<compile_context>
chip_gen: v7x
topology: tpu7x:2x2x1
jax: 0.10.0
libtpu: 0.0.40
codegen_flags: <defaults>
</compile_context>

<pallas_src>
import functools

import jax
import jax.numpy as jnp
from jax import lax
from jax.experimental import pallas as pl
from jax.experimental.pallas import tpu as pltpu


# ----------------------------------------------------------------------------
# small helpers
# ----------------------------------------------------------------------------
def _round_up(a, m):
    return (a + m - 1) // m * m


def _tpu_info():
    """(vmem_capacity_bytes, is_v6_or_newer), with conservative fallbacks."""
    vmem = 64 * 1024 * 1024          # v7x-sized fallback (safe everywhere)
    try:
        vmem = int(pltpu.get_tpu_info().vmem_capacity_bytes)
    except Exception:
        pass
    newgen = False
    try:
        kind = jax.devices()[0].device_kind.lower()
        newgen = not any(t in kind for t in ("v2", "v3", "v4", "v5"))
    except Exception:
        pass
    return vmem, newgen


def conv2d_nchw(x, w, b, stride, padding, dilation):
    """Plain NCHW conv (XLA) for the zero-init offset / modulator convs."""
    out = lax.conv_general_dilated(
        x, w,
        window_strides=stride,
        padding=[(padding, padding), (padding, padding)],
        rhs_dilation=(dilation, dilation),
        dimension_numbers=("NCHW", "OIHW", "NCHW"))
    if b is not None:
        out = out + b[None, :, None, None]
    return out


# ----------------------------------------------------------------------------
# Pallas kernels
# ----------------------------------------------------------------------------
def _deform_kernel_separable(x_ref, pck_ref, w_ref, o_ref, samp_ref, *,
                             G, Kc, C_pad, C_chunk, KK, mul_dtype):
    """Separable bilinear gather.

    x_ref   : (1, C_pad*G, Kc)  bf16  feature map (row = c*G + g), resident over P tiles
    pck_ref : (1, KK, 3, P_t)   f32   per-tap rows: [coord_K, coord_G, modulator]
    w_ref   : (C_out, KK*C_pad) bf16  conv weight, column = k*C_pad + c
    o_ref   : (1, C_out, P_t)   f32
    samp_ref: (KK, C_pad, P_t)  bf16  VMEM scratch with all tap samples
    """
    P_t = pck_ref.shape[-1]
    k_iota = lax.broadcasted_iota(jnp.int32, (Kc, P_t), 0).astype(jnp.float32)
    g_iota = lax.broadcasted_iota(jnp.int32, (G, P_t), 0).astype(jnp.float32)

    def tap(k, carry):
        row = pck_ref[0, k]                       # (3, P_t)
        ck = row[0:1, :]                          # coord along MXU-contracted dim
        cg = row[1:2, :]                          # coord along VPU-reduced dim
        m = row[2:3, :]                           # modulator (2*sigmoid done host-side)
        # "Tent" bilinear factors: relu(1 - |i - coord|).  Out-of-range coords
        # (including the -2.0 of padded output columns and zero-padded spatial
        # rows/cols of x) contribute zero -> torchvision zero-padding rule.
        c_fac = jnp.maximum(1.0 - jnp.abs(k_iota - ck), 0.0).astype(jnp.bfloat16)
        r_fac = (jnp.maximum(1.0 - jnp.abs(g_iota - cg), 0.0) * m).astype(mul_dtype)

        # Channel-chunked gather: caps the live f32 temp at (C_chunk*G, P_t).
        for c0 in range(0, C_pad, C_chunk):
            cc = min(C_chunk, C_pad - c0)
            xs = x_ref[0, c0 * G:(c0 + cc) * G, :]                  # (cc*G, Kc) bf16
            t = jnp.dot(xs, c_fac, preferred_element_type=jnp.float32)
            t = t.reshape(cc, G, P_t).astype(mul_dtype)             # G % 8 == 0 (padded)
            samp = jnp.sum(t * r_fac[None, :, :], axis=1)           # (cc, P_t)
            samp_ref[k, c0:c0 + cc, :] = samp.astype(jnp.bfloat16)
        return carry

    lax.fori_loop(0, KK, tap, 0, unroll=True)

    # Single fused weight contraction over all taps.
    s = samp_ref[...].reshape(KK * C_pad, P_t)                       # C_pad % 16 == 0
    o_ref[0] = jnp.dot(w_ref[...], s,
                       preferred_element_type=jnp.float32).astype(o_ref.dtype)


def _deform_kernel_dense(x_ref, pck_ref, w_ref, o_ref, samp_ref, *,
                         G, Kc, C_pad, KK):
    """Dense (H*W-contraction) gather: one full-K MXU matmul per tap.

    x_ref   : (1, C_pad, G*Kc)  bf16
    others  : as in the separable kernel.
    """
    P_t = pck_ref.shape[-1]
    k_iota = lax.broadcasted_iota(jnp.int32, (Kc, P_t), 0).astype(jnp.float32)
    g_iota = lax.broadcasted_iota(jnp.int32, (G, P_t), 0).astype(jnp.float32)

    def tap(k, carry):
        row = pck_ref[0, k]
        ck = row[0:1, :]
        cg = row[1:2, :]
        m = row[2:3, :]
        c_fac = jnp.maximum(1.0 - jnp.abs(k_iota - ck), 0.0)         # (Kc, P_t)
        r_fac = jnp.maximum(1.0 - jnp.abs(g_iota - cg), 0.0) * m     # (G, P_t)
        gmat = (r_fac[:, None, :] * c_fac[None, :, :]).reshape(G * Kc, P_t)
        samp = jnp.dot(x_ref[0], gmat.astype(jnp.bfloat16),
                       preferred_element_type=jnp.float32)           # (C_pad, P_t)
        samp_ref[k, :, :] = samp.astype(jnp.bfloat16)
        return carry

    lax.fori_loop(0, KK, tap, 0, unroll=True)

    s = samp_ref[...].reshape(KK * C_pad, P_t)
    o_ref[0] = jnp.dot(w_ref[...], s,
                       preferred_element_type=jnp.float32).astype(o_ref.dtype)


# ----------------------------------------------------------------------------
# host wrapper
# ----------------------------------------------------------------------------
def deform_conv2d_pallas(x, offset, mask, weight, stride, padding, dilation,
                         variant=None, p_tile=None, chunk_bytes=2 * 1024 * 1024):
    """x:(N,C,H,W), offset:(N,2*KK,Ho,Wo), mask:(N,KK,Ho,Wo) (already 2*sigmoid),
    weight:(C_out,C_in,Kh,Kw).  Returns (N,C_out,Ho,Wo) f32."""
    N, C_in, H, W = x.shape
    C_out, _, Kh, Kw = weight.shape
    _, _, Ho, Wo = offset.shape
    KK = Kh * Kw
    P = Ho * Wo

    vmem_total, newgen = _tpu_info()
    # Re-derived per generation: ~38 MiB on 64-MiB-VMEM chips (v7x), 64 MiB on
    # 128-MiB chips (v5e/v6e).
    vmem_limit = min(64 * 1024 * 1024, vmem_total * 3 // 5)
    max_tile = 1024 if vmem_total >= 100 * 1024 * 1024 else 512

    # Output-pixel tile: lane-dense multiple of 128 that minimizes padded work.
    if p_tile is None:
        best = None
        cand = 128
        while cand <= max(128, max_tile):
            padded = _round_up(P, cand)
            if best is None or padded < best[0] or (padded == best[0] and cand > best[1]):
                best = (padded, cand)
            cand += 128
        P_t = best[1]
    else:
        P_t = p_tile
    n_pt = pl.cdiv(P, P_t)
    P_pad = n_pt * P_t

    # Dense (H*W-contraction) gather only pays off on the 256-deep MXUs
    # (v6e / v7x) once C_in is at least as large as the spatial dims.
    if variant is None:
        variant = "dense" if (newgen and C_in >= max(H, W)) else "separable"

    C_pad = _round_up(C_in, 16)   # whole bf16 (16,128) tiles per tap in the scratch

    # Feature-map layout (bf16).  Separable: contract the LARGER spatial dim on
    # the MXU; both spatial dims padded to multiples of 8 (zero rows/cols are
    # never sampled with nonzero weight into real outputs, see tent factors).
    if variant == "separable":
        contract_w = W >= H
        if contract_w:
            xs, G_real, Kc_real = x, H, W
        else:
            xs, G_real, Kc_real = jnp.transpose(x, (0, 1, 3, 2)), W, H
        G = _round_up(G_real, 8)
        Kc = _round_up(Kc_real, 8)
        xs = jnp.pad(xs.astype(jnp.bfloat16),
                     ((0, 0), (0, C_pad - C_in), (0, G - G_real), (0, Kc - Kc_real)))
        x_in = xs.reshape(N, C_pad * G, Kc)
    else:
        contract_w = True
        G_real, Kc_real = H, W
        G = _round_up(H, 8)
        Kc = _round_up(W, 8)
        xs = jnp.pad(x.astype(jnp.bfloat16),
                     ((0, 0), (0, C_pad - C_in), (0, G - H), (0, Kc - W)))
        x_in = xs.reshape(N, C_pad, G * Kc)
    x_rows, x_cols = x_in.shape[1], x_in.shape[2]

    # Absolute fractional sample coordinates: base grid + tap displacement
    # folded into the learned offsets host-side (no per-tap adds in-kernel).
    off = offset.reshape(N, KK, 2, P).astype(jnp.float32)
    base_y = jnp.repeat(jnp.arange(Ho, dtype=jnp.float32), Wo) * float(stride[0]) - float(padding)
    base_x = jnp.tile(jnp.arange(Wo, dtype=jnp.float32), Ho) * float(stride[1]) - float(padding)
    ky = ((jnp.arange(KK) // Kw) * dilation).astype(jnp.float32)
    kx = ((jnp.arange(KK) % Kw) * dilation).astype(jnp.float32)
    abs_y = off[:, :, 0, :] + base_y[None, None, :] + ky[None, :, None]
    abs_x = off[:, :, 1, :] + base_x[None, None, :] + kx[None, :, None]
    coord_k, coord_g = (abs_x, abs_y) if contract_w else (abs_y, abs_x)
    m = mask.reshape(N, KK, P).astype(jnp.float32)
    pck = jnp.stack([coord_k, coord_g, m], axis=2)                  # (N, KK, 3, P)
    if P_pad != P:
        # coords of -2.0 are >= 1 away from every in-range index -> zero factors
        pck = jnp.pad(pck, ((0, 0), (0, 0), (0, 0), (0, P_pad - P)),
                      constant_values=-2.0)

    # Weight laid out so ONE (C_out, KK*C_pad) matmul covers all taps
    # (column = (i*Kw + j)*C_pad + c, padded channels are zero).
    w_r = jnp.transpose(weight, (0, 2, 3, 1))
    w_r = jnp.pad(w_r, ((0, 0), (0, 0), (0, 0), (0, C_pad - C_in)))
    w_in = w_r.reshape(C_out, KK * C_pad).astype(jnp.bfloat16)

    # Channel chunk (separable path): bound the (cc*G, P_t) f32 gather temp.
    ch = chunk_bytes // (G * P_t * 4)
    C_chunk = int(min(C_pad, max(16, (ch // 16) * 16)))

    if variant == "separable":
        kern = functools.partial(
            _deform_kernel_separable, G=G, Kc=Kc, C_pad=C_pad, C_chunk=C_chunk,
            KK=KK, mul_dtype=(jnp.bfloat16 if newgen else jnp.float32))
    else:
        kern = functools.partial(_deform_kernel_dense, G=G, Kc=Kc,
                                 C_pad=C_pad, KK=KK)

    flops = 2 * N * P_pad * KK * C_pad * (G * Kc + C_out)
    bytes_acc = (N * x_rows * x_cols * 2 + N * KK * 3 * P_pad * 4 +
                 C_out * KK * C_pad * 2 + N * C_out * P_pad * 4)

    # TODO(synk): on v7x, stage x once per batch element via a manual DMA (or
    # pipeline_mode=pl.Buffered(1)) so the resident feature map is not
    # double-buffered; kept on the plain BlockSpec path here for portability.
    out = pl.pallas_call(
        kern,
        out_shape=jax.ShapeDtypeStruct((N, C_out, P_pad), jnp.float32),
        grid=(N, n_pt),
        in_specs=[
            # feature map: block index constant over the P-tile axis -> resident
            pl.BlockSpec((1, x_rows, x_cols), lambda n, t: (n, 0, 0)),
            pl.BlockSpec((1, KK, 3, P_t), lambda n, t: (n, 0, 0, t)),
            pl.BlockSpec((C_out, KK * C_pad), lambda n, t: (0, 0)),
        ],
        out_specs=pl.BlockSpec((1, C_out, P_t), lambda n, t: (n, 0, t)),
        scratch_shapes=[pltpu.VMEM((KK, C_pad, P_t), jnp.bfloat16)],
        compiler_params=pltpu.CompilerParams(
            dimension_semantics=("parallel", "parallel"),
            vmem_limit_bytes=int(vmem_limit)),
        cost_estimate=pl.CostEstimate(flops=int(flops), transcendentals=0,
                                      bytes_accessed=int(bytes_acc)),
    )(x_in, pck, w_in)

    return out[:, :, :P].reshape(N, C_out, Ho, Wo)


# ----------------------------------------------------------------------------
# pure-JAX reference (for testing the non-trivial bilinear / boundary path)
# ----------------------------------------------------------------------------
def deform_conv2d_ref(x, offset, mask, weight, stride, padding, dilation):
    N, C, H, W = x.shape
    C_out, _, Kh, Kw = weight.shape
    _, _, Ho, Wo = offset.shape
    KK = Kh * Kw
    off = offset.reshape(N, KK, 2, Ho, Wo).astype(jnp.float32)
    base_y = jnp.arange(Ho, dtype=jnp.float32)[:, None] * stride[0] - padding
    base_x = jnp.arange(Wo, dtype=jnp.float32)[None, :] * stride[1] - padding
    ky = ((jnp.arange(KK) // Kw) * dilation).astype(jnp.float32)
    kx = ((jnp.arange(KK) % Kw) * dilation).astype(jnp.float32)
    py = off[:, :, 0] + base_y[None, None] + ky[None, :, None, None]
    px = off[:, :, 1] + base_x[None, None] + kx[None, :, None, None]

    def sample_b(xb, pyb, pxb):
        y0 = jnp.floor(pyb)
        x0 = jnp.floor(pxb)
        ly = pyb - y0
        lx = pxb - x0

        def corner(yi, xi, wgt):
            valid = ((yi >= 0) & (yi < H) & (xi >= 0) & (xi < W)).astype(xb.dtype)
            yc = jnp.clip(yi, 0, H - 1).astype(jnp.int32)
            xc = jnp.clip(xi, 0, W - 1).astype(jnp.int32)
            return xb[:, yc, xc] * (wgt * valid)[None]

        return (corner(y0, x0, (1 - ly) * (1 - lx)) +
                corner(y0, x0 + 1, (1 - ly) * lx) +
                corner(y0 + 1, x0, ly * (1 - lx)) +
                corner(y0 + 1, x0 + 1, ly * lx))

    vals = jax.vmap(sample_b)(x, py, px)                  # (N, C, KK, Ho, Wo)
    vals = vals * mask[:, None].astype(x.dtype)
    w2 = weight.reshape(C_out, C, KK)
    return jnp.einsum("nckhw,ock->nohw", vals, w2)


# ----------------------------------------------------------------------------
# Module wrapper mirroring the PyTorch DeformableConv2d (forward only)
# ----------------------------------------------------------------------------
class DeformableConv2d:
    def __init__(self, key, offset_in_channels, modulator_in_channels,
                 in_channels, out_channels, kernel_size=3, stride=1,
                 padding=1, dilation=1, bias=False):
        kernel_size = kernel_size if isinstance(kernel_size, tuple) else (kernel_size, kernel_size)
        self.kernel_size = kernel_size
        self.stride = stride if isinstance(stride, tuple) else (stride, stride)
        self.padding = padding
        self.dilation = dilation
        kh, kw = kernel_size

        # offset_conv / modulator_conv are zero-initialized per the reference __init__
        self.offset_w = jnp.zeros((2 * kh * kw, offset_in_channels, kh, kw), jnp.float32)
        self.offset_b = jnp.zeros((2 * kh * kw,), jnp.float32)
        self.mod_w = jnp.zeros((kh * kw, modulator_in_channels, kh, kw), jnp.float32)
        self.mod_b = jnp.zeros((kh * kw,), jnp.float32)

        # regular_conv: deterministic PyTorch-default-style (kaiming-uniform) init
        fan_in = in_channels * kh * kw
        bound = 1.0 / (fan_in ** 0.5)
        kw_key, kb_key = jax.random.split(key)
        self.reg_w = jax.random.uniform(kw_key, (out_channels, in_channels, kh, kw),
                                        jnp.float32, -bound, bound)
        self.reg_b = (jax.random.uniform(kb_key, (out_channels,), jnp.float32, -bound, bound)
                      if bias else None)

    def __call__(self, x, offset_map, modulator_map):
        offset = conv2d_nchw(offset_map, self.offset_w, self.offset_b,
                             self.stride, self.padding, self.dilation)
        # mask = 2*sigmoid(modulator_conv(...)) — torchvision's `mask` argument
        mask = 2.0 * jax.nn.sigmoid(
            conv2d_nchw(modulator_map, self.mod_w, self.mod_b,
                        self.stride, self.padding, self.dilation))
        out = deform_conv2d_pallas(x, offset, mask, self.reg_w,
                                   self.stride, self.padding, self.dilation)
        if self.reg_b is not None:
            out = out + self.reg_b[None, :, None, None]
        return out


if __name__ == "__main__":
    key = jax.random.PRNGKey(0)
    ks = jax.random.split(key, 12)

    # --- Test 1: module forward; zero-init offset/modulator convs =>
    #             must reduce exactly to a regular 3x3 conv (bf16-rounded ops).
    N, C, Hs, Ws, C_out = 2, 4, 16, 16, 8
    x = jax.random.normal(ks[0], (N, C, Hs, Ws), jnp.float32)
    offset_map = jax.random.normal(ks[1], (N, C, Hs, Ws), jnp.float32)
    modulator_map = jax.random.normal(ks[2], (N, C, Hs, Ws), jnp.float32)
    module = DeformableConv2d(ks[3], C, C, C, C_out, kernel_size=3, stride=1,
                              padding=1, dilation=1, bias=False)
    out = jax.block_until_ready(module(x, offset_map, modulator_map))
    x_bf = x.astype(jnp.bfloat16).astype(jnp.float32)
    w_bf = module.reg_w.astype(jnp.bfloat16).astype(jnp.float32)
    ref1 = conv2d_nchw(x_bf, w_bf, None, (1, 1), 1, 1)
    assert out.shape == (N, C_out, Hs, Ws)
    err1 = float(jnp.max(jnp.abs(out - ref1)))
    assert err1 < 2e-3, f"zero-offset check failed: {err1}"

    # --- Test 2: non-zero offsets + modulation, separable path vs JAX reference
    w2 = jax.random.uniform(ks[4], (C_out, C, 3, 3), jnp.float32, -0.25, 0.25)
    w2_bf = w2.astype(jnp.bfloat16).astype(jnp.float32)
    offs2 = 1.5 * jax.random.normal(ks[5], (N, 18, Hs, Ws), jnp.float32)
    mask2 = 2.0 * jax.nn.sigmoid(jax.random.normal(ks[6], (N, 9, Hs, Ws), jnp.float32))
    out2 = jax.block_until_ready(
        deform_conv2d_pallas(x, offs2, mask2, w2, (1, 1), 1, 1, variant="separable"))
    ref2 = deform_conv2d_ref(x_bf, offs2, mask2, w2_bf, (1, 1), 1, 1)
    err2 = float(jnp.max(jnp.abs(out2 - ref2)))
    tol2 = 2.5e-2 * max(1.0, float(jnp.max(jnp.abs(ref2))))
    assert err2 < tol2, f"separable bilinear check failed: {err2} vs {tol2}"

    # --- Test 3: dense (H*W-contraction) path on the same data
    out3 = jax.block_until_ready(
        deform_conv2d_pallas(x, offs2, mask2, w2, (1, 1), 1, 1, variant="dense"))
    err3 = float(jnp.max(jnp.abs(out3 - ref2)))
    assert err3 < tol2, f"dense bilinear check failed: {err3} vs {tol2}"

    # --- Test 4: stride/dilation/padding, H > W (contract-H layout), C_in not a
    #             multiple of 16, and a forced multi-chunk channel loop.
    N4, C4, H4, W4, Co4 = 1, 24, 20, 12, 16
    st4, pd4, dl4 = (2, 2), 2, 2
    Ho4 = (H4 + 2 * pd4 - dl4 * 2 - 1) // st4[0] + 1
    Wo4 = (W4 + 2 * pd4 - dl4 * 2 - 1) // st4[1] + 1
    x4 = jax.random.normal(ks[7], (N4, C4, H4, W4), jnp.float32)
    w4 = jax.random.uniform(ks[8], (Co4, C4, 3, 3), jnp.float32, -0.15, 0.15)
    offs4 = 1.5 * jax.random.normal(ks[9], (N4, 18, Ho4, Wo4), jnp.float32)
    mask4 = 2.0 * jax.nn.sigmoid(jax.random.normal(ks[10], (N4, 9, Ho4, Wo4), jnp.float32))
    out4 = jax.block_until_ready(
        deform_conv2d_pallas(x4, offs4, mask4, w4, st4, pd4, dl4,
                             variant="separable", chunk_bytes=16 * 1024))
    x4_bf = x4.astype(jnp.bfloat16).astype(jnp.float32)
    w4_bf = w4.astype(jnp.bfloat16).astype(jnp.float32)
    ref4 = deform_conv2d_ref(x4_bf, offs4, mask4, w4_bf, st4, pd4, dl4)
    err4 = float(jnp.max(jnp.abs(out4 - ref4)))
    tol4 = 2.5e-2 * max(1.0, float(jnp.max(jnp.abs(ref4))))
    assert out4.shape == (N4, Co4, Ho4, Wo4)
    assert err4 < tol4, f"strided/dilated check failed: {err4} vs {tol4}"

    print("KERNEL_OK")
</pallas_src>

<mosaic_0001>
module attributes {stable_mosaic.version = 11 : i64} {
  func.func @_deform_kernel_separable(%arg0: i32, %arg1: i32, %arg2: memref<1x256x16xbf16, #tpu.memory_space<vmem>>, %arg3: memref<1x9x3x256xf32, #tpu.memory_space<vmem>>, %arg4: memref<8x144xbf16, #tpu.memory_space<vmem>>, %arg5: memref<1x8x256xf32, #tpu.memory_space<vmem>>, %arg6: memref<9x16x256xbf16, #tpu.memory_space<vmem>>) attributes {dimension_semantics = [#tpu.dimension_semantics<parallel>, #tpu.dimension_semantics<parallel>], iteration_bounds = array<i64: 2, 1>, scalar_prefetch = 0 : i64, scratch_operands = 1 : i64, tpu.core_type = #tpu.core_type<tc>, window_params = [{transform_indices = @transform_0, window_bounds = array<i64: 1, 256, 16>}, {transform_indices = @transform_1, window_bounds = array<i64: 1, 9, 3, 256>}, {pipeline_mode = #tpu.pipeline_mode<synchronous>, transform_indices = @transform_2, window_bounds = array<i64: 8, 144>}, {transform_indices = @transform_3, window_bounds = array<i64: 1, 8, 256>}]} {
    %0 = tpu.iota {dimensions = array<i32: 0>} : vector<16x256xi32>
    %1 = arith.sitofp %0 : vector<16x256xi32> to vector<16x256xf32>
    %2 = tpu.iota {dimensions = array<i32: 0>} : vector<16x256xi32>
    %3 = arith.sitofp %2 : vector<16x256xi32> to vector<16x256xf32>
    %c0_i32 = arith.constant 0 : i32
    %c0 = arith.constant 0 : index
    %4 = arith.index_cast %c0_i32 : i32 to index
    %c0_0 = arith.constant 0 : index
    %c0_1 = arith.constant 0 : index
    %5 = vector.load %arg3[%c0, %4, %c0_0, %c0_1] : memref<1x9x3x256xf32, #tpu.memory_space<vmem>>, vector<1x1x3x256xf32>
    %6 = vector.shape_cast %5 : vector<1x1x3x256xf32> to vector<3x256xf32>
    %7 = vector.extract_strided_slice %6 {offsets = [0, 0], sizes = [1, 256], strides = [1, 1]} : vector<3x256xf32> to vector<1x256xf32>
    %8 = vector.extract_strided_slice %6 {offsets = [1, 0], sizes = [1, 256], strides = [1, 1]} : vector<3x256xf32> to vector<1x256xf32>
    %9 = vector.extract_strided_slice %6 {offsets = [2, 0], sizes = [1, 256], strides = [1, 1]} : vector<3x256xf32> to vector<1x256xf32>
    %10 = vector.broadcast %7 : vector<1x256xf32> to vector<16x256xf32>
    %11 = arith.subf %1, %10 : vector<16x256xf32>
    %12 = math.absf %11 : vector<16x256xf32>
    %cst = arith.constant 1.000000e+00 : f32
    %13 = vector.broadcast %cst : f32 to vector<16x256xf32>
    %14 = arith.subf %13, %12 : vector<16x256xf32>
    %cst_2 = arith.constant 0.000000e+00 : f32
    %15 = vector.broadcast %cst_2 : f32 to vector<16x256xf32>
    %16 = arith.maximumf %14, %15 : vector<16x256xf32>
    %17 = arith.truncf %16 : vector<16x256xf32> to vector<16x256xbf16>
    %18 = vector.broadcast %8 : vector<1x256xf32> to vector<16x256xf32>
    %19 = arith.subf %3, %18 : vector<16x256xf32>
    %20 = math.absf %19 : vector<16x256xf32>
    %cst_3 = arith.constant 1.000000e+00 : f32
    %21 = vector.broadcast %cst_3 : f32 to vector<16x256xf32>
    %22 = arith.subf %21, %20 : vector<16x256xf32>
    %cst_4 = arith.constant 0.000000e+00 : f32
    %23 = vector.broadcast %cst_4 : f32 to vector<16x256xf32>
    %24 = arith.maximumf %22, %23 : vector<16x256xf32>
    %25 = vector.broadcast %9 : vector<1x256xf32> to vector<16x256xf32>
    %26 = arith.mulf %24, %25 : vector<16x256xf32>
    %27 = arith.truncf %26 : vector<16x256xf32> to vector<16x256xbf16>
    %c0_5 = arith.constant 0 : index
    %c0_6 = arith.constant 0 : index
    %c0_7 = arith.constant 0 : index
    %28 = vector.load %arg2[%c0_5, %c0_6, %c0_7] : memref<1x256x16xbf16, #tpu.memory_space<vmem>>, vector<1x256x16xbf16>
    %29 = vector.shape_cast %28 : vector<1x256x16xbf16> to vector<256x16xbf16>
    %cst_8 = arith.constant dense<0.000000e+00> : vector<256x256xf32>
    %30 = tpu.matmul %29, %17, %cst_8 {dimension_numbers = #tpu.dot_dimension_numbers<[1], [0], [0], [1], [0, 0, 1, 1], [], []>} : vector<256x16xbf16>, vector<16x256xbf16>, vector<256x256xf32> -> vector<256x256xf32>
    %31 = vector.shape_cast %30 : vector<256x256xf32> to vector<16x16x256xf32>
    %32 = arith.truncf %31 : vector<16x16x256xf32> to vector<16x16x256xbf16>
    %33 = vector.shape_cast %27 : vector<16x256xbf16> to vector<1x16x256xbf16>
    %34 = vector.broadcast %33 : vector<1x16x256xbf16> to vector<16x16x256xbf16>
    %35 = arith.mulf %32, %34 : vector<16x16x256xbf16>
    %36 = arith.extf %35 : vector<16x16x256xbf16> to vector<16x16x256xf32>
    %cst_9 = arith.constant dense<0.000000e+00> : vector<16x256xf32>
    %37 = vector.multi_reduction <add>, %36, %cst_9 [1] : vector<16x16x256xf32> to vector<16x256xf32>
    %38 = arith.truncf %37 : vector<16x256xf32> to vector<16x256xbf16>
    %39 = arith.index_cast %c0_i32 : i32 to index
    %c0_10 = arith.constant 0 : index
    %c0_11 = arith.constant 0 : index
    %40 = vector.load %arg6[%39, %c0_10, %c0_11] : memref<9x16x256xbf16, #tpu.memory_space<vmem>>, vector<1x16x256xbf16>
    %41 = vector.shape_cast %40 : vector<1x16x256xbf16> to vector<16x256xbf16>
    %42 = vector.shape_cast %38 : vector<16x256xbf16> to vector<1x16x256xbf16>
    tpu.vector_store %arg6[%39, %c0_10, %c0_11], %42 {strides = array<i32>} : memref<9x16x256xbf16, #tpu.memory_space<vmem>>, vector<1x16x256xbf16>,
    %c1_i32 = arith.constant 1 : i32
    %c0_12 = arith.constant 0 : index
    %43 = arith.index_cast %c1_i32 : i32 to index
    %c0_13 = arith.constant 0 : index
    %c0_14 = arith.constant 0 : index
    %44 = vector.load %arg3[%c0_12, %43, %c0_13, %c0_14] : memref<1x9x3x256xf32, #tpu.memory_space<vmem>>, vector<1x1x3x256xf32>
    %45 = vector.shape_cast %44 : vector<1x1x3x256xf32> to vector<3x256xf32>
    %46 = vector.extract_strided_slice %45 {offsets = [0, 0], sizes = [1, 256], strides = [1, 1]} : vector<3x256xf32> to vector<1x256xf32>
    %47 = vector.extract_strided_slice %45 {offsets = [1, 0], sizes = [1, 256], strides = [1, 1]} : vector<3x256xf32> to vector<1x256xf32>
    %48 = vector.extract_strided_slice %45 {offsets = [2, 0], sizes = [1, 256], strides = [1, 1]} : vector<3x256xf32> to vector<1x256xf32>
    %49 = vector.broadcast %46 : vector<1x256xf32> to vector<16x256xf32>
    %50 = arith.subf %1, %49 : vector<16x256xf32>
    %51 = math.absf %50 : vector<16x256xf32>
    %cst_15 = arith.constant 1.000000e+00 : f32
    %52 = vector.broadcast %cst_15 : f32 to vector<16x256xf32>
    %53 = arith.subf %52, %51 : vector<16x256xf32>
    %cst_16 = arith.constant 0.000000e+00 : f32
    %54 = vector.broadcast %cst_16 : f32 to vector<16x256xf32>
    %55 = arith.maximumf %53, %54 : vector<16x256xf32>
    %56 = arith.truncf %55 : vector<16x256xf32> to vector<16x256xbf16>
    %57 = vector.broadcast %47 : vector<1x256xf32> to vector<16x256xf32>
    %58 = arith.subf %3, %57 : vector<16x256xf32>
    %59 = math.absf %58 : vector<16x256xf32>
    %cst_17 = arith.constant 1.000000e+00 : f32
    %60 = vector.broadcast %cst_17 : f32 to vector<16x256xf32>
    %61 = arith.subf %60, %59 : vector<16x256xf32>
    %cst_18 = arith.constant 0.000000e+00 : f32
    %62 = vector.broadcast %cst_18 : f32 to vector<16x256xf32>
    %63 = arith.maximumf %61, %62 : vector<16x256xf32>
    %64 = vector.broadcast %48 : vector<1x256xf32> to vector<16x256xf32>
    %65 = arith.mulf %63, %64 : vector<16x256xf32>
    %66 = arith.truncf %65 : vector<16x256xf32> to vector<16x256xbf16>
    %c0_19 = arith.constant 0 : index
    %c0_20 = arith.constant 0 : index
    %c0_21 = arith.constant 0 : index
    %67 = vector.load %arg2[%c0_19, %c0_20, %c0_21] : memref<1x256x16xbf16, #tpu.memory_space<vmem>>, vector<1x256x16xbf16>
    %68 = vector.shape_cast %67 : vector<1x256x16xbf16> to vector<256x16xbf16>
    %cst_22 = arith.constant dense<0.000000e+00> : vector<256x256xf32>
    %69 = tpu.matmul %68, %56, %cst_22 {dimension_numbers = #tpu.dot_dimension_numbers<[1], [0], [0], [1], [0, 0, 1, 1], [], []>} : vector<256x16xbf16>, vector<16x256xbf16>, vector<256x256xf32> -> vector<256x256xf32>
    %70 = vector.shape_cast %69 : vector<256x256xf32> to vector<16x16x256xf32>
    %71 = arith.truncf %70 : vector<16x16x256xf32> to vector<16x16x256xbf16>
    %72 = vector.shape_cast %66 : vector<16x256xbf16> to vector<1x16x256xbf16>
    %73 = vector.broadcast %72 : vector<1x16x256xbf16> to vector<16x16x256xbf16>
    %74 = arith.mulf %71, %73 : vector<16x16x256xbf16>
    %75 = arith.extf %74 : vector<16x16x256xbf16> to vector<16x16x256xf32>
    %cst_23 = arith.constant dense<0.000000e+00> : vector<16x256xf32>
    %76 = vector.multi_reduction <add>, %75, %cst_23 [1] : vector<16x16x256xf32> to vector<16x256xf32>
    %77 = arith.truncf %76 : vector<16x256xf32> to vector<16x256xbf16>
    %78 = arith.index_cast %c1_i32 : i32 to index
    %c0_24 = arith.constant 0 : index
    %c0_25 = arith.constant 0 : index
    %79 = vector.load %arg6[%78, %c0_24, %c0_25] : memref<9x16x256xbf16, #tpu.memory_space<vmem>>, vector<1x16x256xbf16>
    %80 = vector.shape_cast %79 : vector<1x16x256xbf16> to vector<16x256xbf16>
    %81 = vector.shape_cast %77 : vector<16x256xbf16> to vector<1x16x256xbf16>
    tpu.vector_store %arg6[%78, %c0_24, %c0_25], %81 {strides = array<i32>} : memref<9x16x256xbf16, #tpu.memory_space<vmem>>, vector<1x16x256xbf16>,
    %c2_i32 = arith.constant 2 : i32
    %c0_26 = arith.constant 0 : index
    %82 = arith.index_cast %c2_i32 : i32 to index
    %c0_27 = arith.constant 0 : index
    %c0_28 = arith.constant 0 : index
    %83 = vector.load %arg3[%c0_26, %82, %c0_27, %c0_28] : memref<1x9x3x256xf32, #tpu.memory_space<vmem>>, vector<1x1x3x256xf32>
    %84 = vector.shape_cast %83 : vector<1x1x3x256xf32> to vector<3x256xf32>
    %85 = vector.extract_strided_slice %84 {offsets = [0, 0], sizes = [1, 256], strides = [1, 1]} : vector<3x256xf32> to vector<1x256xf32>
    %86 = vector.extract_strided_slice %84 {offsets = [1, 0], sizes = [1, 256], strides = [1, 1]} : vector<3x256xf32> to vector<1x256xf32>
    %87 = vector.extract_strided_slice %84 {offsets = [2, 0], sizes = [1, 256], strides = [1, 1]} : vector<3x256xf32> to vector<1x256xf32>
    %88 = vector.broadcast %85 : vector<1x256xf32> to vector<16x256xf32>
    %89 = arith.subf %1, %88 : vector<16x256xf32>
    %90 = math.absf %89 : vector<16x256xf32>
    %cst_29 = arith.constant 1.000000e+00 : f32
    %91 = vector.broadcast %cst_29 : f32 to vector<16x256xf32>
    %92 = arith.subf %91, %90 : vector<16x256xf32>
    %cst_30 = arith.constant 0.000000e+00 : f32
    %93 = vector.broadcast %cst_30 : f32 to vector<16x256xf32>
    %94 = arith.maximumf %92, %93 : vector<16x256xf32>
    %95 = arith.truncf %94 : vector<16x256xf32> to vector<16x256xbf16>
    %96 = vector.broadcast %86 : vector<1x256xf32> to vector<16x256xf32>
    %97 = arith.subf %3, %96 : vector<16x256xf32>
    %98 = math.absf %97 : vector<16x256xf32>
    %cst_31 = arith.constant 1.000000e+00 : f32
    %99 = vector.broadcast %cst_31 : f32 to vector<16x256xf32>
    %100 = arith.subf %99, %98 : vector<16x256xf32>
    %cst_32 = arith.constant 0.000000e+00 : f32
    %101 = vector.broadcast %cst_32 : f32 to vector<16x256xf32>
    %102 = arith.maximumf %100, %101 : vector<16x256xf32>
    %103 = vector.broadcast %87 : vector<1x256xf32> to vector<16x256xf32>
    %104 = arith.mulf %102, %103 : vector<16x256xf32>
    %105 = arith.truncf %104 : vector<16x256xf32> to vector<16x256xbf16>
    %c0_33 = arith.constant 0 : index
    %c0_34 = arith.constant 0 : index
    %c0_35 = arith.constant 0 : index
    %106 = vector.load %arg2[%c0_33, %c0_34, %c0_35] : memref<1x256x16xbf16, #tpu.memory_space<vmem>>, vector<1x256x16xbf16>
    %107 = vector.shape_cast %106 : vector<1x256x16xbf16> to vector<256x16xbf16>
    %cst_36 = arith.constant dense<0.000000e+00> : vector<256x256xf32>
    %108 = tpu.matmul %107, %95, %cst_36 {dimension_numbers = #tpu.dot_dimension_numbers<[1], [0], [0], [1], [0, 0, 1, 1], [], []>} : vector<256x16xbf16>, vector<16x256xbf16>, vector<256x256xf32> -> vector<256x256xf32>
    %109 = vector.shape_cast %108 : vector<256x256xf32> to vector<16x16x256xf32>
    %110 = arith.truncf %109 : vector<16x16x256xf32> to vector<16x16x256xbf16>
    %111 = vector.shape_cast %105 : vector<16x256xbf16> to vector<1x16x256xbf16>
    %112 = vector.broadcast %111 : vector<1x16x256xbf16> to vector<16x16x256xbf16>
    %113 = arith.mulf %110, %112 : vector<16x16x256xbf16>
    %114 = arith.extf %113 : vector<16x16x256xbf16> to vector<16x16x256xf32>
    %cst_37 = arith.constant dense<0.000000e+00> : vector<16x256xf32>
    %115 = vector.multi_reduction <add>, %114, %cst_37 [1] : vector<16x16x256xf32> to vector<16x256xf32>
    %116 = arith.truncf %115 : vector<16x256xf32> to vector<16x256xbf16>
    %117 = arith.index_cast %c2_i32 : i32 to index
    %c0_38 = arith.constant 0 : index
    %c0_39 = arith.constant 0 : index
    %118 = vector.load %arg6[%117, %c0_38, %c0_39] : memref<9x16x256xbf16, #tpu.memory_space<vmem>>, vector<1x16x256xbf16>
    %119 = vector.shape_cast %118 : vector<1x16x256xbf16> to vector<16x256xbf16>
    %120 = vector.shape_cast %116 : vector<16x256xbf16> to vector<1x16x256xbf16>
    tpu.vector_store %arg6[%117, %c0_38, %c0_39], %120 {strides = array<i32>} : memref<9x16x256xbf16, #tpu.memory_space<vmem>>, vector<1x16x256xbf16>,
    %c3_i32 = arith.constant 3 : i32
    %c0_40 = arith.constant 0 : index
    %121 = arith.index_cast %c3_i32 : i32 to index
    %c0_41 = arith.constant 0 : index
    %c0_42 = arith.constant 0 : index
    %122 = vector.load %arg3[%c0_40, %121, %c0_41, %c0_42] : memref<1x9x3x256xf32, #tpu.memory_space<vmem>>, vector<1x1x3x256xf32>
    %123 = vector.shape_cast %122 : vector<1x1x3x256xf32> to vector<3x256xf32>
    %124 = vector.extract_strided_slice %123 {offsets = [0, 0], sizes = [1, 256], strides = [1, 1]} : vector<3x256xf32> to vector<1x256xf32>
    %125 = vector.extract_strided_slice %123 {offsets = [1, 0], sizes = [1, 256], strides = [1, 1]} : vector<3x256xf32> to vector<1x256xf32>
    %126 = vector.extract_strided_slice %123 {offsets = [2, 0], sizes = [1, 256], strides = [1, 1]} : vector<3x256xf32> to vector<1x256xf32>
    %127 = vector.broadcast %124 : vector<1x256xf32> to vector<16x256xf32>
    %128 = arith.subf %1, %127 : vector<16x256xf32>
    %129 = math.absf %128 : vector<16x256xf32>
    %cst_43 = arith.constant 1.000000e+00 : f32
    %130 = vector.broadcast %cst_43 : f32 to vector<16x256xf32>
    %131 = arith.subf %130, %129 : vector<16x256xf32>
    %cst_44 = arith.constant 0.000000e+00 : f32
    %132 = vector.broadcast %cst_44 : f32 to vector<16x256xf32>
    %133 = arith.maximumf %131, %132 : vector<16x256xf32>
    %134 = arith.truncf %133 : vector<16x256xf32> to vector<16x256xbf16>
    %135 = vector.broadcast %125 : vector<1x256xf32> to vector<16x256xf32>
    %136 = arith.subf %3, %135 : vector<16x256xf32>
    %137 = math.absf %136 : vector<16x256xf32>
    %cst_45 = arith.constant 1.000000e+00 : f32
    %138 = vector.broadcast %cst_45 : f32 to vector<16x256xf32>
    %139 = arith.subf %138, %137 : vector<16x256xf32>
    %cst_46 = arith.constant 0.000000e+00 : f32
    %140 = vector.broadcast %cst_46 : f32 to vector<16x256xf32>
    %141 = arith.maximumf %139, %140 : vector<16x256xf32>
    %142 = vector.broadcast %126 : vector<1x256xf32> to vector<16x256xf32>
    %143 = arith.mulf %141, %142 : vector<16x256xf32>
    %144 = arith.truncf %143 : vector<16x256xf32> to vector<16x256xbf16>
    %c0_47 = arith.constant 0 : index
    %c0_48 = arith.constant 0 : index
    %c0_49 = arith.constant 0 : index
    %145 = vector.load %arg2[%c0_47, %c0_48, %c0_49] : memref<1x256x16xbf16, #tpu.memory_space<vmem>>, vector<1x256x16xbf16>
    %146 = vector.shape_cast %145 : vector<1x256x16xbf16> to vector<256x16xbf16>
    %cst_50 = arith.constant dense<0.000000e+00> : vector<256x256xf32>
    %147 = tpu.matmul %146, %134, %cst_50 {dimension_numbers = #tpu.dot_dimension_numbers<[1], [0], [0], [1], [0, 0, 1, 1], [], []>} : vector<256x16xbf16>, vector<16x256xbf16>, vector<256x256xf32> -> vector<256x256xf32>
    %148 = vector.shape_cast %147 : vector<256x256xf32> to vector<16x16x256xf32>
    %149 = arith.truncf %148 : vector<16x16x256xf32> to vector<16x16x256xbf16>
    %150 = vector.shape_cast %144 : vector<16x256xbf16> to vector<1x16x256xbf16>
    %151 = vector.broadcast %150 : vector<1x16x256xbf16> to vector<16x16x256xbf16>
    %152 = arith.mulf %149, %151 : vector<16x16x256xbf16>
    %153 = arith.extf %152 : vector<16x16x256xbf16> to vector<16x16x256xf32>
    %cst_51 = arith.constant dense<0.000000e+00> : vector<16x256xf32>
    %154 = vector.multi_reduction <add>, %153, %cst_51 [1] : vector<16x16x256xf32> to vector<16x256xf32>
    %155 = arith.truncf %154 : vector<16x256xf32> to vector<16x256xbf16>
    %156 = arith.index_cast %c3_i32 : i32 to index
    %c0_52 = arith.constant 0 : index
    %c0_53 = arith.constant 0 : index
    %157 = vector.load %arg6[%156, %c0_52, %c0_53] : memref<9x16x256xbf16, #tpu.memory_space<vmem>>, vector<1x16x256xbf16>
    %158 = vector.shape_cast %157 : vector<1x16x256xbf16> to vector<16x256xbf16>
    %159 = vector.shape_cast %155 : vector<16x256xbf16> to vector<1x16x256xbf16>
    tpu.vector_store %arg6[%156, %c0_52, %c0_53], %159 {strides = array<i32>} : memref<9x16x256xbf16, #tpu.memory_space<vmem>>, vector<1x16x256xbf16>,
    %c4_i32 = arith.constant 4 : i32
    %c0_54 = arith.constant 0 : index
    %160 = arith.index_cast %c4_i32 : i32 to index
    %c0_55 = arith.constant 0 : index
    %c0_56 = arith.constant 0 : index
    %161 = vector.load %arg3[%c0_54, %160, %c0_55, %c0_56] : memref<1x9x3x256xf32, #tpu.memory_space<vmem>>, vector<1x1x3x256xf32>
    %162 = vector.shape_cast %161 : vector<1x1x3x256xf32> to vector<3x256xf32>
    %163 = vector.extract_strided_slice %162 {offsets = [0, 0], sizes = [1, 256], strides = [1, 1]} : vector<3x256xf32> to vector<1x256xf32>
    %164 = vector.extract_strided_slice %162 {offsets = [1, 0], sizes = [1, 256], strides = [1, 1]} : vector<3x256xf32> to vector<1x256xf32>
    %165 = vector.extract_strided_slice %162 {offsets = [2, 0], sizes = [1, 256], strides = [1, 1]} : vector<3x256xf32> to vector<1x256xf32>
    %166 = vector.broadcast %163 : vector<1x256xf32> to vector<16x256xf32>
    %167 = arith.subf %1, %166 : vector<16x256xf32>
    %168 = math.absf %167 : vector<16x256xf32>
    %cst_57 = arith.constant 1.000000e+00 : f32
    %169 = vector.broadcast %cst_57 : f32 to vector<16x256xf32>
    %170 = arith.subf %169, %168 : vector<16x256xf32>
    %cst_58 = arith.constant 0.000000e+00 : f32
    %171 = vector.broadcast %cst_58 : f32 to vector<16x256xf32>
    %172 = arith.maximumf %170, %171 : vector<16x256xf32>
    %173 = arith.truncf %172 : vector<16x256xf32> to vector<16x256xbf16>
    %174 = vector.broadcast %164 : vector<1x256xf32> to vector<16x256xf32>
    %175 = arith.subf %3, %174 : vector<16x256xf32>
    %176 = math.absf %175 : vector<16x256xf32>
    %cst_59 = arith.constant 1.000000e+00 : f32
    %177 = vector.broadcast %cst_59 : f32 to vector<16x256xf32>
    %178 = arith.subf %177, %176 : vector<16x256xf32>
    %cst_60 = arith.constant 0.000000e+00 : f32
    %179 = vector.broadcast %cst_60 : f32 to vector<16x256xf32>
    %180 = arith.maximumf %178, %179 : vector<16x256xf32>
    %181 = vector.broadcast %165 : vector<1x256xf32> to vector<16x256xf32>
    %182 = arith.mulf %180, %181 : vector<16x256xf32>
    %183 = arith.truncf %182 : vector<16x256xf32> to vector<16x256xbf16>
    %c0_61 = arith.constant 0 : index
    %c0_62 = arith.constant 0 : index
    %c0_63 = arith.constant 0 : index
    %184 = vector.load %arg2[%c0_61, %c0_62, %c0_63] : memref<1x256x16xbf16, #tpu.memory_space<vmem>>, vector<1x256x16xbf16>
    %185 = vector.shape_cast %184 : vector<1x256x16xbf16> to vector<256x16xbf16>
    %cst_64 = arith.constant dense<0.000000e+00> : vector<256x256xf32>
    %186 = tpu.matmul %185, %173, %cst_64 {dimension_numbers = #tpu.dot_dimension_numbers<[1], [0], [0], [1], [0, 0, 1, 1], [], []>} : vector<256x16xbf16>, vector<16x256xbf16>, vector<256x256xf32> -> vector<256x256xf32>
    %187 = vector.shape_cast %186 : vector<256x256xf32> to vector<16x16x256xf32>
    %188 = arith.truncf %187 : vector<16x16x256xf32> to vector<16x16x256xbf16>
    %189 = vector.shape_cast %183 : vector<16x256xbf16> to vector<1x16x256xbf16>
    %190 = vector.broadcast %189 : vector<1x16x256xbf16> to vector<16x16x256xbf16>
    %191 = arith.mulf %188, %190 : vector<16x16x256xbf16>
    %192 = arith.extf %191 : vector<16x16x256xbf16> to vector<16x16x256xf32>
    %cst_65 = arith.constant dense<0.000000e+00> : vector<16x256xf32>
    %193 = vector.multi_reduction <add>, %192, %cst_65 [1] : vector<16x16x256xf32> to vector<16x256xf32>
    %194 = arith.truncf %193 : vector<16x256xf32> to vector<16x256xbf16>
    %195 = arith.index_cast %c4_i32 : i32 to index
    %c0_66 = arith.constant 0 : index
    %c0_67 = arith.constant 0 : index
    %196 = vector.load %arg6[%195, %c0_66, %c0_67] : memref<9x16x256xbf16, #tpu.memory_space<vmem>>, vector<1x16x256xbf16>
    %197 = vector.shape_cast %196 : vector<1x16x256xbf16> to vector<16x256xbf16>
    %198 = vector.shape_cast %194 : vector<16x256xbf16> to vector<1x16x256xbf16>
    tpu.vector_store %arg6[%195, %c0_66, %c0_67], %198 {strides = array<i32>} : memref<9x16x256xbf16, #tpu.memory_space<vmem>>, vector<1x16x256xbf16>,
    %c5_i32 = arith.constant 5 : i32
    %c0_68 = arith.constant 0 : index
    %199 = arith.index_cast %c5_i32 : i32 to index
    %c0_69 = arith.constant 0 : index
    %c0_70 = arith.constant 0 : index
    %200 = vector.load %arg3[%c0_68, %199, %c0_69, %c0_70] : memref<1x9x3x256xf32, #tpu.memory_space<vmem>>, vector<1x1x3x256xf32>
    %201 = vector.shape_cast %200 : vector<1x1x3x256xf32> to vector<3x256xf32>
    %202 = vector.extract_strided_slice %201 {offsets = [0, 0], sizes = [1, 256], strides = [1, 1]} : vector<3x256xf32> to vector<1x256xf32>
    %203 = vector.extract_strided_slice %201 {offsets = [1, 0], sizes = [1, 256], strides = [1, 1]} : vector<3x256xf32> to vector<1x256xf32>
    %204 = vector.extract_strided_slice %201 {offsets = [2, 0], sizes = [1, 256], strides = [1, 1]} : vector<3x256xf32> to vector<1x256xf32>
    %205 = vector.broadcast %202 : vector<1x256xf32> to vector<16x256xf32>
    %206 = arith.subf %1, %205 : vector<16x256xf32>
    %207 = math.absf %206 : vector<16x256xf32>
    %cst_71 = arith.constant 1.000000e+00 : f32
    %208 = vector.broadcast %cst_71 : f32 to vector<16x256xf32>
    %209 = arith.subf %208, %207 : vector<16x256xf32>
    %cst_72 = arith.constant 0.000000e+00 : f32
    %210 = vector.broadcast %cst_72 : f32 to vector<16x256xf32>
    %211 = arith.maximumf %209, %210 : vector<16x256xf32>
    %212 = arith.truncf %211 : vector<16x256xf32> to vector<16x256xbf16>
    %213 = vector.broadcast %203 : vector<1x256xf32> to vector<16x256xf32>
    %214 = arith.subf %3, %213 : vector<16x256xf32>
    %215 = math.absf %214 : vector<16x256xf32>
    %cst_73 = arith.constant 1.000000e+00 : f32
    %216 = vector.broadcast %cst_73 : f32 to vector<16x256xf32>
    %217 = arith.subf %216, %215 : vector<16x256xf32>
    %cst_74 = arith.constant 0.000000e+00 : f32
    %218 = vector.broadcast %cst_74 : f32 to vector<16x256xf32>
    %219 = arith.maximumf %217, %218 : vector<16x256xf32>
    %220 = vector.broadcast %204 : vector<1x256xf32> to vector<16x256xf32>
    %221 = arith.mulf %219, %220 : vector<16x256xf32>
    %222 = arith.truncf %221 : vector<16x256xf32> to vector<16x256xbf16>
    %c0_75 = arith.constant 0 : index
    %c0_76 = arith.constant 0 : index
    %c0_77 = arith.constant 0 : index
    %223 = vector.load %arg2[%c0_75, %c0_76, %c0_77] : memref<1x256x16xbf16, #tpu.memory_space<vmem>>, vector<1x256x16xbf16>
    %224 = vector.shape_cast %223 : vector<1x256x16xbf16> to vector<256x16xbf16>
    %cst_78 = arith.constant dense<0.000000e+00> : vector<256x256xf32>
    %225 = tpu.matmul %224, %212, %cst_78 {dimension_numbers = #tpu.dot_dimension_numbers<[1], [0], [0], [1], [0, 0, 1, 1], [], []>} : vector<256x16xbf16>, vector<16x256xbf16>, vector<256x256xf32> -> vector<256x256xf32>
    %226 = vector.shape_cast %225 : vector<256x256xf32> to vector<16x16x256xf32>
    %227 = arith.truncf %226 : vector<16x16x256xf32> to vector<16x16x256xbf16>
    %228 = vector.shape_cast %222 : vector<16x256xbf16> to vector<1x16x256xbf16>
    %229 = vector.broadcast %228 : vector<1x16x256xbf16> to vector<16x16x256xbf16>
    %230 = arith.mulf %227, %229 : vector<16x16x256xbf16>
    %231 = arith.extf %230 : vector<16x16x256xbf16> to vector<16x16x256xf32>
    %cst_79 = arith.constant dense<0.000000e+00> : vector<16x256xf32>
    %232 = vector.multi_reduction <add>, %231, %cst_79 [1] : vector<16x16x256xf32> to vector<16x256xf32>
    %233 = arith.truncf %232 : vector<16x256xf32> to vector<16x256xbf16>
    %234 = arith.index_cast %c5_i32 : i32 to index
    %c0_80 = arith.constant 0 : index
    %c0_81 = arith.constant 0 : index
    %235 = vector.load %arg6[%234, %c0_80, %c0_81] : memref<9x16x256xbf16, #tpu.memory_space<vmem>>, vector<1x16x256xbf16>
    %236 = vector.shape_cast %235 : vector<1x16x256xbf16> to vector<16x256xbf16>
    %237 = vector.shape_cast %233 : vector<16x256xbf16> to vector<1x16x256xbf16>
    tpu.vector_store %arg6[%234, %c0_80, %c0_81], %237 {strides = array<i32>} : memref<9x16x256xbf16, #tpu.memory_space<vmem>>, vector<1x16x256xbf16>,
    %c6_i32 = arith.constant 6 : i32
    %c0_82 = arith.constant 0 : index
    %238 = arith.index_cast %c6_i32 : i32 to index
    %c0_83 = arith.constant 0 : index
    %c0_84 = arith.constant 0 : index
    %239 = vector.load %arg3[%c0_82, %238, %c0_83, %c0_84] : memref<1x9x3x256xf32, #tpu.memory_space<vmem>>, vector<1x1x3x256xf32>
    %240 = vector.shape_cast %239 : vector<1x1x3x256xf32> to vector<3x256xf32>
    %241 = vector.extract_strided_slice %240 {offsets = [0, 0], sizes = [1, 256], strides = [1, 1]} : vector<3x256xf32> to vector<1x256xf32>
    %242 = vector.extract_strided_slice %240 {offsets = [1, 0], sizes = [1, 256], strides = [1, 1]} : vector<3x256xf32> to vector<1x256xf32>
    %243 = vector.extract_strided_slice %240 {offsets = [2, 0], sizes = [1, 256], strides = [1, 1]} : vector<3x256xf32> to vector<1x256xf32>
    %244 = vector.broadcast %241 : vector<1x256xf32> to vector<16x256xf32>
    %245 = arith.subf %1, %244 : vector<16x256xf32>
    %246 = math.absf %245 : vector<16x256xf32>
    %cst_85 = arith.constant 1.000000e+00 : f32
    %247 = vector.broadcast %cst_85 : f32 to vector<16x256xf32>
    %248 = arith.subf %247, %246 : vector<16x256xf32>
    %cst_86 = arith.constant 0.000000e+00 : f32
    %249 = vector.broadcast %cst_86 : f32 to vector<16x256xf32>
    %250 = arith.maximumf %248, %249 : vector<16x256xf32>
    %251 = arith.truncf %250 : vector<16x256xf32> to vector<16x256xbf16>
    %252 = vector.broadcast %242 : vector<1x256xf32> to vector<16x256xf32>
    %253 = arith.subf %3, %252 : vector<16x256xf32>
    %254 = math.absf %253 : vector<16x256xf32>
    %cst_87 = arith.constant 1.000000e+00 : f32
    %255 = vector.broadcast %cst_87 : f32 to vector<16x256xf32>
    %256 = arith.subf %255, %254 : vector<16x256xf32>
    %cst_88 = arith.constant 0.000000e+00 : f32
    %257 = vector.broadcast %cst_88 : f32 to vector<16x256xf32>
    %258 = arith.maximumf %256, %257 : vector<16x256xf32>
    %259 = vector.broadcast %243 : vector<1x256xf32> to vector<16x256xf32>
    %260 = arith.mulf %258, %259 : vector<16x256xf32>
    %261 = arith.truncf %260 : vector<16x256xf32> to vector<16x256xbf16>
    %c0_89 = arith.constant 0 : index
    %c0_90 = arith.constant 0 : index
    %c0_91 = arith.constant 0 : index
    %262 = vector.load %arg2[%c0_89, %c0_90, %c0_91] : memref<1x256x16xbf16, #tpu.memory_space<vmem>>, vector<1x256x16xbf16>
    %263 = vector.shape_cast %262 : vector<1x256x16xbf16> to vector<256x16xbf16>
    %cst_92 = arith.constant dense<0.000000e+00> : vector<256x256xf32>
    %264 = tpu.matmul %263, %251, %cst_92 {dimension_numbers = #tpu.dot_dimension_numbers<[1], [0], [0], [1], [0, 0, 1, 1], [], []>} : vector<256x16xbf16>, vector<16x256xbf16>, vector<256x256xf32> -> vector<256x256xf32>
    %265 = vector.shape_cast %264 : vector<256x256xf32> to vector<16x16x256xf32>
    %266 = arith.truncf %265 : vector<16x16x256xf32> to vector<16x16x256xbf16>
    %267 = vector.shape_cast %261 : vector<16x256xbf16> to vector<1x16x256xbf16>
    %268 = vector.broadcast %267 : vector<1x16x256xbf16> to vector<16x16x256xbf16>
    %269 = arith.mulf %266, %268 : vector<16x16x256xbf16>
    %270 = arith.extf %269 : vector<16x16x256xbf16> to vector<16x16x256xf32>
    %cst_93 = arith.constant dense<0.000000e+00> : vector<16x256xf32>
    %271 = vector.multi_reduction <add>, %270, %cst_93 [1] : vector<16x16x256xf32> to vector<16x256xf32>
    %272 = arith.truncf %271 : vector<16x256xf32> to vector<16x256xbf16>
    %273 = arith.index_cast %c6_i32 : i32 to index
    %c0_94 = arith.constant 0 : index
    %c0_95 = arith.constant 0 : index
    %274 = vector.load %arg6[%273, %c0_94, %c0_95] : memref<9x16x256xbf16, #tpu.memory_space<vmem>>, vector<1x16x256xbf16>
    %275 = vector.shape_cast %274 : vector<1x16x256xbf16> to vector<16x256xbf16>
    %276 = vector.shape_cast %272 : vector<16x256xbf16> to vector<1x16x256xbf16>
    tpu.vector_store %arg6[%273, %c0_94, %c0_95], %276 {strides = array<i32>} : memref<9x16x256xbf16, #tpu.memory_space<vmem>>, vector<1x16x256xbf16>,
    %c7_i32 = arith.constant 7 : i32
    %c0_96 = arith.constant 0 : index
    %277 = arith.index_cast %c7_i32 : i32 to index
    %c0_97 = arith.constant 0 : index
    %c0_98 = arith.constant 0 : index
    %278 = vector.load %arg3[%c0_96, %277, %c0_97, %c0_98] : memref<1x9x3x256xf32, #tpu.memory_space<vmem>>, vector<1x1x3x256xf32>
    %279 = vector.shape_cast %278 : vector<1x1x3x256xf32> to vector<3x256xf32>
    %280 = vector.extract_strided_slice %279 {offsets = [0, 0], sizes = [1, 256], strides = [1, 1]} : vector<3x256xf32> to vector<1x256xf32>
    %281 = vector.extract_strided_slice %279 {offsets = [1, 0], sizes = [1, 256], strides = [1, 1]} : vector<3x256xf32> to vector<1x256xf32>
    %282 = vector.extract_strided_slice %279 {offsets = [2, 0], sizes = [1, 256], strides = [1, 1]} : vector<3x256xf32> to vector<1x256xf32>
    %283 = vector.broadcast %280 : vector<1x256xf32> to vector<16x256xf32>
    %284 = arith.subf %1, %283 : vector<16x256xf32>
    %285 = math.absf %284 : vector<16x256xf32>
    %cst_99 = arith.constant 1.000000e+00 : f32
    %286 = vector.broadcast %cst_99 : f32 to vector<16x256xf32>
    %287 = arith.subf %286, %285 : vector<16x256xf32>
    %cst_100 = arith.constant 0.000000e+00 : f32
    %288 = vector.broadcast %cst_100 : f32 to vector<16x256xf32>
    %289 = arith.maximumf %287, %288 : vector<16x256xf32>
    %290 = arith.truncf %289 : vector<16x256xf32> to vector<16x256xbf16>
    %291 = vector.broadcast %281 : vector<1x256xf32> to vector<16x256xf32>
    %292 = arith.subf %3, %291 : vector<16x256xf32>
    %293 = math.absf %292 : vector<16x256xf32>
    %cst_101 = arith.constant 1.000000e+00 : f32
    %294 = vector.broadcast %cst_101 : f32 to vector<16x256xf32>
    %295 = arith.subf %294, %293 : vector<16x256xf32>
    %cst_102 = arith.constant 0.000000e+00 : f32
    %296 = vector.broadcast %cst_102 : f32 to vector<16x256xf32>
    %297 = arith.maximumf %295, %296 : vector<16x256xf32>
    %298 = vector.broadcast %282 : vector<1x256xf32> to vector<16x256xf32>
    %299 = arith.mulf %297, %298 : vector<16x256xf32>
    %300 = arith.truncf %299 : vector<16x256xf32> to vector<16x256xbf16>
    %c0_103 = arith.constant 0 : index
    %c0_104 = arith.constant 0 : index
    %c0_105 = arith.constant 0 : index
    %301 = vector.load %arg2[%c0_103, %c0_104, %c0_105] : memref<1x256x16xbf16, #tpu.memory_space<vmem>>, vector<1x256x16xbf16>
    %302 = vector.shape_cast %301 : vector<1x256x16xbf16> to vector<256x16xbf16>
    %cst_106 = arith.constant dense<0.000000e+00> : vector<256x256xf32>
    %303 = tpu.matmul %302, %290, %cst_106 {dimension_numbers = #tpu.dot_dimension_numbers<[1], [0], [0], [1], [0, 0, 1, 1], [], []>} : vector<256x16xbf16>, vector<16x256xbf16>, vector<256x256xf32> -> vector<256x256xf32>
    %304 = vector.shape_cast %303 : vector<256x256xf32> to vector<16x16x256xf32>
    %305 = arith.truncf %304 : vector<16x16x256xf32> to vector<16x16x256xbf16>
    %306 = vector.shape_cast %300 : vector<16x256xbf16> to vector<1x16x256xbf16>
    %307 = vector.broadcast %306 : vector<1x16x256xbf16> to vector<16x16x256xbf16>
    %308 = arith.mulf %305, %307 : vector<16x16x256xbf16>
    %309 = arith.extf %308 : vector<16x16x256xbf16> to vector<16x16x256xf32>
    %cst_107 = arith.constant dense<0.000000e+00> : vector<16x256xf32>
    %310 = vector.multi_reduction <add>, %309, %cst_107 [1] : vector<16x16x256xf32> to vector<16x256xf32>
    %311 = arith.truncf %310 : vector<16x256xf32> to vector<16x256xbf16>
    %312 = arith.index_cast %c7_i32 : i32 to index
    %c0_108 = arith.constant 0 : index
    %c0_109 = arith.constant 0 : index
    %313 = vector.load %arg6[%312, %c0_108, %c0_109] : memref<9x16x256xbf16, #tpu.memory_space<vmem>>, vector<1x16x256xbf16>
    %314 = vector.shape_cast %313 : vector<1x16x256xbf16> to vector<16x256xbf16>
    %315 = vector.shape_cast %311 : vector<16x256xbf16> to vector<1x16x256xbf16>
    tpu.vector_store %arg6[%312, %c0_108, %c0_109], %315 {strides = array<i32>} : memref<9x16x256xbf16, #tpu.memory_space<vmem>>, vector<1x16x256xbf16>,
    %c8_i32 = arith.constant 8 : i32
    %c0_110 = arith.constant 0 : index
    %316 = arith.index_cast %c8_i32 : i32 to index
    %c0_111 = arith.constant 0 : index
    %c0_112 = arith.constant 0 : index
    %317 = vector.load %arg3[%c0_110, %316, %c0_111, %c0_112] : memref<1x9x3x256xf32, #tpu.memory_space<vmem>>, vector<1x1x3x256xf32>
    %318 = vector.shape_cast %317 : vector<1x1x3x256xf32> to vector<3x256xf32>
    %319 = vector.extract_strided_slice %318 {offsets = [0, 0], sizes = [1, 256], strides = [1, 1]} : vector<3x256xf32> to vector<1x256xf32>
    %320 = vector.extract_strided_slice %318 {offsets = [1, 0], sizes = [1, 256], strides = [1, 1]} : vector<3x256xf32> to vector<1x256xf32>
    %321 = vector.extract_strided_slice %318 {offsets = [2, 0], sizes = [1, 256], strides = [1, 1]} : vector<3x256xf32> to vector<1x256xf32>
    %322 = vector.broadcast %319 : vector<1x256xf32> to vector<16x256xf32>
    %323 = arith.subf %1, %322 : vector<16x256xf32>
    %324 = math.absf %323 : vector<16x256xf32>
    %cst_113 = arith.constant 1.000000e+00 : f32
    %325 = vector.broadcast %cst_113 : f32 to vector<16x256xf32>
    %326 = arith.subf %325, %324 : vector<16x256xf32>
    %cst_114 = arith.constant 0.000000e+00 : f32
    %327 = vector.broadcast %cst_114 : f32 to vector<16x256xf32>
    %328 = arith.maximumf %326, %327 : vector<16x256xf32>
    %329 = arith.truncf %328 : vector<16x256xf32> to vector<16x256xbf16>
    %330 = vector.broadcast %320 : vector<1x256xf32> to vector<16x256xf32>
    %331 = arith.subf %3, %330 : vector<16x256xf32>
    %332 = math.absf %331 : vector<16x256xf32>
    %cst_115 = arith.constant 1.000000e+00 : f32
    %333 = vector.broadcast %cst_115 : f32 to vector<16x256xf32>
    %334 = arith.subf %333, %332 : vector<16x256xf32>
    %cst_116 = arith.constant 0.000000e+00 : f32
    %335 = vector.broadcast %cst_116 : f32 to vector<16x256xf32>
    %336 = arith.maximumf %334, %335 : vector<16x256xf32>
    %337 = vector.broadcast %321 : vector<1x256xf32> to vector<16x256xf32>
    %338 = arith.mulf %336, %337 : vector<16x256xf32>
    %339 = arith.truncf %338 : vector<16x256xf32> to vector<16x256xbf16>
    %c0_117 = arith.constant 0 : index
    %c0_118 = arith.constant 0 : index
    %c0_119 = arith.constant 0 : index
    %340 = vector.load %arg2[%c0_117, %c0_118, %c0_119] : memref<1x256x16xbf16, #tpu.memory_space<vmem>>, vector<1x256x16xbf16>
    %341 = vector.shape_cast %340 : vector<1x256x16xbf16> to vector<256x16xbf16>
    %cst_120 = arith.constant dense<0.000000e+00> : vector<256x256xf32>
    %342 = tpu.matmul %341, %329, %cst_120 {dimension_numbers = #tpu.dot_dimension_numbers<[1], [0], [0], [1], [0, 0, 1, 1], [], []>} : vector<256x16xbf16>, vector<16x256xbf16>, vector<256x256xf32> -> vector<256x256xf32>
    %343 = vector.shape_cast %342 : vector<256x256xf32> to vector<16x16x256xf32>
    %344 = arith.truncf %343 : vector<16x16x256xf32> to vector<16x16x256xbf16>
    %345 = vector.shape_cast %339 : vector<16x256xbf16> to vector<1x16x256xbf16>
    %346 = vector.broadcast %345 : vector<1x16x256xbf16> to vector<16x16x256xbf16>
    %347 = arith.mulf %344, %346 : vector<16x16x256xbf16>
    %348 = arith.extf %347 : vector<16x16x256xbf16> to vector<16x16x256xf32>
    %cst_121 = arith.constant dense<0.000000e+00> : vector<16x256xf32>
    %349 = vector.multi_reduction <add>, %348, %cst_121 [1] : vector<16x16x256xf32> to vector<16x256xf32>
    %350 = arith.truncf %349 : vector<16x256xf32> to vector<16x256xbf16>
    %351 = arith.index_cast %c8_i32 : i32 to index
    %c0_122 = arith.constant 0 : index
    %c0_123 = arith.constant 0 : index
    %352 = vector.load %arg6[%351, %c0_122, %c0_123] : memref<9x16x256xbf16, #tpu.memory_space<vmem>>, vector<1x16x256xbf16>
    %353 = vector.shape_cast %352 : vector<1x16x256xbf16> to vector<16x256xbf16>
    %354 = vector.shape_cast %350 : vector<16x256xbf16> to vector<1x16x256xbf16>
    tpu.vector_store %arg6[%351, %c0_122, %c0_123], %354 {strides = array<i32>} : memref<9x16x256xbf16, #tpu.memory_space<vmem>>, vector<1x16x256xbf16>,
    %c9_i32 = arith.constant 9 : i32
    %c0_124 = arith.constant 0 : index
    %c0_125 = arith.constant 0 : index
    %c0_126 = arith.constant 0 : index
    %355 = vector.load %arg6[%c0_124, %c0_125, %c0_126] : memref<9x16x256xbf16, #tpu.memory_space<vmem>>, vector<9x16x256xbf16>
    %356 = vector.shape_cast %355 : vector<9x16x256xbf16> to vector<144x256xbf16>
    %c0_127 = arith.constant 0 : index
    %c0_128 = arith.constant 0 : index
    %357 = vector.load %arg4[%c0_127, %c0_128] : memref<8x144xbf16, #tpu.memory_space<vmem>>, vector<8x144xbf16>
    %cst_129 = arith.constant dense<0.000000e+00> : vector<8x256xf32>
    %358 = tpu.matmul %357, %356, %cst_129 {dimension_numbers = #tpu.dot_dimension_numbers<[1], [0], [0], [1], [0, 0, 1, 1], [], []>} : vector<8x144xbf16>, vector<144x256xbf16>, vector<8x256xf32> -> vector<8x256xf32>
    %c0_130 = arith.constant 0 : index
    %c0_131 = arith.constant 0 : index
    %c0_132 = arith.constant 0 : index
    %359 = vector.load %arg5[%c0_130, %c0_131, %c0_132] : memref<1x8x256xf32, #tpu.memory_space<vmem>>, vector<1x8x256xf32>
    %360 = vector.shape_cast %359 : vector<1x8x256xf32> to vector<8x256xf32>
    %361 = vector.shape_cast %358 : vector<8x256xf32> to vector<1x8x256xf32>
    tpu.vector_store %arg5[%c0_130, %c0_131, %c0_132], %361 {strides = array<i32>} : memref<1x8x256xf32, #tpu.memory_space<vmem>>, vector<1x8x256xf32>,
    return
  }
  func.func @transform_0(%arg0: i32, %arg1: i32) -> (i32, i32, i32) {
    %c0_i32 = arith.constant 0 : i32
    %c0_i32_0 = arith.constant 0 : i32
    %c0_i32_1 = arith.constant 0 : i32
    return %arg0, %c0_i32, %c0_i32_0 : i32, i32, i32
  }
  func.func @transform_1(%arg0: i32, %arg1: i32) -> (i32, i32, i32, i32) {
    %c0_i32 = arith.constant 0 : i32
    %c0_i32_0 = arith.constant 0 : i32
    %c0_i32_1 = arith.constant 0 : i32
    return %arg0, %c0_i32, %c0_i32_0, %arg1 : i32, i32, i32, i32
  }
  func.func @transform_2(%arg0: i32, %arg1: i32) -> (i32, i32) {
    %c0_i32 = arith.constant 0 : i32
    %c0_i32_0 = arith.constant 0 : i32
    %c0_i32_1 = arith.constant 0 : i32
    return %c0_i32, %c0_i32_0 : i32, i32
  }
  func.func @transform_3(%arg0: i32, %arg1: i32) -> (i32, i32, i32) {
    %c0_i32 = arith.constant 0 : i32
    %c0_i32_0 = arith.constant 0 : i32
    return %arg0, %c0_i32, %arg1 : i32, i32, i32
  }
}

</mosaic_0001>

<llo_original>
// kernel: tpu_custom_call.1
$region0: #{tpu_custom_call.1}
  #allocation0 [shape = 'u32[]', space=smem, size = 0x4, offset = 0x4, fixed_abs, tag = 'smem constant byte address 0x4 - core index']
  #allocation1 [shape = 'u32[144,128]{1,0:T(1,128)}', space=vmem, size = 0x12000, scoped, tag = 'internal scratch']
  #allocation2 [shape = 'bf16[9,16,256]{2,1,0:T(16,128)(2,1)}', space=vmem, size = 0x12000, scoped, tag = 'scratch operand']
  %s0 = inlined_call_operand.vmem [shape: bf16[2,256,16], index: 0, kind: input, shape index: {}]
  %s1 = inlined_call_operand.vmem [shape: f32[2,9,3,256], index: 1, kind: input, shape index: {}]
  %s2 = inlined_call_operand.vmem [shape: bf16[8,144], index: 2, kind: input, shape index: {}]
  %s3 = inlined_call_operand.hbm [shape: f32[2,8,256], index: 3, kind: output, shape index: {}]
  %s4 = sld [smem:[#allocation0]]
  $region45: #{tpu_custom_call.1} parent=0
    _
  %s6 = ssub.s32 1, %s4
  %s7 = scalar_select 0, %s6, %s4
  $region1: #{tpu_custom_call.1} parent=0
    #allocation3 [shape = 'u8[16384]{0}', space=vmem, size = 0x4000, scoped, tag = 'output window, operand 0']
    #allocation4 [shape = 's32[2]{0}', space=sflag, size = 0x8, scoped, tag = 'scoped memory for tpu_custom_call.1']
    %8 = vsyncpa [#allocation4], 0
    %s9 = scalar_lea.sflag [#allocation4], 1
    %10 = vsyncpa %s9, 0
    loop: start=0, step=1, limit=4
    $region2: #{tpu_custom_call.1} parent=1 // loop_pre_header
      _
    $region3: #{tpu_custom_call.1} parent=1 // loop_header
      %s12 = sphi 0, %s16
      %p13 = scmp.ge.s32.totalorder %s12, 4
      %s19 = sphi 0, %s31
      %s20 = sphi 0, %s27
      %s21 = sphi 0, %s19
      %s22 = sphi 0, %s20
      %s23 = sphi 0, %s21
      %s24 = sphi 0, %s22
      %s34 = sphi 0, %s36
      %s37 = sphi 0, %s34
      %s38 = sphi 0, %s37
      %s54 = sphi 0, %s38
      %s62 = sphi 0, %s64
      %s65 = sphi 0, %s62
      %s66 = sphi 0, %s65
      %s82 = sphi 0, %s66
      %s86 = sphi 0, %s86
      %s88 = sphi 0, %s86
      %s89 = sphi 0, %s88
      %s103 = sphi 0, %s89
      %s111 = sphi 0, %s113
      %s114 = sphi 0, %s111
      %s115 = sphi 0, %s114
      %s131 = sphi 0, %s115
    $region4: #{tpu_custom_call.1} parent=1 // loop_header_branch
      %15 = sbr.rel (%p13) target = $region8
    $region5: #{tpu_custom_call.1} parent=1 // loop_body
      %s17 = ssub.s32 %s12, 1
      %s18 = ssub.s32 %s12, 2
      %s25 = sadd.s32 1, %s20
      %p26 = scmp.ge.s32.totalorder %s25, 1
      %s27 = scalar_select %p26, 0, %s25
      %s28 = sadd.s32 1, %s19
      %s29 = scalar_select %p26, %s28, %s19
      %p30 = scmp.ge.s32.totalorder %s29, 2
      %s31 = scalar_select %p30, 0, %s29
      %s32 = ssub.s32 %s19, %s31
      %p33 = scmp.eq.s32.totalorder %s32, 0
      %s35 = sadd.s32 %s34, 1
      %s36 = scalar_select %p33, %s34, %s35
      %p39 = pneg %p33
      %p40 = scmp.eq.s32.totalorder %s12, 1
      %p41 = por %p39, %p40
      %p42 = scmp.ne.s32.totalorder %s34, %s37
      %p43 = scmp.eq.s32.totalorder %s12, 0
      %p44 = por %p42, %p43
      %p45 = scmp.ne.s32.totalorder %s34, %s37
      %p46 = scmp.eq.s32.totalorder %s17, 1
      %p47 = por %p45, %p46
      %p48 = scmp.ne.s32.totalorder %s37, %s38
      %p49 = scmp.eq.s32.totalorder %s17, 0
      %p50 = por %p48, %p49
      %p51 = scmp.ne.s32.totalorder %s37, %s38
      %p52 = scmp.eq.s32.totalorder %s18, 1
      %p53 = por %p51, %p52
      %p55 = scmp.ne.s32.totalorder %s38, %s54
      %p56 = scmp.eq.s32.totalorder %s18, 0
      %p57 = por %p55, %p56
      %s58 = ssub.s32 %s19, %s31
      %s59 = ssub.s32 %s20, %s27
      %s60 = sor.u32 %s58, %s59
      %p61 = scmp.eq.s32.totalorder %s60, 0
      %s63 = sadd.s32 %s62, 1
      %s64 = scalar_select %p61, %s62, %s63
      %p67 = pneg %p61
      %p68 = scmp.eq.s32.totalorder %s12, 1
      %p69 = por %p67, %p68
      %p70 = scmp.ne.s32.totalorder %s62, %s65
      %p71 = scmp.eq.s32.totalorder %s12, 0
      %p72 = por %p70, %p71
      %p73 = scmp.ne.s32.totalorder %s62, %s65
      %p74 = scmp.eq.s32.totalorder %s17, 1
      %p75 = por %p73, %p74
      %p76 = scmp.ne.s32.totalorder %s65, %s66
      %p77 = scmp.eq.s32.totalorder %s17, 0
      %p78 = por %p76, %p77
      %p79 = scmp.ne.s32.totalorder %s65, %s66
      %p80 = scmp.eq.s32.totalorder %s18, 1
      %p81 = por %p79, %p80
      %p83 = scmp.ne.s32.totalorder %s66, %s82
      %p84 = scmp.eq.s32.totalorder %s18, 0
      %p85 = por %p83, %p84
      %s87 = sadd.s32 %s86, 1
      %p90 = scmp.eq.s32.totalorder %s12, 1
      %p91 = scmp.ne.s32.totalorder %s86, %s88
      %p92 = scmp.eq.s32.totalorder %s12, 0
      %p93 = por %p91, %p92
      %p94 = scmp.ne.s32.totalorder %s86, %s88
      %p95 = scmp.eq.s32.totalorder %s17, 1
      %p96 = por %p94, %p95
      %p97 = scmp.ne.s32.totalorder %s88, %s89
      %p98 = scmp.eq.s32.totalorder %s17, 0
      %p99 = por %p97, %p98
      %p100 = scmp.ne.s32.totalorder %s88, %s89
      %p101 = scmp.eq.s32.totalorder %s18, 1
      %p102 = por %p100, %p101
      %p104 = scmp.ne.s32.totalorder %s89, %s103
      %p105 = scmp.eq.s32.totalorder %s18, 0
      %p106 = por %p104, %p105
      %s107 = ssub.s32 %s19, %s31
      %s108 = ssub.s32 %s20, %s27
      %s109 = sor.u32 %s107, %s108
      %p110 = scmp.eq.s32.totalorder %s109, 0
      %s112 = sadd.s32 %s111, 1
      %s113 = scalar_select %p110, %s111, %s112
      %p116 = pneg %p110
      %p117 = scmp.eq.s32.totalorder %s12, 1
      %p118 = por %p116, %p117
      %p119 = scmp.ne.s32.totalorder %s111, %s114
      %p120 = scmp.eq.s32.totalorder %s12, 0
      %p121 = por %p119, %p120
      %p122 = scmp.ne.s32.totalorder %s111, %s114
      %p123 = scmp.eq.s32.totalorder %s17, 1
      %p124 = por %p122, %p123
      %p125 = scmp.ne.s32.totalorder %s114, %s115
      %p126 = scmp.eq.s32.totalorder %s17, 0
      %p127 = por %p125, %p126
      %p128 = scmp.ne.s32.totalorder %s114, %s115
      %p129 = scmp.eq.s32.totalorder %s18, 1
      %p130 = por %p128, %p129
      %p132 = scmp.ne.s32.totalorder %s115, %s131
      %p133 = scmp.eq.s32.totalorder %s18, 0
      %p134 = por %p132, %p133
      %p135 = scmp.le.s32.totalorder 1, %s12
      %p136 = scmp.lt.s32.totalorder %s12, 3
      %p137 = pnand %p135, %p136
      %p138 = pneg %p137
      // Predicated region
      $region9: #{tpu_custom_call.1} parent=5 // pred_check
        _
      $region10: #{tpu_custom_call.1} parent=5 // pred_check_branch
        %140 = sbr.rel (%p137) target = $region12
      $region11: #{tpu_custom_call.1} parent=5 // pred_region
        %s141 = ssub.s32 %s12, 1
        // Predicated region
        $region13: #{tpu_custom_call.1} parent=11 // pred_check
          %p142 = pneg %p99
        $region14: #{tpu_custom_call.1} parent=11 // pred_check_branch
          %144 = sbr.rel (%p142) target = $region16
        $region15: #{tpu_custom_call.1} parent=11 // pred_region
          _
        $region16: #{tpu_custom_call.1} parent=11 // pred_fallthru
          _
      $region12: #{tpu_custom_call.1} parent=5 // pred_fallthru
        _
      %p145 = scmp.lt.s32.totalorder %s12, 2
      // Predicated region
      $region17: #{tpu_custom_call.1} parent=5 // pred_check
        %p146 = pneg %p145
      $region18: #{tpu_custom_call.1} parent=5 // pred_check_branch
        %148 = sbr.rel (%p146) target = $region20
      $region19: #{tpu_custom_call.1} parent=5 // pred_region
        // Predicated region
        $region21: #{tpu_custom_call.1} parent=19 // pred_check
          %p149 = pneg %p44
        $region22: #{tpu_custom_call.1} parent=19 // pred_check_branch
          %151 = sbr.rel (%p149) target = $region24
        $region23: #{tpu_custom_call.1} parent=19 // pred_region
          %p152 = scmp.lt.s32.totalorder %s19, 1
          %s153 = scalar_select %p152, %s19, 1
          %s154 = smul.addr %s153, 32
          %s155 = smul.addr %s154, 4
          %s156 = scalar_lea.vmem %s0, %s155
        $region24: #{tpu_custom_call.1} parent=19 // pred_fallthru
          _
        // Predicated region
        $region25: #{tpu_custom_call.1} parent=19 // pred_check
          %p157 = pneg %p72
        $region26: #{tpu_custom_call.1} parent=19 // pred_check_branch
          %159 = sbr.rel (%p157) target = $region28
        $region27: #{tpu_custom_call.1} parent=19 // pred_region
          %s160 = smul.u32 2, %s20
          %p161 = scmp.lt.s32.totalorder %s19, 1
          %s162 = scalar_select %p161, %s19, 1
          %p163 = scmp.lt.s32.totalorder %s160, 1
          %s164 = scalar_select %p163, %s160, 1
          %s165 = smul.addr %s162, 18
          %s166 = sadd.s32 %s164, %s165
          %s167 = smul.addr %s166, 4
          %s168 = scalar_lea.vmem %s1, %s167
          %s169 = smul.u32 2, %s20
        $region28: #{tpu_custom_call.1} parent=19 // pred_fallthru
          _
      $region20: #{tpu_custom_call.1} parent=5 // pred_fallthru
        _
      %p170 = scmp.le.s32.totalorder 1, %s12
      %p171 = scmp.lt.s32.totalorder %s12, 3
      %p172 = pnand %p170, %p171
      %p173 = pneg %p172
      // Predicated region
      $region29: #{tpu_custom_call.1} parent=5 // pred_check
        _
      $region30: #{tpu_custom_call.1} parent=5 // pred_check_branch
        %175 = sbr.rel (%p172) target = $region32
      $region31: #{tpu_custom_call.1} parent=5 // pred_region
        %s176 = ssub.s32 %s12, 1
        %p177 = scmp.lt.s32.totalorder %s21, 1
        %s178 = scalar_select %p177, %s21, 1
        %s179 = smul.addr %s178, 32
        %s180 = smul.addr %s179, 4
        %s181 = scalar_lea.vmem %s0, %s180
        %p182 = pneg %p50
        %p183 = pneg %p47
        %s184 = smul.u32 2, %s22
        %p185 = scmp.lt.s32.totalorder %s21, 1
        %s186 = scalar_select %p185, %s21, 1
        %p187 = scmp.lt.s32.totalorder %s184, 1
        %s188 = scalar_select %p187, %s184, 1
        %s189 = smul.addr %s186, 18
        %s190 = sadd.s32 %s188, %s189
        %s191 = smul.addr %s190, 4
        %s192 = scalar_lea.vmem %s1, %s191
        %p193 = pneg %p78
        %p194 = pneg %p75
        %p195 = pneg %p99
        %p196 = pneg %p96
        %p197 = pneg %p127
        %p198 = pneg %p124
        %s199 = sand.u32 %s114, 1
        %s200 = scalar_lea.sflag [#allocation4], %s199
        %s201 = sand.u32 %s114, 1
        %s202 = smul.addr %s201, 16
        %s203 = scalar_lea.vmem [#allocation3], %s202
        %p204 = scmp.lt.s32.totalorder %s21, 1
        %s205 = scalar_select %p204, %s21, 1
        %s206 = smul.addr %s205, 32
        %s207 = smul.addr %s206, 4
        %s208 = scalar_lea.vmem %s0, %s207
        %s209 = smul.u32 2, %s22
        %p210 = scmp.lt.s32.totalorder %s21, 1
        %s211 = scalar_select %p210, %s21, 1
        %p212 = scmp.lt.s32.totalorder %s209, 1
        %s213 = scalar_select %p212, %s209, 1
        %s214 = smul.addr %s211, 18
        %s215 = sadd.s32 %s213, %s214
        %s216 = smul.addr %s215, 4
        %s217 = scalar_lea.vmem %s1, %s216
        %s218 = smul.u32 2, %s22
        %s219 = smul.u32 2, %s22
        %v221 = vlaneseq
        %v222 = vshrl.u32 %v221, 7
        %v223 = vadd.s32 %v222, 8
        %v224 = vcvt.s32.f32 %v222
        %v225 = vcvt.s32.f32 %v223
        %v226 = vld [vmem:[%s217] sm:$0x77]
        %v228 = vlaneseq
        %v229 = vshrl.u32 %v228, 7
        %v230 = vsub.s32 0, %v229
        %v231 = vrot.slane %v226, %v230
        %v232 = vlaneseq
        %v233 = vshrl.u32 %v232, 7
        %v234 = vsub.s32 4, %v233
        %v235 = vrot.slane %v226, %v234
        %v238 = vlaneseq
        %v239 = vshrl.u32 %v238, 7
        %v240 = vsub.s32 0, %v239
        %v241 = vrot.slane %v231, %v240
        %v242 = vlaneseq
        %v243 = vshrl.u32 %v242, 7
        %v244 = vsub.s32 0, %v243
        %v245 = vrot.slane %v235, %v244
        %v246 = vsub.f32 %v224, %v241
        %v247 = vsub.f32 %v224, %v245
        %v248 = vsub.f32 %v225, %v241
        %v249 = vsub.f32 %v225, %v245
        %v250 = vand.u32 2147483647, %v246
        %v251 = vand.u32 2147483647, %v247
        %v252 = vand.u32 2147483647, %v248
        %v253 = vand.u32 2147483647, %v249
        %v254 = vsub.f32 1.0, %v250
        %v255 = vsub.f32 1.0, %v251
        %v256 = vsub.f32 1.0, %v252
        %v257 = vsub.f32 1.0, %v253
        %v258 = vmax.f32 %v254, 0.0
        %v259 = vmax.f32 %v255, 0.0
        %v260 = vmax.f32 %v256, 0.0
        %v261 = vmax.f32 %v257, 0.0
        %v262 = vpack.c.bf16 %v260, %v258
        %v263 = vpack.c.bf16 %v261, %v259
        %v264 = vlaneseq
        %v265 = vshrl.u32 %v264, 7
        %v266 = vsub.s32 1, %v265
        %v267 = vrot.slane %v226, %v266
        %v268 = vlaneseq
        %v269 = vshrl.u32 %v268, 7
        %v270 = vsub.s32 5, %v269
        %v271 = vrot.slane %v226, %v270
        %v274 = vlaneseq
        %v275 = vshrl.u32 %v274, 7
        %v276 = vsub.s32 1, %v275
        %v277 = vrot.slane %v267, %v276
        %v278 = vlaneseq
        %v279 = vshrl.u32 %v278, 7
        %v280 = vsub.s32 1, %v279
        %v281 = vrot.slane %v271, %v280
        %v282 = vsub.f32 %v224, %v277
        %v283 = vsub.f32 %v224, %v281
        %v284 = vsub.f32 %v225, %v277
        %v285 = vsub.f32 %v225, %v281
        %v286 = vand.u32 2147483647, %v282
        %v287 = vand.u32 2147483647, %v283
        %v288 = vand.u32 2147483647, %v284
        %v289 = vand.u32 2147483647, %v285
        %v290 = vsub.f32 1.0, %v286
        %v291 = vsub.f32 1.0, %v287
        %v292 = vsub.f32 1.0, %v288
        %v293 = vsub.f32 1.0, %v289
        %v294 = vmax.f32 %v290, 0.0
        %v295 = vmax.f32 %v291, 0.0
        %v296 = vmax.f32 %v292, 0.0
        %v297 = vmax.f32 %v293, 0.0
        %v298 = vlaneseq
        %v299 = vshrl.u32 %v298, 7
        %v300 = vsub.s32 2, %v299
        %v301 = vrot.slane %v226, %v300
        %v302 = vlaneseq
        %v303 = vshrl.u32 %v302, 7
        %v304 = vsub.s32 6, %v303
        %v305 = vrot.slane %v226, %v304
        %v308 = vlaneseq
        %v309 = vshrl.u32 %v308, 7
        %v310 = vsub.s32 2, %v309
        %v311 = vrot.slane %v301, %v310
        %v312 = vlaneseq
        %v313 = vshrl.u32 %v312, 7
        %v314 = vsub.s32 2, %v313
        %v315 = vrot.slane %v305, %v314
        %v316 = vmul.f32 %v294, %v311
        %v317 = vmul.f32 %v295, %v315
        %v318 = vmul.f32 %v296, %v311
        %v319 = vmul.f32 %v297, %v315
        %v320 = vpack.c.bf16 %v318, %v316
        %v321 = vpack.c.bf16 %v319, %v317
        %v322 = vld [vmem:[%s208] sm:$0xf]
        %v323 = vld [vmem:[%s208 + $0x4] sm:$0xf]
        %v324 = vld [vmem:[%s208 + $0x8] sm:$0xf]
        %v325 = vld [vmem:[%s208 + $0xc] sm:$0xf]
        %v326 = vld [vmem:[%s208 + $0x10] sm:$0xf]
        %v327 = vld [vmem:[%s208 + $0x14] sm:$0xf]
        %v328 = vld [vmem:[%s208 + $0x18] sm:$0xf]
        %v329 = vld [vmem:[%s208 + $0x1c] sm:$0xf]
        %v330 = vld [vmem:[%s208 + $0x20] sm:$0xf]
        %v331 = vld [vmem:[%s208 + $0x24] sm:$0xf]
        %v332 = vld [vmem:[%s208 + $0x28] sm:$0xf]
        %v333 = vld [vmem:[%s208 + $0x2c] sm:$0xf]
        %v334 = vld [vmem:[%s208 + $0x30] sm:$0xf]
        %v335 = vld [vmem:[%s208 + $0x34] sm:$0xf]
        %v336 = vld [vmem:[%s208 + $0x38] sm:$0xf]
        %v337 = vld [vmem:[%s208 + $0x3c] sm:$0xf]
        %v338 = vld [vmem:[%s208 + $0x40] sm:$0xf]
        %v339 = vld [vmem:[%s208 + $0x44] sm:$0xf]
        %v340 = vld [vmem:[%s208 + $0x48] sm:$0xf]
        %v341 = vld [vmem:[%s208 + $0x4c] sm:$0xf]
        %v342 = vld [vmem:[%s208 + $0x50] sm:$0xf]
        %v343 = vld [vmem:[%s208 + $0x54] sm:$0xf]
        %v344 = vld [vmem:[%s208 + $0x58] sm:$0xf]
        %v345 = vld [vmem:[%s208 + $0x5c] sm:$0xf]
        %v346 = vld [vmem:[%s208 + $0x60] sm:$0xf]
        %v347 = vld [vmem:[%s208 + $0x64] sm:$0xf]
        %v348 = vld [vmem:[%s208 + $0x68] sm:$0xf]
        %v349 = vld [vmem:[%s208 + $0x6c] sm:$0xf]
        %v350 = vld [vmem:[%s208 + $0x70] sm:$0xf]
        %v351 = vld [vmem:[%s208 + $0x74] sm:$0xf]
        %v352 = vld [vmem:[%s208 + $0x78] sm:$0xf]
        %v353 = vld [vmem:[%s208 + $0x7c] sm:$0xf]
        %v386 = vunpack.c.l.b16 %v322
        %v387 = vunpack.c.l.b16 %v323
        %v388 = vunpack.c.l.b16 %v324
        %v389 = vunpack.c.l.b16 %v325
        %v390 = vunpack.c.l.b16 %v326
        %v391 = vunpack.c.l.b16 %v327
        %v392 = vunpack.c.l.b16 %v328
        %v393 = vunpack.c.l.b16 %v329
        %v394 = vunpack.c.l.b16 %v330
        %v395 = vunpack.c.l.b16 %v331
        %v396 = vunpack.c.l.b16 %v332
        %v397 = vunpack.c.l.b16 %v333
        %v398 = vunpack.c.l.b16 %v334
        %v399 = vunpack.c.l.b16 %v335
        %v400 = vunpack.c.l.b16 %v336
        %v401 = vunpack.c.l.b16 %v337
        %v402 = vunpack.c.l.b16 %v338
        %v403 = vunpack.c.l.b16 %v339
        %v404 = vunpack.c.l.b16 %v340
        %v405 = vunpack.c.l.b16 %v341
        %v406 = vunpack.c.l.b16 %v342
        %v407 = vunpack.c.l.b16 %v343
        %v408 = vunpack.c.l.b16 %v344
        %v409 = vunpack.c.l.b16 %v345
        %v410 = vunpack.c.l.b16 %v346
        %v411 = vunpack.c.l.b16 %v347
        %v412 = vunpack.c.l.b16 %v348
        %v413 = vunpack.c.l.b16 %v349
        %v414 = vunpack.c.l.b16 %v350
        %v415 = vunpack.c.l.b16 %v351
        %v416 = vunpack.c.l.b16 %v352
        %v417 = vunpack.c.l.b16 %v353
        %v418 = vpack.c.b16 %v387, %v386
        %v419 = vpack.c.b16 %v389, %v388
        %v420 = vpack.c.b16 %v391, %v390
        %v421 = vpack.c.b16 %v393, %v392
        %v422 = vpack.c.b16 %v395, %v394
        %v423 = vpack.c.b16 %v397, %v396
        %v424 = vpack.c.b16 %v399, %v398
        %v425 = vpack.c.b16 %v401, %v400
        %v426 = vpack.c.b16 %v403, %v402
        %v427 = vpack.c.b16 %v405, %v404
        %v428 = vpack.c.b16 %v407, %v406
        %v429 = vpack.c.b16 %v409, %v408
        %v430 = vpack.c.b16 %v411, %v410
        %v431 = vpack.c.b16 %v413, %v412
        %v432 = vpack.c.b16 %v415, %v414
        %v433 = vpack.c.b16 %v417, %v416
        %vm434 = vcmask 130048
        %v436 = vsel %vm434, %v418, 0
        %v439 = vsel %vm434, %v419, 0
        %v442 = vsel %vm434, %v420, 0
        %v445 = vsel %vm434, %v421, 0
        %v448 = vsel %vm434, %v422, 0
        %v451 = vsel %vm434, %v423, 0
        %v454 = vsel %vm434, %v424, 0
        %v457 = vsel %vm434, %v425, 0
        %v460 = vsel %vm434, %v426, 0
        %v463 = vsel %vm434, %v427, 0
        %v466 = vsel %vm434, %v428, 0
        %v469 = vsel %vm434, %v429, 0
        %v472 = vsel %vm434, %v430, 0
        %v475 = vsel %vm434, %v431, 0
        %v478 = vsel %vm434, %v432, 0
        %v481 = vsel %vm434, %v433, 0
        %483 = vmatprep.subr.bf16.mxu0 %v263
        %484 = vmatpush1.bf16.msra.mxu0 %v262
        %485 = vmatprep.subr.bf16.mxu0 0
        %486 = vmatpush1.bf16.msra.mxu0 0
        %487 = vmatprep.subr.bf16.mxu0 0
        %488 = vmatpush1.bf16.msra.mxu0 0
        %489 = vmatprep.subr.bf16.mxu0 0
        %490 = vmatpush1.bf16.msra.mxu0 0
        %491 = vmatprep.subr.bf16.mxu0 0
        %492 = vmatpush1.bf16.msra.mxu0 0
        %493 = vmatprep.subr.bf16.mxu0 0
        %494 = vmatpush1.bf16.msra.mxu0 0
        %495 = vmatprep.subr.bf16.mxu0 0
        %496 = vmatpush1.bf16.msra.mxu0 0
        %497 = vmatprep.subr.bf16.mxu0 0
        %498 = vmatpush1.bf16.msra.mxu0 0
        %499 = vmatprep.subr.bf16.mxu0 0
        %500 = vmatpush1.bf16.msra.mxu0 0
        %501 = vmatprep.subr.bf16.mxu0 0
        %502 = vmatpush1.bf16.msra.mxu0 0
        %503 = vmatprep.subr.bf16.mxu0 0
        %504 = vmatpush1.bf16.msra.mxu0 0
        %505 = vmatprep.subr.bf16.mxu0 0
        %506 = vmatpush1.bf16.msra.mxu0 0
        %507 = vmatprep.subr.bf16.mxu0 0
        %508 = vmatpush1.bf16.msra.mxu0 0
        %509 = vmatprep.subr.bf16.mxu0 0
        %510 = vmatpush1.bf16.msra.mxu0 0
        %511 = vmatprep.subr.bf16.mxu0 0
        %512 = vmatpush1.bf16.msra.mxu0 0
        %513 = vmatprep.subr.bf16.mxu0 0
        %514 = vmatpush1.bf16.msra.mxu0 0
        %515 = vmatprep.mubr.bf16.mxu0 0
        %516 = vmatmul.mubr.bf16.gmra.mrb[0].mxu0 %v436
        %v517 = vpop.f32.mrb[0].mxu0
        %v518 = vadd.f32 0.0, %v517
        %v519 = vpop.f32.mrb[0].mxu0
        %v520 = vadd.f32 0.0, %v519
        %v521 = vpop.f32.mrb[0].mxu0
        %v522 = vadd.f32 0.0, %v521
        %v523 = vpop.f32.mrb[0].mxu0
        %v524 = vadd.f32 0.0, %v523
        %525 = vmatprep.mubr.bf16.mxu0 0
        %526 = vmatmul.mubr.bf16.gmra.mrb[0].mxu0 %v439
        %v527 = vpop.f32.mrb[0].mxu0
        %v528 = vadd.f32 0.0, %v527
        %v529 = vpop.f32.mrb[0].mxu0
        %v530 = vadd.f32 0.0, %v529
        %v531 = vpop.f32.mrb[0].mxu0
        %v532 = vadd.f32 0.0, %v531
        %v533 = vpop.f32.mrb[0].mxu0
        %v534 = vadd.f32 0.0, %v533
        %535 = vmatprep.mubr.bf16.mxu0 0
        %536 = vmatmul.mubr.bf16.gmra.mrb[0].mxu0 %v442
        %v537 = vpop.f32.mrb[0].mxu0
        %v538 = vadd.f32 0.0, %v537
        %v539 = vpop.f32.mrb[0].mxu0
        %v540 = vadd.f32 0.0, %v539
        %v541 = vpop.f32.mrb[0].mxu0
        %v542 = vadd.f32 0.0, %v541
        %v543 = vpop.f32.mrb[0].mxu0
        %v544 = vadd.f32 0.0, %v543
        %545 = vmatprep.mubr.bf16.mxu0 0
        %546 = vmatmul.mubr.bf16.gmra.mrb[0].mxu0 %v445
        %v547 = vpop.f32.mrb[0].mxu0
        %v548 = vadd.f32 0.0, %v547
        %v549 = vpop.f32.mrb[0].mxu0
        %v550 = vadd.f32 0.0, %v549
        %v551 = vpop.f32.mrb[0].mxu0
        %v552 = vadd.f32 0.0, %v551
        %v553 = vpop.f32.mrb[0].mxu0
        %v554 = vadd.f32 0.0, %v553
        %555 = vmatprep.mubr.bf16.mxu0 0
        %556 = vmatmul.mubr.bf16.gmra.mrb[0].mxu0 %v448
        %v557 = vpop.f32.mrb[0].mxu0
        %v558 = vadd.f32 0.0, %v557
        %v559 = vpop.f32.mrb[0].mxu0
        %v560 = vadd.f32 0.0, %v559
        %v561 = vpop.f32.mrb[0].mxu0
        %v562 = vadd.f32 0.0, %v561
        %v563 = vpop.f32.mrb[0].mxu0
        %v564 = vadd.f32 0.0, %v563
        %565 = vmatprep.mubr.bf16.mxu0 0
        %566 = vmatmul.mubr.bf16.gmra.mrb[0].mxu0 %v451
        %v567 = vpop.f32.mrb[0].mxu0
        %v568 = vadd.f32 0.0, %v567
        %v569 = vpop.f32.mrb[0].mxu0
        %v570 = vadd.f32 0.0, %v569
        %v571 = vpop.f32.mrb[0].mxu0
        %v572 = vadd.f32 0.0, %v571
        %v573 = vpop.f32.mrb[0].mxu0
        %v574 = vadd.f32 0.0, %v573
        %575 = vmatprep.mubr.bf16.mxu0 0
        %576 = vmatmul.mubr.bf16.gmra.mrb[0].mxu0 %v454
        %v577 = vpop.f32.mrb[0].mxu0
        %v578 = vadd.f32 0.0, %v577
        %v579 = vpop.f32.mrb[0].mxu0
        %v580 = vadd.f32 0.0, %v579
        %v581 = vpop.f32.mrb[0].mxu0
        %v582 = vadd.f32 0.0, %v581
        %v583 = vpop.f32.mrb[0].mxu0
        %v584 = vadd.f32 0.0, %v583
        %585 = vmatprep.mubr.bf16.mxu0 0
        %586 = vmatmul.mubr.bf16.gmra.mrb[0].mxu0 %v457
        %v587 = vpop.f32.mrb[0].mxu0
        %v588 = vadd.f32 0.0, %v587
        %v589 = vpop.f32.mrb[0].mxu0
        %v590 = vadd.f32 0.0, %v589
        %v591 = vpop.f32.mrb[0].mxu0
        %v592 = vadd.f32 0.0, %v591
        %v593 = vpop.f32.mrb[0].mxu0
        %v594 = vadd.f32 0.0, %v593
        %595 = vmatprep.mubr.bf16.mxu0 0
        %596 = vmatmul.mubr.bf16.gmra.mrb[0].mxu0 %v460
        %v597 = vpop.f32.mrb[0].mxu0
        %v598 = vadd.f32 0.0, %v597
        %v599 = vpop.f32.mrb[0].mxu0
        %v600 = vadd.f32 0.0, %v599
        %v601 = vpop.f32.mrb[0].mxu0
        %v602 = vadd.f32 0.0, %v601
        %v603 = vpop.f32.mrb[0].mxu0
        %v604 = vadd.f32 0.0, %v603
        %605 = vmatprep.mubr.bf16.mxu0 0
        %606 = vmatmul.mubr.bf16.gmra.mrb[0].mxu0 %v463
        %v607 = vpop.f32.mrb[0].mxu0
        %v608 = vadd.f32 0.0, %v607
        %v609 = vpop.f32.mrb[0].mxu0
        %v610 = vadd.f32 0.0, %v609
        %v611 = vpop.f32.mrb[0].mxu0
        %v612 = vadd.f32 0.0, %v611
        %v613 = vpop.f32.mrb[0].mxu0
        %v614 = vadd.f32 0.0, %v613
        %615 = vmatprep.mubr.bf16.mxu0 0
        %616 = vmatmul.mubr.bf16.gmra.mrb[0].mxu0 %v466
        %v617 = vpop.f32.mrb[0].mxu0
        %v618 = vadd.f32 0.0, %v617
        %v619 = vpop.f32.mrb[0].mxu0
        %v620 = vadd.f32 0.0, %v619
        %v621 = vpop.f32.mrb[0].mxu0
        %v622 = vadd.f32 0.0, %v621
        %v623 = vpop.f32.mrb[0].mxu0
        %v624 = vadd.f32 0.0, %v623
        %625 = vmatprep.mubr.bf16.mxu0 0
        %626 = vmatmul.mubr.bf16.gmra.mrb[0].mxu0 %v469
        %v627 = vpop.f32.mrb[0].mxu0
        %v628 = vadd.f32 0.0, %v627
        %v629 = vpop.f32.mrb[0].mxu0
        %v630 = vadd.f32 0.0, %v629
        %v631 = vpop.f32.mrb[0].mxu0
        %v632 = vadd.f32 0.0, %v631
        %v633 = vpop.f32.mrb[0].mxu0
        %v634 = vadd.f32 0.0, %v633
        %635 = vmatprep.mubr.bf16.mxu0 0
        %636 = vmatmul.mubr.bf16.gmra.mrb[0].mxu0 %v472
        %v637 = vpop.f32.mrb[0].mxu0
        %v638 = vadd.f32 0.0, %v637
        %v639 = vpop.f32.mrb[0].mxu0
        %v640 = vadd.f32 0.0, %v639
        %v641 = vpop.f32.mrb[0].mxu0
        %v642 = vadd.f32 0.0, %v641
        %v643 = vpop.f32.mrb[0].mxu0
        %v644 = vadd.f32 0.0, %v643
        %645 = vmatprep.mubr.bf16.mxu0 0
        %646 = vmatmul.mubr.bf16.gmra.mrb[0].mxu0 %v475
        %v647 = vpop.f32.mrb[0].mxu0
        %v648 = vadd.f32 0.0, %v647
        %v649 = vpop.f32.mrb[0].mxu0
        %v650 = vadd.f32 0.0, %v649
        %v651 = vpop.f32.mrb[0].mxu0
        %v652 = vadd.f32 0.0, %v651
        %v653 = vpop.f32.mrb[0].mxu0
        %v654 = vadd.f32 0.0, %v653
        %655 = vmatprep.mubr.bf16.mxu0 0
        %656 = vmatmul.mubr.bf16.gmra.mrb[0].mxu0 %v478
        %v657 = vpop.f32.mrb[0].mxu0
        %v658 = vadd.f32 0.0, %v657
        %v659 = vpop.f32.mrb[0].mxu0
        %v660 = vadd.f32 0.0, %v659
        %v661 = vpop.f32.mrb[0].mxu0
        %v662 = vadd.f32 0.0, %v661
        %v663 = vpop.f32.mrb[0].mxu0
        %v664 = vadd.f32 0.0, %v663
        %665 = vmatprep.mubr.bf16.mxu0 0
        %666 = vmatmul.mubr.bf16.gmra.mrb[0].mxu0 %v481
        %v667 = vpop.f32.mrb[0].mxu0
        %v668 = vadd.f32 0.0, %v667
        %v669 = vpop.f32.mrb[0].mxu0
        %v670 = vadd.f32 0.0, %v669
        %v671 = vpop.f32.mrb[0].mxu0
        %v672 = vadd.f32 0.0, %v671
        %v673 = vpop.f32.mrb[0].mxu0
        %v674 = vadd.f32 0.0, %v673
        %675 = vdwg.mxu0
        %v676 = vpack.c.bf16 %v522, %v518
        %v677 = vpack.c.bf16 %v524, %v520
        %v678 = vpack.c.bf16 %v532, %v528
        %v679 = vpack.c.bf16 %v534, %v530
        %v680 = vpack.c.bf16 %v542, %v538
        %v681 = vpack.c.bf16 %v544, %v540
        %v682 = vpack.c.bf16 %v552, %v548
        %v683 = vpack.c.bf16 %v554, %v550
        %v684 = vpack.c.bf16 %v562, %v558
        %v685 = vpack.c.bf16 %v564, %v560
        %v686 = vpack.c.bf16 %v572, %v568
        %v687 = vpack.c.bf16 %v574, %v570
        %v688 = vpack.c.bf16 %v582, %v578
        %v689 = vpack.c.bf16 %v584, %v580
        %v690 = vpack.c.bf16 %v592, %v588
        %v691 = vpack.c.bf16 %v594, %v590
        %v692 = vpack.c.bf16 %v602, %v598
        %v693 = vpack.c.bf16 %v604, %v600
        %v694 = vpack.c.bf16 %v612, %v608
        %v695 = vpack.c.bf16 %v614, %v610
        %v696 = vpack.c.bf16 %v622, %v618
        %v697 = vpack.c.bf16 %v624, %v620
        %v698 = vpack.c.bf16 %v632, %v628
        %v699 = vpack.c.bf16 %v634, %v630
        %v700 = vpack.c.bf16 %v642, %v638
        %v701 = vpack.c.bf16 %v644, %v640
        %v702 = vpack.c.bf16 %v652, %v648
        %v703 = vpack.c.bf16 %v654, %v650
        %v704 = vpack.c.bf16 %v662, %v658
        %v705 = vpack.c.bf16 %v664, %v660
        %v706 = vpack.c.bf16 %v672, %v668
        %v707 = vpack.c.bf16 %v674, %v670
        %v708 = vmul.bf16 %v676, %v320
        %v709 = vmul.bf16 %v677, %v321
        %v710 = vmul.bf16 %v678, %v320
        %v711 = vmul.bf16 %v679, %v321
        %v712 = vmul.bf16 %v680, %v320
        %v713 = vmul.bf16 %v681, %v321
        %v714 = vmul.bf16 %v682, %v320
        %v715 = vmul.bf16 %v683, %v321
        %v716 = vmul.bf16 %v684, %v320
        %v717 = vmul.bf16 %v685, %v321
        %v718 = vmul.bf16 %v686, %v320
        %v719 = vmul.bf16 %v687, %v321
        %v720 = vmul.bf16 %v688, %v320
        %v721 = vmul.bf16 %v689, %v321
        %v722 = vmul.bf16 %v690, %v320
        %v723 = vmul.bf16 %v691, %v321
        %v724 = vmul.bf16 %v692, %v320
        %v725 = vmul.bf16 %v693, %v321
        %v726 = vmul.bf16 %v694, %v320
        %v727 = vmul.bf16 %v695, %v321
        %v728 = vmul.bf16 %v696, %v320
        %v729 = vmul.bf16 %v697, %v321
        %v730 = vmul.bf16 %v698, %v320
        %v731 = vmul.bf16 %v699, %v321
        %v732 = vmul.bf16 %v700, %v320
        %v733 = vmul.bf16 %v701, %v321
        %v734 = vmul.bf16 %v702, %v320
        %v735 = vmul.bf16 %v703, %v321
        %v736 = vmul.bf16 %v704, %v320
        %v737 = vmul.bf16 %v705, %v321
        %v738 = vmul.bf16 %v706, %v320
        %v739 = vmul.bf16 %v707, %v321
        %v740 = vunpack.c.l.bf16 %v708
        %v741 = vunpack.c.l.bf16 %v709
        %v742 = vunpack.c.h.bf16 %v708
        %v743 = vunpack.c.h.bf16 %v709
        %v744 = vunpack.c.l.bf16 %v710
        %v745 = vunpack.c.l.bf16 %v711
        %v746 = vunpack.c.h.bf16 %v710
        %v747 = vunpack.c.h.bf16 %v711
        %v748 = vunpack.c.l.bf16 %v712
        %v749 = vunpack.c.l.bf16 %v713
        %v750 = vunpack.c.h.bf16 %v712
        %v751 = vunpack.c.h.bf16 %v713
        %v752 = vunpack.c.l.bf16 %v714
        %v753 = vunpack.c.l.bf16 %v715
        %v754 = vunpack.c.h.bf16 %v714
        %v755 = vunpack.c.h.bf16 %v715
        %v756 = vunpack.c.l.bf16 %v716
        %v757 = vunpack.c.l.bf16 %v717
        %v758 = vunpack.c.h.bf16 %v716
        %v759 = vunpack.c.h.bf16 %v717
        %v760 = vunpack.c.l.bf16 %v718
        %v761 = vunpack.c.l.bf16 %v719
        %v762 = vunpack.c.h.bf16 %v718
        %v763 = vunpack.c.h.bf16 %v719
        %v764 = vunpack.c.l.bf16 %v720
        %v765 = vunpack.c.l.bf16 %v721
        %v766 = vunpack.c.h.bf16 %v720
        %v767 = vunpack.c.h.bf16 %v721
        %v768 = vunpack.c.l.bf16 %v722
        %v769 = vunpack.c.l.bf16 %v723
        %v770 = vunpack.c.h.bf16 %v722
        %v771 = vunpack.c.h.bf16 %v723
        %v772 = vunpack.c.l.bf16 %v724
        %v773 = vunpack.c.l.bf16 %v725
        %v774 = vunpack.c.h.bf16 %v724
        %v775 = vunpack.c.h.bf16 %v725
        %v776 = vunpack.c.l.bf16 %v726
        %v777 = vunpack.c.l.bf16 %v727
        %v778 = vunpack.c.h.bf16 %v726
        %v779 = vunpack.c.h.bf16 %v727
        %v780 = vunpack.c.l.bf16 %v728
        %v781 = vunpack.c.l.bf16 %v729
        %v782 = vunpack.c.h.bf16 %v728
        %v783 = vunpack.c.h.bf16 %v729
        %v784 = vunpack.c.l.bf16 %v730
        %v785 = vunpack.c.l.bf16 %v731
        %v786 = vunpack.c.h.bf16 %v730
        %v787 = vunpack.c.h.bf16 %v731
        %v788 = vunpack.c.l.bf16 %v732
        %v789 = vunpack.c.l.bf16 %v733
        %v790 = vunpack.c.h.bf16 %v732
        %v791 = vunpack.c.h.bf16 %v733
        %v792 = vunpack.c.l.bf16 %v734
        %v793 = vunpack.c.l.bf16 %v735
        %v794 = vunpack.c.h.bf16 %v734
        %v795 = vunpack.c.h.bf16 %v735
        %v796 = vunpack.c.l.bf16 %v736
        %v797 = vunpack.c.l.bf16 %v737
        %v798 = vunpack.c.h.bf16 %v736
        %v799 = vunpack.c.h.bf16 %v737
        %v800 = vunpack.c.l.bf16 %v738
        %v801 = vunpack.c.l.bf16 %v739
        %v802 = vunpack.c.h.bf16 %v738
        %v803 = vunpack.c.h.bf16 %v739
        %v804 = vadd.f32 %v740, %v742
        %v805 = vrot.slane %v804, 4
        %v806 = vadd.f32 %v804, %v805
        %v807 = vrot.slane %v806, 2
        %v808 = vadd.f32 %v806, %v807
        %v809 = vrot.slane %v808, 1
        %v810 = vadd.f32 %v808, %v809
        %v811 = vadd.f32 %v741, %v743
        %v812 = vrot.slane %v811, 4
        %v813 = vadd.f32 %v811, %v812
        %v814 = vrot.slane %v813, 2
        %v815 = vadd.f32 %v813, %v814
        %v816 = vrot.slane %v815, 1
        %v817 = vadd.f32 %v815, %v816
        %v818 = vadd.f32 %v744, %v746
        %v819 = vrot.slane %v818, 4
        %v820 = vadd.f32 %v818, %v819
        %v821 = vrot.slane %v820, 2
        %v822 = vadd.f32 %v820, %v821
        %v823 = vrot.slane %v822, 1
        %v824 = vadd.f32 %v822, %v823
        %v825 = vadd.f32 %v745, %v747
        %v826 = vrot.slane %v825, 4
        %v827 = vadd.f32 %v825, %v826
        %v828 = vrot.slane %v827, 2
        %v829 = vadd.f32 %v827, %v828
        %v830 = vrot.slane %v829, 1
        %v831 = vadd.f32 %v829, %v830
        %v832 = vadd.f32 %v748, %v750
        %v833 = vrot.slane %v832, 4
        %v834 = vadd.f32 %v832, %v833
        %v835 = vrot.slane %v834, 2
        %v836 = vadd.f32 %v834, %v835
        %v837 = vrot.slane %v836, 1
        %v838 = vadd.f32 %v836, %v837
        %v839 = vadd.f32 %v749, %v751
        %v840 = vrot.slane %v839, 4
        %v841 = vadd.f32 %v839, %v840
        %v842 = vrot.slane %v841, 2
        %v843 = vadd.f32 %v841, %v842
        %v844 = vrot.slane %v843, 1
        %v845 = vadd.f32 %v843, %v844
        %v846 = vadd.f32 %v752, %v754
        %v847 = vrot.slane %v846, 4
        %v848 = vadd.f32 %v846, %v847
        %v849 = vrot.slane %v848, 2
        %v850 = vadd.f32 %v848, %v849
        %v851 = vrot.slane %v850, 1
        %v852 = vadd.f32 %v850, %v851
        %v853 = vadd.f32 %v753, %v755
        %v854 = vrot.slane %v853, 4
        %v855 = vadd.f32 %v853, %v854
        %v856 = vrot.slane %v855, 2
        %v857 = vadd.f32 %v855, %v856
        %v858 = vrot.slane %v857, 1
        %v859 = vadd.f32 %v857, %v858
        %v860 = vadd.f32 %v756, %v758
        %v861 = vrot.slane %v860, 4
        %v862 = vadd.f32 %v860, %v861
        %v863 = vrot.slane %v862, 2
        %v864 = vadd.f32 %v862, %v863
        %v865 = vrot.slane %v864, 1
        %v866 = vadd.f32 %v864, %v865
        %v867 = vadd.f32 %v757, %v759
        %v868 = vrot.slane %v867, 4
        %v869 = vadd.f32 %v867, %v868
        %v870 = vrot.slane %v869, 2
        %v871 = vadd.f32 %v869, %v870
        %v872 = vrot.slane %v871, 1
        %v873 = vadd.f32 %v871, %v872
        %v874 = vadd.f32 %v760, %v762
        %v875 = vrot.slane %v874, 4
        %v876 = vadd.f32 %v874, %v875
        %v877 = vrot.slane %v876, 2
        %v878 = vadd.f32 %v876, %v877
        %v879 = vrot.slane %v878, 1
        %v880 = vadd.f32 %v878, %v879
        %v881 = vadd.f32 %v761, %v763
        %v882 = vrot.slane %v881, 4
        %v883 = vadd.f32 %v881, %v882
        %v884 = vrot.slane %v883, 2
        %v885 = vadd.f32 %v883, %v884
        %v886 = vrot.slane %v885, 1
        %v887 = vadd.f32 %v885, %v886
        %v888 = vadd.f32 %v764, %v766
        %v889 = vrot.slane %v888, 4
        %v890 = vadd.f32 %v888, %v889
        %v891 = vrot.slane %v890, 2
        %v892 = vadd.f32 %v890, %v891
        %v893 = vrot.slane %v892, 1
        %v894 = vadd.f32 %v892, %v893
        %v895 = vadd.f32 %v765, %v767
        %v896 = vrot.slane %v895, 4
        %v897 = vadd.f32 %v895, %v896
        %v898 = vrot.slane %v897, 2
        %v899 = vadd.f32 %v897, %v898
        %v900 = vrot.slane %v899, 1
        %v901 = vadd.f32 %v899, %v900
        %v902 = vadd.f32 %v768, %v770
        %v903 = vrot.slane %v902, 4
        %v904 = vadd.f32 %v902, %v903
        %v905 = vrot.slane %v904, 2
        %v906 = vadd.f32 %v904, %v905
        %v907 = vrot.slane %v906, 1
        %v908 = vadd.f32 %v906, %v907
        %v909 = vadd.f32 %v769, %v771
        %v910 = vrot.slane %v909, 4
        %v911 = vadd.f32 %v909, %v910
        %v912 = vrot.slane %v911, 2
        %v913 = vadd.f32 %v911, %v912
        %v914 = vrot.slane %v913, 1
        %v915 = vadd.f32 %v913, %v914
        %v916 = vadd.f32 %v772, %v774
        %v917 = vrot.slane %v916, 4
        %v918 = vadd.f32 %v916, %v917
        %v919 = vrot.slane %v918, 2
        %v920 = vadd.f32 %v918, %v919
        %v921 = vrot.slane %v920, 1
        %v922 = vadd.f32 %v920, %v921
        %v923 = vadd.f32 %v773, %v775
        %v924 = vrot.slane %v923, 4
        %v925 = vadd.f32 %v923, %v924
        %v926 = vrot.slane %v925, 2
        %v927 = vadd.f32 %v925, %v926
        %v928 = vrot.slane %v927, 1
        %v929 = vadd.f32 %v927, %v928
        %v930 = vadd.f32 %v776, %v778
        %v931 = vrot.slane %v930, 4
        %v932 = vadd.f32 %v930, %v931
        %v933 = vrot.slane %v932, 2
        %v934 = vadd.f32 %v932, %v933
        %v935 = vrot.slane %v934, 1
        %v936 = vadd.f32 %v934, %v935
        %v937 = vadd.f32 %v777, %v779
        %v938 = vrot.slane %v937, 4
        %v939 = vadd.f32 %v937, %v938
        %v940 = vrot.slane %v939, 2
        %v941 = vadd.f32 %v939, %v940
        %v942 = vrot.slane %v941, 1
        %v943 = vadd.f32 %v941, %v942
        %v944 = vadd.f32 %v780, %v782
        %v945 = vrot.slane %v944, 4
        %v946 = vadd.f32 %v944, %v945
        %v947 = vrot.slane %v946, 2
        %v948 = vadd.f32 %v946, %v947
        %v949 = vrot.slane %v948, 1
        %v950 = vadd.f32 %v948, %v949
        %v951 = vadd.f32 %v781, %v783
        %v952 = vrot.slane %v951, 4
        %v953 = vadd.f32 %v951, %v952
        %v954 = vrot.slane %v953, 2
        %v955 = vadd.f32 %v953, %v954
        %v956 = vrot.slane %v955, 1
        %v957 = vadd.f32 %v955, %v956
        %v958 = vadd.f32 %v784, %v786
        %v959 = vrot.slane %v958, 4
        %v960 = vadd.f32 %v958, %v959
        %v961 = vrot.slane %v960, 2
        %v962 = vadd.f32 %v960, %v961
        %v963 = vrot.slane %v962, 1
        %v964 = vadd.f32 %v962, %v963
        %v965 = vadd.f32 %v785, %v787
        %v966 = vrot.slane %v965, 4
        %v967 = vadd.f32 %v965, %v966
        %v968 = vrot.slane %v967, 2
        %v969 = vadd.f32 %v967, %v968
        %v970 = vrot.slane %v969, 1
        %v971 = vadd.f32 %v969, %v970
        %v972 = vadd.f32 %v788, %v790
        %v973 = vrot.slane %v972, 4
        %v974 = vadd.f32 %v972, %v973
        %v975 = vrot.slane %v974, 2
        %v976 = vadd.f32 %v974, %v975
        %v977 = vrot.slane %v976, 1
        %v978 = vadd.f32 %v976, %v977
        %v979 = vadd.f32 %v789, %v791
        %v980 = vrot.slane %v979, 4
        %v981 = vadd.f32 %v979, %v980
        %v982 = vrot.slane %v981, 2
        %v983 = vadd.f32 %v981, %v982
        %v984 = vrot.slane %v983, 1
        %v985 = vadd.f32 %v983, %v984
        %v986 = vadd.f32 %v792, %v794
        %v987 = vrot.slane %v986, 4
        %v988 = vadd.f32 %v986, %v987
        %v989 = vrot.slane %v988, 2
        %v990 = vadd.f32 %v988, %v989
        %v991 = vrot.slane %v990, 1
        %v992 = vadd.f32 %v990, %v991
        %v993 = vadd.f32 %v793, %v795
        %v994 = vrot.slane %v993, 4
        %v995 = vadd.f32 %v993, %v994
        %v996 = vrot.slane %v995, 2
        %v997 = vadd.f32 %v995, %v996
        %v998 = vrot.slane %v997, 1
        %v999 = vadd.f32 %v997, %v998
        %v1000 = vadd.f32 %v796, %v798
        %v1001 = vrot.slane %v1000, 4
        %v1002 = vadd.f32 %v1000, %v1001
        %v1003 = vrot.slane %v1002, 2
        %v1004 = vadd.f32 %v1002, %v1003
        %v1005 = vrot.slane %v1004, 1
        %v1006 = vadd.f32 %v1004, %v1005
        %v1007 = vadd.f32 %v797, %v799
        %v1008 = vrot.slane %v1007, 4
        %v1009 = vadd.f32 %v1007, %v1008
        %v1010 = vrot.slane %v1009, 2
        %v1011 = vadd.f32 %v1009, %v1010
        %v1012 = vrot.slane %v1011, 1
        %v1013 = vadd.f32 %v1011, %v1012
        %v1014 = vadd.f32 %v800, %v802
        %v1015 = vrot.slane %v1014, 4
        %v1016 = vadd.f32 %v1014, %v1015
        %v1017 = vrot.slane %v1016, 2
        %v1018 = vadd.f32 %v1016, %v1017
        %v1019 = vrot.slane %v1018, 1
        %v1020 = vadd.f32 %v1018, %v1019
        %v1021 = vadd.f32 %v801, %v803
        %v1022 = vrot.slane %v1021, 4
        %v1023 = vadd.f32 %v1021, %v1022
        %v1024 = vrot.slane %v1023, 2
        %v1025 = vadd.f32 %v1023, %v1024
        %v1026 = vrot.slane %v1025, 1
        %v1027 = vadd.f32 %v1025, %v1026
        %v1028 = vpack.c.bf16 %v810, %v810
        %v1029 = vpack.c.bf16 %v817, %v817
        %v1030 = vpack.c.bf16 %v824, %v824
        %v1031 = vpack.c.bf16 %v831, %v831
        %v1032 = vpack.c.bf16 %v838, %v838
        %v1033 = vpack.c.bf16 %v845, %v845
        %v1034 = vpack.c.bf16 %v852, %v852
        %v1035 = vpack.c.bf16 %v859, %v859
        %v1036 = vpack.c.bf16 %v866, %v866
        %v1037 = vpack.c.bf16 %v873, %v873
        %v1038 = vpack.c.bf16 %v880, %v880
        %v1039 = vpack.c.bf16 %v887, %v887
        %v1040 = vpack.c.bf16 %v894, %v894
        %v1041 = vpack.c.bf16 %v901, %v901
        %v1042 = vpack.c.bf16 %v908, %v908
        %v1043 = vpack.c.bf16 %v915, %v915
        %v1044 = vpack.c.bf16 %v922, %v922
        %v1045 = vpack.c.bf16 %v929, %v929
        %v1046 = vpack.c.bf16 %v936, %v936
        %v1047 = vpack.c.bf16 %v943, %v943
        %v1048 = vpack.c.bf16 %v950, %v950
        %v1049 = vpack.c.bf16 %v957, %v957
        %v1050 = vpack.c.bf16 %v964, %v964
        %v1051 = vpack.c.bf16 %v971, %v971
        %v1052 = vpack.c.bf16 %v978, %v978
        %v1053 = vpack.c.bf16 %v985, %v985
        %v1054 = vpack.c.bf16 %v992, %v992
        %v1055 = vpack.c.bf16 %v999, %v999
        %v1056 = vpack.c.bf16 %v1006, %v1006
        %v1057 = vpack.c.bf16 %v1013, %v1013
        %v1058 = vpack.c.bf16 %v1020, %v1020
        %v1059 = vpack.c.bf16 %v1027, %v1027
        %v1092 = vunpack.c.l.b16 %v1028
        %v1093 = vunpack.c.l.b16 %v1029
        %v1094 = vunpack.c.l.b16 %v1030
        %v1095 = vunpack.c.l.b16 %v1031
        %v1096 = vunpack.c.l.b16 %v1032
        %v1097 = vunpack.c.l.b16 %v1033
        %v1098 = vunpack.c.l.b16 %v1034
        %v1099 = vunpack.c.l.b16 %v1035
        %v1100 = vunpack.c.l.b16 %v1036
        %v1101 = vunpack.c.l.b16 %v1037
        %v1102 = vunpack.c.l.b16 %v1038
        %v1103 = vunpack.c.l.b16 %v1039
        %v1104 = vunpack.c.l.b16 %v1040
        %v1105 = vunpack.c.l.b16 %v1041
        %v1106 = vunpack.c.l.b16 %v1042
        %v1107 = vunpack.c.l.b16 %v1043
        %v1108 = vunpack.c.l.b16 %v1044
        %v1109 = vunpack.c.l.b16 %v1045
        %v1110 = vunpack.c.l.b16 %v1046
        %v1111 = vunpack.c.l.b16 %v1047
        %v1112 = vunpack.c.l.b16 %v1048
        %v1113 = vunpack.c.l.b16 %v1049
        %v1114 = vunpack.c.l.b16 %v1050
        %v1115 = vunpack.c.l.b16 %v1051
        %v1116 = vunpack.c.l.b16 %v1052
        %v1117 = vunpack.c.l.b16 %v1053
        %v1118 = vunpack.c.l.b16 %v1054
        %v1119 = vunpack.c.l.b16 %v1055
        %v1120 = vunpack.c.l.b16 %v1056
        %v1121 = vunpack.c.l.b16 %v1057
        %v1122 = vunpack.c.l.b16 %v1058
        %v1123 = vunpack.c.l.b16 %v1059
        %vm1124 = vcmask 1041409
        %v1125 = vsel %vm1124, %v1094, %v1092
        %vm1126 = vcmask 1042434
        %v1127 = vsel %vm1126, %v1096, %v1125
        %vm1128 = vcmask 1043459
        %v1129 = vsel %vm1128, %v1098, %v1127
        %vm1130 = vcmask 1044484
        %v1131 = vsel %vm1130, %v1100, %v1129
        %vm1132 = vcmask 1045509
        %v1133 = vsel %vm1132, %v1102, %v1131
        %vm1134 = vcmask 1046534
        %v1135 = vsel %vm1134, %v1104, %v1133
        %vm1136 = vcmask 1047559
        %v1137 = vsel %vm1136, %v1106, %v1135
        %v1138 = vsel %vm1124, %v1095, %v1093
        %v1139 = vsel %vm1126, %v1097, %v1138
        %v1140 = vsel %vm1128, %v1099, %v1139
        %v1141 = vsel %vm1130, %v1101, %v1140
        %v1142 = vsel %vm1132, %v1103, %v1141
        %v1143 = vsel %vm1134, %v1105, %v1142
        %v1144 = vsel %vm1136, %v1107, %v1143
        %v1145 = vsel %vm1124, %v1110, %v1108
        %v1146 = vsel %vm1126, %v1112, %v1145
        %v1147 = vsel %vm1128, %v1114, %v1146
        %v1148 = vsel %vm1130, %v1116, %v1147
        %v1149 = vsel %vm1132, %v1118, %v1148
        %v1150 = vsel %vm1134, %v1120, %v1149
        %v1151 = vsel %vm1136, %v1122, %v1150
        %v1152 = vsel %vm1124, %v1111, %v1109
        %v1153 = vsel %vm1126, %v1113, %v1152
        %v1154 = vsel %vm1128, %v1115, %v1153
        %v1155 = vsel %vm1130, %v1117, %v1154
        %v1156 = vsel %vm1132, %v1119, %v1155
        %v1157 = vsel %vm1134, %v1121, %v1156
        %v1158 = vsel %vm1136, %v1123, %v1157
        %v1159 = vpack.c.b16 %v1151, %v1137
        %v1160 = vpack.c.b16 %v1158, %v1144
        %1163 = vst [vmem:[#allocation2] sm:$0xff] %v1159
        %1164 = vst [vmem:[#allocation2 + $0x8] sm:$0xff] %v1160
        %s1165 = scalar_lea.vmem %s217, 8
        %v1166 = vld [vmem:[%s1165] sm:$0x77]
        %v1168 = vlaneseq
        %v1169 = vshrl.u32 %v1168, 7
        %v1170 = vsub.s32 0, %v1169
        %v1171 = vrot.slane %v1166, %v1170
        %v1172 = vlaneseq
        %v1173 = vshrl.u32 %v1172, 7
        %v1174 = vsub.s32 4, %v1173
        %v1175 = vrot.slane %v1166, %v1174
        %v1178 = vlaneseq
        %v1179 = vshrl.u32 %v1178, 7
        %v1180 = vsub.s32 0, %v1179
        %v1181 = vrot.slane %v1171, %v1180
        %v1182 = vlaneseq
        %v1183 = vshrl.u32 %v1182, 7
        %v1184 = vsub.s32 0, %v1183
        %v1185 = vrot.slane %v1175, %v1184
        %v1186 = vsub.f32 %v224, %v1181
        %v1187 = vsub.f32 %v224, %v1185
        %v1188 = vsub.f32 %v225, %v1181
        %v1189 = vsub.f32 %v225, %v1185
        %v1190 = vand.u32 2147483647, %v1186
        %v1191 = vand.u32 2147483647, %v1187
        %v1192 = vand.u32 2147483647, %v1188
        %v1193 = vand.u32 2147483647, %v1189
        %v1194 = vsub.f32 1.0, %v1190
        %v1195 = vsub.f32 1.0, %v1191
        %v1196 = vsub.f32 1.0, %v1192
        %v1197 = vsub.f32 1.0, %v1193
        %v1198 = vmax.f32 %v1194, 0.0
        %v1199 = vmax.f32 %v1195, 0.0
        %v1200 = vmax.f32 %v1196, 0.0
        %v1201 = vmax.f32 %v1197, 0.0
        %v1202 = vpack.c.bf16 %v1200, %v1198
        %v1203 = vpack.c.bf16 %v1201, %v1199
        %v1204 = vlaneseq
        %v1205 = vshrl.u32 %v1204, 7
        %v1206 = vsub.s32 1, %v1205
        %v1207 = vrot.slane %v1166, %v1206
        %v1208 = vlaneseq
        %v1209 = vshrl.u32 %v1208, 7
        %v1210 = vsub.s32 5, %v1209
        %v1211 = vrot.slane %v1166, %v1210
        %v1214 = vlaneseq
        %v1215 = vshrl.u32 %v1214, 7
        %v1216 = vsub.s32 1, %v1215
        %v1217 = vrot.slane %v1207, %v1216
        %v1218 = vlaneseq
        %v1219 = vshrl.u32 %v1218, 7
        %v1220 = vsub.s32 1, %v1219
        %v1221 = vrot.slane %v1211, %v1220
        %v1222 = vsub.f32 %v224, %v1217
        %v1223 = vsub.f32 %v224, %v1221
        %v1224 = vsub.f32 %v225, %v1217
        %v1225 = vsub.f32 %v225, %v1221
        %v1226 = vand.u32 2147483647, %v1222
        %v1227 = vand.u32 2147483647, %v1223
        %v1228 = vand.u32 2147483647, %v1224
        %v1229 = vand.u32 2147483647, %v1225
        %v1230 = vsub.f32 1.0, %v1226
        %v1231 = vsub.f32 1.0, %v1227
        %v1232 = vsub.f32 1.0, %v1228
        %v1233 = vsub.f32 1.0, %v1229
        %v1234 = vmax.f32 %v1230, 0.0
        %v1235 = vmax.f32 %v1231, 0.0
        %v1236 = vmax.f32 %v1232, 0.0
        %v1237 = vmax.f32 %v1233, 0.0
        %v1238 = vlaneseq
        %v1239 = vshrl.u32 %v1238, 7
        %v1240 = vsub.s32 2, %v1239
        %v1241 = vrot.slane %v1166, %v1240
        %v1242 = vlaneseq
        %v1243 = vshrl.u32 %v1242, 7
        %v1244 = vsub.s32 6, %v1243
        %v1245 = vrot.slane %v1166, %v1244
        %v1248 = vlaneseq
        %v1249 = vshrl.u32 %v1248, 7
        %v1250 = vsub.s32 2, %v1249
        %v1251 = vrot.slane %v1241, %v1250
        %v1252 = vlaneseq
        %v1253 = vshrl.u32 %v1252, 7
        %v1254 = vsub.s32 2, %v1253
        %v1255 = vrot.slane %v1245, %v1254
        %v1256 = vmul.f32 %v1234, %v1251
        %v1257 = vmul.f32 %v1235, %v1255
        %v1258 = vmul.f32 %v1236, %v1251
        %v1259 = vmul.f32 %v1237, %v1255
        %v1260 = vpack.c.bf16 %v1258, %v1256
        %v1261 = vpack.c.bf16 %v1259, %v1257
        %v1262 = vld [vmem:[%s208] sm:$0xf]
        %v1263 = vld [vmem:[%s208 + $0x4] sm:$0xf]
        %v1264 = vld [vmem:[%s208 + $0x8] sm:$0xf]
        %v1265 = vld [vmem:[%s208 + $0xc] sm:$0xf]
        %v1266 = vld [vmem:[%s208 + $0x10] sm:$0xf]
        %v1267 = vld [vmem:[%s208 + $0x14] sm:$0xf]
        %v1268 = vld [vmem:[%s208 + $0x18] sm:$0xf]
        %v1269 = vld [vmem:[%s208 + $0x1c] sm:$0xf]
        %v1270 = vld [vmem:[%s208 + $0x20] sm:$0xf]
        %v1271 = vld [vmem:[%s208 + $0x24] sm:$0xf]
        %v1272 = vld [vmem:[%s208 + $0x28] sm:$0xf]
        %v1273 = vld [vmem:[%s208 + $0x2c] sm:$0xf]
        %v1274 = vld [vmem:[%s208 + $0x30] sm:$0xf]
        %v1275 = vld [vmem:[%s208 + $0x34] sm:$0xf]
        %v1276 = vld [vmem:[%s208 + $0x38] sm:$0xf]
        %v1277 = vld [vmem:[%s208 + $0x3c] sm:$0xf]
        %v1278 = vld [vmem:[%s208 + $0x40] sm:$0xf]
        %v1279 = vld [vmem:[%s208 + $0x44] sm:$0xf]
        %v1280 = vld [vmem:[%s208 + $0x48] sm:$0xf]
        %v1281 = vld [vmem:[%s208 + $0x4c] sm:$0xf]
        %v1282 = vld [vmem:[%s208 + $0x50] sm:$0xf]
        %v1283 = vld [vmem:[%s208 + $0x54] sm:$0xf]
        %v1284 = vld [vmem:[%s208 + $0x58] sm:$0xf]
        %v1285 = vld [vmem:[%s208 + $0x5c] sm:$0xf]
        %v1286 = vld [vmem:[%s208 + $0x60] sm:$0xf]
        %v1287 = vld [vmem:[%s208 + $0x64] sm:$0xf]
        %v1288 = vld [vmem:[%s208 + $0x68] sm:$0xf]
        %v1289 = vld [vmem:[%s208 + $0x6c] sm:$0xf]
        %v1290 = vld [vmem:[%s208 + $0x70] sm:$0xf]
        %v1291 = vld [vmem:[%s208 + $0x74] sm:$0xf]
        %v1292 = vld [vmem:[%s208 + $0x78] sm:$0xf]
        %v1293 = vld [vmem:[%s208 + $0x7c] sm:$0xf]
        %v1326 = vunpack.c.l.b16 %v1262
        %v1327 = vunpack.c.l.b16 %v1263
        %v1328 = vunpack.c.l.b16 %v1264
        %v1329 = vunpack.c.l.b16 %v1265
        %v1330 = vunpack.c.l.b16 %v1266
        %v1331 = vunpack.c.l.b16 %v1267
        %v1332 = vunpack.c.l.b16 %v1268
        %v1333 = vunpack.c.l.b16 %v1269
        %v1334 = vunpack.c.l.b16 %v1270
        %v1335 = vunpack.c.l.b16 %v1271
        %v1336 = vunpack.c.l.b16 %v1272
        %v1337 = vunpack.c.l.b16 %v1273
        %v1338 = vunpack.c.l.b16 %v1274
        %v1339 = vunpack.c.l.b16 %v1275
        %v1340 = vunpack.c.l.b16 %v1276
        %v1341 = vunpack.c.l.b16 %v1277
        %v1342 = vunpack.c.l.b16 %v1278
        %v1343 = vunpack.c.l.b16 %v1279
        %v1344 = vunpack.c.l.b16 %v1280
        %v1345 = vunpack.c.l.b16 %v1281
        %v1346 = vunpack.c.l.b16 %v1282
        %v1347 = vunpack.c.l.b16 %v1283
        %v1348 = vunpack.c.l.b16 %v1284
        %v1349 = vunpack.c.l.b16 %v1285
        %v1350 = vunpack.c.l.b16 %v1286
        %v1351 = vunpack.c.l.b16 %v1287
        %v1352 = vunpack.c.l.b16 %v1288
        %v1353 = vunpack.c.l.b16 %v1289
        %v1354 = vunpack.c.l.b16 %v1290
        %v1355 = vunpack.c.l.b16 %v1291
        %v1356 = vunpack.c.l.b16 %v1292
        %v1357 = vunpack.c.l.b16 %v1293
        %v1358 = vpack.c.b16 %v1327, %v1326
        %v1359 = vpack.c.b16 %v1329, %v1328
        %v1360 = vpack.c.b16 %v1331, %v1330
        %v1361 = vpack.c.b16 %v1333, %v1332
        %v1362 = vpack.c.b16 %v1335, %v1334
        %v1363 = vpack.c.b16 %v1337, %v1336
        %v1364 = vpack.c.b16 %v1339, %v1338
        %v1365 = vpack.c.b16 %v1341, %v1340
        %v1366 = vpack.c.b16 %v1343, %v1342
        %v1367 = vpack.c.b16 %v1345, %v1344
        %v1368 = vpack.c.b16 %v1347, %v1346
        %v1369 = vpack.c.b16 %v1349, %v1348
        %v1370 = vpack.c.b16 %v1351, %v1350
        %v1371 = vpack.c.b16 %v1353, %v1352
        %v1372 = vpack.c.b16 %v1355, %v1354
        %v1373 = vpack.c.b16 %v1357, %v1356
        %v1375 = vsel %vm434, %v1358, 0
        %v1378 = vsel %vm434, %v1359, 0
        %v1381 = vsel %vm434, %v1360, 0
        %v1384 = vsel %vm434, %v1361, 0
        %v1387 = vsel %vm434, %v1362, 0
        %v1390 = vsel %vm434, %v1363, 0
        %v1393 = vsel %vm434, %v1364, 0
        %v1396 = vsel %vm434, %v1365, 0
        %v1399 = vsel %vm434, %v1366, 0
        %v1402 = vsel %vm434, %v1367, 0
        %v1405 = vsel %vm434, %v1368, 0
        %v1408 = vsel %vm434, %v1369, 0
        %v1411 = vsel %vm434, %v1370, 0
        %v1414 = vsel %vm434, %v1371, 0
        %v1417 = vsel %vm434, %v1372, 0
        %v1420 = vsel %vm434, %v1373, 0
        %1422 = vmatprep.subr.bf16.mxu0 %v1203
        %1423 = vmatpush1.bf16.msra.mxu0 %v1202
        %1424 = vmatprep.subr.bf16.mxu0 0
        %1425 = vmatpush1.bf16.msra.mxu0 0
        %1426 = vmatprep.subr.bf16.mxu0 0
        %1427 = vmatpush1.bf16.msra.mxu0 0
        %1428 = vmatprep.subr.bf16.mxu0 0
        %1429 = vmatpush1.bf16.msra.mxu0 0
        %1430 = vmatprep.subr.bf16.mxu0 0
        %1431 = vmatpush1.bf16.msra.mxu0 0
        %1432 = vmatprep.subr.bf16.mxu0 0
        %1433 = vmatpush1.bf16.msra.mxu0 0
        %1434 = vmatprep.subr.bf16.mxu0 0
        %1435 = vmatpush1.bf16.msra.mxu0 0
        %1436 = vmatprep.subr.bf16.mxu0 0
        %1437 = vmatpush1.bf16.msra.mxu0 0
        %1438 = vmatprep.subr.bf16.mxu0 0
        %1439 = vmatpush1.bf16.msra.mxu0 0
        %1440 = vmatprep.subr.bf16.mxu0 0
        %1441 = vmatpush1.bf16.msra.mxu0 0
        %1442 = vmatprep.subr.bf16.mxu0 0
        %1443 = vmatpush1.bf16.msra.mxu0 0
        %1444 = vmatprep.subr.bf16.mxu0 0
        %1445 = vmatpush1.bf16.msra.mxu0 0
        %1446 = vmatprep.subr.bf16.mxu0 0
        %1447 = vmatpush1.bf16.msra.mxu0 0
        %1448 = vmatprep.subr.bf16.mxu0 0
        %1449 = vmatpush1.bf16.msra.mxu0 0
        %1450 = vmatprep.subr.bf16.mxu0 0
        %1451 = vmatpush1.bf16.msra.mxu0 0
        %1452 = vmatprep.subr.bf16.mxu0 0
        %1453 = vmatpush1.bf16.msra.mxu0 0
        %1454 = vmatprep.mubr.bf16.mxu0 0
        %1455 = vmatmul.mubr.bf16.gmra.mrb[0].mxu0 %v1375
        %v1456 = vpop.f32.mrb[0].mxu0
        %v1457 = vadd.f32 0.0, %v1456
        %v1458 = vpop.f32.mrb[0].mxu0
        %v1459 = vadd.f32 0.0, %v1458
        %v1460 = vpop.f32.mrb[0].mxu0
        %v1461 = vadd.f32 0.0, %v1460
        %v1462 = vpop.f32.mrb[0].mxu0
        %v1463 = vadd.f32 0.0, %v1462
        %1464 = vmatprep.mubr.bf16.mxu0 0
        %1465 = vmatmul.mubr.bf16.gmra.mrb[0].mxu0 %v1378
        %v1466 = vpop.f32.mrb[0].mxu0
        %v1467 = vadd.f32 0.0, %v1466
        %v1468 = vpop.f32.mrb[0].mxu0
        %v1469 = vadd.f32 0.0, %v1468
        %v1470 = vpop.f32.mrb[0].mxu0
        %v1471 = vadd.f32 0.0, %v1470
        %v1472 = vpop.f32.mrb[0].mxu0
        %v1473 = vadd.f32 0.0, %v1472
        %1474 = vmatprep.mubr.bf16.mxu0 0
        %1475 = vmatmul.mubr.bf16.gmra.mrb[0].mxu0 %v1381
        %v1476 = vpop.f32.mrb[0].mxu0
        %v1477 = vadd.f32 0.0, %v1476
        %v1478 = vpop.f32.mrb[0].mxu0
        %v1479 = vadd.f32 0.0, %v1478
        %v1480 = vpop.f32.mrb[0].mxu0
        %v1481 = vadd.f32 0.0, %v1480
        %v1482 = vpop.f32.mrb[0].mxu0
        %v1483 = vadd.f32 0.0, %v1482
        %1484 = vmatprep.mubr.bf16.mxu0 0
        %1485 = vmatmul.mubr.bf16.gmra.mrb[0].mxu0 %v1384
        %v1486 = vpop.f32.mrb[0].mxu0
        %v1487 = vadd.f32 0.0, %v1486
        %v1488 = vpop.f32.mrb[0].mxu0
        %v1489 = vadd.f32 0.0, %v1488
        %v1490 = vpop.f32.mrb[0].mxu0
        %v1491 = vadd.f32 0.0, %v1490
        %v1492 = vpop.f32.mrb[0].mxu0
        %v1493 = vadd.f32 0.0, %v1492
        %1494 = vmatprep.mubr.bf16.mxu0 0
        %1495 = vmatmul.mubr.bf16.gmra.mrb[0].mxu0 %v1387
        %v1496 = vpop.f32.mrb[0].mxu0
        %v1497 = vadd.f32 0.0, %v1496
        %v1498 = vpop.f32.mrb[0].mxu0
        %v1499 = vadd.f32 0.0, %v1498
        %v1500 = vpop.f32.mrb[0].mxu0
        %v1501 = vadd.f32 0.0, %v1500
        %v1502 = vpop.f32.mrb[0].mxu0
        %v1503 = vadd.f32 0.0, %v1502
        %1504 = vmatprep.mubr.bf16.mxu0 0
        %1505 = vmatmul.mubr.bf16.gmra.mrb[0].mxu0 %v1390
        %v1506 = vpop.f32.mrb[0].mxu0
        %v1507 = vadd.f32 0.0, %v1506
        %v1508 = vpop.f32.mrb[0].mxu0
        %v1509 = vadd.f32 0.0, %v1508
        %v1510 = vpop.f32.mrb[0].mxu0
        %v1511 = vadd.f32 0.0, %v1510
        %v1512 = vpop.f32.mrb[0].mxu0
        %v1513 = vadd.f32 0.0, %v1512
        %1514 = vmatprep.mubr.bf16.mxu0 0
        %1515 = vmatmul.mubr.bf16.gmra.mrb[0].mxu0 %v1393
        %v1516 = vpop.f32.mrb[0].mxu0
        %v1517 = vadd.f32 0.0, %v1516
        %v1518 = vpop.f32.mrb[0].mxu0
        %v1519 = vadd.f32 0.0, %v1518
        %v1520 = vpop.f32.mrb[0].mxu0
        %v1521 = vadd.f32 0.0, %v1520
        %v1522 = vpop.f32.mrb[0].mxu0
        %v1523 = vadd.f32 0.0, %v1522
        %1524 = vmatprep.mubr.bf16.mxu0 0
        %1525 = vmatmul.mubr.bf16.gmra.mrb[0].mxu0 %v1396
        %v1526 = vpop.f32.mrb[0].mxu0
        %v1527 = vadd.f32 0.0, %v1526
        %v1528 = vpop.f32.mrb[0].mxu0
        %v1529 = vadd.f32 0.0, %v1528
        %v1530 = vpop.f32.mrb[0].mxu0
        %v1531 = vadd.f32 0.0, %v1530
        %v1532 = vpop.f32.mrb[0].mxu0
        %v1533 = vadd.f32 0.0, %v1532
        %1534 = vmatprep.mubr.bf16.mxu0 0
        %1535 = vmatmul.mubr.bf16.gmra.mrb[0].mxu0 %v1399
        %v1536 = vpop.f32.mrb[0].mxu0
        %v1537 = vadd.f32 0.0, %v1536
        %v1538 = vpop.f32.mrb[0].mxu0
        %v1539 = vadd.f32 0.0, %v1538
        %v1540 = vpop.f32.mrb[0].mxu0
        %v1541 = vadd.f32 0.0, %v1540
        %v1542 = vpop.f32.mrb[0].mxu0
        %v1543 = vadd.f32 0.0, %v1542
        %1544 = vmatprep.mubr.bf16.mxu0 0
        %1545 = vmatmul.mubr.bf16.gmra.mrb[0].mxu0 %v1402
        %v1546 = vpop.f32.mrb[0].mxu0
        %v1547 = vadd.f32 0.0, %v1546
        %v1548 = vpop.f32.mrb[0].mxu0
        %v1549 = vadd.f32 0.0, %v1548
        %v1550 = vpop.f32.mrb[0].mxu0
        %v1551 = vadd.f32 0.0, %v1550
        %v1552 = vpop.f32.mrb[0].mxu0
        %v1553 = vadd.f32 0.0, %v1552
        %1554 = vmatprep.mubr.bf16.mxu0 0
        %1555 = vmatmul.mubr.bf16.gmra.mrb[0].mxu0 %v1405
        %v1556 = vpop.f32.mrb[0].mxu0
        %v1557 = vadd.f32 0.0, %v1556
        %v1558 = vpop.f32.mrb[0].mxu0
        %v1559 = vadd.f32 0.0, %v1558
        %v1560 = vpop.f32.mrb[0].mxu0
        %v1561 = vadd.f32 0.0, %v1560
        %v1562 = vpop.f32.mrb[0].mxu0
        %v1563 = vadd.f32 0.0, %v1562
        %1564 = vmatprep.mubr.bf16.mxu0 0
        %1565 = vmatmul.mubr.bf16.gmra.mrb[0].mxu0 %v1408
        %v1566 = vpop.f32.mrb[0].mxu0
        %v1567 = vadd.f32 0.0, %v1566
        %v1568 = vpop.f32.mrb[0].mxu0
        %v1569 = vadd.f32 0.0, %v1568
        %v1570 = vpop.f32.mrb[0].mxu0
        %v1571 = vadd.f32 0.0, %v1570
        %v1572 = vpop.f32.mrb[0].mxu0
        %v1573 = vadd.f32 0.0, %v1572
        %1574 = vmatprep.mubr.bf16.mxu0 0
        %1575 = vmatmul.mubr.bf16.gmra.mrb[0].mxu0 %v1411
        %v1576 = vpop.f32.mrb[0].mxu0
        %v1577 = vadd.f32 0.0, %v1576
        %v1578 = vpop.f32.mrb[0].mxu0
        %v1579 = vadd.f32 0.0, %v1578
        %v1580 = vpop.f32.mrb[0].mxu0
        %v1581 = vadd.f32 0.0, %v1580
        %v1582 = vpop.f32.mrb[0].mxu0
        %v1583 = vadd.f32 0.0, %v1582
        %1584 = vmatprep.mubr.bf16.mxu0 0
        %1585 = vmatmul.mubr.bf16.gmra.mrb[0].mxu0 %v1414
        %v1586 = vpop.f32.mrb[0].mxu0
        %v1587 = vadd.f32 0.0, %v1586
        %v1588 = vpop.f32.mrb[0].mxu0
        %v1589 = vadd.f32 0.0, %v1588
        %v1590 = vpop.f32.mrb[0].mxu0
        %v1591 = vadd.f32 0.0, %v1590
        %v1592 = vpop.f32.mrb[0].mxu0
        %v1593 = vadd.f32 0.0, %v1592
        %1594 = vmatprep.mubr.bf16.mxu0 0
        %1595 = vmatmul.mubr.bf16.gmra.mrb[0].mxu0 %v1417
        %v1596 = vpop.f32.mrb[0].mxu0
        %v1597 = vadd.f32 0.0, %v1596
        %v1598 = vpop.f32.mrb[0].mxu0
        %v1599 = vadd.f32 0.0, %v1598
        %v1600 = vpop.f32.mrb[0].mxu0
        %v1601 = vadd.f32 0.0, %v1600
        %v1602 = vpop.f32.mrb[0].mxu0
        %v1603 = vadd.f32 0.0, %v1602
        %1604 = vmatprep.mubr.bf16.mxu0 0
        %1605 = vmatmul.mubr.bf16.gmra.mrb[0].mxu0 %v1420
        %v1606 = vpop.f32.mrb[0].mxu0
        %v1607 = vadd.f32 0.0, %v1606
        %v1608 = vpop.f32.mrb[0].mxu0
        %v1609 = vadd.f32 0.0, %v1608
        %v1610 = vpop.f32.mrb[0].mxu0
        %v1611 = vadd.f32 0.0, %v1610
        %v1612 = vpop.f32.mrb[0].mxu0
        %v1613 = vadd.f32 0.0, %v1612
        %1614 = vdwg.mxu0
        %v1615 = vpack.c.bf16 %v1461, %v1457
        %v1616 = vpack.c.bf16 %v1463, %v1459
        %v1617 = vpack.c.bf16 %v1471, %v1467
        %v1618 = vpack.c.bf16 %v1473, %v1469
        %v1619 = vpack.c.bf16 %v1481, %v1477
        %v1620 = vpack.c.bf16 %v1483, %v1479
        %v1621 = vpack.c.bf16 %v1491, %v1487
        %v1622 = vpack.c.bf16 %v1493, %v1489
        %v1623 = vpack.c.bf16 %v1501, %v1497
        %v1624 = vpack.c.bf16 %v1503, %v1499
        %v1625 = vpack.c.bf16 %v1511, %v1507
        %v1626 = vpack.c.bf16 %v1513, %v1509
        %v1627 = vpack.c.bf16 %v1521, %v1517
        %v1628 = vpack.c.bf16 %v1523, %v1519
        %v1629 = vpack.c.bf16 %v1531, %v1527
        %v1630 = vpack.c.bf16 %v1533, %v1529
        %v1631 = vpack.c.bf16 %v1541, %v1537
        %v1632 = vpack.c.bf16 %v1543, %v1539
        %v1633 = vpack.c.bf16 %v1551, %v1547
        %v1634 = vpack.c.bf16 %v1553, %v1549
        %v1635 = vpack.c.bf16 %v1561, %v1557
        %v1636 = vpack.c.bf16 %v1563, %v1559
        %v1637 = vpack.c.bf16 %v1571, %v1567
        %v1638 = vpack.c.bf16 %v1573, %v1569
        %v1639 = vpack.c.bf16 %v1581, %v1577
        %v1640 = vpack.c.bf16 %v1583, %v1579
        %v1641 = vpack.c.bf16 %v1591, %v1587
        %v1642 = vpack.c.bf16 %v1593, %v1589
        %v1643 = vpack.c.bf16 %v1601, %v1597
        %v1644 = vpack.c.bf16 %v1603, %v1599
        %v1645 = vpack.c.bf16 %v1611, %v1607
        %v1646 = vpack.c.bf16 %v1613, %v1609
        %v1647 = vmul.bf16 %v1615, %v1260
        %v1648 = vmul.bf16 %v1616, %v1261
        %v1649 = vmul.bf16 %v1617, %v1260
        %v1650 = vmul.bf16 %v1618, %v1261
        %v1651 = vmul.bf16 %v1619, %v1260
        %v1652 = vmul.bf16 %v1620, %v1261
        %v1653 = vmul.bf16 %v1621, %v1260
        %v1654 = vmul.bf16 %v1622, %v1261
        %v1655 = vmul.bf16 %v1623, %v1260
        %v1656 = vmul.bf16 %v1624, %v1261
        %v1657 = vmul.bf16 %v1625, %v1260
        %v1658 = vmul.bf16 %v1626, %v1261
        %v1659 = vmul.bf16 %v1627, %v1260
        %v1660 = vmul.bf16 %v1628, %v1261
        %v1661 = vmul.bf16 %v1629, %v1260
        %v1662 = vmul.bf16 %v1630, %v1261
        %v1663 = vmul.bf16 %v1631, %v1260
        %v1664 = vmul.bf16 %v1632, %v1261
        %v1665 = vmul.bf16 %v1633, %v1260
        %v1666 = vmul.bf16 %v1634, %v1261
        %v1667 = vmul.bf16 %v1635, %v1260
        %v1668 = vmul.bf16 %v1636, %v1261
        %v1669 = vmul.bf16 %v1637, %v1260
        %v1670 = vmul.bf16 %v1638, %v1261
        %v1671 = vmul.bf16 %v1639, %v1260
        %v1672 = vmul.bf16 %v1640, %v1261
        %v1673 = vmul.bf16 %v1641, %v1260
        %v1674 = vmul.bf16 %v1642, %v1261
        %v1675 = vmul.bf16 %v1643, %v1260
        %v1676 = vmul.bf16 %v1644, %v1261
        %v1677 = vmul.bf16 %v1645, %v1260
        %v1678 = vmul.bf16 %v1646, %v1261
        %v1679 = vunpack.c.l.bf16 %v1647
        %v1680 = vunpack.c.l.bf16 %v1648
        %v1681 = vunpack.c.h.bf16 %v1647
        %v1682 = vunpack.c.h.bf16 %v1648
        %v1683 = vunpack.c.l.bf16 %v1649
        %v1684 = vunpack.c.l.bf16 %v1650
        %v1685 = vunpack.c.h.bf16 %v1649
        %v1686 = vunpack.c.h.bf16 %v1650
        %v1687 = vunpack.c.l.bf16 %v1651
        %v1688 = vunpack.c.l.bf16 %v1652
        %v1689 = vunpack.c.h.bf16 %v1651
        %v1690 = vunpack.c.h.bf16 %v1652
        %v1691 = vunpack.c.l.bf16 %v1653
        %v1692 = vunpack.c.l.bf16 %v1654
        %v1693 = vunpack.c.h.bf16 %v1653
        %v1694 = vunpack.c.h.bf16 %v1654
        %v1695 = vunpack.c.l.bf16 %v1655
        %v1696 = vunpack.c.l.bf16 %v1656
        %v1697 = vunpack.c.h.bf16 %v1655
        %v1698 = vunpack.c.h.bf16 %v1656
        %v1699 = vunpack.c.l.bf16 %v1657
        %v1700 = vunpack.c.l.bf16 %v1658
        %v1701 = vunpack.c.h.bf16 %v1657
        %v1702 = vunpack.c.h.bf16 %v1658
        %v1703 = vunpack.c.l.bf16 %v1659
        %v1704 = vunpack.c.l.bf16 %v1660
        %v1705 = vunpack.c.h.bf16 %v1659
        %v1706 = vunpack.c.h.bf16 %v1660
        %v1707 = vunpack.c.l.bf16 %v1661
        %v1708 = vunpack.c.l.bf16 %v1662
        %v1709 = vunpack.c.h.bf16 %v1661
        %v1710 = vunpack.c.h.bf16 %v1662
        %v1711 = vunpack.c.l.bf16 %v1663
        %v1712 = vunpack.c.l.bf16 %v1664
        %v1713 = vunpack.c.h.bf16 %v1663
        %v1714 = vunpack.c.h.bf16 %v1664
        %v1715 = vunpack.c.l.bf16 %v1665
        %v1716 = vunpack.c.l.bf16 %v1666
        %v1717 = vunpack.c.h.bf16 %v1665
        %v1718 = vunpack.c.h.bf16 %v1666
        %v1719 = vunpack.c.l.bf16 %v1667
        %v1720 = vunpack.c.l.bf16 %v1668
        %v1721 = vunpack.c.h.bf16 %v1667
        %v1722 = vunpack.c.h.bf16 %v1668
        %v1723 = vunpack.c.l.bf16 %v1669
        %v1724 = vunpack.c.l.bf16 %v1670
        %v1725 = vunpack.c.h.bf16 %v1669
        %v1726 = vunpack.c.h.bf16 %v1670
        %v1727 = vunpack.c.l.bf16 %v1671
        %v1728 = vunpack.c.l.bf16 %v1672
        %v1729 = vunpack.c.h.bf16 %v1671
        %v1730 = vunpack.c.h.bf16 %v1672
        %v1731 = vunpack.c.l.bf16 %v1673
        %v1732 = vunpack.c.l.bf16 %v1674
        %v1733 = vunpack.c.h.bf16 %v1673
        %v1734 = vunpack.c.h.bf16 %v1674
        %v1735 = vunpack.c.l.bf16 %v1675
        %v1736 = vunpack.c.l.bf16 %v1676
        %v1737 = vunpack.c.h.bf16 %v1675
        %v1738 = vunpack.c.h.bf16 %v1676
        %v1739 = vunpack.c.l.bf16 %v1677
        %v1740 = vunpack.c.l.bf16 %v1678
        %v1741 = vunpack.c.h.bf16 %v1677
        %v1742 = vunpack.c.h.bf16 %v1678
        %v1743 = vadd.f32 %v1679, %v1681
        %v1744 = vrot.slane %v1743, 4
        %v1745 = vadd.f32 %v1743, %v1744
        %v1746 = vrot.slane %v1745, 2
        %v1747 = vadd.f32 %v1745, %v1746
        %v1748 = vrot.slane %v1747, 1
        %v1749 = vadd.f32 %v1747, %v1748
        %v1750 = vadd.f32 %v1680, %v1682
        %v1751 = vrot.slane %v1750, 4
        %v1752 = vadd.f32 %v1750, %v1751
        %v1753 = vrot.slane %v1752, 2
        %v1754 = vadd.f32 %v1752, %v1753
        %v1755 = vrot.slane %v1754, 1
        %v1756 = vadd.f32 %v1754, %v1755
        %v1757 = vadd.f32 %v1683, %v1685
        %v1758 = vrot.slane %v1757, 4
        %v1759 = vadd.f32 %v1757, %v1758
        %v1760 = vrot.slane %v1759, 2
        %v1761 = vadd.f32 %v1759, %v1760
        %v1762 = vrot.slane %v1761, 1
        %v1763 = vadd.f32 %v1761, %v1762
        %v1764 = vadd.f32 %v1684, %v1686
        %v1765 = vrot.slane %v1764, 4
        %v1766 = vadd.f32 %v1764, %v1765
        %v1767 = vrot.slane %v1766, 2
        %v1768 = vadd.f32 %v1766, %v1767
        %v1769 = vrot.slane %v1768, 1
        %v1770 = vadd.f32 %v1768, %v1769
        %v1771 = vadd.f32 %v1687, %v1689
        %v1772 = vrot.slane %v1771, 4
        %v1773 = vadd.f32 %v1771, %v1772
        %v1774 = vrot.slane %v1773, 2
        %v1775 = vadd.f32 %v1773, %v1774
        %v1776 = vrot.slane %v1775, 1
        %v1777 = vadd.f32 %v1775, %v1776
        %v1778 = vadd.f32 %v1688, %v1690
        %v1779 = vrot.slane %v1778, 4
        %v1780 = vadd.f32 %v1778, %v1779
        %v1781 = vrot.slane %v1780, 2
        %v1782 = vadd.f32 %v1780, %v1781
        %v1783 = vrot.slane %v1782, 1
        %v1784 = vadd.f32 %v1782, %v1783
        %v1785 = vadd.f32 %v1691, %v1693
        %v1786 = vrot.slane %v1785, 4
        %v1787 = vadd.f32 %v1785, %v1786
        %v1788 = vrot.slane %v1787, 2
        %v1789 = vadd.f32 %v1787, %v1788
        %v1790 = vrot.slane %v1789, 1
        %v1791 = vadd.f32 %v1789, %v1790
        %v1792 = vadd.f32 %v1692, %v1694
        %v1793 = vrot.slane %v1792, 4
        %v1794 = vadd.f32 %v1792, %v1793
        %v1795 = vrot.slane %v1794, 2
        %v1796 = vadd.f32 %v1794, %v1795
        %v1797 = vrot.slane %v1796, 1
        %v1798 = vadd.f32 %v1796, %v1797
        %v1799 = vadd.f32 %v1695, %v1697
        %v1800 = vrot.slane %v1799, 4
        %v1801 = vadd.f32 %v1799, %v1800
        %v1802 = vrot.slane %v1801, 2
        %v1803 = vadd.f32 %v1801, %v1802
        %v1804 = vrot.slane %v1803, 1
        %v1805 = vadd.f32 %v1803, %v1804
        %v1806 = vadd.f32 %v1696, %v1698
        %v1807 = vrot.slane %v1806, 4
        %v1808 = vadd.f32 %v1806, %v1807
        %v1809 = vrot.slane %v1808, 2
        %v1810 = vadd.f32 %v1808, %v1809
        %v1811 = vrot.slane %v1810, 1
        %v1812 = vadd.f32 %v1810, %v1811
        %v1813 = vadd.f32 %v1699, %v1701
        %v1814 = vrot.slane %v1813, 4
        %v1815 = vadd.f32 %v1813, %v1814
        %v1816 = vrot.slane %v1815, 2
        %v1817 = vadd.f32 %v1815, %v1816
        %v1818 = vrot.slane %v1817, 1
        %v1819 = vadd.f32 %v1817, %v1818
        %v1820 = vadd.f32 %v1700, %v1702
        %v1821 = vrot.slane %v1820, 4
        %v1822 = vadd.f32 %v1820, %v1821
        %v1823 = vrot.slane %v1822, 2
        %v1824 = vadd.f32 %v1822, %v1823
        %v1825 = vrot.slane %v1824, 1
        %v1826 = vadd.f32 %v1824, %v1825
        %v1827 = vadd.f32 %v1703, %v1705
        %v1828 = vrot.slane %v1827, 4
        %v1829 = vadd.f32 %v1827, %v1828
        %v1830 = vrot.slane %v1829, 2
        %v1831 = vadd.f32 %v1829, %v1830
        %v1832 = vrot.slane %v1831, 1
        %v1833 = vadd.f32 %v1831, %v1832
        %v1834 = vadd.f32 %v1704, %v1706
        %v1835 = vrot.slane %v1834, 4
        %v1836 = vadd.f32 %v1834, %v1835
        %v1837 = vrot.slane %v1836, 2
        %v1838 = vadd.f32 %v1836, %v1837
        %v1839 = vrot.slane %v1838, 1
        %v1840 = vadd.f32 %v1838, %v1839
        %v1841 = vadd.f32 %v1707, %v1709
        %v1842 = vrot.slane %v1841, 4
        %v1843 = vadd.f32 %v1841, %v1842
        %v1844 = vrot.slane %v1843, 2
        %v1845 = vadd.f32 %v1843, %v1844
        %v1846 = vrot.slane %v1845, 1
        %v1847 = vadd.f32 %v1845, %v1846
        %v1848 = vadd.f32 %v1708, %v1710
        %v1849 = vrot.slane %v1848, 4
        %v1850 = vadd.f32 %v1848, %v1849
        %v1851 = vrot.slane %v1850, 2
        %v1852 = vadd.f32 %v1850, %v1851
        %v1853 = vrot.slane %v1852, 1
        %v1854 = vadd.f32 %v1852, %v1853
        %v1855 = vadd.f32 %v1711, %v1713
        %v1856 = vrot.slane %v1855, 4
        %v1857 = vadd.f32 %v1855, %v1856
        %v1858 = vrot.slane %v1857, 2
        %v1859 = vadd.f32 %v1857, %v1858
        %v1860 = vrot.slane %v1859, 1
        %v1861 = vadd.f32 %v1859, %v1860
        %v1862 = vadd.f32 %v1712, %v1714
        %v1863 = vrot.slane %v1862, 4
        %v1864 = vadd.f32 %v1862, %v1863
        %v1865 = vrot.slane %v1864, 2
        %v1866 = vadd.f32 %v1864, %v1865
        %v1867 = vrot.slane %v1866, 1
        %v1868 = vadd.f32 %v1866, %v1867
        %v1869 = vadd.f32 %v1715, %v1717
        %v1870 = vrot.slane %v1869, 4
        %v1871 = vadd.f32 %v1869, %v1870
        %v1872 = vrot.slane %v1871, 2
        %v1873 = vadd.f32 %v1871, %v1872
        %v1874 = vrot.slane %v1873, 1
        %v1875 = vadd.f32 %v1873, %v1874
        %v1876 = vadd.f32 %v1716, %v1718
        %v1877 = vrot.slane %v1876, 4
        %v1878 = vadd.f32 %v1876, %v1877
        %v1879 = vrot.slane %v1878, 2
        %v1880 = vadd.f32 %v1878, %v1879
        %v1881 = vrot.slane %v1880, 1
        %v1882 = vadd.f32 %v1880, %v1881
        %v1883 = vadd.f32 %v1719, %v1721
        %v1884 = vrot.slane %v1883, 4
        %v1885 = vadd.f32 %v1883, %v1884
        %v1886 = vrot.slane %v1885, 2
        %v1887 = vadd.f32 %v1885, %v1886
        %v1888 = vrot.slane %v1887, 1
        %v1889 = vadd.f32 %v1887, %v1888
        %v1890 = vadd.f32 %v1720, %v1722
        %v1891 = vrot.slane %v1890, 4
        %v1892 = vadd.f32 %v1890, %v1891
        %v1893 = vrot.slane %v1892, 2
        %v1894 = vadd.f32 %v1892, %v1893
        %v1895 = vrot.slane %v1894, 1
        %v1896 = vadd.f32 %v1894, %v1895
        %v1897 = vadd.f32 %v1723, %v1725
        %v1898 = vrot.slane %v1897, 4
        %v1899 = vadd.f32 %v1897, %v1898
        %v1900 = vrot.slane %v1899, 2
        %v1901 = vadd.f32 %v1899, %v1900
        %v1902 = vrot.slane %v1901, 1
        %v1903 = vadd.f32 %v1901, %v1902
        %v1904 = vadd.f32 %v1724, %v1726
        %v1905 = vrot.slane %v1904, 4
        %v1906 = vadd.f32 %v1904, %v1905
        %v1907 = vrot.slane %v1906, 2
        %v1908 = vadd.f32 %v1906, %v1907
        %v1909 = vrot.slane %v1908, 1
        %v1910 = vadd.f32 %v1908, %v1909
        %v1911 = vadd.f32 %v1727, %v1729
        %v1912 = vrot.slane %v1911, 4
        %v1913 = vadd.f32 %v1911, %v1912
        %v1914 = vrot.slane %v1913, 2
        %v1915 = vadd.f32 %v1913, %v1914
        %v1916 = vrot.slane %v1915, 1
        %v1917 = vadd.f32 %v1915, %v1916
        %v1918 = vadd.f32 %v1728, %v1730
        %v1919 = vrot.slane %v1918, 4
        %v1920 = vadd.f32 %v1918, %v1919
        %v1921 = vrot.slane %v1920, 2
        %v1922 = vadd.f32 %v1920, %v1921
        %v1923 = vrot.slane %v1922, 1
        %v1924 = vadd.f32 %v1922, %v1923
        %v1925 = vadd.f32 %v1731, %v1733
        %v1926 = vrot.slane %v1925, 4
        %v1927 = vadd.f32 %v1925, %v1926
        %v1928 = vrot.slane %v1927, 2
        %v1929 = vadd.f32 %v1927, %v1928
        %v1930 = vrot.slane %v1929, 1
        %v1931 = vadd.f32 %v1929, %v1930
        %v1932 = vadd.f32 %v1732, %v1734
        %v1933 = vrot.slane %v1932, 4
        %v1934 = vadd.f32 %v1932, %v1933
        %v1935 = vrot.slane %v1934, 2
        %v1936 = vadd.f32 %v1934, %v1935
        %v1937 = vrot.slane %v1936, 1
        %v1938 = vadd.f32 %v1936, %v1937
        %v1939 = vadd.f32 %v1735, %v1737
        %v1940 = vrot.slane %v1939, 4
        %v1941 = vadd.f32 %v1939, %v1940
        %v1942 = vrot.slane %v1941, 2
        %v1943 = vadd.f32 %v1941, %v1942
        %v1944 = vrot.slane %v1943, 1
        %v1945 = vadd.f32 %v1943, %v1944
        %v1946 = vadd.f32 %v1736, %v1738
        %v1947 = vrot.slane %v1946, 4
        %v1948 = vadd.f32 %v1946, %v1947
        %v1949 = vrot.slane %v1948, 2
        %v1950 = vadd.f32 %v1948, %v1949
        %v1951 = vrot.slane %v1950, 1
        %v1952 = vadd.f32 %v1950, %v1951
        %v1953 = vadd.f32 %v1739, %v1741
        %v1954 = vrot.slane %v1953, 4
        %v1955 = vadd.f32 %v1953, %v1954
        %v1956 = vrot.slane %v1955, 2
        %v1957 = vadd.f32 %v1955, %v1956
        %v1958 = vrot.slane %v1957, 1
        %v1959 = vadd.f32 %v1957, %v1958
        %v1960 = vadd.f32 %v1740, %v1742
        %v1961 = vrot.slane %v1960, 4
        %v1962 = vadd.f32 %v1960, %v1961
        %v1963 = vrot.slane %v1962, 2
        %v1964 = vadd.f32 %v1962, %v1963
        %v1965 = vrot.slane %v1964, 1
        %v1966 = vadd.f32 %v1964, %v1965
        %v1967 = vpack.c.bf16 %v1749, %v1749
        %v1968 = vpack.c.bf16 %v1756, %v1756
        %v1969 = vpack.c.bf16 %v1763, %v1763
        %v1970 = vpack.c.bf16 %v1770, %v1770
        %v1971 = vpack.c.bf16 %v1777, %v1777
        %v1972 = vpack.c.bf16 %v1784, %v1784
        %v1973 = vpack.c.bf16 %v1791, %v1791
        %v1974 = vpack.c.bf16 %v1798, %v1798
        %v1975 = vpack.c.bf16 %v1805, %v1805
        %v1976 = vpack.c.bf16 %v1812, %v1812
        %v1977 = vpack.c.bf16 %v1819, %v1819
        %v1978 = vpack.c.bf16 %v1826, %v1826
        %v1979 = vpack.c.bf16 %v1833, %v1833
        %v1980 = vpack.c.bf16 %v1840, %v1840
        %v1981 = vpack.c.bf16 %v1847, %v1847
        %v1982 = vpack.c.bf16 %v1854, %v1854
        %v1983 = vpack.c.bf16 %v1861, %v1861
        %v1984 = vpack.c.bf16 %v1868, %v1868
        %v1985 = vpack.c.bf16 %v1875, %v1875
        %v1986 = vpack.c.bf16 %v1882, %v1882
        %v1987 = vpack.c.bf16 %v1889, %v1889
        %v1988 = vpack.c.bf16 %v1896, %v1896
        %v1989 = vpack.c.bf16 %v1903, %v1903
        %v1990 = vpack.c.bf16 %v1910, %v1910
        %v1991 = vpack.c.bf16 %v1917, %v1917
        %v1992 = vpack.c.bf16 %v1924, %v1924
        %v1993 = vpack.c.bf16 %v1931, %v1931
        %v1994 = vpack.c.bf16 %v1938, %v1938
        %v1995 = vpack.c.bf16 %v1945, %v1945
        %v1996 = vpack.c.bf16 %v1952, %v1952
        %v1997 = vpack.c.bf16 %v1959, %v1959
        %v1998 = vpack.c.bf16 %v1966, %v1966
        %v2031 = vunpack.c.l.b16 %v1967
        %v2032 = vunpack.c.l.b16 %v1968
        %v2033 = vunpack.c.l.b16 %v1969
        %v2034 = vunpack.c.l.b16 %v1970
        %v2035 = vunpack.c.l.b16 %v1971
        %v2036 = vunpack.c.l.b16 %v1972
        %v2037 = vunpack.c.l.b16 %v1973
        %v2038 = vunpack.c.l.b16 %v1974
        %v2039 = vunpack.c.l.b16 %v1975
        %v2040 = vunpack.c.l.b16 %v1976
        %v2041 = vunpack.c.l.b16 %v1977
        %v2042 = vunpack.c.l.b16 %v1978
        %v2043 = vunpack.c.l.b16 %v1979
        %v2044 = vunpack.c.l.b16 %v1980
        %v2045 = vunpack.c.l.b16 %v1981
        %v2046 = vunpack.c.l.b16 %v1982
        %v2047 = vunpack.c.l.b16 %v1983
        %v2048 = vunpack.c.l.b16 %v1984
        %v2049 = vunpack.c.l.b16 %v1985
        %v2050 = vunpack.c.l.b16 %v1986
        %v2051 = vunpack.c.l.b16 %v1987
        %v2052 = vunpack.c.l.b16 %v1988
        %v2053 = vunpack.c.l.b16 %v1989
        %v2054 = vunpack.c.l.b16 %v1990
        %v2055 = vunpack.c.l.b16 %v1991
        %v2056 = vunpack.c.l.b16 %v1992
        %v2057 = vunpack.c.l.b16 %v1993
        %v2058 = vunpack.c.l.b16 %v1994
        %v2059 = vunpack.c.l.b16 %v1995
        %v2060 = vunpack.c.l.b16 %v1996
        %v2061 = vunpack.c.l.b16 %v1997
        %v2062 = vunpack.c.l.b16 %v1998
        %v2063 = vsel %vm1124, %v2033, %v2031
        %v2064 = vsel %vm1126, %v2035, %v2063
        %v2065 = vsel %vm1128, %v2037, %v2064
        %v2066 = vsel %vm1130, %v2039, %v2065
        %v2067 = vsel %vm1132, %v2041, %v2066
        %v2068 = vsel %vm1134, %v2043, %v2067
        %v2069 = vsel %vm1136, %v2045, %v2068
        %v2070 = vsel %vm1124, %v2034, %v2032
        %v2071 = vsel %vm1126, %v2036, %v2070
        %v2072 = vsel %vm1128, %v2038, %v2071
        %v2073 = vsel %vm1130, %v2040, %v2072
        %v2074 = vsel %vm1132, %v2042, %v2073
        %v2075 = vsel %vm1134, %v2044, %v2074
        %v2076 = vsel %vm1136, %v2046, %v2075
        %v2077 = vsel %vm1124, %v2049, %v2047
        %v2078 = vsel %vm1126, %v2051, %v2077
        %v2079 = vsel %vm1128, %v2053, %v2078
        %v2080 = vsel %vm1130, %v2055, %v2079
        %v2081 = vsel %vm1132, %v2057, %v2080
        %v2082 = vsel %vm1134, %v2059, %v2081
        %v2083 = vsel %vm1136, %v2061, %v2082
        %v2084 = vsel %vm1124, %v2050, %v2048
        %v2085 = vsel %vm1126, %v2052, %v2084
        %v2086 = vsel %vm1128, %v2054, %v2085
        %v2087 = vsel %vm1130, %v2056, %v2086
        %v2088 = vsel %vm1132, %v2058, %v2087
        %v2089 = vsel %vm1134, %v2060, %v2088
        %v2090 = vsel %vm1136, %v2062, %v2089
        %v2091 = vpack.c.b16 %v2083, %v2069
        %v2092 = vpack.c.b16 %v2090, %v2076
        %s2095 = scalar_lea.vmem [#allocation2], 16
        %2096 = vst [vmem:[%s2095] sm:$0xff] %v2091
        %2097 = vst [vmem:[%s2095 + $0x8] sm:$0xff] %v2092
        %s2098 = scalar_lea.vmem %s217, 16
        %v2099 = vld [vmem:[%s2098] sm:$0x77]
        %v2101 = vlaneseq
        %v2102 = vshrl.u32 %v2101, 7
        %v2103 = vsub.s32 0, %v2102
        %v2104 = vrot.slane %v2099, %v2103
        %v2105 = vlaneseq
        %v2106 = vshrl.u32 %v2105, 7
        %v2107 = vsub.s32 4, %v2106
        %v2108 = vrot.slane %v2099, %v2107
        %v2111 = vlaneseq
        %v2112 = vshrl.u32 %v2111, 7
        %v2113 = vsub.s32 0, %v2112
        %v2114 = vrot.slane %v2104, %v2113
        %v2115 = vlaneseq
        %v2116 = vshrl.u32 %v2115, 7
        %v2117 = vsub.s32 0, %v2116
        %v2118 = vrot.slane %v2108, %v2117
        %v2119 = vsub.f32 %v224, %v2114
        %v2120 = vsub.f32 %v224, %v2118
        %v2121 = vsub.f32 %v225, %v2114
        %v2122 = vsub.f32 %v225, %v2118
        %v2123 = vand.u32 2147483647, %v2119
        %v2124 = vand.u32 2147483647, %v2120
        %v2125 = vand.u32 2147483647, %v2121
        %v2126 = vand.u32 2147483647, %v2122
        %v2127 = vsub.f32 1.0, %v2123
        %v2128 = vsub.f32 1.0, %v2124
        %v2129 = vsub.f32 1.0, %v2125
        %v2130 = vsub.f32 1.0, %v2126
        %v2131 = vmax.f32 %v2127, 0.0
        %v2132 = vmax.f32 %v2128, 0.0
        %v2133 = vmax.f32 %v2129, 0.0
        %v2134 = vmax.f32 %v2130, 0.0
        %v2135 = vpack.c.bf16 %v2133, %v2131
        %v2136 = vpack.c.bf16 %v2134, %v2132
        %v2137 = vlaneseq
        %v2138 = vshrl.u32 %v2137, 7
        %v2139 = vsub.s32 1, %v2138
        %v2140 = vrot.slane %v2099, %v2139
        %v2141 = vlaneseq
        %v2142 = vshrl.u32 %v2141, 7
        %v2143 = vsub.s32 5, %v2142
        %v2144 = vrot.slane %v2099, %v2143
        %v2147 = vlaneseq
        %v2148 = vshrl.u32 %v2147, 7
        %v2149 = vsub.s32 1, %v2148
        %v2150 = vrot.slane %v2140, %v2149
        %v2151 = vlaneseq
        %v2152 = vshrl.u32 %v2151, 7
        %v2153 = vsub.s32 1, %v2152
        %v2154 = vrot.slane %v2144, %v2153
        %v2155 = vsub.f32 %v224, %v2150
        %v2156 = vsub.f32 %v224, %v2154
        %v2157 = vsub.f32 %v225, %v2150
        %v2158 = vsub.f32 %v225, %v2154
        %v2159 = vand.u32 2147483647, %v2155
        %v2160 = vand.u32 2147483647, %v2156
        %v2161 = vand.u32 2147483647, %v2157
        %v2162 = vand.u32 2147483647, %v2158
        %v2163 = vsub.f32 1.0, %v2159
        %v2164 = vsub.f32 1.0, %v2160
        %v2165 = vsub.f32 1.0, %v2161
        %v2166 = vsub.f32 1.0, %v2162
        %v2167 = vmax.f32 %v2163, 0.0
        %v2168 = vmax.f32 %v2164, 0.0
        %v2169 = vmax.f32 %v2165, 0.0
        %v2170 = vmax.f32 %v2166, 0.0
        %v2171 = vlaneseq
        %v2172 = vshrl.u32 %v2171, 7
        %v2173 = vsub.s32 2, %v2172
        %v2174 = vrot.slane %v2099, %v2173
        %v2175 = vlaneseq
        %v2176 = vshrl.u32 %v2175, 7
        %v2177 = vsub.s32 6, %v2176
        %v2178 = vrot.slane %v2099, %v2177
        %v2181 = vlaneseq
        %v2182 = vshrl.u32 %v2181, 7
        %v2183 = vsub.s32 2, %v2182
        %v2184 = vrot.slane %v2174, %v2183
        %v2185 = vlaneseq
        %v2186 = vshrl.u32 %v2185, 7
        %v2187 = vsub.s32 2, %v2186
        %v2188 = vrot.slane %v2178, %v2187
        %v2189 = vmul.f32 %v2167, %v2184
        %v2190 = vmul.f32 %v2168, %v2188
        %v2191 = vmul.f32 %v2169, %v2184
        %v2192 = vmul.f32 %v2170, %v2188
        %v2193 = vpack.c.bf16 %v2191, %v2189
        %v2194 = vpack.c.bf16 %v2192, %v2190
        %v2195 = vld [vmem:[%s208] sm:$0xf]
        %v2196 = vld [vmem:[%s208 + $0x4] sm:$0xf]
        %v2197 = vld [vmem:[%s208 + $0x8] sm:$0xf]
        %v2198 = vld [vmem:[%s208 + $0xc] sm:$0xf]
        %v2199 = vld [vmem:[%s208 + $0x10] sm:$0xf]
        %v2200 = vld [vmem:[%s208 + $0x14] sm:$0xf]
        %v2201 = vld [vmem:[%s208 + $0x18] sm:$0xf]
        %v2202 = vld [vmem:[%s208 + $0x1c] sm:$0xf]
        %v2203 = vld [vmem:[%s208 + $0x20] sm:$0xf]
        %v2204 = vld [vmem:[%s208 + $0x24] sm:$0xf]
        %v2205 = vld [vmem:[%s208 + $0x28] sm:$0xf]
        %v2206 = vld [vmem:[%s208 + $0x2c] sm:$0xf]
        %v2207 = vld [vmem:[%s208 + $0x30] sm:$0xf]
        %v2208 = vld [vmem:[%s208 + $0x34] sm:$0xf]
        %v2209 = vld [vmem:[%s208 + $0x38] sm:$0xf]
        %v2210 = vld [vmem:[%s208 + $0x3c] sm:$0xf]
        %v2211 = vld [vmem:[%s208 + $0x40] sm:$0xf]
        %v2212 = vld [vmem:[%s208 + $0x44] sm:$0xf]
        %v2213 = vld [vmem:[%s208 + $0x48] sm:$0xf]
        %v2214 = vld [vmem:[%s208 + $0x4c] sm:$0xf]
        %v2215 = vld [vmem:[%s208 + $0x50] sm:$0xf]
        %v2216 = vld [vmem:[%s208 + $0x54] sm:$0xf]
        %v2217 = vld [vmem:[%s208 + $0x58] sm:$0xf]
        %v2218 = vld [vmem:[%s208 + $0x5c] sm:$0xf]
        %v2219 = vld [vmem:[%s208 + $0x60] sm:$0xf]
        %v2220 = vld [vmem:[%s208 + $0x64] sm:$0xf]
        %v2221 = vld [vmem:[%s208 + $0x68] sm:$0xf]
        %v2222 = vld [vmem:[%s208 + $0x6c] sm:$0xf]
        %v2223 = vld [vmem:[%s208 + $0x70] sm:$0xf]
        %v2224 = vld [vmem:[%s208 + $0x74] sm:$0xf]
        %v2225 = vld [vmem:[%s208 + $0x78] sm:$0xf]
        %v2226 = vld [vmem:[%s208 + $0x7c] sm:$0xf]
        %v2259 = vunpack.c.l.b16 %v2195
        %v2260 = vunpack.c.l.b16 %v2196
        %v2261 = vunpack.c.l.b16 %v2197
        %v2262 = vunpack.c.l.b16 %v2198
        %v2263 = vunpack.c.l.b16 %v2199
        %v2264 = vunpack.c.l.b16 %v2200
        %v2265 = vunpack.c.l.b16 %v2201
        %v2266 = vunpack.c.l.b16 %v2202
        %v2267 = vunpack.c.l.b16 %v2203
        %v2268 = vunpack.c.l.b16 %v2204
        %v2269 = vunpack.c.l.b16 %v2205
        %v2270 = vunpack.c.l.b16 %v2206
        %v2271 = vunpack.c.l.b16 %v2207
        %v2272 = vunpack.c.l.b16 %v2208
        %v2273 = vunpack.c.l.b16 %v2209
        %v2274 = vunpack.c.l.b16 %v2210
        %v2275 = vunpack.c.l.b16 %v2211
        %v2276 = vunpack.c.l.b16 %v2212
        %v2277 = vunpack.c.l.b16 %v2213
        %v2278 = vunpack.c.l.b16 %v2214
        %v2279 = vunpack.c.l.b16 %v2215
        %v2280 = vunpack.c.l.b16 %v2216
        %v2281 = vunpack.c.l.b16 %v2217
        %v2282 = vunpack.c.l.b16 %v2218
        %v2283 = vunpack.c.l.b16 %v2219
        %v2284 = vunpack.c.l.b16 %v2220
        %v2285 = vunpack.c.l.b16 %v2221
        %v2286 = vunpack.c.l.b16 %v2222
        %v2287 = vunpack.c.l.b16 %v2223
        %v2288 = vunpack.c.l.b16 %v2224
        %v2289 = vunpack.c.l.b16 %v2225
        %v2290 = vunpack.c.l.b16 %v2226
        %v2291 = vpack.c.b16 %v2260, %v2259
        %v2292 = vpack.c.b16 %v2262, %v2261
        %v2293 = vpack.c.b16 %v2264, %v2263
        %v2294 = vpack.c.b16 %v2266, %v2265
        %v2295 = vpack.c.b16 %v2268, %v2267
        %v2296 = vpack.c.b16 %v2270, %v2269
        %v2297 = vpack.c.b16 %v2272, %v2271
        %v2298 = vpack.c.b16 %v2274, %v2273
        %v2299 = vpack.c.b16 %v2276, %v2275
        %v2300 = vpack.c.b16 %v2278, %v2277
        %v2301 = vpack.c.b16 %v2280, %v2279
        %v2302 = vpack.c.b16 %v2282, %v2281
        %v2303 = vpack.c.b16 %v2284, %v2283
        %v2304 = vpack.c.b16 %v2286, %v2285
        %v2305 = vpack.c.b16 %v2288, %v2287
        %v2306 = vpack.c.b16 %v2290, %v2289
        %v2308 = vsel %vm434, %v2291, 0
        %v2311 = vsel %vm434, %v2292, 0
        %v2314 = vsel %vm434, %v2293, 0
        %v2317 = vsel %vm434, %v2294, 0
        %v2320 = vsel %vm434, %v2295, 0
        %v2323 = vsel %vm434, %v2296, 0
        %v2326 = vsel %vm434, %v2297, 0
        %v2329 = vsel %vm434, %v2298, 0
        %v2332 = vsel %vm434, %v2299, 0
        %v2335 = vsel %vm434, %v2300, 0
        %v2338 = vsel %vm434, %v2301, 0
        %v2341 = vsel %vm434, %v2302, 0
        %v2344 = vsel %vm434, %v2303, 0
        %v2347 = vsel %vm434, %v2304, 0
        %v2350 = vsel %vm434, %v2305, 0
        %v2353 = vsel %vm434, %v2306, 0
        %2355 = vmatprep.subr.bf16.mxu0 %v2136
        %2356 = vmatpush1.bf16.msra.mxu0 %v2135
        %2357 = vmatprep.subr.bf16.mxu0 0
        %2358 = vmatpush1.bf16.msra.mxu0 0
        %2359 = vmatprep.subr.bf16.mxu0 0
        %2360 = vmatpush1.bf16.msra.mxu0 0
        %2361 = vmatprep.subr.bf16.mxu0 0
        %2362 = vmatpush1.bf16.msra.mxu0 0
        %2363 = vmatprep.subr.bf16.mxu0 0
        %2364 = vmatpush1.bf16.msra.mxu0 0
        %2365 = vmatprep.subr.bf16.mxu0 0
        %2366 = vmatpush1.bf16.msra.mxu0 0
        %2367 = vmatprep.subr.bf16.mxu0 0
        %2368 = vmatpush1.bf16.msra.mxu0 0
        %2369 = vmatprep.subr.bf16.mxu0 0
        %2370 = vmatpush1.bf16.msra.mxu0 0
        %2371 = vmatprep.subr.bf16.mxu0 0
        %2372 = vmatpush1.bf16.msra.mxu0 0
        %2373 = vmatprep.subr.bf16.mxu0 0
        %2374 = vmatpush1.bf16.msra.mxu0 0
        %2375 = vmatprep.subr.bf16.mxu0 0
        %2376 = vmatpush1.bf16.msra.mxu0 0
        %2377 = vmatprep.subr.bf16.mxu0 0
        %2378 = vmatpush1.bf16.msra.mxu0 0
        %2379 = vmatprep.subr.bf16.mxu0 0
        %2380 = vmatpush1.bf16.msra.mxu0 0
        %2381 = vmatprep.subr.bf16.mxu0 0
        %2382 = vmatpush1.bf16.msra.mxu0 0
        %2383 = vmatprep.subr.bf16.mxu0 0
        %2384 = vmatpush1.bf16.msra.mxu0 0
        %2385 = vmatprep.subr.bf16.mxu0 0
        %2386 = vmatpush1.bf16.msra.mxu0 0
        %2387 = vmatprep.mubr.bf16.mxu0 0
        %2388 = vmatmul.mubr.bf16.gmra.mrb[0].mxu0 %v2308
        %v2389 = vpop.f32.mrb[0].mxu0
        %v2390 = vadd.f32 0.0, %v2389
        %v2391 = vpop.f32.mrb[0].mxu0
        %v2392 = vadd.f32 0.0, %v2391
        %v2393 = vpop.f32.mrb[0].mxu0
        %v2394 = vadd.f32 0.0, %v2393
        %v2395 = vpop.f32.mrb[0].mxu0
        %v2396 = vadd.f32 0.0, %v2395
        %2397 = vmatprep.mubr.bf16.mxu0 0
        %2398 = vmatmul.mubr.bf16.gmra.mrb[0].mxu0 %v2311
        %v2399 = vpop.f32.mrb[0].mxu0
        %v2400 = vadd.f32 0.0, %v2399
        %v2401 = vpop.f32.mrb[0].mxu0
        %v2402 = vadd.f32 0.0, %v2401
        %v2403 = vpop.f32.mrb[0].mxu0
        %v2404 = vadd.f32 0.0, %v2403
        %v2405 = vpop.f32.mrb[0].mxu0
        %v2406 = vadd.f32 0.0, %v2405
        %2407 = vmatprep.mubr.bf16.mxu0 0
        %2408 = vmatmul.mubr.bf16.gmra.mrb[0].mxu0 %v2314
        %v2409 = vpop.f32.mrb[0].mxu0
        %v2410 = vadd.f32 0.0, %v2409
        %v2411 = vpop.f32.mrb[0].mxu0
        %v2412 = vadd.f32 0.0, %v2411
        %v2413 = vpop.f32.mrb[0].mxu0
        %v2414 = vadd.f32 0.0, %v2413
        %v2415 = vpop.f32.mrb[0].mxu0
        %v2416 = vadd.f32 0.0, %v2415
        %2417 = vmatprep.mubr.bf16.mxu0 0
        %2418 = vmatmul.mubr.bf16.gmra.mrb[0].mxu0 %v2317
        %v2419 = vpop.f32.mrb[0].mxu0
        %v2420 = vadd.f32 0.0, %v2419
        %v2421 = vpop.f32.mrb[0].mxu0
        %v2422 = vadd.f32 0.0, %v2421
        %v2423 = vpop.f32.mrb[0].mxu0
        %v2424 = vadd.f32 0.0, %v2423
        %v2425 = vpop.f32.mrb[0].mxu0
        %v2426 = vadd.f32 0.0, %v2425
        %2427 = vmatprep.mubr.bf16.mxu0 0
        %2428 = vmatmul.mubr.bf16.gmra.mrb[0].mxu0 %v2320
        %v2429 = vpop.f32.mrb[0].mxu0
        %v2430 = vadd.f32 0.0, %v2429
        %v2431 = vpop.f32.mrb[0].mxu0
        %v2432 = vadd.f32 0.0, %v2431
        %v2433 = vpop.f32.mrb[0].mxu0
        %v2434 = vadd.f32 0.0, %v2433
        %v2435 = vpop.f32.mrb[0].mxu0
        %v2436 = vadd.f32 0.0, %v2435
        %2437 = vmatprep.mubr.bf16.mxu0 0
        %2438 = vmatmul.mubr.bf16.gmra.mrb[0].mxu0 %v2323
        %v2439 = vpop.f32.mrb[0].mxu0
        %v2440 = vadd.f32 0.0, %v2439
        %v2441 = vpop.f32.mrb[0].mxu0
        %v2442 = vadd.f32 0.0, %v2441
        %v2443 = vpop.f32.mrb[0].mxu0
        %v2444 = vadd.f32 0.0, %v2443
        %v2445 = vpop.f32.mrb[0].mxu0
        %v2446 = vadd.f32 0.0, %v2445
        %2447 = vmatprep.mubr.bf16.mxu0 0
        %2448 = vmatmul.mubr.bf16.gmra.mrb[0].mxu0 %v2326
        %v2449 = vpop.f32.mrb[0].mxu0
        %v2450 = vadd.f32 0.0, %v2449
        %v2451 = vpop.f32.mrb[0].mxu0
        %v2452 = vadd.f32 0.0, %v2451
        %v2453 = vpop.f32.mrb[0].mxu0
        %v2454 = vadd.f32 0.0, %v2453
        %v2455 = vpop.f32.mrb[0].mxu0
        %v2456 = vadd.f32 0.0, %v2455
        %2457 = vmatprep.mubr.bf16.mxu0 0
        %2458 = vmatmul.mubr.bf16.gmra.mrb[0].mxu0 %v2329
        %v2459 = vpop.f32.mrb[0].mxu0
        %v2460 = vadd.f32 0.0, %v2459
        %v2461 = vpop.f32.mrb[0].mxu0
        %v2462 = vadd.f32 0.0, %v2461
        %v2463 = vpop.f32.mrb[0].mxu0
        %v2464 = vadd.f32 0.0, %v2463
        %v2465 = vpop.f32.mrb[0].mxu0
        %v2466 = vadd.f32 0.0, %v2465
        %2467 = vmatprep.mubr.bf16.mxu0 0
        %2468 = vmatmul.mubr.bf16.gmra.mrb[0].mxu0 %v2332
        %v2469 = vpop.f32.mrb[0].mxu0
        %v2470 = vadd.f32 0.0, %v2469
        %v2471 = vpop.f32.mrb[0].mxu0
        %v2472 = vadd.f32 0.0, %v2471
        %v2473 = vpop.f32.mrb[0].mxu0
        %v2474 = vadd.f32 0.0, %v2473
        %v2475 = vpop.f32.mrb[0].mxu0
        %v2476 = vadd.f32 0.0, %v2475
        %2477 = vmatprep.mubr.bf16.mxu0 0
        %2478 = vmatmul.mubr.bf16.gmra.mrb[0].mxu0 %v2335
        %v2479 = vpop.f32.mrb[0].mxu0
        %v2480 = vadd.f32 0.0, %v2479
        %v2481 = vpop.f32.mrb[0].mxu0
        %v2482 = vadd.f32 0.0, %v2481
        %v2483 = vpop.f32.mrb[0].mxu0
        %v2484 = vadd.f32 0.0, %v2483
        %v2485 = vpop.f32.mrb[0].mxu0
        %v2486 = vadd.f32 0.0, %v2485
        %2487 = vmatprep.mubr.bf16.mxu0 0
        %2488 = vmatmul.mubr.bf16.gmra.mrb[0].mxu0 %v2338
        %v2489 = vpop.f32.mrb[0].mxu0
        %v2490 = vadd.f32 0.0, %v2489
        %v2491 = vpop.f32.mrb[0].mxu0
        %v2492 = vadd.f32 0.0, %v2491
        %v2493 = vpop.f32.mrb[0].mxu0
        %v2494 = vadd.f32 0.0, %v2493
        %v2495 = vpop.f32.mrb[0].mxu0
        %v2496 = vadd.f32 0.0, %v2495
        %2497 = vmatprep.mubr.bf16.mxu0 0
        %2498 = vmatmul.mubr.bf16.gmra.mrb[0].mxu0 %v2341
        %v2499 = vpop.f32.mrb[0].mxu0
        %v2500 = vadd.f32 0.0, %v2499
        %v2501 = vpop.f32.mrb[0].mxu0
        %v2502 = vadd.f32 0.0, %v2501
        %v2503 = vpop.f32.mrb[0].mxu0
        %v2504 = vadd.f32 0.0, %v2503
        %v2505 = vpop.f32.mrb[0].mxu0
        %v2506 = vadd.f32 0.0, %v2505
        %2507 = vmatprep.mubr.bf16.mxu0 0
        %2508 = vmatmul.mubr.bf16.gmra.mrb[0].mxu0 %v2344
        %v2509 = vpop.f32.mrb[0].mxu0
        %v2510 = vadd.f32 0.0, %v2509
        %v2511 = vpop.f32.mrb[0].mxu0
        %v2512 = vadd.f32 0.0, %v2511
        %v2513 = vpop.f32.mrb[0].mxu0
        %v2514 = vadd.f32 0.0, %v2513
        %v2515 = vpop.f32.mrb[0].mxu0
        %v2516 = vadd.f32 0.0, %v2515
        %2517 = vmatprep.mubr.bf16.mxu0 0
        %2518 = vmatmul.mubr.bf16.gmra.mrb[0].mxu0 %v2347
        %v2519 = vpop.f32.mrb[0].mxu0
        %v2520 = vadd.f32 0.0, %v2519
        %v2521 = vpop.f32.mrb[0].mxu0
        %v2522 = vadd.f32 0.0, %v2521
        %v2523 = vpop.f32.mrb[0].mxu0
        %v2524 = vadd.f32 0.0, %v2523
        %v2525 = vpop.f32.mrb[0].mxu0
        %v2526 = vadd.f32 0.0, %v2525
        %2527 = vmatprep.mubr.bf16.mxu0 0
        %2528 = vmatmul.mubr.bf16.gmra.mrb[0].mxu0 %v2350
        %v2529 = vpop.f32.mrb[0].mxu0
        %v2530 = vadd.f32 0.0, %v2529
        %v2531 = vpop.f32.mrb[0].mxu0
        %v2532 = vadd.f32 0.0, %v2531
        %v2533 = vpop.f32.mrb[0].mxu0
        %v2534 = vadd.f32 0.0, %v2533
        %v2535 = vpop.f32.mrb[0].mxu0
        %v2536 = vadd.f32 0.0, %v2535
        %2537 = vmatprep.mubr.bf16.mxu0 0
        %2538 = vmatmul.mubr.bf16.gmra.mrb[0].mxu0 %v2353
        %v2539 = vpop.f32.mrb[0].mxu0
        %v2540 = vadd.f32 0.0, %v2539
        %v2541 = vpop.f32.mrb[0].mxu0
        %v2542 = vadd.f32 0.0, %v2541
        %v2543 = vpop.f32.mrb[0].mxu0
        %v2544 = vadd.f32 0.0, %v2543
        %v2545 = vpop.f32.mrb[0].mxu0
        %v2546 = vadd.f32 0.0, %v2545
        %2547 = vdwg.mxu0
        %v2548 = vpack.c.bf16 %v2394, %v2390
        %v2549 = vpack.c.bf16 %v2396, %v2392
        %v2550 = vpack.c.bf16 %v2404, %v2400
        %v2551 = vpack.c.bf16 %v2406, %v2402
        %v2552 = vpack.c.bf16 %v2414, %v2410
        %v2553 = vpack.c.bf16 %v2416, %v2412
        %v2554 = vpack.c.bf16 %v2424, %v2420
        %v2555 = vpack.c.bf16 %v2426, %v2422
        %v2556 = vpack.c.bf16 %v2434, %v2430
        %v2557 = vpack.c.bf16 %v2436, %v2432
        %v2558 = vpack.c.bf16 %v2444, %v2440
        %v2559 = vpack.c.bf16 %v2446, %v2442
        %v2560 = vpack.c.bf16 %v2454, %v2450
        %v2561 = vpack.c.bf16 %v2456, %v2452
        %v2562 = vpack.c.bf16 %v2464, %v2460
        %v2563 = vpack.c.bf16 %v2466, %v2462
        %v2564 = vpack.c.bf16 %v2474, %v2470
        %v2565 = vpack.c.bf16 %v2476, %v2472
        %v2566 = vpack.c.bf16 %v2484, %v2480
        %v2567 = vpack.c.bf16 %v2486, %v2482
        %v2568 = vpack.c.bf16 %v2494, %v2490
        %v2569 = vpack.c.bf16 %v2496, %v2492
        %v2570 = vpack.c.bf16 %v2504, %v2500
        %v2571 = vpack.c.bf16 %v2506, %v2502
        %v2572 = vpack.c.bf16 %v2514, %v2510
        %v2573 = vpack.c.bf16 %v2516, %v2512
        %v2574 = vpack.c.bf16 %v2524, %v2520
        %v2575 = vpack.c.bf16 %v2526, %v2522
        %v2576 = vpack.c.bf16 %v2534, %v2530
        %v2577 = vpack.c.bf16 %v2536, %v2532
        %v2578 = vpack.c.bf16 %v2544, %v2540
        %v2579 = vpack.c.bf16 %v2546, %v2542
        %v2580 = vmul.bf16 %v2548, %v2193
        %v2581 = vmul.bf16 %v2549, %v2194
        %v2582 = vmul.bf16 %v2550, %v2193
        %v2583 = vmul.bf16 %v2551, %v2194
        %v2584 = vmul.bf16 %v2552, %v2193
        %v2585 = vmul.bf16 %v2553, %v2194
        %v2586 = vmul.bf16 %v2554, %v2193
        %v2587 = vmul.bf16 %v2555, %v2194
        %v2588 = vmul.bf16 %v2556, %v2193
        %v2589 = vmul.bf16 %v2557, %v2194
        %v2590 = vmul.bf16 %v2558, %v2193
        %v2591 = vmul.bf16 %v2559, %v2194
        %v2592 = vmul.bf16 %v2560, %v2193
        %v2593 = vmul.bf16 %v2561, %v2194
        %v2594 = vmul.bf16 %v2562, %v2193
        %v2595 = vmul.bf16 %v2563, %v2194
        %v2596 = vmul.bf16 %v2564, %v2193
        %v2597 = vmul.bf16 %v2565, %v2194
        %v2598 = vmul.bf16 %v2566, %v2193
        %v2599 = vmul.bf16 %v2567, %v2194
        %v2600 = vmul.bf16 %v2568, %v2193
        %v2601 = vmul.bf16 %v2569, %v2194
        %v2602 = vmul.bf16 %v2570, %v2193
        %v2603 = vmul.bf16 %v2571, %v2194
        %v2604 = vmul.bf16 %v2572, %v2193
        %v2605 = vmul.bf16 %v2573, %v2194
        %v2606 = vmul.bf16 %v2574, %v2193
        %v2607 = vmul.bf16 %v2575, %v2194
        %v2608 = vmul.bf16 %v2576, %v2193
        %v2609 = vmul.bf16 %v2577, %v2194
        %v2610 = vmul.bf16 %v2578, %v2193
        %v2611 = vmul.bf16 %v2579, %v2194
        %v2612 = vunpack.c.l.bf16 %v2580
        %v2613 = vunpack.c.l.bf16 %v2581
        %v2614 = vunpack.c.h.bf16 %v2580
        %v2615 = vunpack.c.h.bf16 %v2581
        %v2616 = vunpack.c.l.bf16 %v2582
        %v2617 = vunpack.c.l.bf16 %v2583
        %v2618 = vunpack.c.h.bf16 %v2582
        %v2619 = vunpack.c.h.bf16 %v2583
        %v2620 = vunpack.c.l.bf16 %v2584
        %v2621 = vunpack.c.l.bf16 %v2585
        %v2622 = vunpack.c.h.bf16 %v2584
        %v2623 = vunpack.c.h.bf16 %v2585
        %v2624 = vunpack.c.l.bf16 %v2586
        %v2625 = vunpack.c.l.bf16 %v2587
        %v2626 = vunpack.c.h.bf16 %v2586
        %v2627 = vunpack.c.h.bf16 %v2587
        %v2628 = vunpack.c.l.bf16 %v2588
        %v2629 = vunpack.c.l.bf16 %v2589
        %v2630 = vunpack.c.h.bf16 %v2588
        %v2631 = vunpack.c.h.bf16 %v2589
        %v2632 = vunpack.c.l.bf16 %v2590
        %v2633 = vunpack.c.l.bf16 %v2591
        %v2634 = vunpack.c.h.bf16 %v2590
        %v2635 = vunpack.c.h.bf16 %v2591
        %v2636 = vunpack.c.l.bf16 %v2592
        %v2637 = vunpack.c.l.bf16 %v2593
        %v2638 = vunpack.c.h.bf16 %v2592
        %v2639 = vunpack.c.h.bf16 %v2593
        %v2640 = vunpack.c.l.bf16 %v2594
        %v2641 = vunpack.c.l.bf16 %v2595
        %v2642 = vunpack.c.h.bf16 %v2594
        %v2643 = vunpack.c.h.bf16 %v2595
        %v2644 = vunpack.c.l.bf16 %v2596
        %v2645 = vunpack.c.l.bf16 %v2597
        %v2646 = vunpack.c.h.bf16 %v2596
        %v2647 = vunpack.c.h.bf16 %v2597
        %v2648 = vunpack.c.l.bf16 %v2598
        %v2649 = vunpack.c.l.bf16 %v2599
        %v2650 = vunpack.c.h.bf16 %v2598
        %v2651 = vunpack.c.h.bf16 %v2599
        %v2652 = vunpack.c.l.bf16 %v2600
        %v2653 = vunpack.c.l.bf16 %v2601
        %v2654 = vunpack.c.h.bf16 %v2600
        %v2655 = vunpack.c.h.bf16 %v2601
        %v2656 = vunpack.c.l.bf16 %v2602
        %v2657 = vunpack.c.l.bf16 %v2603
        %v2658 = vunpack.c.h.bf16 %v2602
        %v2659 = vunpack.c.h.bf16 %v2603
        %v2660 = vunpack.c.l.bf16 %v2604
        %v2661 = vunpack.c.l.bf16 %v2605
        %v2662 = vunpack.c.h.bf16 %v2604
        %v2663 = vunpack.c.h.bf16 %v2605
        %v2664 = vunpack.c.l.bf16 %v2606
        %v2665 = vunpack.c.l.bf16 %v2607
        %v2666 = vunpack.c.h.bf16 %v2606
        %v2667 = vunpack.c.h.bf16 %v2607
        %v2668 = vunpack.c.l.bf16 %v2608
        %v2669 = vunpack.c.l.bf16 %v2609
        %v2670 = vunpack.c.h.bf16 %v2608
        %v2671 = vunpack.c.h.bf16 %v2609
        %v2672 = vunpack.c.l.bf16 %v2610
        %v2673 = vunpack.c.l.bf16 %v2611
        %v2674 = vunpack.c.h.bf16 %v2610
        %v2675 = vunpack.c.h.bf16 %v2611
        %v2676 = vadd.f32 %v2612, %v2614
        %v2677 = vrot.slane %v2676, 4
        %v2678 = vadd.f32 %v2676, %v2677
        %v2679 = vrot.slane %v2678, 2
        %v2680 = vadd.f32 %v2678, %v2679
        %v2681 = vrot.slane %v2680, 1
        %v2682 = vadd.f32 %v2680, %v2681
        %v2683 = vadd.f32 %v2613, %v2615
        %v2684 = vrot.slane %v2683, 4
        %v2685 = vadd.f32 %v2683, %v2684
        %v2686 = vrot.slane %v2685, 2
        %v2687 = vadd.f32 %v2685, %v2686
        %v2688 = vrot.slane %v2687, 1
        %v2689 = vadd.f32 %v2687, %v2688
        %v2690 = vadd.f32 %v2616, %v2618
        %v2691 = vrot.slane %v2690, 4
        %v2692 = vadd.f32 %v2690, %v2691
        %v2693 = vrot.slane %v2692, 2
        %v2694 = vadd.f32 %v2692, %v2693
        %v2695 = vrot.slane %v2694, 1
        %v2696 = vadd.f32 %v2694, %v2695
        %v2697 = vadd.f32 %v2617, %v2619
        %v2698 = vrot.slane %v2697, 4
        %v2699 = vadd.f32 %v2697, %v2698
        %v2700 = vrot.slane %v2699, 2
        %v2701 = vadd.f32 %v2699, %v2700
        %v2702 = vrot.slane %v2701, 1
        %v2703 = vadd.f32 %v2701, %v2702
        %v2704 = vadd.f32 %v2620, %v2622
        %v2705 = vrot.slane %v2704, 4
        %v2706 = vadd.f32 %v2704, %v2705
        %v2707 = vrot.slane %v2706, 2
        %v2708 = vadd.f32 %v2706, %v2707
        %v2709 = vrot.slane %v2708, 1
        %v2710 = vadd.f32 %v2708, %v2709
        %v2711 = vadd.f32 %v2621, %v2623
        %v2712 = vrot.slane %v2711, 4
        %v2713 = vadd.f32 %v2711, %v2712
        %v2714 = vrot.slane %v2713, 2
        %v2715 = vadd.f32 %v2713, %v2714
        %v2716 = vrot.slane %v2715, 1
        %v2717 = vadd.f32 %v2715, %v2716
        %v2718 = vadd.f32 %v2624, %v2626
        %v2719 = vrot.slane %v2718, 4
        %v2720 = vadd.f32 %v2718, %v2719
        %v2721 = vrot.slane %v2720, 2
        %v2722 = vadd.f32 %v2720, %v2721
        %v2723 = vrot.slane %v2722, 1
        %v2724 = vadd.f32 %v2722, %v2723
        %v2725 = vadd.f32 %v2625, %v2627
        %v2726 = vrot.slane %v2725, 4
        %v2727 = vadd.f32 %v2725, %v2726
        %v2728 = vrot.slane %v2727, 2
        %v2729 = vadd.f32 %v2727, %v2728
        %v2730 = vrot.slane %v2729, 1
        %v2731 = vadd.f32 %v2729, %v2730
        %v2732 = vadd.f32 %v2628, %v2630
        %v2733 = vrot.slane %v2732, 4
        %v2734 = vadd.f32 %v2732, %v2733
        %v2735 = vrot.slane %v2734, 2
        %v2736 = vadd.f32 %v2734, %v2735
        %v2737 = vrot.slane %v2736, 1
        %v2738 = vadd.f32 %v2736, %v2737
        %v2739 = vadd.f32 %v2629, %v2631
        %v2740 = vrot.slane %v2739, 4
        %v2741 = vadd.f32 %v2739, %v2740
        %v2742 = vrot.slane %v2741, 2
        %v2743 = vadd.f32 %v2741, %v2742
        %v2744 = vrot.slane %v2743, 1
        %v2745 = vadd.f32 %v2743, %v2744
        %v2746 = vadd.f32 %v2632, %v2634
        %v2747 = vrot.slane %v2746, 4
        %v2748 = vadd.f32 %v2746, %v2747
        %v2749 = vrot.slane %v2748, 2
        %v2750 = vadd.f32 %v2748, %v2749
        %v2751 = vrot.slane %v2750, 1
        %v2752 = vadd.f32 %v2750, %v2751
        %v2753 = vadd.f32 %v2633, %v2635
        %v2754 = vrot.slane %v2753, 4
        %v2755 = vadd.f32 %v2753, %v2754
        %v2756 = vrot.slane %v2755, 2
        %v2757 = vadd.f32 %v2755, %v2756
        %v2758 = vrot.slane %v2757, 1
        %v2759 = vadd.f32 %v2757, %v2758
        %v2760 = vadd.f32 %v2636, %v2638
        %v2761 = vrot.slane %v2760, 4
        %v2762 = vadd.f32 %v2760, %v2761
        %v2763 = vrot.slane %v2762, 2
        %v2764 = vadd.f32 %v2762, %v2763
        %v2765 = vrot.slane %v2764, 1
        %v2766 = vadd.f32 %v2764, %v2765
        %v2767 = vadd.f32 %v2637, %v2639
        %v2768 = vrot.slane %v2767, 4
        %v2769 = vadd.f32 %v2767, %v2768
        %v2770 = vrot.slane %v2769, 2
        %v2771 = vadd.f32 %v2769, %v2770
        %v2772 = vrot.slane %v2771, 1
        %v2773 = vadd.f32 %v2771, %v2772
        %v2774 = vadd.f32 %v2640, %v2642
        %v2775 = vrot.slane %v2774, 4
        %v2776 = vadd.f32 %v2774, %v2775
        %v2777 = vrot.slane %v2776, 2
        %v2778 = vadd.f32 %v2776, %v2777
        %v2779 = vrot.slane %v2778, 1
        %v2780 = vadd.f32 %v2778, %v2779
        %v2781 = vadd.f32 %v2641, %v2643
        %v2782 = vrot.slane %v2781, 4
        %v2783 = vadd.f32 %v2781, %v2782
        %v2784 = vrot.slane %v2783, 2
        %v2785 = vadd.f32 %v2783, %v2784
        %v2786 = vrot.slane %v2785, 1
        %v2787 = vadd.f32 %v2785, %v2786
        %v2788 = vadd.f32 %v2644, %v2646
        %v2789 = vrot.slane %v2788, 4
        %v2790 = vadd.f32 %v2788, %v2789
        %v2791 = vrot.slane %v2790, 2
        %v2792 = vadd.f32 %v2790, %v2791
        %v2793 = vrot.slane %v2792, 1
        %v2794 = vadd.f32 %v2792, %v2793
        %v2795 = vadd.f32 %v2645, %v2647
        %v2796 = vrot.slane %v2795, 4
        %v2797 = vadd.f32 %v2795, %v2796
        %v2798 = vrot.slane %v2797, 2
        %v2799 = vadd.f32 %v2797, %v2798
        %v2800 = vrot.slane %v2799, 1
        %v2801 = vadd.f32 %v2799, %v2800
        %v2802 = vadd.f32 %v2648, %v2650
        %v2803 = vrot.slane %v2802, 4
        %v2804 = vadd.f32 %v2802, %v2803
        %v2805 = vrot.slane %v2804, 2
        %v2806 = vadd.f32 %v2804, %v2805
        %v2807 = vrot.slane %v2806, 1
        %v2808 = vadd.f32 %v2806, %v2807
        %v2809 = vadd.f32 %v2649, %v2651
        %v2810 = vrot.slane %v2809, 4
        %v2811 = vadd.f32 %v2809, %v2810
        %v2812 = vrot.slane %v2811, 2
        %v2813 = vadd.f32 %v2811, %v2812
        %v2814 = vrot.slane %v2813, 1
        %v2815 = vadd.f32 %v2813, %v2814
        %v2816 = vadd.f32 %v2652, %v2654
        %v2817 = vrot.slane %v2816, 4
        %v2818 = vadd.f32 %v2816, %v2817
        %v2819 = vrot.slane %v2818, 2
        %v2820 = vadd.f32 %v2818, %v2819
        %v2821 = vrot.slane %v2820, 1
        %v2822 = vadd.f32 %v2820, %v2821
        %v2823 = vadd.f32 %v2653, %v2655
        %v2824 = vrot.slane %v2823, 4
        %v2825 = vadd.f32 %v2823, %v2824
        %v2826 = vrot.slane %v2825, 2
        %v2827 = vadd.f32 %v2825, %v2826
        %v2828 = vrot.slane %v2827, 1
        %v2829 = vadd.f32 %v2827, %v2828
        %v2830 = vadd.f32 %v2656, %v2658
        %v2831 = vrot.slane %v2830, 4
        %v2832 = vadd.f32 %v2830, %v2831
        %v2833 = vrot.slane %v2832, 2
        %v2834 = vadd.f32 %v2832, %v2833
        %v2835 = vrot.slane %v2834, 1
        %v2836 = vadd.f32 %v2834, %v2835
        %v2837 = vadd.f32 %v2657, %v2659
        %v2838 = vrot.slane %v2837, 4
        %v2839 = vadd.f32 %v2837, %v2838
        %v2840 = vrot.slane %v2839, 2
        %v2841 = vadd.f32 %v2839, %v2840
        %v2842 = vrot.slane %v2841, 1
        %v2843 = vadd.f32 %v2841, %v2842
        %v2844 = vadd.f32 %v2660, %v2662
        %v2845 = vrot.slane %v2844, 4
        %v2846 = vadd.f32 %v2844, %v2845
        %v2847 = vrot.slane %v2846, 2
        %v2848 = vadd.f32 %v2846, %v2847
        %v2849 = vrot.slane %v2848, 1
        %v2850 = vadd.f32 %v2848, %v2849
        %v2851 = vadd.f32 %v2661, %v2663
        %v2852 = vrot.slane %v2851, 4
        %v2853 = vadd.f32 %v2851, %v2852
        %v2854 = vrot.slane %v2853, 2
        %v2855 = vadd.f32 %v2853, %v2854
        %v2856 = vrot.slane %v2855, 1
        %v2857 = vadd.f32 %v2855, %v2856
        %v2858 = vadd.f32 %v2664, %v2666
        %v2859 = vrot.slane %v2858, 4
        %v2860 = vadd.f32 %v2858, %v2859
        %v2861 = vrot.slane %v2860, 2
        %v2862 = vadd.f32 %v2860, %v2861
        %v2863 = vrot.slane %v2862, 1
        %v2864 = vadd.f32 %v2862, %v2863
        %v2865 = vadd.f32 %v2665, %v2667
        %v2866 = vrot.slane %v2865, 4
        %v2867 = vadd.f32 %v2865, %v2866
        %v2868 = vrot.slane %v2867, 2
        %v2869 = vadd.f32 %v2867, %v2868
        %v2870 = vrot.slane %v2869, 1
        %v2871 = vadd.f32 %v2869, %v2870
        %v2872 = vadd.f32 %v2668, %v2670
        %v2873 = vrot.slane %v2872, 4
        %v2874 = vadd.f32 %v2872, %v2873
        %v2875 = vrot.slane %v2874, 2
        %v2876 = vadd.f32 %v2874, %v2875
        %v2877 = vrot.slane %v2876, 1
        %v2878 = vadd.f32 %v2876, %v2877
        %v2879 = vadd.f32 %v2669, %v2671
        %v2880 = vrot.slane %v2879, 4
        %v2881 = vadd.f32 %v2879, %v2880
        %v2882 = vrot.slane %v2881, 2
        %v2883 = vadd.f32 %v2881, %v2882
        %v2884 = vrot.slane %v2883, 1
        %v2885 = vadd.f32 %v2883, %v2884
        %v2886 = vadd.f32 %v2672, %v2674
        %v2887 = vrot.slane %v2886, 4
        %v2888 = vadd.f32 %v2886, %v2887
        %v2889 = vrot.slane %v2888, 2
        %v2890 = vadd.f32 %v2888, %v2889
        %v2891 = vrot.slane %v2890, 1
        %v2892 = vadd.f32 %v2890, %v2891
        %v2893 = vadd.f32 %v2673, %v2675
        %v2894 = vrot.slane %v2893, 4
        %v2895 = vadd.f32 %v2893, %v2894
        %v2896 = vrot.slane %v2895, 2
        %v2897 = vadd.f32 %v2895, %v2896
        %v2898 = vrot.slane %v2897, 1
        %v2899 = vadd.f32 %v2897, %v2898
        %v2900 = vpack.c.bf16 %v2682, %v2682
        %v2901 = vpack.c.bf16 %v2689, %v2689
        %v2902 = vpack.c.bf16 %v2696, %v2696
        %v2903 = vpack.c.bf16 %v2703, %v2703
        %v2904 = vpack.c.bf16 %v2710, %v2710
        %v2905 = vpack.c.bf16 %v2717, %v2717
        %v2906 = vpack.c.bf16 %v2724, %v2724
        %v2907 = vpack.c.bf16 %v2731, %v2731
        %v2908 = vpack.c.bf16 %v2738, %v2738
        %v2909 = vpack.c.bf16 %v2745, %v2745
        %v2910 = vpack.c.bf16 %v2752, %v2752
        %v2911 = vpack.c.bf16 %v2759, %v2759
        %v2912 = vpack.c.bf16 %v2766, %v2766
        %v2913 = vpack.c.bf16 %v2773, %v2773
        %v2914 = vpack.c.bf16 %v2780, %v2780
        %v2915 = vpack.c.bf16 %v2787, %v2787
        %v2916 = vpack.c.bf16 %v2794, %v2794
        %v2917 = vpack.c.bf16 %v2801, %v2801
        %v2918 = vpack.c.bf16 %v2808, %v2808
        %v2919 = vpack.c.bf16 %v2815, %v2815
        %v2920 = vpack.c.bf16 %v2822, %v2822
        %v2921 = vpack.c.bf16 %v2829, %v2829
        %v2922 = vpack.c.bf16 %v2836, %v2836
        %v2923 = vpack.c.bf16 %v2843, %v2843
        %v2924 = vpack.c.bf16 %v2850, %v2850
        %v2925 = vpack.c.bf16 %v2857, %v2857
        %v2926 = vpack.c.bf16 %v2864, %v2864
        %v2927 = vpack.c.bf16 %v2871, %v2871
        %v2928 = vpack.c.bf16 %v2878, %v2878
        %v2929 = vpack.c.bf16 %v2885, %v2885
        %v2930 = vpack.c.bf16 %v2892, %v2892
        %v2931 = vpack.c.bf16 %v2899, %v2899
        %v2964 = vunpack.c.l.b16 %v2900
        %v2965 = vunpack.c.l.b16 %v2901
        %v2966 = vunpack.c.l.b16 %v2902
        %v2967 = vunpack.c.l.b16 %v2903
        %v2968 = vunpack.c.l.b16 %v2904
        %v2969 = vunpack.c.l.b16 %v2905
        %v2970 = vunpack.c.l.b16 %v2906
        %v2971 = vunpack.c.l.b16 %v2907
        %v2972 = vunpack.c.l.b16 %v2908
        %v2973 = vunpack.c.l.b16 %v2909
        %v2974 = vunpack.c.l.b16 %v2910
        %v2975 = vunpack.c.l.b16 %v2911
        %v2976 = vunpack.c.l.b16 %v2912
        %v2977 = vunpack.c.l.b16 %v2913
        %v2978 = vunpack.c.l.b16 %v2914
        %v2979 = vunpack.c.l.b16 %v2915
        %v2980 = vunpack.c.l.b16 %v2916
        %v2981 = vunpack.c.l.b16 %v2917
        %v2982 = vunpack.c.l.b16 %v2918
        %v2983 = vunpack.c.l.b16 %v2919
        %v2984 = vunpack.c.l.b16 %v2920
        %v2985 = vunpack.c.l.b16 %v2921
        %v2986 = vunpack.c.l.b16 %v2922
        %v2987 = vunpack.c.l.b16 %v2923
        %v2988 = vunpack.c.l.b16 %v2924
        %v2989 = vunpack.c.l.b16 %v2925
        %v2990 = vunpack.c.l.b16 %v2926
        %v2991 = vunpack.c.l.b16 %v2927
        %v2992 = vunpack.c.l.b16 %v2928
        %v2993 = vunpack.c.l.b16 %v2929
        %v2994 = vunpack.c.l.b16 %v2930
        %v2995 = vunpack.c.l.b16 %v2931
        %v2996 = vsel %vm1124, %v2966, %v2964
        %v2997 = vsel %vm1126, %v2968, %v2996
        %v2998 = vsel %vm1128, %v2970, %v2997
        %v2999 = vsel %vm1130, %v2972, %v2998
        %v3000 = vsel %vm1132, %v2974, %v2999
        %v3001 = vsel %vm1134, %v2976, %v3000
        %v3002 = vsel %vm1136, %v2978, %v3001
        %v3003 = vsel %vm1124, %v2967, %v2965
        %v3004 = vsel %vm1126, %v2969, %v3003
        %v3005 = vsel %vm1128, %v2971, %v3004
        %v3006 = vsel %vm1130, %v2973, %v3005
        %v3007 = vsel %vm1132, %v2975, %v3006
        %v3008 = vsel %vm1134, %v2977, %v3007
        %v3009 = vsel %vm1136, %v2979, %v3008
        %v3010 = vsel %vm1124, %v2982, %v2980
        %v3011 = vsel %vm1126, %v2984, %v3010
        %v3012 = vsel %vm1128, %v2986, %v3011
        %v3013 = vsel %vm1130, %v2988, %v3012
        %v3014 = vsel %vm1132, %v2990, %v3013
        %v3015 = vsel %vm1134, %v2992, %v3014
        %v3016 = vsel %vm1136, %v2994, %v3015
        %v3017 = vsel %vm1124, %v2983, %v2981
        %v3018 = vsel %vm1126, %v2985, %v3017
        %v3019 = vsel %vm1128, %v2987, %v3018
        %v3020 = vsel %vm1130, %v2989, %v3019
        %v3021 = vsel %vm1132, %v2991, %v3020
        %v3022 = vsel %vm1134, %v2993, %v3021
        %v3023 = vsel %vm1136, %v2995, %v3022
        %v3024 = vpack.c.b16 %v3016, %v3002
        %v3025 = vpack.c.b16 %v3023, %v3009
        %s3028 = scalar_lea.vmem [#allocation2], 32
        %3029 = vst [vmem:[%s3028] sm:$0xff] %v3024
        %3030 = vst [vmem:[%s3028 + $0x8] sm:$0xff] %v3025
        %s3031 = scalar_lea.vmem %s217, 24
        %v3032 = vld [vmem:[%s3031] sm:$0x77]
        %v3034 = vlaneseq
        %v3035 = vshrl.u32 %v3034, 7
        %v3036 = vsub.s32 0, %v3035
        %v3037 = vrot.slane %v3032, %v3036
        %v3038 = vlaneseq
        %v3039 = vshrl.u32 %v3038, 7
        %v3040 = vsub.s32 4, %v3039
        %v3041 = vrot.slane %v3032, %v3040
        %v3044 = vlaneseq
        %v3045 = vshrl.u32 %v3044, 7
        %v3046 = vsub.s32 0, %v3045
        %v3047 = vrot.slane %v3037, %v3046
        %v3048 = vlaneseq
        %v3049 = vshrl.u32 %v3048, 7
        %v3050 = vsub.s32 0, %v3049
        %v3051 = vrot.slane %v3041, %v3050
        %v3052 = vsub.f32 %v224, %v3047
        %v3053 = vsub.f32 %v224, %v3051
        %v3054 = vsub.f32 %v225, %v3047
        %v3055 = vsub.f32 %v225, %v3051
        %v3056 = vand.u32 2147483647, %v3052
        %v3057 = vand.u32 2147483647, %v3053
        %v3058 = vand.u32 2147483647, %v3054
        %v3059 = vand.u32 2147483647, %v3055
        %v3060 = vsub.f32 1.0, %v3056
        %v3061 = vsub.f32 1.0, %v3057
        %v3062 = vsub.f32 1.0, %v3058
        %v3063 = vsub.f32 1.0, %v3059
        %v3064 = vmax.f32 %v3060, 0.0
        %v3065 = vmax.f32 %v3061, 0.0
        %v3066 = vmax.f32 %v3062, 0.0
        %v3067 = vmax.f32 %v3063, 0.0
        %v3068 = vpack.c.bf16 %v3066, %v3064
        %v3069 = vpack.c.bf16 %v3067, %v3065
        %v3070 = vlaneseq
        %v3071 = vshrl.u32 %v3070, 7
        %v3072 = vsub.s32 1, %v3071
        %v3073 = vrot.slane %v3032, %v3072
        %v3074 = vlaneseq
        %v3075 = vshrl.u32 %v3074, 7
        %v3076 = vsub.s32 5, %v3075
        %v3077 = vrot.slane %v3032, %v3076
        %v3080 = vlaneseq
        %v3081 = vshrl.u32 %v3080, 7
        %v3082 = vsub.s32 1, %v3081
        %v3083 = vrot.slane %v3073, %v3082
        %v3084 = vlaneseq
        %v3085 = vshrl.u32 %v3084, 7
        %v3086 = vsub.s32 1, %v3085
        %v3087 = vrot.slane %v3077, %v3086
        %v3088 = vsub.f32 %v224, %v3083
        %v3089 = vsub.f32 %v224, %v3087
        %v3090 = vsub.f32 %v225, %v3083
        %v3091 = vsub.f32 %v225, %v3087
        %v3092 = vand.u32 2147483647, %v3088
        %v3093 = vand.u32 2147483647, %v3089
        %v3094 = vand.u32 2147483647, %v3090
        %v3095 = vand.u32 2147483647, %v3091
        %v3096 = vsub.f32 1.0, %v3092
        %v3097 = vsub.f32 1.0, %v3093
        %v3098 = vsub.f32 1.0, %v3094
        %v3099 = vsub.f32 1.0, %v3095
        %v3100 = vmax.f32 %v3096, 0.0
        %v3101 = vmax.f32 %v3097, 0.0
        %v3102 = vmax.f32 %v3098, 0.0
        %v3103 = vmax.f32 %v3099, 0.0
        %v3104 = vlaneseq
        %v3105 = vshrl.u32 %v3104, 7
        %v3106 = vsub.s32 2, %v3105
        %v3107 = vrot.slane %v3032, %v3106
        %v3108 = vlaneseq
        %v3109 = vshrl.u32 %v3108, 7
        %v3110 = vsub.s32 6, %v3109
        %v3111 = vrot.slane %v3032, %v3110
        %v3114 = vlaneseq
        %v3115 = vshrl.u32 %v3114, 7
        %v3116 = vsub.s32 2, %v3115
        %v3117 = vrot.slane %v3107, %v3116
        %v3118 = vlaneseq
        %v3119 = vshrl.u32 %v3118, 7
        %v3120 = vsub.s32 2, %v3119
        %v3121 = vrot.slane %v3111, %v3120
        %v3122 = vmul.f32 %v3100, %v3117
        %v3123 = vmul.f32 %v3101, %v3121
        %v3124 = vmul.f32 %v3102, %v3117
        %v3125 = vmul.f32 %v3103, %v3121
        %v3126 = vpack.c.bf16 %v3124, %v3122
        %v3127 = vpack.c.bf16 %v3125, %v3123
        %v3128 = vld [vmem:[%s208] sm:$0xf]
        %v3129 = vld [vmem:[%s208 + $0x4] sm:$0xf]
        %v3130 = vld [vmem:[%s208 + $0x8] sm:$0xf]
        %v3131 = vld [vmem:[%s208 + $0xc] sm:$0xf]
        %v3132 = vld [vmem:[%s208 + $0x10] sm:$0xf]
        %v3133 = vld [vmem:[%s208 + $0x14] sm:$0xf]
        %v3134 = vld [vmem:[%s208 + $0x18] sm:$0xf]
        %v3135 = vld [vmem:[%s208 + $0x1c] sm:$0xf]
        %v3136 = vld [vmem:[%s208 + $0x20] sm:$0xf]
        %v3137 = vld [vmem:[%s208 + $0x24] sm:$0xf]
        %v3138 = vld [vmem:[%s208 + $0x28] sm:$0xf]
        %v3139 = vld [vmem:[%s208 + $0x2c] sm:$0xf]
        %v3140 = vld [vmem:[%s208 + $0x30] sm:$0xf]
        %v3141 = vld [vmem:[%s208 + $0x34] sm:$0xf]
        %v3142 = vld [vmem:[%s208 + $0x38] sm:$0xf]
        %v3143 = vld [vmem:[%s208 + $0x3c] sm:$0xf]
        %v3144 = vld [vmem:[%s208 + $0x40] sm:$0xf]
        %v3145 = vld [vmem:[%s208 + $0x44] sm:$0xf]
        %v3146 = vld [vmem:[%s208 + $0x48] sm:$0xf]
        %v3147 = vld [vmem:[%s208 + $0x4c] sm:$0xf]
        %v3148 = vld [vmem:[%s208 + $0x50] sm:$0xf]
        %v3149 = vld [vmem:[%s208 + $0x54] sm:$0xf]
        %v3150 = vld [vmem:[%s208 + $0x58] sm:$0xf]
        %v3151 = vld [vmem:[%s208 + $0x5c] sm:$0xf]
        %v3152 = vld [vmem:[%s208 + $0x60] sm:$0xf]
        %v3153 = vld [vmem:[%s208 + $0x64] sm:$0xf]
        %v3154 = vld [vmem:[%s208 + $0x68] sm:$0xf]
        %v3155 = vld [vmem:[%s208 + $0x6c] sm:$0xf]
        %v3156 = vld [vmem:[%s208 + $0x70] sm:$0xf]
        %v3157 = vld [vmem:[%s208 + $0x74] sm:$0xf]
        %v3158 = vld [vmem:[%s208 + $0x78] sm:$0xf]
        %v3159 = vld [vmem:[%s208 + $0x7c] sm:$0xf]
        %v3192 = vunpack.c.l.b16 %v3128
        %v3193 = vunpack.c.l.b16 %v3129
        %v3194 = vunpack.c.l.b16 %v3130
        %v3195 = vunpack.c.l.b16 %v3131
        %v3196 = vunpack.c.l.b16 %v3132
        %v3197 = vunpack.c.l.b16 %v3133
        %v3198 = vunpack.c.l.b16 %v3134
        %v3199 = vunpack.c.l.b16 %v3135
        %v3200 = vunpack.c.l.b16 %v3136
        %v3201 = vunpack.c.l.b16 %v3137
        %v3202 = vunpack.c.l.b16 %v3138
        %v3203 = vunpack.c.l.b16 %v3139
        %v3204 = vunpack.c.l.b16 %v3140
        %v3205 = vunpack.c.l.b16 %v3141
        %v3206 = vunpack.c.l.b16 %v3142
        %v3207 = vunpack.c.l.b16 %v3143
        %v3208 = vunpack.c.l.b16 %v3144
        %v3209 = vunpack.c.l.b16 %v3145
        %v3210 = vunpack.c.l.b16 %v3146
        %v3211 = vunpack.c.l.b16 %v3147
        %v3212 = vunpack.c.l.b16 %v3148
        %v3213 = vunpack.c.l.b16 %v3149
        %v3214 = vunpack.c.l.b16 %v3150
        %v3215 = vunpack.c.l.b16 %v3151
        %v3216 = vunpack.c.l.b16 %v3152
        %v3217 = vunpack.c.l.b16 %v3153
        %v3218 = vunpack.c.l.b16 %v3154
        %v3219 = vunpack.c.l.b16 %v3155
        %v3220 = vunpack.c.l.b16 %v3156
        %v3221 = vunpack.c.l.b16 %v3157
        %v3222 = vunpack.c.l.b16 %v3158
        %v3223 = vunpack.c.l.b16 %v3159
        %v3224 = vpack.c.b16 %v3193, %v3192
        %v3225 = vpack.c.b16 %v3195, %v3194
        %v3226 = vpack.c.b16 %v3197, %v3196
        %v3227 = vpack.c.b16 %v3199, %v3198
        %v3228 = vpack.c.b16 %v3201, %v3200
        %v3229 = vpack.c.b16 %v3203, %v3202
        %v3230 = vpack.c.b16 %v3205, %v3204
        %v3231 = vpack.c.b16 %v3207, %v3206
        %v3232 = vpack.c.b16 %v3209, %v3208
        %v3233 = vpack.c.b16 %v3211, %v3210
        %v3234 = vpack.c.b16 %v3213, %v3212
        %v3235 = vpack.c.b16 %v3215, %v3214
        %v3236 = vpack.c.b16 %v3217, %v3216
        %v3237 = vpack.c.b16 %v3219, %v3218
        %v3238 = vpack.c.b16 %v3221, %v3220
        %v3239 = vpack.c.b16 %v3223, %v3222
        %v3241 = vsel %vm434, %v3224, 0
        %v3244 = vsel %vm434, %v3225, 0
        %v3247 = vsel %vm434, %v3226, 0
        %v3250 = vsel %vm434, %v3227, 0
        %v3253 = vsel %vm434, %v3228, 0
        %v3256 = vsel %vm434, %v3229, 0
        %v3259 = vsel %vm434, %v3230, 0
        %v3262 = vsel %vm434, %v3231, 0
        %v3265 = vsel %vm434, %v3232, 0
        %v3268 = vsel %vm434, %v3233, 0
        %v3271 = vsel %vm434, %v3234, 0
        %v3274 = vsel %vm434, %v3235, 0
        %v3277 = vsel %vm434, %v3236, 0
        %v3280 = vsel %vm434, %v3237, 0
        %v3283 = vsel %vm434, %v3238, 0
        %v3286 = vsel %vm434, %v3239, 0
        %3288 = vmatprep.subr.bf16.mxu0 %v3069
        %3289 = vmatpush1.bf16.msra.mxu0 %v3068
        %3290 = vmatprep.subr.bf16.mxu0 0
        %3291 = vmatpush1.bf16.msra.mxu0 0
        %3292 = vmatprep.subr.bf16.mxu0 0
        %3293 = vmatpush1.bf16.msra.mxu0 0
        %3294 = vmatprep.subr.bf16.mxu0 0
        %3295 = vmatpush1.bf16.msra.mxu0 0
        %3296 = vmatprep.subr.bf16.mxu0 0
        %3297 = vmatpush1.bf16.msra.mxu0 0
        %3298 = vmatprep.subr.bf16.mxu0 0
        %3299 = vmatpush1.bf16.msra.mxu0 0
        %3300 = vmatprep.subr.bf16.mxu0 0
        %3301 = vmatpush1.bf16.msra.mxu0 0
        %3302 = vmatprep.subr.bf16.mxu0 0
        %3303 = vmatpush1.bf16.msra.mxu0 0
        %3304 = vmatprep.subr.bf16.mxu0 0
        %3305 = vmatpush1.bf16.msra.mxu0 0
        %3306 = vmatprep.subr.bf16.mxu0 0
        %3307 = vmatpush1.bf16.msra.mxu0 0
        %3308 = vmatprep.subr.bf16.mxu0 0
        %3309 = vmatpush1.bf16.msra.mxu0 0
        %3310 = vmatprep.subr.bf16.mxu0 0
        %3311 = vmatpush1.bf16.msra.mxu0 0
        %3312 = vmatprep.subr.bf16.mxu0 0
        %3313 = vmatpush1.bf16.msra.mxu0 0
        %3314 = vmatprep.subr.bf16.mxu0 0
        %3315 = vmatpush1.bf16.msra.mxu0 0
        %3316 = vmatprep.subr.bf16.mxu0 0
        %3317 = vmatpush1.bf16.msra.mxu0 0
        %3318 = vmatprep.subr.bf16.mxu0 0
        %3319 = vmatpush1.bf16.msra.mxu0 0
        %3320 = vmatprep.mubr.bf16.mxu0 0
        %3321 = vmatmul.mubr.bf16.gmra.mrb[0].mxu0 %v3241
        %v3322 = vpop.f32.mrb[0].mxu0
        %v3323 = vadd.f32 0.0, %v3322
        %v3324 = vpop.f32.mrb[0].mxu0
        %v3325 = vadd.f32 0.0, %v3324
        %v3326 = vpop.f32.mrb[0].mxu0
        %v3327 = vadd.f32 0.0, %v3326
        %v3328 = vpop.f32.mrb[0].mxu0
        %v3329 = vadd.f32 0.0, %v3328
        %3330 = vmatprep.mubr.bf16.mxu0 0
        %3331 = vmatmul.mubr.bf16.gmra.mrb[0].mxu0 %v3244
        %v3332 = vpop.f32.mrb[0].mxu0
        %v3333 = vadd.f32 0.0, %v3332
        %v3334 = vpop.f32.mrb[0].mxu0
        %v3335 = vadd.f32 0.0, %v3334
        %v3336 = vpop.f32.mrb[0].mxu0
        %v3337 = vadd.f32 0.0, %v3336
        %v3338 = vpop.f32.mrb[0].mxu0
        %v3339 = vadd.f32 0.0, %v3338
        %3340 = vmatprep.mubr.bf16.mxu0 0
        %3341 = vmatmul.mubr.bf16.gmra.mrb[0].mxu0 %v3247
        %v3342 = vpop.f32.mrb[0].mxu0
        %v3343 = vadd.f32 0.0, %v3342
        %v3344 = vpop.f32.mrb[0].mxu0
        %v3345 = vadd.f32 0.0, %v3344
        %v3346 = vpop.f32.mrb[0].mxu0
        %v3347 = vadd.f32 0.0, %v3346
        %v3348 = vpop.f32.mrb[0].mxu0
        %v3349 = vadd.f32 0.0, %v3348
        %3350 = vmatprep.mubr.bf16.mxu0 0
        %3351 = vmatmul.mubr.bf16.gmra.mrb[0].mxu0 %v3250
        %v3352 = vpop.f32.mrb[0].mxu0
        %v3353 = vadd.f32 0.0, %v3352
        %v3354 = vpop.f32.mrb[0].mxu0
        %v3355 = vadd.f32 0.0, %v3354
        %v3356 = vpop.f32.mrb[0].mxu0
        %v3357 = vadd.f32 0.0, %v3356
        %v3358 = vpop.f32.mrb[0].mxu0
        %v3359 = vadd.f32 0.0, %v3358
        %3360 = vmatprep.mubr.bf16.mxu0 0
        %3361 = vmatmul.mubr.bf16.gmra.mrb[0].mxu0 %v3253
        %v3362 = vpop.f32.mrb[0].mxu0
        %v3363 = vadd.f32 0.0, %v3362
        %v3364 = vpop.f32.mrb[0].mxu0
        %v3365 = vadd.f32 0.0, %v3364
        %v3366 = vpop.f32.mrb[0].mxu0
        %v3367 = vadd.f32 0.0, %v3366
        %v3368 = vpop.f32.mrb[0].mxu0
        %v3369 = vadd.f32 0.0, %v3368
        %3370 = vmatprep.mubr.bf16.mxu0 0
        %3371 = vmatmul.mubr.bf16.gmra.mrb[0].mxu0 %v3256
        %v3372 = vpop.f32.mrb[0].mxu0
        %v3373 = vadd.f32 0.0, %v3372
        %v3374 = vpop.f32.mrb[0].mxu0
        %v3375 = vadd.f32 0.0, %v3374
        %v3376 = vpop.f32.mrb[0].mxu0
        %v3377 = vadd.f32 0.0, %v3376
        %v3378 = vpop.f32.mrb[0].mxu0
        %v3379 = vadd.f32 0.0, %v3378
        %3380 = vmatprep.mubr.bf16.mxu0 0
        %3381 = vmatmul.mubr.bf16.gmra.mrb[0].mxu0 %v3259
        %v3382 = vpop.f32.mrb[0].mxu0
        %v3383 = vadd.f32 0.0, %v3382
        %v3384 = vpop.f32.mrb[0].mxu0
        %v3385 = vadd.f32 0.0, %v3384
        %v3386 = vpop.f32.mrb[0].mxu0
        %v3387 = vadd.f32 0.0, %v3386
        %v3388 = vpop.f32.mrb[0].mxu0
        %v3389 = vadd.f32 0.0, %v3388
        %3390 = vmatprep.mubr.bf16.mxu0 0
        %3391 = vmatmul.mubr.bf16.gmra.mrb[0].mxu0 %v3262
        %v3392 = vpop.f32.mrb[0].mxu0
        %v3393 = vadd.f32 0.0, %v3392
        %v3394 = vpop.f32.mrb[0].mxu0
        %v3395 = vadd.f32 0.0, %v3394
        %v3396 = vpop.f32.mrb[0].mxu0
        %v3397 = vadd.f32 0.0, %v3396
        %v3398 = vpop.f32.mrb[0].mxu0
        %v3399 = vadd.f32 0.0, %v3398
        %3400 = vmatprep.mubr.bf16.mxu0 0
        %3401 = vmatmul.mubr.bf16.gmra.mrb[0].mxu0 %v3265
        %v3402 = vpop.f32.mrb[0].mxu0
        %v3403 = vadd.f32 0.0, %v3402
        %v3404 = vpop.f32.mrb[0].mxu0
        %v3405 = vadd.f32 0.0, %v3404
        %v3406 = vpop.f32.mrb[0].mxu0
        %v3407 = vadd.f32 0.0, %v3406
        %v3408 = vpop.f32.mrb[0].mxu0
        %v3409 = vadd.f32 0.0, %v3408
        %3410 = vmatprep.mubr.bf16.mxu0 0
        %3411 = vmatmul.mubr.bf16.gmra.mrb[0].mxu0 %v3268
        %v3412 = vpop.f32.mrb[0].mxu0
        %v3413 = vadd.f32 0.0, %v3412
        %v3414 = vpop.f32.mrb[0].mxu0
        %v3415 = vadd.f32 0.0, %v3414
        %v3416 = vpop.f32.mrb[0].mxu0
        %v3417 = vadd.f32 0.0, %v3416
        %v3418 = vpop.f32.mrb[0].mxu0
        %v3419 = vadd.f32 0.0, %v3418
        %3420 = vmatprep.mubr.bf16.mxu0 0
        %3421 = vmatmul.mubr.bf16.gmra.mrb[0].mxu0 %v3271
        %v3422 = vpop.f32.mrb[0].mxu0
        %v3423 = vadd.f32 0.0, %v3422
        %v3424 = vpop.f32.mrb[0].mxu0
        %v3425 = vadd.f32 0.0, %v3424
        %v3426 = vpop.f32.mrb[0].mxu0
        %v3427 = vadd.f32 0.0, %v3426
        %v3428 = vpop.f32.mrb[0].mxu0
        %v3429 = vadd.f32 0.0, %v3428
        %3430 = vmatprep.mubr.bf16.mxu0 0
        %3431 = vmatmul.mubr.bf16.gmra.mrb[0].mxu0 %v3274
        %v3432 = vpop.f32.mrb[0].mxu0
        %v3433 = vadd.f32 0.0, %v3432
        %v3434 = vpop.f32.mrb[0].mxu0
        %v3435 = vadd.f32 0.0, %v3434
        %v3436 = vpop.f32.mrb[0].mxu0
        %v3437 = vadd.f32 0.0, %v3436
        %v3438 = vpop.f32.mrb[0].mxu0
        %v3439 = vadd.f32 0.0, %v3438
        %3440 = vmatprep.mubr.bf16.mxu0 0
        %3441 = vmatmul.mubr.bf16.gmra.mrb[0].mxu0 %v3277
        %v3442 = vpop.f32.mrb[0].mxu0
        %v3443 = vadd.f32 0.0, %v3442
        %v3444 = vpop.f32.mrb[0].mxu0
        %v3445 = vadd.f32 0.0, %v3444
        %v3446 = vpop.f32.mrb[0].mxu0
        %v3447 = vadd.f32 0.0, %v3446
        %v3448 = vpop.f32.mrb[0].mxu0
        %v3449 = vadd.f32 0.0, %v3448
        %3450 = vmatprep.mubr.bf16.mxu0 0
        %3451 = vmatmul.mubr.bf16.gmra.mrb[0].mxu0 %v3280
        %v3452 = vpop.f32.mrb[0].mxu0
        %v3453 = vadd.f32 0.0, %v3452
        %v3454 = vpop.f32.mrb[0].mxu0
        %v3455 = vadd.f32 0.0, %v3454
        %v3456 = vpop.f32.mrb[0].mxu0
        %v3457 = vadd.f32 0.0, %v3456
        %v3458 = vpop.f32.mrb[0].mxu0
        %v3459 = vadd.f32 0.0, %v3458
        %3460 = vmatprep.mubr.bf16.mxu0 0
        %3461 = vmatmul.mubr.bf16.gmra.mrb[0].mxu0 %v3283
        %v3462 = vpop.f32.mrb[0].mxu0
        %v3463 = vadd.f32 0.0, %v3462
        %v3464 = vpop.f32.mrb[0].mxu0
        %v3465 = vadd.f32 0.0, %v3464
        %v3466 = vpop.f32.mrb[0].mxu0
        %v3467 = vadd.f32 0.0, %v3466
        %v3468 = vpop.f32.mrb[0].mxu0
        %v3469 = vadd.f32 0.0, %v3468
        %3470 = vmatprep.mubr.bf16.mxu0 0
        %3471 = vmatmul.mubr.bf16.gmra.mrb[0].mxu0 %v3286
        %v3472 = vpop.f32.mrb[0].mxu0
        %v3473 = vadd.f32 0.0, %v3472
        %v3474 = vpop.f32.mrb[0].mxu0
        %v3475 = vadd.f32 0.0, %v3474
        %v3476 = vpop.f32.mrb[0].mxu0
        %v3477 = vadd.f32 0.0, %v3476
        %v3478 = vpop.f32.mrb[0].mxu0
        %v3479 = vadd.f32 0.0, %v3478
        %3480 = vdwg.mxu0
        %v3481 = vpack.c.bf16 %v3327, %v3323
        %v3482 = vpack.c.bf16 %v3329, %v3325
        %v3483 = vpack.c.bf16 %v3337, %v3333
        %v3484 = vpack.c.bf16 %v3339, %v3335
        %v3485 = vpack.c.bf16 %v3347, %v3343
        %v3486 = vpack.c.bf16 %v3349, %v3345
        %v3487 = vpack.c.bf16 %v3357, %v3353
        %v3488 = vpack.c.bf16 %v3359, %v3355
        %v3489 = vpack.c.bf16 %v3367, %v3363
        %v3490 = vpack.c.bf16 %v3369, %v3365
        %v3491 = vpack.c.bf16 %v3377, %v3373
        %v3492 = vpack.c.bf16 %v3379, %v3375
        %v3493 = vpack.c.bf16 %v3387, %v3383
        %v3494 = vpack.c.bf16 %v3389, %v3385
        %v3495 = vpack.c.bf16 %v3397, %v3393
        %v3496 = vpack.c.bf16 %v3399, %v3395
        %v3497 = vpack.c.bf16 %v3407, %v3403
        %v3498 = vpack.c.bf16 %v3409, %v3405
        %v3499 = vpack.c.bf16 %v3417, %v3413
        %v3500 = vpack.c.bf16 %v3419, %v3415
        %v3501 = vpack.c.bf16 %v3427, %v3423
        %v3502 = vpack.c.bf16 %v3429, %v3425
        %v3503 = vpack.c.bf16 %v3437, %v3433
        %v3504 = vpack.c.bf16 %v3439, %v3435
        %v3505 = vpack.c.bf16 %v3447, %v3443
        %v3506 = vpack.c.bf16 %v3449, %v3445
        %v3507 = vpack.c.bf16 %v3457, %v3453
        %v3508 = vpack.c.bf16 %v3459, %v3455
        %v3509 = vpack.c.bf16 %v3467, %v3463
        %v3510 = vpack.c.bf16 %v3469, %v3465
        %v3511 = vpack.c.bf16 %v3477, %v3473
        %v3512 = vpack.c.bf16 %v3479, %v3475
        %v3513 = vmul.bf16 %v3481, %v3126
        %v3514 = vmul.bf16 %v3482, %v3127
        %v3515 = vmul.bf16 %v3483, %v3126
        %v3516 = vmul.bf16 %v3484, %v3127
        %v3517 = vmul.bf16 %v3485, %v3126
        %v3518 = vmul.bf16 %v3486, %v3127
        %v3519 = vmul.bf16 %v3487, %v3126
        %v3520 = vmul.bf16 %v3488, %v3127
        %v3521 = vmul.bf16 %v3489, %v3126
        %v3522 = vmul.bf16 %v3490, %v3127
        %v3523 = vmul.bf16 %v3491, %v3126
        %v3524 = vmul.bf16 %v3492, %v3127
        %v3525 = vmul.bf16 %v3493, %v3126
        %v3526 = vmul.bf16 %v3494, %v3127
        %v3527 = vmul.bf16 %v3495, %v3126
        %v3528 = vmul.bf16 %v3496, %v3127
        %v3529 = vmul.bf16 %v3497, %v3126
        %v3530 = vmul.bf16 %v3498, %v3127
        %v3531 = vmul.bf16 %v3499, %v3126
        %v3532 = vmul.bf16 %v3500, %v3127
        %v3533 = vmul.bf16 %v3501, %v3126
        %v3534 = vmul.bf16 %v3502, %v3127
        %v3535 = vmul.bf16 %v3503, %v3126
        %v3536 = vmul.bf16 %v3504, %v3127
        %v3537 = vmul.bf16 %v3505, %v3126
        %v3538 = vmul.bf16 %v3506, %v3127
        %v3539 = vmul.bf16 %v3507, %v3126
        %v3540 = vmul.bf16 %v3508, %v3127
        %v3541 = vmul.bf16 %v3509, %v3126
        %v3542 = vmul.bf16 %v3510, %v3127
        %v3543 = vmul.bf16 %v3511, %v3126
        %v3544 = vmul.bf16 %v3512, %v3127
        %v3545 = vunpack.c.l.bf16 %v3513
        %v3546 = vunpack.c.l.bf16 %v3514
        %v3547 = vunpack.c.h.bf16 %v3513
        %v3548 = vunpack.c.h.bf16 %v3514
        %v3549 = vunpack.c.l.bf16 %v3515
        %v3550 = vunpack.c.l.bf16 %v3516
        %v3551 = vunpack.c.h.bf16 %v3515
        %v3552 = vunpack.c.h.bf16 %v3516
        %v3553 = vunpack.c.l.bf16 %v3517
        %v3554 = vunpack.c.l.bf16 %v3518
        %v3555 = vunpack.c.h.bf16 %v3517
        %v3556 = vunpack.c.h.bf16 %v3518
        %v3557 = vunpack.c.l.bf16 %v3519
        %v3558 = vunpack.c.l.bf16 %v3520
        %v3559 = vunpack.c.h.bf16 %v3519
        %v3560 = vunpack.c.h.bf16 %v3520
        %v3561 = vunpack.c.l.bf16 %v3521
        %v3562 = vunpack.c.l.bf16 %v3522
        %v3563 = vunpack.c.h.bf16 %v3521
        %v3564 = vunpack.c.h.bf16 %v3522
        %v3565 = vunpack.c.l.bf16 %v3523
        %v3566 = vunpack.c.l.bf16 %v3524
        %v3567 = vunpack.c.h.bf16 %v3523
        %v3568 = vunpack.c.h.bf16 %v3524
        %v3569 = vunpack.c.l.bf16 %v3525
        %v3570 = vunpack.c.l.bf16 %v3526
        %v3571 = vunpack.c.h.bf16 %v3525
        %v3572 = vunpack.c.h.bf16 %v3526
        %v3573 = vunpack.c.l.bf16 %v3527
        %v3574 = vunpack.c.l.bf16 %v3528
        %v3575 = vunpack.c.h.bf16 %v3527
        %v3576 = vunpack.c.h.bf16 %v3528
        %v3577 = vunpack.c.l.bf16 %v3529
        %v3578 = vunpack.c.l.bf16 %v3530
        %v3579 = vunpack.c.h.bf16 %v3529
        %v3580 = vunpack.c.h.bf16 %v3530
        %v3581 = vunpack.c.l.bf16 %v3531
        %v3582 = vunpack.c.l.bf16 %v3532
        %v3583 = vunpack.c.h.bf16 %v3531
        %v3584 = vunpack.c.h.bf16 %v3532
        %v3585 = vunpack.c.l.bf16 %v3533
        %v3586 = vunpack.c.l.bf16 %v3534
        %v3587 = vunpack.c.h.bf16 %v3533
        %v3588 = vunpack.c.h.bf16 %v3534
        %v3589 = vunpack.c.l.bf16 %v3535
        %v3590 = vunpack.c.l.bf16 %v3536
        %v3591 = vunpack.c.h.bf16 %v3535
        %v3592 = vunpack.c.h.bf16 %v3536
        %v3593 = vunpack.c.l.bf16 %v3537
        %v3594 = vunpack.c.l.bf16 %v3538
        %v3595 = vunpack.c.h.bf16 %v3537
        %v3596 = vunpack.c.h.bf16 %v3538
        %v3597 = vunpack.c.l.bf16 %v3539
        %v3598 = vunpack.c.l.bf16 %v3540
        %v3599 = vunpack.c.h.bf16 %v3539
        %v3600 = vunpack.c.h.bf16 %v3540
        %v3601 = vunpack.c.l.bf16 %v3541
        %v3602 = vunpack.c.l.bf16 %v3542
        %v3603 = vunpack.c.h.bf16 %v3541
        %v3604 = vunpack.c.h.bf16 %v3542
        %v3605 = vunpack.c.l.bf16 %v3543
        %v3606 = vunpack.c.l.bf16 %v3544
        %v3607 = vunpack.c.h.bf16 %v3543
        %v3608 = vunpack.c.h.bf16 %v3544
        %v3609 = vadd.f32 %v3545, %v3547
        %v3610 = vrot.slane %v3609, 4
        %v3611 = vadd.f32 %v3609, %v3610
        %v3612 = vrot.slane %v3611, 2
        %v3613 = vadd.f32 %v3611, %v3612
        %v3614 = vrot.slane %v3613, 1
        %v3615 = vadd.f32 %v3613, %v3614
        %v3616 = vadd.f32 %v3546, %v3548
        %v3617 = vrot.slane %v3616, 4
        %v3618 = vadd.f32 %v3616, %v3617
        %v3619 = vrot.slane %v3618, 2
        %v3620 = vadd.f32 %v3618, %v3619
        %v3621 = vrot.slane %v3620, 1
        %v3622 = vadd.f32 %v3620, %v3621
        %v3623 = vadd.f32 %v3549, %v3551
        %v3624 = vrot.slane %v3623, 4
        %v3625 = vadd.f32 %v3623, %v3624
        %v3626 = vrot.slane %v3625, 2
        %v3627 = vadd.f32 %v3625, %v3626
        %v3628 = vrot.slane %v3627, 1
        %v3629 = vadd.f32 %v3627, %v3628
        %v3630 = vadd.f32 %v3550, %v3552
        %v3631 = vrot.slane %v3630, 4
        %v3632 = vadd.f32 %v3630, %v3631
        %v3633 = vrot.slane %v3632, 2
        %v3634 = vadd.f32 %v3632, %v3633
        %v3635 = vrot.slane %v3634, 1
        %v3636 = vadd.f32 %v3634, %v3635
        %v3637 = vadd.f32 %v3553, %v3555
        %v3638 = vrot.slane %v3637, 4
        %v3639 = vadd.f32 %v3637, %v3638
        %v3640 = vrot.slane %v3639, 2
        %v3641 = vadd.f32 %v3639, %v3640
        %v3642 = vrot.slane %v3641, 1
        %v3643 = vadd.f32 %v3641, %v3642
        %v3644 = vadd.f32 %v3554, %v3556
        %v3645 = vrot.slane %v3644, 4
        %v3646 = vadd.f32 %v3644, %v3645
        %v3647 = vrot.slane %v3646, 2
        %v3648 = vadd.f32 %v3646, %v3647
        %v3649 = vrot.slane %v3648, 1
        %v3650 = vadd.f32 %v3648, %v3649
        %v3651 = vadd.f32 %v3557, %v3559
        %v3652 = vrot.slane %v3651, 4
        %v3653 = vadd.f32 %v3651, %v3652
        %v3654 = vrot.slane %v3653, 2
        %v3655 = vadd.f32 %v3653, %v3654
        %v3656 = vrot.slane %v3655, 1
        %v3657 = vadd.f32 %v3655, %v3656
        %v3658 = vadd.f32 %v3558, %v3560
        %v3659 = vrot.slane %v3658, 4
        %v3660 = vadd.f32 %v3658, %v3659
        %v3661 = vrot.slane %v3660, 2
        %v3662 = vadd.f32 %v3660, %v3661
        %v3663 = vrot.slane %v3662, 1
        %v3664 = vadd.f32 %v3662, %v3663
        %v3665 = vadd.f32 %v3561, %v3563
        %v3666 = vrot.slane %v3665, 4
        %v3667 = vadd.f32 %v3665, %v3666
        %v3668 = vrot.slane %v3667, 2
        %v3669 = vadd.f32 %v3667, %v3668
        %v3670 = vrot.slane %v3669, 1
        %v3671 = vadd.f32 %v3669, %v3670
        %v3672 = vadd.f32 %v3562, %v3564
        %v3673 = vrot.slane %v3672, 4
        %v3674 = vadd.f32 %v3672, %v3673
        %v3675 = vrot.slane %v3674, 2
        %v3676 = vadd.f32 %v3674, %v3675
        %v3677 = vrot.slane %v3676, 1
        %v3678 = vadd.f32 %v3676, %v3677
        %v3679 = vadd.f32 %v3565, %v3567
        %v3680 = vrot.slane %v3679, 4
        %v3681 = vadd.f32 %v3679, %v3680
        %v3682 = vrot.slane %v3681, 2
        %v3683 = vadd.f32 %v3681, %v3682
        %v3684 = vrot.slane %v3683, 1
        %v3685 = vadd.f32 %v3683, %v3684
        %v3686 = vadd.f32 %v3566, %v3568
        %v3687 = vrot.slane %v3686, 4
        %v3688 = vadd.f32 %v3686, %v3687
        %v3689 = vrot.slane %v3688, 2
        %v3690 = vadd.f32 %v3688, %v3689
        %v3691 = vrot.slane %v3690, 1
        %v3692 = vadd.f32 %v3690, %v3691
        %v3693 = vadd.f32 %v3569, %v3571
        %v3694 = vrot.slane %v3693, 4
        %v3695 = vadd.f32 %v3693, %v3694
        %v3696 = vrot.slane %v3695, 2
        %v3697 = vadd.f32 %v3695, %v3696
        %v3698 = vrot.slane %v3697, 1
        %v3699 = vadd.f32 %v3697, %v3698
        %v3700 = vadd.f32 %v3570, %v3572
        %v3701 = vrot.slane %v3700, 4
        %v3702 = vadd.f32 %v3700, %v3701
        %v3703 = vrot.slane %v3702, 2
        %v3704 = vadd.f32 %v3702, %v3703
        %v3705 = vrot.slane %v3704, 1
        %v3706 = vadd.f32 %v3704, %v3705
        %v3707 = vadd.f32 %v3573, %v3575
        %v3708 = vrot.slane %v3707, 4
        %v3709 = vadd.f32 %v3707, %v3708
        %v3710 = vrot.slane %v3709, 2
        %v3711 = vadd.f32 %v3709, %v3710
        %v3712 = vrot.slane %v3711, 1
        %v3713 = vadd.f32 %v3711, %v3712
        %v3714 = vadd.f32 %v3574, %v3576
        %v3715 = vrot.slane %v3714, 4
        %v3716 = vadd.f32 %v3714, %v3715
        %v3717 = vrot.slane %v3716, 2
        %v3718 = vadd.f32 %v3716, %v3717
        %v3719 = vrot.slane %v3718, 1
        %v3720 = vadd.f32 %v3718, %v3719
        %v3721 = vadd.f32 %v3577, %v3579
        %v3722 = vrot.slane %v3721, 4
        %v3723 = vadd.f32 %v3721, %v3722
        %v3724 = vrot.slane %v3723, 2
        %v3725 = vadd.f32 %v3723, %v3724
        %v3726 = vrot.slane %v3725, 1
        %v3727 = vadd.f32 %v3725, %v3726
        %v3728 = vadd.f32 %v3578, %v3580
        %v3729 = vrot.slane %v3728, 4
        %v3730 = vadd.f32 %v3728, %v3729
        %v3731 = vrot.slane %v3730, 2
        %v3732 = vadd.f32 %v3730, %v3731
        %v3733 = vrot.slane %v3732, 1
        %v3734 = vadd.f32 %v3732, %v3733
        %v3735 = vadd.f32 %v3581, %v3583
        %v3736 = vrot.slane %v3735, 4
        %v3737 = vadd.f32 %v3735, %v3736
        %v3738 = vrot.slane %v3737, 2
        %v3739 = vadd.f32 %v3737, %v3738
        %v3740 = vrot.slane %v3739, 1
        %v3741 = vadd.f32 %v3739, %v3740
        %v3742 = vadd.f32 %v3582, %v3584
        %v3743 = vrot.slane %v3742, 4
        %v3744 = vadd.f32 %v3742, %v3743
        %v3745 = vrot.slane %v3744, 2
        %v3746 = vadd.f32 %v3744, %v3745
        %v3747 = vrot.slane %v3746, 1
        %v3748 = vadd.f32 %v3746, %v3747
        %v3749 = vadd.f32 %v3585, %v3587
        %v3750 = vrot.slane %v3749, 4
        %v3751 = vadd.f32 %v3749, %v3750
        %v3752 = vrot.slane %v3751, 2
        %v3753 = vadd.f32 %v3751, %v3752
        %v3754 = vrot.slane %v3753, 1
        %v3755 = vadd.f32 %v3753, %v3754
        %v3756 = vadd.f32 %v3586, %v3588
        %v3757 = vrot.slane %v3756, 4
        %v3758 = vadd.f32 %v3756, %v3757
        %v3759 = vrot.slane %v3758, 2
        %v3760 = vadd.f32 %v3758, %v3759
        %v3761 = vrot.slane %v3760, 1
        %v3762 = vadd.f32 %v3760, %v3761
        %v3763 = vadd.f32 %v3589, %v3591
        %v3764 = vrot.slane %v3763, 4
        %v3765 = vadd.f32 %v3763, %v3764
        %v3766 = vrot.slane %v3765, 2
        %v3767 = vadd.f32 %v3765, %v3766
        %v3768 = vrot.slane %v3767, 1
        %v3769 = vadd.f32 %v3767, %v3768
        %v3770 = vadd.f32 %v3590, %v3592
        %v3771 = vrot.slane %v3770, 4
        %v3772 = vadd.f32 %v3770, %v3771
        %v3773 = vrot.slane %v3772, 2
        %v3774 = vadd.f32 %v3772, %v3773
        %v3775 = vrot.slane %v3774, 1
        %v3776 = vadd.f32 %v3774, %v3775
        %v3777 = vadd.f32 %v3593, %v3595
        %v3778 = vrot.slane %v3777, 4
        %v3779 = vadd.f32 %v3777, %v3778
        %v3780 = vrot.slane %v3779, 2
        %v3781 = vadd.f32 %v3779, %v3780
        %v3782 = vrot.slane %v3781, 1
        %v3783 = vadd.f32 %v3781, %v3782
        %v3784 = vadd.f32 %v3594, %v3596
        %v3785 = vrot.slane %v3784, 4
        %v3786 = vadd.f32 %v3784, %v3785
        %v3787 = vrot.slane %v3786, 2
        %v3788 = vadd.f32 %v3786, %v3787
        %v3789 = vrot.slane %v3788, 1
        %v3790 = vadd.f32 %v3788, %v3789
        %v3791 = vadd.f32 %v3597, %v3599
        %v3792 = vrot.slane %v3791, 4
        %v3793 = vadd.f32 %v3791, %v3792
        %v3794 = vrot.slane %v3793, 2
        %v3795 = vadd.f32 %v3793, %v3794
        %v3796 = vrot.slane %v3795, 1
        %v3797 = vadd.f32 %v3795, %v3796
        %v3798 = vadd.f32 %v3598, %v3600
        %v3799 = vrot.slane %v3798, 4
        %v3800 = vadd.f32 %v3798, %v3799
        %v3801 = vrot.slane %v3800, 2
        %v3802 = vadd.f32 %v3800, %v3801
        %v3803 = vrot.slane %v3802, 1
        %v3804 = vadd.f32 %v3802, %v3803
        %v3805 = vadd.f32 %v3601, %v3603
        %v3806 = vrot.slane %v3805, 4
        %v3807 = vadd.f32 %v3805, %v3806
        %v3808 = vrot.slane %v3807, 2
        %v3809 = vadd.f32 %v3807, %v3808
        %v3810 = vrot.slane %v3809, 1
        %v3811 = vadd.f32 %v3809, %v3810
        %v3812 = vadd.f32 %v3602, %v3604
        %v3813 = vrot.slane %v3812, 4
        %v3814 = vadd.f32 %v3812, %v3813
        %v3815 = vrot.slane %v3814, 2
        %v3816 = vadd.f32 %v3814, %v3815
        %v3817 = vrot.slane %v3816, 1
        %v3818 = vadd.f32 %v3816, %v3817
        %v3819 = vadd.f32 %v3605, %v3607
        %v3820 = vrot.slane %v3819, 4
        %v3821 = vadd.f32 %v3819, %v3820
        %v3822 = vrot.slane %v3821, 2
        %v3823 = vadd.f32 %v3821, %v3822
        %v3824 = vrot.slane %v3823, 1
        %v3825 = vadd.f32 %v3823, %v3824
        %v3826 = vadd.f32 %v3606, %v3608
        %v3827 = vrot.slane %v3826, 4
        %v3828 = vadd.f32 %v3826, %v3827
        %v3829 = vrot.slane %v3828, 2
        %v3830 = vadd.f32 %v3828, %v3829
        %v3831 = vrot.slane %v3830, 1
        %v3832 = vadd.f32 %v3830, %v3831
        %v3833 = vpack.c.bf16 %v3615, %v3615
        %v3834 = vpack.c.bf16 %v3622, %v3622
        %v3835 = vpack.c.bf16 %v3629, %v3629
        %v3836 = vpack.c.bf16 %v3636, %v3636
        %v3837 = vpack.c.bf16 %v3643, %v3643
        %v3838 = vpack.c.bf16 %v3650, %v3650
        %v3839 = vpack.c.bf16 %v3657, %v3657
        %v3840 = vpack.c.bf16 %v3664, %v3664
        %v3841 = vpack.c.bf16 %v3671, %v3671
        %v3842 = vpack.c.bf16 %v3678, %v3678
        %v3843 = vpack.c.bf16 %v3685, %v3685
        %v3844 = vpack.c.bf16 %v3692, %v3692
        %v3845 = vpack.c.bf16 %v3699, %v3699
        %v3846 = vpack.c.bf16 %v3706, %v3706
        %v3847 = vpack.c.bf16 %v3713, %v3713
        %v3848 = vpack.c.bf16 %v3720, %v3720
        %v3849 = vpack.c.bf16 %v3727, %v3727
        %v3850 = vpack.c.bf16 %v3734, %v3734
        %v3851 = vpack.c.bf16 %v3741, %v3741
        %v3852 = vpack.c.bf16 %v3748, %v3748
        %v3853 = vpack.c.bf16 %v3755, %v3755
        %v3854 = vpack.c.bf16 %v3762, %v3762
        %v3855 = vpack.c.bf16 %v3769, %v3769
        %v3856 = vpack.c.bf16 %v3776, %v3776
        %v3857 = vpack.c.bf16 %v3783, %v3783
        %v3858 = vpack.c.bf16 %v3790, %v3790
        %v3859 = vpack.c.bf16 %v3797, %v3797
        %v3860 = vpack.c.bf16 %v3804, %v3804
        %v3861 = vpack.c.bf16 %v3811, %v3811
        %v3862 = vpack.c.bf16 %v3818, %v3818
        %v3863 = vpack.c.bf16 %v3825, %v3825
        %v3864 = vpack.c.bf16 %v3832, %v3832
        %v3897 = vunpack.c.l.b16 %v3833
        %v3898 = vunpack.c.l.b16 %v3834
        %v3899 = vunpack.c.l.b16 %v3835
        %v3900 = vunpack.c.l.b16 %v3836
        %v3901 = vunpack.c.l.b16 %v3837
        %v3902 = vunpack.c.l.b16 %v3838
        %v3903 = vunpack.c.l.b16 %v3839
        %v3904 = vunpack.c.l.b16 %v3840
        %v3905 = vunpack.c.l.b16 %v3841
        %v3906 = vunpack.c.l.b16 %v3842
        %v3907 = vunpack.c.l.b16 %v3843
        %v3908 = vunpack.c.l.b16 %v3844
        %v3909 = vunpack.c.l.b16 %v3845
        %v3910 = vunpack.c.l.b16 %v3846
        %v3911 = vunpack.c.l.b16 %v3847
        %v3912 = vunpack.c.l.b16 %v3848
        %v3913 = vunpack.c.l.b16 %v3849
        %v3914 = vunpack.c.l.b16 %v3850
        %v3915 = vunpack.c.l.b16 %v3851
        %v3916 = vunpack.c.l.b16 %v3852
        %v3917 = vunpack.c.l.b16 %v3853
        %v3918 = vunpack.c.l.b16 %v3854
        %v3919 = vunpack.c.l.b16 %v3855
        %v3920 = vunpack.c.l.b16 %v3856
        %v3921 = vunpack.c.l.b16 %v3857
        %v3922 = vunpack.c.l.b16 %v3858
        %v3923 = vunpack.c.l.b16 %v3859
        %v3924 = vunpack.c.l.b16 %v3860
        %v3925 = vunpack.c.l.b16 %v3861
        %v3926 = vunpack.c.l.b16 %v3862
        %v3927 = vunpack.c.l.b16 %v3863
        %v3928 = vunpack.c.l.b16 %v3864
        %v3929 = vsel %vm1124, %v3899, %v3897
        %v3930 = vsel %vm1126, %v3901, %v3929
        %v3931 = vsel %vm1128, %v3903, %v3930
        %v3932 = vsel %vm1130, %v3905, %v3931
        %v3933 = vsel %vm1132, %v3907, %v3932
        %v3934 = vsel %vm1134, %v3909, %v3933
        %v3935 = vsel %vm1136, %v3911, %v3934
        %v3936 = vsel %vm1124, %v3900, %v3898
        %v3937 = vsel %vm1126, %v3902, %v3936
        %v3938 = vsel %vm1128, %v3904, %v3937
        %v3939 = vsel %vm1130, %v3906, %v3938
        %v3940 = vsel %vm1132, %v3908, %v3939
        %v3941 = vsel %vm1134, %v3910, %v3940
        %v3942 = vsel %vm1136, %v3912, %v3941
        %v3943 = vsel %vm1124, %v3915, %v3913
        %v3944 = vsel %vm1126, %v3917, %v3943
        %v3945 = vsel %vm1128, %v3919, %v3944
        %v3946 = vsel %vm1130, %v3921, %v3945
        %v3947 = vsel %vm1132, %v3923, %v3946
        %v3948 = vsel %vm1134, %v3925, %v3947
        %v3949 = vsel %vm1136, %v3927, %v3948
        %v3950 = vsel %vm1124, %v3916, %v3914
        %v3951 = vsel %vm1126, %v3918, %v3950
        %v3952 = vsel %vm1128, %v3920, %v3951
        %v3953 = vsel %vm1130, %v3922, %v3952
        %v3954 = vsel %vm1132, %v3924, %v3953
        %v3955 = vsel %vm1134, %v3926, %v3954
        %v3956 = vsel %vm1136, %v3928, %v3955
        %v3957 = vpack.c.b16 %v3949, %v3935
        %v3958 = vpack.c.b16 %v3956, %v3942
        %s3961 = scalar_lea.vmem [#allocation2], 48
        %3962 = vst [vmem:[%s3961] sm:$0xff] %v3957
        %3963 = vst [vmem:[%s3961 + $0x8] sm:$0xff] %v3958
        %s3964 = scalar_lea.vmem %s217, 32
        %v3965 = vld [vmem:[%s3964] sm:$0x77]
        %v3967 = vlaneseq
        %v3968 = vshrl.u32 %v3967, 7
        %v3969 = vsub.s32 0, %v3968
        %v3970 = vrot.slane %v3965, %v3969
        %v3971 = vlaneseq
        %v3972 = vshrl.u32 %v3971, 7
        %v3973 = vsub.s32 4, %v3972
        %v3974 = vrot.slane %v3965, %v3973
        %v3977 = vlaneseq
        %v3978 = vshrl.u32 %v3977, 7
        %v3979 = vsub.s32 0, %v3978
        %v3980 = vrot.slane %v3970, %v3979
        %v3981 = vlaneseq
        %v3982 = vshrl.u32 %v3981, 7
        %v3983 = vsub.s32 0, %v3982
        %v3984 = vrot.slane %v3974, %v3983
        %v3985 = vsub.f32 %v224, %v3980
        %v3986 = vsub.f32 %v224, %v3984
        %v3987 = vsub.f32 %v225, %v3980
        %v3988 = vsub.f32 %v225, %v3984
        %v3989 = vand.u32 2147483647, %v3985
        %v3990 = vand.u32 2147483647, %v3986
        %v3991 = vand.u32 2147483647, %v3987
        %v3992 = vand.u32 2147483647, %v3988
        %v3993 = vsub.f32 1.0, %v3989
        %v3994 = vsub.f32 1.0, %v3990
        %v3995 = vsub.f32 1.0, %v3991
        %v3996 = vsub.f32 1.0, %v3992
        %v3997 = vmax.f32 %v3993, 0.0
        %v3998 = vmax.f32 %v3994, 0.0
        %v3999 = vmax.f32 %v3995, 0.0
        %v4000 = vmax.f32 %v3996, 0.0
        %v4001 = vpack.c.bf16 %v3999, %v3997
        %v4002 = vpack.c.bf16 %v4000, %v3998
        %v4003 = vlaneseq
        %v4004 = vshrl.u32 %v4003, 7
        %v4005 = vsub.s32 1, %v4004
        %v4006 = vrot.slane %v3965, %v4005
        %v4007 = vlaneseq
        %v4008 = vshrl.u32 %v4007, 7
        %v4009 = vsub.s32 5, %v4008
        %v4010 = vrot.slane %v3965, %v4009
        %v4013 = vlaneseq
        %v4014 = vshrl.u32 %v4013, 7
        %v4015 = vsub.s32 1, %v4014
        %v4016 = vrot.slane %v4006, %v4015
        %v4017 = vlaneseq
        %v4018 = vshrl.u32 %v4017, 7
        %v4019 = vsub.s32 1, %v4018
        %v4020 = vrot.slane %v4010, %v4019
        %v4021 = vsub.f32 %v224, %v4016
        %v4022 = vsub.f32 %v224, %v4020
        %v4023 = vsub.f32 %v225, %v4016
        %v4024 = vsub.f32 %v225, %v4020
        %v4025 = vand.u32 2147483647, %v4021
        %v4026 = vand.u32 2147483647, %v4022
        %v4027 = vand.u32 2147483647, %v4023
        %v4028 = vand.u32 2147483647, %v4024
        %v4029 = vsub.f32 1.0, %v4025
        %v4030 = vsub.f32 1.0, %v4026
        %v4031 = vsub.f32 1.0, %v4027
        %v4032 = vsub.f32 1.0, %v4028
        %v4033 = vmax.f32 %v4029, 0.0
        %v4034 = vmax.f32 %v4030, 0.0
        %v4035 = vmax.f32 %v4031, 0.0
        %v4036 = vmax.f32 %v4032, 0.0
        %v4037 = vlaneseq
        %v4038 = vshrl.u32 %v4037, 7
        %v4039 = vsub.s32 2, %v4038
        %v4040 = vrot.slane %v3965, %v4039
        %v4041 = vlaneseq
        %v4042 = vshrl.u32 %v4041, 7
        %v4043 = vsub.s32 6, %v4042
        %v4044 = vrot.slane %v3965, %v4043
        %v4047 = vlaneseq
        %v4048 = vshrl.u32 %v4047, 7
        %v4049 = vsub.s32 2, %v4048
        %v4050 = vrot.slane %v4040, %v4049
        %v4051 = vlaneseq
        %v4052 = vshrl.u32 %v4051, 7
        %v4053 = vsub.s32 2, %v4052
        %v4054 = vrot.slane %v4044, %v4053
        %v4055 = vmul.f32 %v4033, %v4050
        %v4056 = vmul.f32 %v4034, %v4054
        %v4057 = vmul.f32 %v4035, %v4050
        %v4058 = vmul.f32 %v4036, %v4054
        %v4059 = vpack.c.bf16 %v4057, %v4055
        %v4060 = vpack.c.bf16 %v4058, %v4056
        %v4061 = vld [vmem:[%s208] sm:$0xf]
        %v4062 = vld [vmem:[%s208 + $0x4] sm:$0xf]
        %v4063 = vld [vmem:[%s208 + $0x8] sm:$0xf]
        %v4064 = vld [vmem:[%s208 + $0xc] sm:$0xf]
        %v4065 = vld [vmem:[%s208 + $0x10] sm:$0xf]
        %v4066 = vld [vmem:[%s208 + $0x14] sm:$0xf]
        %v4067 = vld [vmem:[%s208 + $0x18] sm:$0xf]
        %v4068 = vld [vmem:[%s208 + $0x1c] sm:$0xf]
        %v4069 = vld [vmem:[%s208 + $0x20] sm:$0xf]
        %v4070 = vld [vmem:[%s208 + $0x24] sm:$0xf]
        %v4071 = vld [vmem:[%s208 + $0x28] sm:$0xf]
        %v4072 = vld [vmem:[%s208 + $0x2c] sm:$0xf]
        %v4073 = vld [vmem:[%s208 + $0x30] sm:$0xf]
        %v4074 = vld [vmem:[%s208 + $0x34] sm:$0xf]
        %v4075 = vld [vmem:[%s208 + $0x38] sm:$0xf]
        %v4076 = vld [vmem:[%s208 + $0x3c] sm:$0xf]
        %v4077 = vld [vmem:[%s208 + $0x40] sm:$0xf]
        %v4078 = vld [vmem:[%s208 + $0x44] sm:$0xf]
        %v4079 = vld [vmem:[%s208 + $0x48] sm:$0xf]
        %v4080 = vld [vmem:[%s208 + $0x4c] sm:$0xf]
        %v4081 = vld [vmem:[%s208 + $0x50] sm:$0xf]
        %v4082 = vld [vmem:[%s208 + $0x54] sm:$0xf]
        %v4083 = vld [vmem:[%s208 + $0x58] sm:$0xf]
        %v4084 = vld [vmem:[%s208 + $0x5c] sm:$0xf]
        %v4085 = vld [vmem:[%s208 + $0x60] sm:$0xf]
        %v4086 = vld [vmem:[%s208 + $0x64] sm:$0xf]
        %v4087 = vld [vmem:[%s208 + $0x68] sm:$0xf]
        %v4088 = vld [vmem:[%s208 + $0x6c] sm:$0xf]
        %v4089 = vld [vmem:[%s208 + $0x70] sm:$0xf]
        %v4090 = vld [vmem:[%s208 + $0x74] sm:$0xf]
        %v4091 = vld [vmem:[%s208 + $0x78] sm:$0xf]
        %v4092 = vld [vmem:[%s208 + $0x7c] sm:$0xf]
        %v4125 = vunpack.c.l.b16 %v4061
        %v4126 = vunpack.c.l.b16 %v4062
        %v4127 = vunpack.c.l.b16 %v4063
        %v4128 = vunpack.c.l.b16 %v4064
        %v4129 = vunpack.c.l.b16 %v4065
        %v4130 = vunpack.c.l.b16 %v4066
        %v4131 = vunpack.c.l.b16 %v4067
        %v4132 = vunpack.c.l.b16 %v4068
        %v4133 = vunpack.c.l.b16 %v4069
        %v4134 = vunpack.c.l.b16 %v4070
        %v4135 = vunpack.c.l.b16 %v4071
        %v4136 = vunpack.c.l.b16 %v4072
        %v4137 = vunpack.c.l.b16 %v4073
        %v4138 = vunpack.c.l.b16 %v4074
        %v4139 = vunpack.c.l.b16 %v4075
        %v4140 = vunpack.c.l.b16 %v4076
        %v4141 = vunpack.c.l.b16 %v4077
        %v4142 = vunpack.c.l.b16 %v4078
        %v4143 = vunpack.c.l.b16 %v4079
        %v4144 = vunpack.c.l.b16 %v4080
        %v4145 = vunpack.c.l.b16 %v4081
        %v4146 = vunpack.c.l.b16 %v4082
        %v4147 = vunpack.c.l.b16 %v4083
        %v4148 = vunpack.c.l.b16 %v4084
        %v4149 = vunpack.c.l.b16 %v4085
        %v4150 = vunpack.c.l.b16 %v4086
        %v4151 = vunpack.c.l.b16 %v4087
        %v4152 = vunpack.c.l.b16 %v4088
        %v4153 = vunpack.c.l.b16 %v4089
        %v4154 = vunpack.c.l.b16 %v4090
        %v4155 = vunpack.c.l.b16 %v4091
        %v4156 = vunpack.c.l.b16 %v4092
        %v4157 = vpack.c.b16 %v4126, %v4125
        %v4158 = vpack.c.b16 %v4128, %v4127
        %v4159 = vpack.c.b16 %v4130, %v4129
        %v4160 = vpack.c.b16 %v4132, %v4131
        %v4161 = vpack.c.b16 %v4134, %v4133
        %v4162 = vpack.c.b16 %v4136, %v4135
        %v4163 = vpack.c.b16 %v4138, %v4137
        %v4164 = vpack.c.b16 %v4140, %v4139
        %v4165 = vpack.c.b16 %v4142, %v4141
        %v4166 = vpack.c.b16 %v4144, %v4143
        %v4167 = vpack.c.b16 %v4146, %v4145
        %v4168 = vpack.c.b16 %v4148, %v4147
        %v4169 = vpack.c.b16 %v4150, %v4149
        %v4170 = vpack.c.b16 %v4152, %v4151
        %v4171 = vpack.c.b16 %v4154, %v4153
        %v4172 = vpack.c.b16 %v4156, %v4155
        %v4174 = vsel %vm434, %v4157, 0
        %v4177 = vsel %vm434, %v4158, 0
        %v4180 = vsel %vm434, %v4159, 0
        %v4183 = vsel %vm434, %v4160, 0
        %v4186 = vsel %vm434, %v4161, 0
        %v4189 = vsel %vm434, %v4162, 0
        %v4192 = vsel %vm434, %v4163, 0
        %v4195 = vsel %vm434, %v4164, 0
        %v4198 = vsel %vm434, %v4165, 0
        %v4201 = vsel %vm434, %v4166, 0
        %v4204 = vsel %vm434, %v4167, 0
        %v4207 = vsel %vm434, %v4168, 0
        %v4210 = vsel %vm434, %v4169, 0
        %v4213 = vsel %vm434, %v4170, 0
        %v4216 = vsel %vm434, %v4171, 0
        %v4219 = vsel %vm434, %v4172, 0
        %4221 = vmatprep.subr.bf16.mxu0 %v4002
        %4222 = vmatpush1.bf16.msra.mxu0 %v4001
        %4223 = vmatprep.subr.bf16.mxu0 0
        %4224 = vmatpush1.bf16.msra.mxu0 0
        %4225 = vmatprep.subr.bf16.mxu0 0
        %4226 = vmatpush1.bf16.msra.mxu0 0
        %4227 = vmatprep.subr.bf16.mxu0 0
        %4228 = vmatpush1.bf16.msra.mxu0 0
        %4229 = vmatprep.subr.bf16.mxu0 0
        %4230 = vmatpush1.bf16.msra.mxu0 0
        %4231 = vmatprep.subr.bf16.mxu0 0
        %4232 = vmatpush1.bf16.msra.mxu0 0
        %4233 = vmatprep.subr.bf16.mxu0 0
        %4234 = vmatpush1.bf16.msra.mxu0 0
        %4235 = vmatprep.subr.bf16.mxu0 0
        %4236 = vmatpush1.bf16.msra.mxu0 0
        %4237 = vmatprep.subr.bf16.mxu0 0
        %4238 = vmatpush1.bf16.msra.mxu0 0
        %4239 = vmatprep.subr.bf16.mxu0 0
        %4240 = vmatpush1.bf16.msra.mxu0 0
        %4241 = vmatprep.subr.bf16.mxu0 0
        %4242 = vmatpush1.bf16.msra.mxu0 0
        %4243 = vmatprep.subr.bf16.mxu0 0
        %4244 = vmatpush1.bf16.msra.mxu0 0
        %4245 = vmatprep.subr.bf16.mxu0 0
        %4246 = vmatpush1.bf16.msra.mxu0 0
        %4247 = vmatprep.subr.bf16.mxu0 0
        %4248 = vmatpush1.bf16.msra.mxu0 0
        %4249 = vmatprep.subr.bf16.mxu0 0
        %4250 = vmatpush1.bf16.msra.mxu0 0
        %4251 = vmatprep.subr.bf16.mxu0 0
        %4252 = vmatpush1.bf16.msra.mxu0 0
        %4253 = vmatprep.mubr.bf16.mxu0 0
        %4254 = vmatmul.mubr.bf16.gmra.mrb[0].mxu0 %v4174
        %v4255 = vpop.f32.mrb[0].mxu0
        %v4256 = vadd.f32 0.0, %v4255
        %v4257 = vpop.f32.mrb[0].mxu0
        %v4258 = vadd.f32 0.0, %v4257
        %v4259 = vpop.f32.mrb[0].mxu0
        %v4260 = vadd.f32 0.0, %v4259
        %v4261 = vpop.f32.mrb[0].mxu0
        %v4262 = vadd.f32 0.0, %v4261
        %4263 = vmatprep.mubr.bf16.mxu0 0
        %4264 = vmatmul.mubr.bf16.gmra.mrb[0].mxu0 %v4177
        %v4265 = vpop.f32.mrb[0].mxu0
        %v4266 = vadd.f32 0.0, %v4265
        %v4267 = vpop.f32.mrb[0].mxu0
        %v4268 = vadd.f32 0.0, %v4267
        %v4269 = vpop.f32.mrb[0].mxu0
        %v4270 = vadd.f32 0.0, %v4269
        %v4271 = vpop.f32.mrb[0].mxu0
        %v4272 = vadd.f32 0.0, %v4271
        %4273 = vmatprep.mubr.bf16.mxu0 0
        %4274 = vmatmul.mubr.bf16.gmra.mrb[0].mxu0 %v4180
        %v4275 = vpop.f32.mrb[0].mxu0
        %v4276 = vadd.f32 0.0, %v4275
        %v4277 = vpop.f32.mrb[0].mxu0
        %v4278 = vadd.f32 0.0, %v4277
        %v4279 = vpop.f32.mrb[0].mxu0
        %v4280 = vadd.f32 0.0, %v4279
        %v4281 = vpop.f32.mrb[0].mxu0
        %v4282 = vadd.f32 0.0, %v4281
        %4283 = vmatprep.mubr.bf16.mxu0 0
        %4284 = vmatmul.mubr.bf16.gmra.mrb[0].mxu0 %v4183
        %v4285 = vpop.f32.mrb[0].mxu0
        %v4286 = vadd.f32 0.0, %v4285
        %v4287 = vpop.f32.mrb[0].mxu0
        %v4288 = vadd.f32 0.0, %v4287
        %v4289 = vpop.f32.mrb[0].mxu0
        %v4290 = vadd.f32 0.0, %v4289
        %v4291 = vpop.f32.mrb[0].mxu0
        %v4292 = vadd.f32 0.0, %v4291
        %4293 = vmatprep.mubr.bf16.mxu0 0
        %4294 = vmatmul.mubr.bf16.gmra.mrb[0].mxu0 %v4186
        %v4295 = vpop.f32.mrb[0].mxu0
        %v4296 = vadd.f32 0.0, %v4295
        %v4297 = vpop.f32.mrb[0].mxu0
        %v4298 = vadd.f32 0.0, %v4297
        %v4299 = vpop.f32.mrb[0].mxu0
        %v4300 = vadd.f32 0.0, %v4299
        %v4301 = vpop.f32.mrb[0].mxu0
        %v4302 = vadd.f32 0.0, %v4301
        %4303 = vmatprep.mubr.bf16.mxu0 0
        %4304 = vmatmul.mubr.bf16.gmra.mrb[0].mxu0 %v4189
        %v4305 = vpop.f32.mrb[0].mxu0
        %v4306 = vadd.f32 0.0, %v4305
        %v4307 = vpop.f32.mrb[0].mxu0
        %v4308 = vadd.f32 0.0, %v4307
        %v4309 = vpop.f32.mrb[0].mxu0
        %v4310 = vadd.f32 0.0, %v4309
        %v4311 = vpop.f32.mrb[0].mxu0
        %v4312 = vadd.f32 0.0, %v4311
        %4313 = vmatprep.mubr.bf16.mxu0 0
        %4314 = vmatmul.mubr.bf16.gmra.mrb[0].mxu0 %v4192
        %v4315 = vpop.f32.mrb[0].mxu0
        %v4316 = vadd.f32 0.0, %v4315
        %v4317 = vpop.f32.mrb[0].mxu0
        %v4318 = vadd.f32 0.0, %v4317
        %v4319 = vpop.f32.mrb[0].mxu0
        %v4320 = vadd.f32 0.0, %v4319
        %v4321 = vpop.f32.mrb[0].mxu0
        %v4322 = vadd.f32 0.0, %v4321
        %4323 = vmatprep.mubr.bf16.mxu0 0
        %4324 = vmatmul.mubr.bf16.gmra.mrb[0].mxu0 %v4195
        %v4325 = vpop.f32.mrb[0].mxu0
        %v4326 = vadd.f32 0.0, %v4325
        %v4327 = vpop.f32.mrb[0].mxu0
        %v4328 = vadd.f32 0.0, %v4327
        %v4329 = vpop.f32.mrb[0].mxu0
        %v4330 = vadd.f32 0.0, %v4329
        %v4331 = vpop.f32.mrb[0].mxu0
        %v4332 = vadd.f32 0.0, %v4331
        %4333 = vmatprep.mubr.bf16.mxu0 0
        %4334 = vmatmul.mubr.bf16.gmra.mrb[0].mxu0 %v4198
        %v4335 = vpop.f32.mrb[0].mxu0
        %v4336 = vadd.f32 0.0, %v4335
        %v4337 = vpop.f32.mrb[0].mxu0
        %v4338 = vadd.f32 0.0, %v4337
        %v4339 = vpop.f32.mrb[0].mxu0
        %v4340 = vadd.f32 0.0, %v4339
        %v4341 = vpop.f32.mrb[0].mxu0
        %v4342 = vadd.f32 0.0, %v4341
        %4343 = vmatprep.mubr.bf16.mxu0 0
        %4344 = vmatmul.mubr.bf16.gmra.mrb[0].mxu0 %v4201
        %v4345 = vpop.f32.mrb[0].mxu0
        %v4346 = vadd.f32 0.0, %v4345
        %v4347 = vpop.f32.mrb[0].mxu0
        %v4348 = vadd.f32 0.0, %v4347
        %v4349 = vpop.f32.mrb[0].mxu0
        %v4350 = vadd.f32 0.0, %v4349
        %v4351 = vpop.f32.mrb[0].mxu0
        %v4352 = vadd.f32 0.0, %v4351
        %4353 = vmatprep.mubr.bf16.mxu0 0
        %4354 = vmatmul.mubr.bf16.gmra.mrb[0].mxu0 %v4204
        %v4355 = vpop.f32.mrb[0].mxu0
        %v4356 = vadd.f32 0.0, %v4355
        %v4357 = vpop.f32.mrb[0].mxu0
        %v4358 = vadd.f32 0.0, %v4357
        %v4359 = vpop.f32.mrb[0].mxu0
        %v4360 = vadd.f32 0.0, %v4359
        %v4361 = vpop.f32.mrb[0].mxu0
        %v4362 = vadd.f32 0.0, %v4361
        %4363 = vmatprep.mubr.bf16.mxu0 0
        %4364 = vmatmul.mubr.bf16.gmra.mrb[0].mxu0 %v4207
        %v4365 = vpop.f32.mrb[0].mxu0
        %v4366 = vadd.f32 0.0, %v4365
        %v4367 = vpop.f32.mrb[0].mxu0
        %v4368 = vadd.f32 0.0, %v4367
        %v4369 = vpop.f32.mrb[0].mxu0
        %v4370 = vadd.f32 0.0, %v4369
        %v4371 = vpop.f32.mrb[0].mxu0
        %v4372 = vadd.f32 0.0, %v4371
        %4373 = vmatprep.mubr.bf16.mxu0 0
        %4374 = vmatmul.mubr.bf16.gmra.mrb[0].mxu0 %v4210
        %v4375 = vpop.f32.mrb[0].mxu0
        %v4376 = vadd.f32 0.0, %v4375
        %v4377 = vpop.f32.mrb[0].mxu0
        %v4378 = vadd.f32 0.0, %v4377
        %v4379 = vpop.f32.mrb[0].mxu0
        %v4380 = vadd.f32 0.0, %v4379
        %v4381 = vpop.f32.mrb[0].mxu0
        %v4382 = vadd.f32 0.0, %v4381
        %4383 = vmatprep.mubr.bf16.mxu0 0
        %4384 = vmatmul.mubr.bf16.gmra.mrb[0].mxu0 %v4213
        %v4385 = vpop.f32.mrb[0].mxu0
        %v4386 = vadd.f32 0.0, %v4385
        %v4387 = vpop.f32.mrb[0].mxu0
        %v4388 = vadd.f32 0.0, %v4387
        %v4389 = vpop.f32.mrb[0].mxu0
        %v4390 = vadd.f32 0.0, %v4389
        %v4391 = vpop.f32.mrb[0].mxu0
        %v4392 = vadd.f32 0.0, %v4391
        %4393 = vmatprep.mubr.bf16.mxu0 0
        %4394 = vmatmul.mubr.bf16.gmra.mrb[0].mxu0 %v4216
        %v4395 = vpop.f32.mrb[0].mxu0
        %v4396 = vadd.f32 0.0, %v4395
        %v4397 = vpop.f32.mrb[0].mxu0
        %v4398 = vadd.f32 0.0, %v4397
        %v4399 = vpop.f32.mrb[0].mxu0
        %v4400 = vadd.f32 0.0, %v4399
        %v4401 = vpop.f32.mrb[0].mxu0
        %v4402 = vadd.f32 0.0, %v4401
        %4403 = vmatprep.mubr.bf16.mxu0 0
        %4404 = vmatmul.mubr.bf16.gmra.mrb[0].mxu0 %v4219
        %v4405 = vpop.f32.mrb[0].mxu0
        %v4406 = vadd.f32 0.0, %v4405
        %v4407 = vpop.f32.mrb[0].mxu0
        %v4408 = vadd.f32 0.0, %v4407
        %v4409 = vpop.f32.mrb[0].mxu0
        %v4410 = vadd.f32 0.0, %v4409
        %v4411 = vpop.f32.mrb[0].mxu0
        %v4412 = vadd.f32 0.0, %v4411
        %4413 = vdwg.mxu0
        %v4414 = vpack.c.bf16 %v4260, %v4256
        %v4415 = vpack.c.bf16 %v4262, %v4258
        %v4416 = vpack.c.bf16 %v4270, %v4266
        %v4417 = vpack.c.bf16 %v4272, %v4268
        %v4418 = vpack.c.bf16 %v4280, %v4276
        %v4419 = vpack.c.bf16 %v4282, %v4278
        %v4420 = vpack.c.bf16 %v4290, %v4286
        %v4421 = vpack.c.bf16 %v4292, %v4288
        %v4422 = vpack.c.bf16 %v4300, %v4296
        %v4423 = vpack.c.bf16 %v4302, %v4298
        %v4424 = vpack.c.bf16 %v4310, %v4306
        %v4425 = vpack.c.bf16 %v4312, %v4308
        %v4426 = vpack.c.bf16 %v4320, %v4316
        %v4427 = vpack.c.bf16 %v4322, %v4318
        %v4428 = vpack.c.bf16 %v4330, %v4326
        %v4429 = vpack.c.bf16 %v4332, %v4328
        %v4430 = vpack.c.bf16 %v4340, %v4336
        %v4431 = vpack.c.bf16 %v4342, %v4338
        %v4432 = vpack.c.bf16 %v4350, %v4346
        %v4433 = vpack.c.bf16 %v4352, %v4348
        %v4434 = vpack.c.bf16 %v4360, %v4356
        %v4435 = vpack.c.bf16 %v4362, %v4358
        %v4436 = vpack.c.bf16 %v4370, %v4366
        %v4437 = vpack.c.bf16 %v4372, %v4368
        %v4438 = vpack.c.bf16 %v4380, %v4376
        %v4439 = vpack.c.bf16 %v4382, %v4378
        %v4440 = vpack.c.bf16 %v4390, %v4386
        %v4441 = vpack.c.bf16 %v4392, %v4388
        %v4442 = vpack.c.bf16 %v4400, %v4396
        %v4443 = vpack.c.bf16 %v4402, %v4398
        %v4444 = vpack.c.bf16 %v4410, %v4406
        %v4445 = vpack.c.bf16 %v4412, %v4408
        %v4446 = vmul.bf16 %v4414, %v4059
        %v4447 = vmul.bf16 %v4415, %v4060
        %v4448 = vmul.bf16 %v4416, %v4059
        %v4449 = vmul.bf16 %v4417, %v4060
        %v4450 = vmul.bf16 %v4418, %v4059
        %v4451 = vmul.bf16 %v4419, %v4060
        %v4452 = vmul.bf16 %v4420, %v4059
        %v4453 = vmul.bf16 %v4421, %v4060
        %v4454 = vmul.bf16 %v4422, %v4059
        %v4455 = vmul.bf16 %v4423, %v4060
        %v4456 = vmul.bf16 %v4424, %v4059
        %v4457 = vmul.bf16 %v4425, %v4060
        %v4458 = vmul.bf16 %v4426, %v4059
        %v4459 = vmul.bf16 %v4427, %v4060
        %v4460 = vmul.bf16 %v4428, %v4059
        %v4461 = vmul.bf16 %v4429, %v4060
        %v4462 = vmul.bf16 %v4430, %v4059
        %v4463 = vmul.bf16 %v4431, %v4060
        %v4464 = vmul.bf16 %v4432, %v4059
        %v4465 = vmul.bf16 %v4433, %v4060
        %v4466 = vmul.bf16 %v4434, %v4059
        %v4467 = vmul.bf16 %v4435, %v4060
        %v4468 = vmul.bf16 %v4436, %v4059
        %v4469 = vmul.bf16 %v4437, %v4060
        %v4470 = vmul.bf16 %v4438, %v4059
        %v4471 = vmul.bf16 %v4439, %v4060
        %v4472 = vmul.bf16 %v4440, %v4059
        %v4473 = vmul.bf16 %v4441, %v4060
        %v4474 = vmul.bf16 %v4442, %v4059
        %v4475 = vmul.bf16 %v4443, %v4060
        %v4476 = vmul.bf16 %v4444, %v4059
        %v4477 = vmul.bf16 %v4445, %v4060
        %v4478 = vunpack.c.l.bf16 %v4446
        %v4479 = vunpack.c.l.bf16 %v4447
        %v4480 = vunpack.c.h.bf16 %v4446
        %v4481 = vunpack.c.h.bf16 %v4447
        %v4482 = vunpack.c.l.bf16 %v4448
        %v4483 = vunpack.c.l.bf16 %v4449
        %v4484 = vunpack.c.h.bf16 %v4448
        %v4485 = vunpack.c.h.bf16 %v4449
        %v4486 = vunpack.c.l.bf16 %v4450
        %v4487 = vunpack.c.l.bf16 %v4451
        %v4488 = vunpack.c.h.bf16 %v4450
        %v4489 = vunpack.c.h.bf16 %v4451
        %v4490 = vunpack.c.l.bf16 %v4452
        %v4491 = vunpack.c.l.bf16 %v4453
        %v4492 = vunpack.c.h.bf16 %v4452
        %v4493 = vunpack.c.h.bf16 %v4453
        %v4494 = vunpack.c.l.bf16 %v4454
        %v4495 = vunpack.c.l.bf16 %v4455
        %v4496 = vunpack.c.h.bf16 %v4454
        %v4497 = vunpack.c.h.bf16 %v4455
        %v4498 = vunpack.c.l.bf16 %v4456
        %v4499 = vunpack.c.l.bf16 %v4457
        %v4500 = vunpack.c.h.bf16 %v4456
        %v4501 = vunpack.c.h.bf16 %v4457
        %v4502 = vunpack.c.l.bf16 %v4458
        %v4503 = vunpack.c.l.bf16 %v4459
        %v4504 = vunpack.c.h.bf16 %v4458
        %v4505 = vunpack.c.h.bf16 %v4459
        %v4506 = vunpack.c.l.bf16 %v4460
        %v4507 = vunpack.c.l.bf16 %v4461
        %v4508 = vunpack.c.h.bf16 %v4460
        %v4509 = vunpack.c.h.bf16 %v4461
        %v4510 = vunpack.c.l.bf16 %v4462
        %v4511 = vunpack.c.l.bf16 %v4463
        %v4512 = vunpack.c.h.bf16 %v4462
        %v4513 = vunpack.c.h.bf16 %v4463
        %v4514 = vunpack.c.l.bf16 %v4464
        %v4515 = vunpack.c.l.bf16 %v4465
        %v4516 = vunpack.c.h.bf16 %v4464
        %v4517 = vunpack.c.h.bf16 %v4465
        %v4518 = vunpack.c.l.bf16 %v4466
        %v4519 = vunpack.c.l.bf16 %v4467
        %v4520 = vunpack.c.h.bf16 %v4466
        %v4521 = vunpack.c.h.bf16 %v4467
        %v4522 = vunpack.c.l.bf16 %v4468
        %v4523 = vunpack.c.l.bf16 %v4469
        %v4524 = vunpack.c.h.bf16 %v4468
        %v4525 = vunpack.c.h.bf16 %v4469
        %v4526 = vunpack.c.l.bf16 %v4470
        %v4527 = vunpack.c.l.bf16 %v4471
        %v4528 = vunpack.c.h.bf16 %v4470
        %v4529 = vunpack.c.h.bf16 %v4471
        %v4530 = vunpack.c.l.bf16 %v4472
        %v4531 = vunpack.c.l.bf16 %v4473
        %v4532 = vunpack.c.h.bf16 %v4472
        %v4533 = vunpack.c.h.bf16 %v4473
        %v4534 = vunpack.c.l.bf16 %v4474
        %v4535 = vunpack.c.l.bf16 %v4475
        %v4536 = vunpack.c.h.bf16 %v4474
        %v4537 = vunpack.c.h.bf16 %v4475
        %v4538 = vunpack.c.l.bf16 %v4476
        %v4539 = vunpack.c.l.bf16 %v4477
        %v4540 = vunpack.c.h.bf16 %v4476
        %v4541 = vunpack.c.h.bf16 %v4477
        %v4542 = vadd.f32 %v4478, %v4480
        %v4543 = vrot.slane %v4542, 4
        %v4544 = vadd.f32 %v4542, %v4543
        %v4545 = vrot.slane %v4544, 2
        %v4546 = vadd.f32 %v4544, %v4545
        %v4547 = vrot.slane %v4546, 1
        %v4548 = vadd.f32 %v4546, %v4547
        %v4549 = vadd.f32 %v4479, %v4481
        %v4550 = vrot.slane %v4549, 4
        %v4551 = vadd.f32 %v4549, %v4550
        %v4552 = vrot.slane %v4551, 2
        %v4553 = vadd.f32 %v4551, %v4552
        %v4554 = vrot.slane %v4553, 1
        %v4555 = vadd.f32 %v4553, %v4554
        %v4556 = vadd.f32 %v4482, %v4484
        %v4557 = vrot.slane %v4556, 4
        %v4558 = vadd.f32 %v4556, %v4557
        %v4559 = vrot.slane %v4558, 2
        %v4560 = vadd.f32 %v4558, %v4559
        %v4561 = vrot.slane %v4560, 1
        %v4562 = vadd.f32 %v4560, %v4561
        %v4563 = vadd.f32 %v4483, %v4485
        %v4564 = vrot.slane %v4563, 4
        %v4565 = vadd.f32 %v4563, %v4564
        %v4566 = vrot.slane %v4565, 2
        %v4567 = vadd.f32 %v4565, %v4566
        %v4568 = vrot.slane %v4567, 1
        %v4569 = vadd.f32 %v4567, %v4568
        %v4570 = vadd.f32 %v4486, %v4488
        %v4571 = vrot.slane %v4570, 4
        %v4572 = vadd.f32 %v4570, %v4571
        %v4573 = vrot.slane %v4572, 2
        %v4574 = vadd.f32 %v4572, %v4573
        %v4575 = vrot.slane %v4574, 1
        %v4576 = vadd.f32 %v4574, %v4575
        %v4577 = vadd.f32 %v4487, %v4489
        %v4578 = vrot.slane %v4577, 4
        %v4579 = vadd.f32 %v4577, %v4578
        %v4580 = vrot.slane %v4579, 2
        %v4581 = vadd.f32 %v4579, %v4580
        %v4582 = vrot.slane %v4581, 1
        %v4583 = vadd.f32 %v4581, %v4582
        %v4584 = vadd.f32 %v4490, %v4492
        %v4585 = vrot.slane %v4584, 4
        %v4586 = vadd.f32 %v4584, %v4585
        %v4587 = vrot.slane %v4586, 2
        %v4588 = vadd.f32 %v4586, %v4587
        %v4589 = vrot.slane %v4588, 1
        %v4590 = vadd.f32 %v4588, %v4589
        %v4591 = vadd.f32 %v4491, %v4493
        %v4592 = vrot.slane %v4591, 4
        %v4593 = vadd.f32 %v4591, %v4592
        %v4594 = vrot.slane %v4593, 2
        %v4595 = vadd.f32 %v4593, %v4594
        %v4596 = vrot.slane %v4595, 1
        %v4597 = vadd.f32 %v4595, %v4596
        %v4598 = vadd.f32 %v4494, %v4496
        %v4599 = vrot.slane %v4598, 4
        %v4600 = vadd.f32 %v4598, %v4599
        %v4601 = vrot.slane %v4600, 2
        %v4602 = vadd.f32 %v4600, %v4601
        %v4603 = vrot.slane %v4602, 1
        %v4604 = vadd.f32 %v4602, %v4603
        %v4605 = vadd.f32 %v4495, %v4497
        %v4606 = vrot.slane %v4605, 4
        %v4607 = vadd.f32 %v4605, %v4606
        %v4608 = vrot.slane %v4607, 2
        %v4609 = vadd.f32 %v4607, %v4608
        %v4610 = vrot.slane %v4609, 1
        %v4611 = vadd.f32 %v4609, %v4610
        %v4612 = vadd.f32 %v4498, %v4500
        %v4613 = vrot.slane %v4612, 4
        %v4614 = vadd.f32 %v4612, %v4613
        %v4615 = vrot.slane %v4614, 2
        %v4616 = vadd.f32 %v4614, %v4615
        %v4617 = vrot.slane %v4616, 1
        %v4618 = vadd.f32 %v4616, %v4617
        %v4619 = vadd.f32 %v4499, %v4501
        %v4620 = vrot.slane %v4619, 4
        %v4621 = vadd.f32 %v4619, %v4620
        %v4622 = vrot.slane %v4621, 2
        %v4623 = vadd.f32 %v4621, %v4622
        %v4624 = vrot.slane %v4623, 1
        %v4625 = vadd.f32 %v4623, %v4624
        %v4626 = vadd.f32 %v4502, %v4504
        %v4627 = vrot.slane %v4626, 4
        %v4628 = vadd.f32 %v4626, %v4627
        %v4629 = vrot.slane %v4628, 2
        %v4630 = vadd.f32 %v4628, %v4629
        %v4631 = vrot.slane %v4630, 1
        %v4632 = vadd.f32 %v4630, %v4631
        %v4633 = vadd.f32 %v4503, %v4505
        %v4634 = vrot.slane %v4633, 4
        %v4635 = vadd.f32 %v4633, %v4634
        %v4636 = vrot.slane %v4635, 2
        %v4637 = vadd.f32 %v4635, %v4636
        %v4638 = vrot.slane %v4637, 1
        %v4639 = vadd.f32 %v4637, %v4638
        %v4640 = vadd.f32 %v4506, %v4508
        %v4641 = vrot.slane %v4640, 4
        %v4642 = vadd.f32 %v4640, %v4641
        %v4643 = vrot.slane %v4642, 2
        %v4644 = vadd.f32 %v4642, %v4643
        %v4645 = vrot.slane %v4644, 1
        %v4646 = vadd.f32 %v4644, %v4645
        %v4647 = vadd.f32 %v4507, %v4509
        %v4648 = vrot.slane %v4647, 4
        %v4649 = vadd.f32 %v4647, %v4648
        %v4650 = vrot.slane %v4649, 2
        %v4651 = vadd.f32 %v4649, %v4650
        %v4652 = vrot.slane %v4651, 1
        %v4653 = vadd.f32 %v4651, %v4652
        %v4654 = vadd.f32 %v4510, %v4512
        %v4655 = vrot.slane %v4654, 4
        %v4656 = vadd.f32 %v4654, %v4655
        %v4657 = vrot.slane %v4656, 2
        %v4658 = vadd.f32 %v4656, %v4657
        %v4659 = vrot.slane %v4658, 1
        %v4660 = vadd.f32 %v4658, %v4659
        %v4661 = vadd.f32 %v4511, %v4513
        %v4662 = vrot.slane %v4661, 4
        %v4663 = vadd.f32 %v4661, %v4662
        %v4664 = vrot.slane %v4663, 2
        %v4665 = vadd.f32 %v4663, %v4664
        %v4666 = vrot.slane %v4665, 1
        %v4667 = vadd.f32 %v4665, %v4666
        %v4668 = vadd.f32 %v4514, %v4516
        %v4669 = vrot.slane %v4668, 4
        %v4670 = vadd.f32 %v4668, %v4669
        %v4671 = vrot.slane %v4670, 2
        %v4672 = vadd.f32 %v4670, %v4671
        %v4673 = vrot.slane %v4672, 1
        %v4674 = vadd.f32 %v4672, %v4673
        %v4675 = vadd.f32 %v4515, %v4517
        %v4676 = vrot.slane %v4675, 4
        %v4677 = vadd.f32 %v4675, %v4676
        %v4678 = vrot.slane %v4677, 2
        %v4679 = vadd.f32 %v4677, %v4678
        %v4680 = vrot.slane %v4679, 1
        %v4681 = vadd.f32 %v4679, %v4680
        %v4682 = vadd.f32 %v4518, %v4520
        %v4683 = vrot.slane %v4682, 4
        %v4684 = vadd.f32 %v4682, %v4683
        %v4685 = vrot.slane %v4684, 2
        %v4686 = vadd.f32 %v4684, %v4685
        %v4687 = vrot.slane %v4686, 1
        %v4688 = vadd.f32 %v4686, %v4687
        %v4689 = vadd.f32 %v4519, %v4521
        %v4690 = vrot.slane %v4689, 4
        %v4691 = vadd.f32 %v4689, %v4690
        %v4692 = vrot.slane %v4691, 2
        %v4693 = vadd.f32 %v4691, %v4692
        %v4694 = vrot.slane %v4693, 1
        %v4695 = vadd.f32 %v4693, %v4694
        %v4696 = vadd.f32 %v4522, %v4524
        %v4697 = vrot.slane %v4696, 4
        %v4698 = vadd.f32 %v4696, %v4697
        %v4699 = vrot.slane %v4698, 2
        %v4700 = vadd.f32 %v4698, %v4699
        %v4701 = vrot.slane %v4700, 1
        %v4702 = vadd.f32 %v4700, %v4701
        %v4703 = vadd.f32 %v4523, %v4525
        %v4704 = vrot.slane %v4703, 4
        %v4705 = vadd.f32 %v4703, %v4704
        %v4706 = vrot.slane %v4705, 2
        %v4707 = vadd.f32 %v4705, %v4706
        %v4708 = vrot.slane %v4707, 1
        %v4709 = vadd.f32 %v4707, %v4708
        %v4710 = vadd.f32 %v4526, %v4528
        %v4711 = vrot.slane %v4710, 4
        %v4712 = vadd.f32 %v4710, %v4711
        %v4713 = vrot.slane %v4712, 2
        %v4714 = vadd.f32 %v4712, %v4713
        %v4715 = vrot.slane %v4714, 1
        %v4716 = vadd.f32 %v4714, %v4715
        %v4717 = vadd.f32 %v4527, %v4529
        %v4718 = vrot.slane %v4717, 4
        %v4719 = vadd.f32 %v4717, %v4718
        %v4720 = vrot.slane %v4719, 2
        %v4721 = vadd.f32 %v4719, %v4720
        %v4722 = vrot.slane %v4721, 1
        %v4723 = vadd.f32 %v4721, %v4722
        %v4724 = vadd.f32 %v4530, %v4532
        %v4725 = vrot.slane %v4724, 4
        %v4726 = vadd.f32 %v4724, %v4725
        %v4727 = vrot.slane %v4726, 2
        %v4728 = vadd.f32 %v4726, %v4727
        %v4729 = vrot.slane %v4728, 1
        %v4730 = vadd.f32 %v4728, %v4729
        %v4731 = vadd.f32 %v4531, %v4533
        %v4732 = vrot.slane %v4731, 4
        %v4733 = vadd.f32 %v4731, %v4732
        %v4734 = vrot.slane %v4733, 2
        %v4735 = vadd.f32 %v4733, %v4734
        %v4736 = vrot.slane %v4735, 1
        %v4737 = vadd.f32 %v4735, %v4736
        %v4738 = vadd.f32 %v4534, %v4536
        %v4739 = vrot.slane %v4738, 4
        %v4740 = vadd.f32 %v4738, %v4739
        %v4741 = vrot.slane %v4740, 2
        %v4742 = vadd.f32 %v4740, %v4741
        %v4743 = vrot.slane %v4742, 1
        %v4744 = vadd.f32 %v4742, %v4743
        %v4745 = vadd.f32 %v4535, %v4537
        %v4746 = vrot.slane %v4745, 4
        %v4747 = vadd.f32 %v4745, %v4746
        %v4748 = vrot.slane %v4747, 2
        %v4749 = vadd.f32 %v4747, %v4748
        %v4750 = vrot.slane %v4749, 1
        %v4751 = vadd.f32 %v4749, %v4750
        %v4752 = vadd.f32 %v4538, %v4540
        %v4753 = vrot.slane %v4752, 4
        %v4754 = vadd.f32 %v4752, %v4753
        %v4755 = vrot.slane %v4754, 2
        %v4756 = vadd.f32 %v4754, %v4755
        %v4757 = vrot.slane %v4756, 1
        %v4758 = vadd.f32 %v4756, %v4757
        %v4759 = vadd.f32 %v4539, %v4541
        %v4760 = vrot.slane %v4759, 4
        %v4761 = vadd.f32 %v4759, %v4760
        %v4762 = vrot.slane %v4761, 2
        %v4763 = vadd.f32 %v4761, %v4762
        %v4764 = vrot.slane %v4763, 1
        %v4765 = vadd.f32 %v4763, %v4764
        %v4766 = vpack.c.bf16 %v4548, %v4548
        %v4767 = vpack.c.bf16 %v4555, %v4555
        %v4768 = vpack.c.bf16 %v4562, %v4562
        %v4769 = vpack.c.bf16 %v4569, %v4569
        %v4770 = vpack.c.bf16 %v4576, %v4576
        %v4771 = vpack.c.bf16 %v4583, %v4583
        %v4772 = vpack.c.bf16 %v4590, %v4590
        %v4773 = vpack.c.bf16 %v4597, %v4597
        %v4774 = vpack.c.bf16 %v4604, %v4604
        %v4775 = vpack.c.bf16 %v4611, %v4611
        %v4776 = vpack.c.bf16 %v4618, %v4618
        %v4777 = vpack.c.bf16 %v4625, %v4625
        %v4778 = vpack.c.bf16 %v4632, %v4632
        %v4779 = vpack.c.bf16 %v4639, %v4639
        %v4780 = vpack.c.bf16 %v4646, %v4646
        %v4781 = vpack.c.bf16 %v4653, %v4653
        %v4782 = vpack.c.bf16 %v4660, %v4660
        %v4783 = vpack.c.bf16 %v4667, %v4667
        %v4784 = vpack.c.bf16 %v4674, %v4674
        %v4785 = vpack.c.bf16 %v4681, %v4681
        %v4786 = vpack.c.bf16 %v4688, %v4688
        %v4787 = vpack.c.bf16 %v4695, %v4695
        %v4788 = vpack.c.bf16 %v4702, %v4702
        %v4789 = vpack.c.bf16 %v4709, %v4709
        %v4790 = vpack.c.bf16 %v4716, %v4716
        %v4791 = vpack.c.bf16 %v4723, %v4723
        %v4792 = vpack.c.bf16 %v4730, %v4730
        %v4793 = vpack.c.bf16 %v4737, %v4737
        %v4794 = vpack.c.bf16 %v4744, %v4744
        %v4795 = vpack.c.bf16 %v4751, %v4751
        %v4796 = vpack.c.bf16 %v4758, %v4758
        %v4797 = vpack.c.bf16 %v4765, %v4765
        %v4830 = vunpack.c.l.b16 %v4766
        %v4831 = vunpack.c.l.b16 %v4767
        %v4832 = vunpack.c.l.b16 %v4768
        %v4833 = vunpack.c.l.b16 %v4769
        %v4834 = vunpack.c.l.b16 %v4770
        %v4835 = vunpack.c.l.b16 %v4771
        %v4836 = vunpack.c.l.b16 %v4772
        %v4837 = vunpack.c.l.b16 %v4773
        %v4838 = vunpack.c.l.b16 %v4774
        %v4839 = vunpack.c.l.b16 %v4775
        %v4840 = vunpack.c.l.b16 %v4776
        %v4841 = vunpack.c.l.b16 %v4777
        %v4842 = vunpack.c.l.b16 %v4778
        %v4843 = vunpack.c.l.b16 %v4779
        %v4844 = vunpack.c.l.b16 %v4780
        %v4845 = vunpack.c.l.b16 %v4781
        %v4846 = vunpack.c.l.b16 %v4782
        %v4847 = vunpack.c.l.b16 %v4783
        %v4848 = vunpack.c.l.b16 %v4784
        %v4849 = vunpack.c.l.b16 %v4785
        %v4850 = vunpack.c.l.b16 %v4786
        %v4851 = vunpack.c.l.b16 %v4787
        %v4852 = vunpack.c.l.b16 %v4788
        %v4853 = vunpack.c.l.b16 %v4789
        %v4854 = vunpack.c.l.b16 %v4790
        %v4855 = vunpack.c.l.b16 %v4791
        %v4856 = vunpack.c.l.b16 %v4792
        %v4857 = vunpack.c.l.b16 %v4793
        %v4858 = vunpack.c.l.b16 %v4794
        %v4859 = vunpack.c.l.b16 %v4795
        %v4860 = vunpack.c.l.b16 %v4796
        %v4861 = vunpack.c.l.b16 %v4797
        %v4862 = vsel %vm1124, %v4832, %v4830
        %v4863 = vsel %vm1126, %v4834, %v4862
        %v4864 = vsel %vm1128, %v4836, %v4863
        %v4865 = vsel %vm1130, %v4838, %v4864
        %v4866 = vsel %vm1132, %v4840, %v4865
        %v4867 = vsel %vm1134, %v4842, %v4866
        %v4868 = vsel %vm1136, %v4844, %v4867
        %v4869 = vsel %vm1124, %v4833, %v4831
        %v4870 = vsel %vm1126, %v4835, %v4869
        %v4871 = vsel %vm1128, %v4837, %v4870
        %v4872 = vsel %vm1130, %v4839, %v4871
        %v4873 = vsel %vm1132, %v4841, %v4872
        %v4874 = vsel %vm1134, %v4843, %v4873
        %v4875 = vsel %vm1136, %v4845, %v4874
        %v4876 = vsel %vm1124, %v4848, %v4846
        %v4877 = vsel %vm1126, %v4850, %v4876
        %v4878 = vsel %vm1128, %v4852, %v4877
        %v4879 = vsel %vm1130, %v4854, %v4878
        %v4880 = vsel %vm1132, %v4856, %v4879
        %v4881 = vsel %vm1134, %v4858, %v4880
        %v4882 = vsel %vm1136, %v4860, %v4881
        %v4883 = vsel %vm1124, %v4849, %v4847
        %v4884 = vsel %vm1126, %v4851, %v4883
        %v4885 = vsel %vm1128, %v4853, %v4884
        %v4886 = vsel %vm1130, %v4855, %v4885
        %v4887 = vsel %vm1132, %v4857, %v4886
        %v4888 = vsel %vm1134, %v4859, %v4887
        %v4889 = vsel %vm1136, %v4861, %v4888
        %v4890 = vpack.c.b16 %v4882, %v4868
        %v4891 = vpack.c.b16 %v4889, %v4875
        %s4894 = scalar_lea.vmem [#allocation2], 64
        %4895 = vst [vmem:[%s4894] sm:$0xff] %v4890
        %4896 = vst [vmem:[%s4894 + $0x8] sm:$0xff] %v4891
        %s4897 = scalar_lea.vmem %s217, 40
        %v4898 = vld [vmem:[%s4897] sm:$0x77]
        %v4900 = vlaneseq
        %v4901 = vshrl.u32 %v4900, 7
        %v4902 = vsub.s32 0, %v4901
        %v4903 = vrot.slane %v4898, %v4902
        %v4904 = vlaneseq
        %v4905 = vshrl.u32 %v4904, 7
        %v4906 = vsub.s32 4, %v4905
        %v4907 = vrot.slane %v4898, %v4906
        %v4910 = vlaneseq
        %v4911 = vshrl.u32 %v4910, 7
        %v4912 = vsub.s32 0, %v4911
        %v4913 = vrot.slane %v4903, %v4912
        %v4914 = vlaneseq
        %v4915 = vshrl.u32 %v4914, 7
        %v4916 = vsub.s32 0, %v4915
        %v4917 = vrot.slane %v4907, %v4916
        %v4918 = vsub.f32 %v224, %v4913
        %v4919 = vsub.f32 %v224, %v4917
        %v4920 = vsub.f32 %v225, %v4913
        %v4921 = vsub.f32 %v225, %v4917
        %v4922 = vand.u32 2147483647, %v4918
        %v4923 = vand.u32 2147483647, %v4919
        %v4924 = vand.u32 2147483647, %v4920
        %v4925 = vand.u32 2147483647, %v4921
        %v4926 = vsub.f32 1.0, %v4922
        %v4927 = vsub.f32 1.0, %v4923
        %v4928 = vsub.f32 1.0, %v4924
        %v4929 = vsub.f32 1.0, %v4925
        %v4930 = vmax.f32 %v4926, 0.0
        %v4931 = vmax.f32 %v4927, 0.0
        %v4932 = vmax.f32 %v4928, 0.0
        %v4933 = vmax.f32 %v4929, 0.0
        %v4934 = vpack.c.bf16 %v4932, %v4930
        %v4935 = vpack.c.bf16 %v4933, %v4931
        %v4936 = vlaneseq
        %v4937 = vshrl.u32 %v4936, 7
        %v4938 = vsub.s32 1, %v4937
        %v4939 = vrot.slane %v4898, %v4938
        %v4940 = vlaneseq
        %v4941 = vshrl.u32 %v4940, 7
        %v4942 = vsub.s32 5, %v4941
        %v4943 = vrot.slane %v4898, %v4942
        %v4946 = vlaneseq
        %v4947 = vshrl.u32 %v4946, 7
        %v4948 = vsub.s32 1, %v4947
        %v4949 = vrot.slane %v4939, %v4948
        %v4950 = vlaneseq
        %v4951 = vshrl.u32 %v4950, 7
        %v4952 = vsub.s32 1, %v4951
        %v4953 = vrot.slane %v4943, %v4952
        %v4954 = vsub.f32 %v224, %v4949
        %v4955 = vsub.f32 %v224, %v4953
        %v4956 = vsub.f32 %v225, %v4949
        %v4957 = vsub.f32 %v225, %v4953
        %v4958 = vand.u32 2147483647, %v4954
        %v4959 = vand.u32 2147483647, %v4955
        %v4960 = vand.u32 2147483647, %v4956
        %v4961 = vand.u32 2147483647, %v4957
        %v4962 = vsub.f32 1.0, %v4958
        %v4963 = vsub.f32 1.0, %v4959
        %v4964 = vsub.f32 1.0, %v4960
        %v4965 = vsub.f32 1.0, %v4961
        %v4966 = vmax.f32 %v4962, 0.0
        %v4967 = vmax.f32 %v4963, 0.0
        %v4968 = vmax.f32 %v4964, 0.0
        %v4969 = vmax.f32 %v4965, 0.0
        %v4970 = vlaneseq
        %v4971 = vshrl.u32 %v4970, 7
        %v4972 = vsub.s32 2, %v4971
        %v4973 = vrot.slane %v4898, %v4972
        %v4974 = vlaneseq
        %v4975 = vshrl.u32 %v4974, 7
        %v4976 = vsub.s32 6, %v4975
        %v4977 = vrot.slane %v4898, %v4976
        %v4980 = vlaneseq
        %v4981 = vshrl.u32 %v4980, 7
        %v4982 = vsub.s32 2, %v4981
        %v4983 = vrot.slane %v4973, %v4982
        %v4984 = vlaneseq
        %v4985 = vshrl.u32 %v4984, 7
        %v4986 = vsub.s32 2, %v4985
        %v4987 = vrot.slane %v4977, %v4986
        %v4988 = vmul.f32 %v4966, %v4983
        %v4989 = vmul.f32 %v4967, %v4987
        %v4990 = vmul.f32 %v4968, %v4983
        %v4991 = vmul.f32 %v4969, %v4987
        %v4992 = vpack.c.bf16 %v4990, %v4988
        %v4993 = vpack.c.bf16 %v4991, %v4989
        %v4994 = vld [vmem:[%s208] sm:$0xf]
        %v4995 = vld [vmem:[%s208 + $0x4] sm:$0xf]
        %v4996 = vld [vmem:[%s208 + $0x8] sm:$0xf]
        %v4997 = vld [vmem:[%s208 + $0xc] sm:$0xf]
        %v4998 = vld [vmem:[%s208 + $0x10] sm:$0xf]
        %v4999 = vld [vmem:[%s208 + $0x14] sm:$0xf]
        %v5000 = vld [vmem:[%s208 + $0x18] sm:$0xf]
        %v5001 = vld [vmem:[%s208 + $0x1c] sm:$0xf]
        %v5002 = vld [vmem:[%s208 + $0x20] sm:$0xf]
        %v5003 = vld [vmem:[%s208 + $0x24] sm:$0xf]
        %v5004 = vld [vmem:[%s208 + $0x28] sm:$0xf]
        %v5005 = vld [vmem:[%s208 + $0x2c] sm:$0xf]
        %v5006 = vld [vmem:[%s208 + $0x30] sm:$0xf]
        %v5007 = vld [vmem:[%s208 + $0x34] sm:$0xf]
        %v5008 = vld [vmem:[%s208 + $0x38] sm:$0xf]
        %v5009 = vld [vmem:[%s208 + $0x3c] sm:$0xf]
        %v5010 = vld [vmem:[%s208 + $0x40] sm:$0xf]
        %v5011 = vld [vmem:[%s208 + $0x44] sm:$0xf]
        %v5012 = vld [vmem:[%s208 + $0x48] sm:$0xf]
        %v5013 = vld [vmem:[%s208 + $0x4c] sm:$0xf]
        %v5014 = vld [vmem:[%s208 + $0x50] sm:$0xf]
        %v5015 = vld [vmem:[%s208 + $0x54] sm:$0xf]
        %v5016 = vld [vmem:[%s208 + $0x58] sm:$0xf]
        %v5017 = vld [vmem:[%s208 + $0x5c] sm:$0xf]
        %v5018 = vld [vmem:[%s208 + $0x60] sm:$0xf]
        %v5019 = vld [vmem:[%s208 + $0x64] sm:$0xf]
        %v5020 = vld [vmem:[%s208 + $0x68] sm:$0xf]
        %v5021 = vld [vmem:[%s208 + $0x6c] sm:$0xf]
        %v5022 = vld [vmem:[%s208 + $0x70] sm:$0xf]
        %v5023 = vld [vmem:[%s208 + $0x74] sm:$0xf]
        %v5024 = vld [vmem:[%s208 + $0x78] sm:$0xf]
        %v5025 = vld [vmem:[%s208 + $0x7c] sm:$0xf]
        %v5058 = vunpack.c.l.b16 %v4994
        %v5059 = vunpack.c.l.b16 %v4995
        %v5060 = vunpack.c.l.b16 %v4996
        %v5061 = vunpack.c.l.b16 %v4997
        %v5062 = vunpack.c.l.b16 %v4998
        %v5063 = vunpack.c.l.b16 %v4999
        %v5064 = vunpack.c.l.b16 %v5000
        %v5065 = vunpack.c.l.b16 %v5001
        %v5066 = vunpack.c.l.b16 %v5002
        %v5067 = vunpack.c.l.b16 %v5003
        %v5068 = vunpack.c.l.b16 %v5004
        %v5069 = vunpack.c.l.b16 %v5005
        %v5070 = vunpack.c.l.b16 %v5006
        %v5071 = vunpack.c.l.b16 %v5007
        %v5072 = vunpack.c.l.b16 %v5008
        %v5073 = vunpack.c.l.b16 %v5009
        %v5074 = vunpack.c.l.b16 %v5010
        %v5075 = vunpack.c.l.b16 %v5011
        %v5076 = vunpack.c.l.b16 %v5012
        %v5077 = vunpack.c.l.b16 %v5013
        %v5078 = vunpack.c.l.b16 %v5014
        %v5079 = vunpack.c.l.b16 %v5015
        %v5080 = vunpack.c.l.b16 %v5016
        %v5081 = vunpack.c.l.b16 %v5017
        %v5082 = vunpack.c.l.b16 %v5018
        %v5083 = vunpack.c.l.b16 %v5019
        %v5084 = vunpack.c.l.b16 %v5020
        %v5085 = vunpack.c.l.b16 %v5021
        %v5086 = vunpack.c.l.b16 %v5022
        %v5087 = vunpack.c.l.b16 %v5023
        %v5088 = vunpack.c.l.b16 %v5024
        %v5089 = vunpack.c.l.b16 %v5025
        %v5090 = vpack.c.b16 %v5059, %v5058
        %v5091 = vpack.c.b16 %v5061, %v5060
        %v5092 = vpack.c.b16 %v5063, %v5062
        %v5093 = vpack.c.b16 %v5065, %v5064
        %v5094 = vpack.c.b16 %v5067, %v5066
        %v5095 = vpack.c.b16 %v5069, %v5068
        %v5096 = vpack.c.b16 %v5071, %v5070
        %v5097 = vpack.c.b16 %v5073, %v5072
        %v5098 = vpack.c.b16 %v5075, %v5074
        %v5099 = vpack.c.b16 %v5077, %v5076
        %v5100 = vpack.c.b16 %v5079, %v5078
        %v5101 = vpack.c.b16 %v5081, %v5080
        %v5102 = vpack.c.b16 %v5083, %v5082
        %v5103 = vpack.c.b16 %v5085, %v5084
        %v5104 = vpack.c.b16 %v5087, %v5086
        %v5105 = vpack.c.b16 %v5089, %v5088
        %v5107 = vsel %vm434, %v5090, 0
        %v5110 = vsel %vm434, %v5091, 0
        %v5113 = vsel %vm434, %v5092, 0
        %v5116 = vsel %vm434, %v5093, 0
        %v5119 = vsel %vm434, %v5094, 0
        %v5122 = vsel %vm434, %v5095, 0
        %v5125 = vsel %vm434, %v5096, 0
        %v5128 = vsel %vm434, %v5097, 0
        %v5131 = vsel %vm434, %v5098, 0
        %v5134 = vsel %vm434, %v5099, 0
        %v5137 = vsel %vm434, %v5100, 0
        %v5140 = vsel %vm434, %v5101, 0
        %v5143 = vsel %vm434, %v5102, 0
        %v5146 = vsel %vm434, %v5103, 0
        %v5149 = vsel %vm434, %v5104, 0
        %v5152 = vsel %vm434, %v5105, 0
        %5154 = vmatprep.subr.bf16.mxu0 %v4935
        %5155 = vmatpush1.bf16.msra.mxu0 %v4934
        %5156 = vmatprep.subr.bf16.mxu0 0
        %5157 = vmatpush1.bf16.msra.mxu0 0
        %5158 = vmatprep.subr.bf16.mxu0 0
        %5159 = vmatpush1.bf16.msra.mxu0 0
        %5160 = vmatprep.subr.bf16.mxu0 0
        %5161 = vmatpush1.bf16.msra.mxu0 0
        %5162 = vmatprep.subr.bf16.mxu0 0
        %5163 = vmatpush1.bf16.msra.mxu0 0
        %5164 = vmatprep.subr.bf16.mxu0 0
        %5165 = vmatpush1.bf16.msra.mxu0 0
        %5166 = vmatprep.subr.bf16.mxu0 0
        %5167 = vmatpush1.bf16.msra.mxu0 0
        %5168 = vmatprep.subr.bf16.mxu0 0
        %5169 = vmatpush1.bf16.msra.mxu0 0
        %5170 = vmatprep.subr.bf16.mxu0 0
        %5171 = vmatpush1.bf16.msra.mxu0 0
        %5172 = vmatprep.subr.bf16.mxu0 0
        %5173 = vmatpush1.bf16.msra.mxu0 0
        %5174 = vmatprep.subr.bf16.mxu0 0
        %5175 = vmatpush1.bf16.msra.mxu0 0
        %5176 = vmatprep.subr.bf16.mxu0 0
        %5177 = vmatpush1.bf16.msra.mxu0 0
        %5178 = vmatprep.subr.bf16.mxu0 0
        %5179 = vmatpush1.bf16.msra.mxu0 0
        %5180 = vmatprep.subr.bf16.mxu0 0
        %5181 = vmatpush1.bf16.msra.mxu0 0
        %5182 = vmatprep.subr.bf16.mxu0 0
        %5183 = vmatpush1.bf16.msra.mxu0 0
        %5184 = vmatprep.subr.bf16.mxu0 0
        %5185 = vmatpush1.bf16.msra.mxu0 0
        %5186 = vmatprep.mubr.bf16.mxu0 0
        %5187 = vmatmul.mubr.bf16.gmra.mrb[0].mxu0 %v5107
        %v5188 = vpop.f32.mrb[0].mxu0
        %v5189 = vadd.f32 0.0, %v5188
        %v5190 = vpop.f32.mrb[0].mxu0
        %v5191 = vadd.f32 0.0, %v5190
        %v5192 = vpop.f32.mrb[0].mxu0
        %v5193 = vadd.f32 0.0, %v5192
        %v5194 = vpop.f32.mrb[0].mxu0
        %v5195 = vadd.f32 0.0, %v5194
        %5196 = vmatprep.mubr.bf16.mxu0 0
        %5197 = vmatmul.mubr.bf16.gmra.mrb[0].mxu0 %v5110
        %v5198 = vpop.f32.mrb[0].mxu0
        %v5199 = vadd.f32 0.0, %v5198
        %v5200 = vpop.f32.mrb[0].mxu0
        %v5201 = vadd.f32 0.0, %v5200
        %v5202 = vpop.f32.mrb[0].mxu0
        %v5203 = vadd.f32 0.0, %v5202
        %v5204 = vpop.f32.mrb[0].mxu0
        %v5205 = vadd.f32 0.0, %v5204
        %5206 = vmatprep.mubr.bf16.mxu0 0
        %5207 = vmatmul.mubr.bf16.gmra.mrb[0].mxu0 %v5113
        %v5208 = vpop.f32.mrb[0].mxu0
        %v5209 = vadd.f32 0.0, %v5208
        %v5210 = vpop.f32.mrb[0].mxu0
        %v5211 = vadd.f32 0.0, %v5210
        %v5212 = vpop.f32.mrb[0].mxu0
        %v5213 = vadd.f32 0.0, %v5212
        %v5214 = vpop.f32.mrb[0].mxu0
        %v5215 = vadd.f32 0.0, %v5214
        %5216 = vmatprep.mubr.bf16.mxu0 0
        %5217 = vmatmul.mubr.bf16.gmra.mrb[0].mxu0 %v5116
        %v5218 = vpop.f32.mrb[0].mxu0
        %v5219 = vadd.f32 0.0, %v5218
        %v5220 = vpop.f32.mrb[0].mxu0
        %v5221 = vadd.f32 0.0, %v5220
        %v5222 = vpop.f32.mrb[0].mxu0
        %v5223 = vadd.f32 0.0, %v5222
        %v5224 = vpop.f32.mrb[0].mxu0
        %v5225 = vadd.f32 0.0, %v5224
        %5226 = vmatprep.mubr.bf16.mxu0 0
        %5227 = vmatmul.mubr.bf16.gmra.mrb[0].mxu0 %v5119
        %v5228 = vpop.f32.mrb[0].mxu0
        %v5229 = vadd.f32 0.0, %v5228
        %v5230 = vpop.f32.mrb[0].mxu0
        %v5231 = vadd.f32 0.0, %v5230
        %v5232 = vpop.f32.mrb[0].mxu0
        %v5233 = vadd.f32 0.0, %v5232
        %v5234 = vpop.f32.mrb[0].mxu0
        %v5235 = vadd.f32 0.0, %v5234
        %5236 = vmatprep.mubr.bf16.mxu0 0
        %5237 = vmatmul.mubr.bf16.gmra.mrb[0].mxu0 %v5122
        %v5238 = vpop.f32.mrb[0].mxu0
        %v5239 = vadd.f32 0.0, %v5238
        %v5240 = vpop.f32.mrb[0].mxu0
        %v5241 = vadd.f32 0.0, %v5240
        %v5242 = vpop.f32.mrb[0].mxu0
        %v5243 = vadd.f32 0.0, %v5242
        %v5244 = vpop.f32.mrb[0].mxu0
        %v5245 = vadd.f32 0.0, %v5244
        %5246 = vmatprep.mubr.bf16.mxu0 0
        %5247 = vmatmul.mubr.bf16.gmra.mrb[0].mxu0 %v5125
        %v5248 = vpop.f32.mrb[0].mxu0
        %v5249 = vadd.f32 0.0, %v5248
        %v5250 = vpop.f32.mrb[0].mxu0
        %v5251 = vadd.f32 0.0, %v5250
        %v5252 = vpop.f32.mrb[0].mxu0
        %v5253 = vadd.f32 0.0, %v5252
        %v5254 = vpop.f32.mrb[0].mxu0
        %v5255 = vadd.f32 0.0, %v5254
        %5256 = vmatprep.mubr.bf16.mxu0 0
        %5257 = vmatmul.mubr.bf16.gmra.mrb[0].mxu0 %v5128
        %v5258 = vpop.f32.mrb[0].mxu0
        %v5259 = vadd.f32 0.0, %v5258
        %v5260 = vpop.f32.mrb[0].mxu0
        %v5261 = vadd.f32 0.0, %v5260
        %v5262 = vpop.f32.mrb[0].mxu0
        %v5263 = vadd.f32 0.0, %v5262
        %v5264 = vpop.f32.mrb[0].mxu0
        %v5265 = vadd.f32 0.0, %v5264
        %5266 = vmatprep.mubr.bf16.mxu0 0
        %5267 = vmatmul.mubr.bf16.gmra.mrb[0].mxu0 %v5131
        %v5268 = vpop.f32.mrb[0].mxu0
        %v5269 = vadd.f32 0.0, %v5268
        %v5270 = vpop.f32.mrb[0].mxu0
        %v5271 = vadd.f32 0.0, %v5270
        %v5272 = vpop.f32.mrb[0].mxu0
        %v5273 = vadd.f32 0.0, %v5272
        %v5274 = vpop.f32.mrb[0].mxu0
        %v5275 = vadd.f32 0.0, %v5274
        %5276 = vmatprep.mubr.bf16.mxu0 0
        %5277 = vmatmul.mubr.bf16.gmra.mrb[0].mxu0 %v5134
        %v5278 = vpop.f32.mrb[0].mxu0
        %v5279 = vadd.f32 0.0, %v5278
        %v5280 = vpop.f32.mrb[0].mxu0
        %v5281 = vadd.f32 0.0, %v5280
        %v5282 = vpop.f32.mrb[0].mxu0
        %v5283 = vadd.f32 0.0, %v5282
        %v5284 = vpop.f32.mrb[0].mxu0
        %v5285 = vadd.f32 0.0, %v5284
        %5286 = vmatprep.mubr.bf16.mxu0 0
        %5287 = vmatmul.mubr.bf16.gmra.mrb[0].mxu0 %v5137
        %v5288 = vpop.f32.mrb[0].mxu0
        %v5289 = vadd.f32 0.0, %v5288
        %v5290 = vpop.f32.mrb[0].mxu0
        %v5291 = vadd.f32 0.0, %v5290
        %v5292 = vpop.f32.mrb[0].mxu0
        %v5293 = vadd.f32 0.0, %v5292
        %v5294 = vpop.f32.mrb[0].mxu0
        %v5295 = vadd.f32 0.0, %v5294
        %5296 = vmatprep.mubr.bf16.mxu0 0
        %5297 = vmatmul.mubr.bf16.gmra.mrb[0].mxu0 %v5140
        %v5298 = vpop.f32.mrb[0].mxu0
        %v5299 = vadd.f32 0.0, %v5298
        %v5300 = vpop.f32.mrb[0].mxu0
        %v5301 = vadd.f32 0.0, %v5300
        %v5302 = vpop.f32.mrb[0].mxu0
        %v5303 = vadd.f32 0.0, %v5302
        %v5304 = vpop.f32.mrb[0].mxu0
        %v5305 = vadd.f32 0.0, %v5304
        %5306 = vmatprep.mubr.bf16.mxu0 0
        %5307 = vmatmul.mubr.bf16.gmra.mrb[0].mxu0 %v5143
        %v5308 = vpop.f32.mrb[0].mxu0
        %v5309 = vadd.f32 0.0, %v5308
        %v5310 = vpop.f32.mrb[0].mxu0
        %v5311 = vadd.f32 0.0, %v5310
        %v5312 = vpop.f32.mrb[0].mxu0
        %v5313 = vadd.f32 0.0, %v5312
        %v5314 = vpop.f32.mrb[0].mxu0
        %v5315 = vadd.f32 0.0, %v5314
        %5316 = vmatprep.mubr.bf16.mxu0 0
        %5317 = vmatmul.mubr.bf16.gmra.mrb[0].mxu0 %v5146
        %v5318 = vpop.f32.mrb[0].mxu0
        %v5319 = vadd.f32 0.0, %v5318
        %v5320 = vpop.f32.mrb[0].mxu0
        %v5321 = vadd.f32 0.0, %v5320
        %v5322 = vpop.f32.mrb[0].mxu0
        %v5323 = vadd.f32 0.0, %v5322
        %v5324 = vpop.f32.mrb[0].mxu0
        %v5325 = vadd.f32 0.0, %v5324
        %5326 = vmatprep.mubr.bf16.mxu0 0
        %5327 = vmatmul.mubr.bf16.gmra.mrb[0].mxu0 %v5149
        %v5328 = vpop.f32.mrb[0].mxu0
        %v5329 = vadd.f32 0.0, %v5328
        %v5330 = vpop.f32.mrb[0].mxu0
        %v5331 = vadd.f32 0.0, %v5330
        %v5332 = vpop.f32.mrb[0].mxu0
        %v5333 = vadd.f32 0.0, %v5332
        %v5334 = vpop.f32.mrb[0].mxu0
        %v5335 = vadd.f32 0.0, %v5334
        %5336 = vmatprep.mubr.bf16.mxu0 0
        %5337 = vmatmul.mubr.bf16.gmra.mrb[0].mxu0 %v5152
        %v5338 = vpop.f32.mrb[0].mxu0
        %v5339 = vadd.f32 0.0, %v5338
        %v5340 = vpop.f32.mrb[0].mxu0
        %v5341 = vadd.f32 0.0, %v5340
        %v5342 = vpop.f32.mrb[0].mxu0
        %v5343 = vadd.f32 0.0, %v5342
        %v5344 = vpop.f32.mrb[0].mxu0
        %v5345 = vadd.f32 0.0, %v5344
        %5346 = vdwg.mxu0
        %v5347 = vpack.c.bf16 %v5193, %v5189
        %v5348 = vpack.c.bf16 %v5195, %v5191
        %v5349 = vpack.c.bf16 %v5203, %v5199
        %v5350 = vpack.c.bf16 %v5205, %v5201
        %v5351 = vpack.c.bf16 %v5213, %v5209
        %v5352 = vpack.c.bf16 %v5215, %v5211
        %v5353 = vpack.c.bf16 %v5223, %v5219
        %v5354 = vpack.c.bf16 %v5225, %v5221
        %v5355 = vpack.c.bf16 %v5233, %v5229
        %v5356 = vpack.c.bf16 %v5235, %v5231
        %v5357 = vpack.c.bf16 %v5243, %v5239
        %v5358 = vpack.c.bf16 %v5245, %v5241
        %v5359 = vpack.c.bf16 %v5253, %v5249
        %v5360 = vpack.c.bf16 %v5255, %v5251
        %v5361 = vpack.c.bf16 %v5263, %v5259
        %v5362 = vpack.c.bf16 %v5265, %v5261
        %v5363 = vpack.c.bf16 %v5273, %v5269
        %v5364 = vpack.c.bf16 %v5275, %v5271
        %v5365 = vpack.c.bf16 %v5283, %v5279
        %v5366 = vpack.c.bf16 %v5285, %v5281
        %v5367 = vpack.c.bf16 %v5293, %v5289
        %v5368 = vpack.c.bf16 %v5295, %v5291
        %v5369 = vpack.c.bf16 %v5303, %v5299
        %v5370 = vpack.c.bf16 %v5305, %v5301
        %v5371 = vpack.c.bf16 %v5313, %v5309
        %v5372 = vpack.c.bf16 %v5315, %v5311
        %v5373 = vpack.c.bf16 %v5323, %v5319
        %v5374 = vpack.c.bf16 %v5325, %v5321
        %v5375 = vpack.c.bf16 %v5333, %v5329
        %v5376 = vpack.c.bf16 %v5335, %v5331
        %v5377 = vpack.c.bf16 %v5343, %v5339
        %v5378 = vpack.c.bf16 %v5345, %v5341
        %v5379 = vmul.bf16 %v5347, %v4992
        %v5380 = vmul.bf16 %v5348, %v4993
        %v5381 = vmul.bf16 %v5349, %v4992
        %v5382 = vmul.bf16 %v5350, %v4993
        %v5383 = vmul.bf16 %v5351, %v4992
        %v5384 = vmul.bf16 %v5352, %v4993
        %v5385 = vmul.bf16 %v5353, %v4992
        %v5386 = vmul.bf16 %v5354, %v4993
        %v5387 = vmul.bf16 %v5355, %v4992
        %v5388 = vmul.bf16 %v5356, %v4993
        %v5389 = vmul.bf16 %v5357, %v4992
        %v5390 = vmul.bf16 %v5358, %v4993
        %v5391 = vmul.bf16 %v5359, %v4992
        %v5392 = vmul.bf16 %v5360, %v4993
        %v5393 = vmul.bf16 %v5361, %v4992
        %v5394 = vmul.bf16 %v5362, %v4993
        %v5395 = vmul.bf16 %v5363, %v4992
        %v5396 = vmul.bf16 %v5364, %v4993
        %v5397 = vmul.bf16 %v5365, %v4992
        %v5398 = vmul.bf16 %v5366, %v4993
        %v5399 = vmul.bf16 %v5367, %v4992
        %v5400 = vmul.bf16 %v5368, %v4993
        %v5401 = vmul.bf16 %v5369, %v4992
        %v5402 = vmul.bf16 %v5370, %v4993
        %v5403 = vmul.bf16 %v5371, %v4992
        %v5404 = vmul.bf16 %v5372, %v4993
        %v5405 = vmul.bf16 %v5373, %v4992
        %v5406 = vmul.bf16 %v5374, %v4993
        %v5407 = vmul.bf16 %v5375, %v4992
        %v5408 = vmul.bf16 %v5376, %v4993
        %v5409 = vmul.bf16 %v5377, %v4992
        %v5410 = vmul.bf16 %v5378, %v4993
        %v5411 = vunpack.c.l.bf16 %v5379
        %v5412 = vunpack.c.l.bf16 %v5380
        %v5413 = vunpack.c.h.bf16 %v5379
        %v5414 = vunpack.c.h.bf16 %v5380
        %v5415 = vunpack.c.l.bf16 %v5381
        %v5416 = vunpack.c.l.bf16 %v5382
        %v5417 = vunpack.c.h.bf16 %v5381
        %v5418 = vunpack.c.h.bf16 %v5382
        %v5419 = vunpack.c.l.bf16 %v5383
        %v5420 = vunpack.c.l.bf16 %v5384
        %v5421 = vunpack.c.h.bf16 %v5383
        %v5422 = vunpack.c.h.bf16 %v5384
        %v5423 = vunpack.c.l.bf16 %v5385
        %v5424 = vunpack.c.l.bf16 %v5386
        %v5425 = vunpack.c.h.bf16 %v5385
        %v5426 = vunpack.c.h.bf16 %v5386
        %v5427 = vunpack.c.l.bf16 %v5387
        %v5428 = vunpack.c.l.bf16 %v5388
        %v5429 = vunpack.c.h.bf16 %v5387
        %v5430 = vunpack.c.h.bf16 %v5388
        %v5431 = vunpack.c.l.bf16 %v5389
        %v5432 = vunpack.c.l.bf16 %v5390
        %v5433 = vunpack.c.h.bf16 %v5389
        %v5434 = vunpack.c.h.bf16 %v5390
        %v5435 = vunpack.c.l.bf16 %v5391
        %v5436 = vunpack.c.l.bf16 %v5392
        %v5437 = vunpack.c.h.bf16 %v5391
        %v5438 = vunpack.c.h.bf16 %v5392
        %v5439 = vunpack.c.l.bf16 %v5393
        %v5440 = vunpack.c.l.bf16 %v5394
        %v5441 = vunpack.c.h.bf16 %v5393
        %v5442 = vunpack.c.h.bf16 %v5394
        %v5443 = vunpack.c.l.bf16 %v5395
        %v5444 = vunpack.c.l.bf16 %v5396
        %v5445 = vunpack.c.h.bf16 %v5395
        %v5446 = vunpack.c.h.bf16 %v5396
        %v5447 = vunpack.c.l.bf16 %v5397
        %v5448 = vunpack.c.l.bf16 %v5398
        %v5449 = vunpack.c.h.bf16 %v5397
        %v5450 = vunpack.c.h.bf16 %v5398
        %v5451 = vunpack.c.l.bf16 %v5399
        %v5452 = vunpack.c.l.bf16 %v5400
        %v5453 = vunpack.c.h.bf16 %v5399
        %v5454 = vunpack.c.h.bf16 %v5400
        %v5455 = vunpack.c.l.bf16 %v5401
        %v5456 = vunpack.c.l.bf16 %v5402
        %v5457 = vunpack.c.h.bf16 %v5401
        %v5458 = vunpack.c.h.bf16 %v5402
        %v5459 = vunpack.c.l.bf16 %v5403
        %v5460 = vunpack.c.l.bf16 %v5404
        %v5461 = vunpack.c.h.bf16 %v5403
        %v5462 = vunpack.c.h.bf16 %v5404
        %v5463 = vunpack.c.l.bf16 %v5405
        %v5464 = vunpack.c.l.bf16 %v5406
        %v5465 = vunpack.c.h.bf16 %v5405
        %v5466 = vunpack.c.h.bf16 %v5406
        %v5467 = vunpack.c.l.bf16 %v5407
        %v5468 = vunpack.c.l.bf16 %v5408
        %v5469 = vunpack.c.h.bf16 %v5407
        %v5470 = vunpack.c.h.bf16 %v5408
        %v5471 = vunpack.c.l.bf16 %v5409
        %v5472 = vunpack.c.l.bf16 %v5410
        %v5473 = vunpack.c.h.bf16 %v5409
        %v5474 = vunpack.c.h.bf16 %v5410
        %v5475 = vadd.f32 %v5411, %v5413
        %v5476 = vrot.slane %v5475, 4
        %v5477 = vadd.f32 %v5475, %v5476
        %v5478 = vrot.slane %v5477, 2
        %v5479 = vadd.f32 %v5477, %v5478
        %v5480 = vrot.slane %v5479, 1
        %v5481 = vadd.f32 %v5479, %v5480
        %v5482 = vadd.f32 %v5412, %v5414
        %v5483 = vrot.slane %v5482, 4
        %v5484 = vadd.f32 %v5482, %v5483
        %v5485 = vrot.slane %v5484, 2
        %v5486 = vadd.f32 %v5484, %v5485
        %v5487 = vrot.slane %v5486, 1
        %v5488 = vadd.f32 %v5486, %v5487
        %v5489 = vadd.f32 %v5415, %v5417
        %v5490 = vrot.slane %v5489, 4
        %v5491 = vadd.f32 %v5489, %v5490
        %v5492 = vrot.slane %v5491, 2
        %v5493 = vadd.f32 %v5491, %v5492
        %v5494 = vrot.slane %v5493, 1
        %v5495 = vadd.f32 %v5493, %v5494
        %v5496 = vadd.f32 %v5416, %v5418
        %v5497 = vrot.slane %v5496, 4
        %v5498 = vadd.f32 %v5496, %v5497
        %v5499 = vrot.slane %v5498, 2
        %v5500 = vadd.f32 %v5498, %v5499
        %v5501 = vrot.slane %v5500, 1
        %v5502 = vadd.f32 %v5500, %v5501
        %v5503 = vadd.f32 %v5419, %v5421
        %v5504 = vrot.slane %v5503, 4
        %v5505 = vadd.f32 %v5503, %v5504
        %v5506 = vrot.slane %v5505, 2
        %v5507 = vadd.f32 %v5505, %v5506
        %v5508 = vrot.slane %v5507, 1
        %v5509 = vadd.f32 %v5507, %v5508
        %v5510 = vadd.f32 %v5420, %v5422
        %v5511 = vrot.slane %v5510, 4
        %v5512 = vadd.f32 %v5510, %v5511
        %v5513 = vrot.slane %v5512, 2
        %v5514 = vadd.f32 %v5512, %v5513
        %v5515 = vrot.slane %v5514, 1
        %v5516 = vadd.f32 %v5514, %v5515
        %v5517 = vadd.f32 %v5423, %v5425
        %v5518 = vrot.slane %v5517, 4
        %v5519 = vadd.f32 %v5517, %v5518
        %v5520 = vrot.slane %v5519, 2
        %v5521 = vadd.f32 %v5519, %v5520
        %v5522 = vrot.slane %v5521, 1
        %v5523 = vadd.f32 %v5521, %v5522
        %v5524 = vadd.f32 %v5424, %v5426
        %v5525 = vrot.slane %v5524, 4
        %v5526 = vadd.f32 %v5524, %v5525
        %v5527 = vrot.slane %v5526, 2
        %v5528 = vadd.f32 %v5526, %v5527
        %v5529 = vrot.slane %v5528, 1
        %v5530 = vadd.f32 %v5528, %v5529
        %v5531 = vadd.f32 %v5427, %v5429
        %v5532 = vrot.slane %v5531, 4
        %v5533 = vadd.f32 %v5531, %v5532
        %v5534 = vrot.slane %v5533, 2
        %v5535 = vadd.f32 %v5533, %v5534
        %v5536 = vrot.slane %v5535, 1
        %v5537 = vadd.f32 %v5535, %v5536
        %v5538 = vadd.f32 %v5428, %v5430
        %v5539 = vrot.slane %v5538, 4
        %v5540 = vadd.f32 %v5538, %v5539
        %v5541 = vrot.slane %v5540, 2
        %v5542 = vadd.f32 %v5540, %v5541
        %v5543 = vrot.slane %v5542, 1
        %v5544 = vadd.f32 %v5542, %v5543
        %v5545 = vadd.f32 %v5431, %v5433
        %v5546 = vrot.slane %v5545, 4
        %v5547 = vadd.f32 %v5545, %v5546
        %v5548 = vrot.slane %v5547, 2
        %v5549 = vadd.f32 %v5547, %v5548
        %v5550 = vrot.slane %v5549, 1
        %v5551 = vadd.f32 %v5549, %v5550
        %v5552 = vadd.f32 %v5432, %v5434
        %v5553 = vrot.slane %v5552, 4
        %v5554 = vadd.f32 %v5552, %v5553
        %v5555 = vrot.slane %v5554, 2
        %v5556 = vadd.f32 %v5554, %v5555
        %v5557 = vrot.slane %v5556, 1
        %v5558 = vadd.f32 %v5556, %v5557
        %v5559 = vadd.f32 %v5435, %v5437
        %v5560 = vrot.slane %v5559, 4
        %v5561 = vadd.f32 %v5559, %v5560
        %v5562 = vrot.slane %v5561, 2
        %v5563 = vadd.f32 %v5561, %v5562
        %v5564 = vrot.slane %v5563, 1
        %v5565 = vadd.f32 %v5563, %v5564
        %v5566 = vadd.f32 %v5436, %v5438
        %v5567 = vrot.slane %v5566, 4
        %v5568 = vadd.f32 %v5566, %v5567
        %v5569 = vrot.slane %v5568, 2
        %v5570 = vadd.f32 %v5568, %v5569
        %v5571 = vrot.slane %v5570, 1
        %v5572 = vadd.f32 %v5570, %v5571
        %v5573 = vadd.f32 %v5439, %v5441
        %v5574 = vrot.slane %v5573, 4
        %v5575 = vadd.f32 %v5573, %v5574
        %v5576 = vrot.slane %v5575, 2
        %v5577 = vadd.f32 %v5575, %v5576
        %v5578 = vrot.slane %v5577, 1
        %v5579 = vadd.f32 %v5577, %v5578
        %v5580 = vadd.f32 %v5440, %v5442
        %v5581 = vrot.slane %v5580, 4
        %v5582 = vadd.f32 %v5580, %v5581
        %v5583 = vrot.slane %v5582, 2
        %v5584 = vadd.f32 %v5582, %v5583
        %v5585 = vrot.slane %v5584, 1
        %v5586 = vadd.f32 %v5584, %v5585
        %v5587 = vadd.f32 %v5443, %v5445
        %v5588 = vrot.slane %v5587, 4
        %v5589 = vadd.f32 %v5587, %v5588
        %v5590 = vrot.slane %v5589, 2
        %v5591 = vadd.f32 %v5589, %v5590
        %v5592 = vrot.slane %v5591, 1
        %v5593 = vadd.f32 %v5591, %v5592
        %v5594 = vadd.f32 %v5444, %v5446
        %v5595 = vrot.slane %v5594, 4
        %v5596 = vadd.f32 %v5594, %v5595
        %v5597 = vrot.slane %v5596, 2
        %v5598 = vadd.f32 %v5596, %v5597
        %v5599 = vrot.slane %v5598, 1
        %v5600 = vadd.f32 %v5598, %v5599
        %v5601 = vadd.f32 %v5447, %v5449
        %v5602 = vrot.slane %v5601, 4
        %v5603 = vadd.f32 %v5601, %v5602
        %v5604 = vrot.slane %v5603, 2
        %v5605 = vadd.f32 %v5603, %v5604
        %v5606 = vrot.slane %v5605, 1
        %v5607 = vadd.f32 %v5605, %v5606
        %v5608 = vadd.f32 %v5448, %v5450
        %v5609 = vrot.slane %v5608, 4
        %v5610 = vadd.f32 %v5608, %v5609
        %v5611 = vrot.slane %v5610, 2
        %v5612 = vadd.f32 %v5610, %v5611
        %v5613 = vrot.slane %v5612, 1
        %v5614 = vadd.f32 %v5612, %v5613
        %v5615 = vadd.f32 %v5451, %v5453
        %v5616 = vrot.slane %v5615, 4
        %v5617 = vadd.f32 %v5615, %v5616
        %v5618 = vrot.slane %v5617, 2
        %v5619 = vadd.f32 %v5617, %v5618
        %v5620 = vrot.slane %v5619, 1
        %v5621 = vadd.f32 %v5619, %v5620
        %v5622 = vadd.f32 %v5452, %v5454
        %v5623 = vrot.slane %v5622, 4
        %v5624 = vadd.f32 %v5622, %v5623
        %v5625 = vrot.slane %v5624, 2
        %v5626 = vadd.f32 %v5624, %v5625
        %v5627 = vrot.slane %v5626, 1
        %v5628 = vadd.f32 %v5626, %v5627
        %v5629 = vadd.f32 %v5455, %v5457
        %v5630 = vrot.slane %v5629, 4
        %v5631 = vadd.f32 %v5629, %v5630
        %v5632 = vrot.slane %v5631, 2
        %v5633 = vadd.f32 %v5631, %v5632
        %v5634 = vrot.slane %v5633, 1
        %v5635 = vadd.f32 %v5633, %v5634
        %v5636 = vadd.f32 %v5456, %v5458
        %v5637 = vrot.slane %v5636, 4
        %v5638 = vadd.f32 %v5636, %v5637
        %v5639 = vrot.slane %v5638, 2
        %v5640 = vadd.f32 %v5638, %v5639
        %v5641 = vrot.slane %v5640, 1
        %v5642 = vadd.f32 %v5640, %v5641
        %v5643 = vadd.f32 %v5459, %v5461
        %v5644 = vrot.slane %v5643, 4
        %v5645 = vadd.f32 %v5643, %v5644
        %v5646 = vrot.slane %v5645, 2
        %v5647 = vadd.f32 %v5645, %v5646
        %v5648 = vrot.slane %v5647, 1
        %v5649 = vadd.f32 %v5647, %v5648
        %v5650 = vadd.f32 %v5460, %v5462
        %v5651 = vrot.slane %v5650, 4
        %v5652 = vadd.f32 %v5650, %v5651
        %v5653 = vrot.slane %v5652, 2
        %v5654 = vadd.f32 %v5652, %v5653
        %v5655 = vrot.slane %v5654, 1
        %v5656 = vadd.f32 %v5654, %v5655
        %v5657 = vadd.f32 %v5463, %v5465
        %v5658 = vrot.slane %v5657, 4
        %v5659 = vadd.f32 %v5657, %v5658
        %v5660 = vrot.slane %v5659, 2
        %v5661 = vadd.f32 %v5659, %v5660
        %v5662 = vrot.slane %v5661, 1
        %v5663 = vadd.f32 %v5661, %v5662
        %v5664 = vadd.f32 %v5464, %v5466
        %v5665 = vrot.slane %v5664, 4
        %v5666 = vadd.f32 %v5664, %v5665
        %v5667 = vrot.slane %v5666, 2
        %v5668 = vadd.f32 %v5666, %v5667
        %v5669 = vrot.slane %v5668, 1
        %v5670 = vadd.f32 %v5668, %v5669
        %v5671 = vadd.f32 %v5467, %v5469
        %v5672 = vrot.slane %v5671, 4
        %v5673 = vadd.f32 %v5671, %v5672
        %v5674 = vrot.slane %v5673, 2
        %v5675 = vadd.f32 %v5673, %v5674
        %v5676 = vrot.slane %v5675, 1
        %v5677 = vadd.f32 %v5675, %v5676
        %v5678 = vadd.f32 %v5468, %v5470
        %v5679 = vrot.slane %v5678, 4
        %v5680 = vadd.f32 %v5678, %v5679
        %v5681 = vrot.slane %v5680, 2
        %v5682 = vadd.f32 %v5680, %v5681
        %v5683 = vrot.slane %v5682, 1
        %v5684 = vadd.f32 %v5682, %v5683
        %v5685 = vadd.f32 %v5471, %v5473
        %v5686 = vrot.slane %v5685, 4
        %v5687 = vadd.f32 %v5685, %v5686
        %v5688 = vrot.slane %v5687, 2
        %v5689 = vadd.f32 %v5687, %v5688
        %v5690 = vrot.slane %v5689, 1
        %v5691 = vadd.f32 %v5689, %v5690
        %v5692 = vadd.f32 %v5472, %v5474
        %v5693 = vrot.slane %v5692, 4
        %v5694 = vadd.f32 %v5692, %v5693
        %v5695 = vrot.slane %v5694, 2
        %v5696 = vadd.f32 %v5694, %v5695
        %v5697 = vrot.slane %v5696, 1
        %v5698 = vadd.f32 %v5696, %v5697
        %v5699 = vpack.c.bf16 %v5481, %v5481
        %v5700 = vpack.c.bf16 %v5488, %v5488
        %v5701 = vpack.c.bf16 %v5495, %v5495
        %v5702 = vpack.c.bf16 %v5502, %v5502
        %v5703 = vpack.c.bf16 %v5509, %v5509
        %v5704 = vpack.c.bf16 %v5516, %v5516
        %v5705 = vpack.c.bf16 %v5523, %v5523
        %v5706 = vpack.c.bf16 %v5530, %v5530
        %v5707 = vpack.c.bf16 %v5537, %v5537
        %v5708 = vpack.c.bf16 %v5544, %v5544
        %v5709 = vpack.c.bf16 %v5551, %v5551
        %v5710 = vpack.c.bf16 %v5558, %v5558
        %v5711 = vpack.c.bf16 %v5565, %v5565
        %v5712 = vpack.c.bf16 %v5572, %v5572
        %v5713 = vpack.c.bf16 %v5579, %v5579
        %v5714 = vpack.c.bf16 %v5586, %v5586
        %v5715 = vpack.c.bf16 %v5593, %v5593
        %v5716 = vpack.c.bf16 %v5600, %v5600
        %v5717 = vpack.c.bf16 %v5607, %v5607
        %v5718 = vpack.c.bf16 %v5614, %v5614
        %v5719 = vpack.c.bf16 %v5621, %v5621
        %v5720 = vpack.c.bf16 %v5628, %v5628
        %v5721 = vpack.c.bf16 %v5635, %v5635
        %v5722 = vpack.c.bf16 %v5642, %v5642
        %v5723 = vpack.c.bf16 %v5649, %v5649
        %v5724 = vpack.c.bf16 %v5656, %v5656
        %v5725 = vpack.c.bf16 %v5663, %v5663
        %v5726 = vpack.c.bf16 %v5670, %v5670
        %v5727 = vpack.c.bf16 %v5677, %v5677
        %v5728 = vpack.c.bf16 %v5684, %v5684
        %v5729 = vpack.c.bf16 %v5691, %v5691
        %v5730 = vpack.c.bf16 %v5698, %v5698
        %v5763 = vunpack.c.l.b16 %v5699
        %v5764 = vunpack.c.l.b16 %v5700
        %v5765 = vunpack.c.l.b16 %v5701
        %v5766 = vunpack.c.l.b16 %v5702
        %v5767 = vunpack.c.l.b16 %v5703
        %v5768 = vunpack.c.l.b16 %v5704
        %v5769 = vunpack.c.l.b16 %v5705
        %v5770 = vunpack.c.l.b16 %v5706
        %v5771 = vunpack.c.l.b16 %v5707
        %v5772 = vunpack.c.l.b16 %v5708
        %v5773 = vunpack.c.l.b16 %v5709
        %v5774 = vunpack.c.l.b16 %v5710
        %v5775 = vunpack.c.l.b16 %v5711
        %v5776 = vunpack.c.l.b16 %v5712
        %v5777 = vunpack.c.l.b16 %v5713
        %v5778 = vunpack.c.l.b16 %v5714
        %v5779 = vunpack.c.l.b16 %v5715
        %v5780 = vunpack.c.l.b16 %v5716
        %v5781 = vunpack.c.l.b16 %v5717
        %v5782 = vunpack.c.l.b16 %v5718
        %v5783 = vunpack.c.l.b16 %v5719
        %v5784 = vunpack.c.l.b16 %v5720
        %v5785 = vunpack.c.l.b16 %v5721
        %v5786 = vunpack.c.l.b16 %v5722
        %v5787 = vunpack.c.l.b16 %v5723
        %v5788 = vunpack.c.l.b16 %v5724
        %v5789 = vunpack.c.l.b16 %v5725
        %v5790 = vunpack.c.l.b16 %v5726
        %v5791 = vunpack.c.l.b16 %v5727
        %v5792 = vunpack.c.l.b16 %v5728
        %v5793 = vunpack.c.l.b16 %v5729
        %v5794 = vunpack.c.l.b16 %v5730
        %v5795 = vsel %vm1124, %v5765, %v5763
        %v5796 = vsel %vm1126, %v5767, %v5795
        %v5797 = vsel %vm1128, %v5769, %v5796
        %v5798 = vsel %vm1130, %v5771, %v5797
        %v5799 = vsel %vm1132, %v5773, %v5798
        %v5800 = vsel %vm1134, %v5775, %v5799
        %v5801 = vsel %vm1136, %v5777, %v5800
        %v5802 = vsel %vm1124, %v5766, %v5764
        %v5803 = vsel %vm1126, %v5768, %v5802
        %v5804 = vsel %vm1128, %v5770, %v5803
        %v5805 = vsel %vm1130, %v5772, %v5804
        %v5806 = vsel %vm1132, %v5774, %v5805
        %v5807 = vsel %vm1134, %v5776, %v5806
        %v5808 = vsel %vm1136, %v5778, %v5807
        %v5809 = vsel %vm1124, %v5781, %v5779
        %v5810 = vsel %vm1126, %v5783, %v5809
        %v5811 = vsel %vm1128, %v5785, %v5810
        %v5812 = vsel %vm1130, %v5787, %v5811
        %v5813 = vsel %vm1132, %v5789, %v5812
        %v5814 = vsel %vm1134, %v5791, %v5813
        %v5815 = vsel %vm1136, %v5793, %v5814
        %v5816 = vsel %vm1124, %v5782, %v5780
        %v5817 = vsel %vm1126, %v5784, %v5816
        %v5818 = vsel %vm1128, %v5786, %v5817
        %v5819 = vsel %vm1130, %v5788, %v5818
        %v5820 = vsel %vm1132, %v5790, %v5819
        %v5821 = vsel %vm1134, %v5792, %v5820
        %v5822 = vsel %vm1136, %v5794, %v5821
        %v5823 = vpack.c.b16 %v5815, %v5801
        %v5824 = vpack.c.b16 %v5822, %v5808
        %s5827 = scalar_lea.vmem [#allocation2], 80
        %5828 = vst [vmem:[%s5827] sm:$0xff] %v5823
        %5829 = vst [vmem:[%s5827 + $0x8] sm:$0xff] %v5824
        %s5830 = scalar_lea.vmem %s217, 48
        %v5831 = vld [vmem:[%s5830] sm:$0x77]
        %v5833 = vlaneseq
        %v5834 = vshrl.u32 %v5833, 7
        %v5835 = vsub.s32 0, %v5834
        %v5836 = vrot.slane %v5831, %v5835
        %v5837 = vlaneseq
        %v5838 = vshrl.u32 %v5837, 7
        %v5839 = vsub.s32 4, %v5838
        %v5840 = vrot.slane %v5831, %v5839
        %v5843 = vlaneseq
        %v5844 = vshrl.u32 %v5843, 7
        %v5845 = vsub.s32 0, %v5844
        %v5846 = vrot.slane %v5836, %v5845
        %v5847 = vlaneseq
        %v5848 = vshrl.u32 %v5847, 7
        %v5849 = vsub.s32 0, %v5848
        %v5850 = vrot.slane %v5840, %v5849
        %v5851 = vsub.f32 %v224, %v5846
        %v5852 = vsub.f32 %v224, %v5850
        %v5853 = vsub.f32 %v225, %v5846
        %v5854 = vsub.f32 %v225, %v5850
        %v5855 = vand.u32 2147483647, %v5851
        %v5856 = vand.u32 2147483647, %v5852
        %v5857 = vand.u32 2147483647, %v5853
        %v5858 = vand.u32 2147483647, %v5854
        %v5859 = vsub.f32 1.0, %v5855
        %v5860 = vsub.f32 1.0, %v5856
        %v5861 = vsub.f32 1.0, %v5857
        %v5862 = vsub.f32 1.0, %v5858
        %v5863 = vmax.f32 %v5859, 0.0
        %v5864 = vmax.f32 %v5860, 0.0
        %v5865 = vmax.f32 %v5861, 0.0
        %v5866 = vmax.f32 %v5862, 0.0
        %v5867 = vpack.c.bf16 %v5865, %v5863
        %v5868 = vpack.c.bf16 %v5866, %v5864
        %v5869 = vlaneseq
        %v5870 = vshrl.u32 %v5869, 7
        %v5871 = vsub.s32 1, %v5870
        %v5872 = vrot.slane %v5831, %v5871
        %v5873 = vlaneseq
        %v5874 = vshrl.u32 %v5873, 7
        %v5875 = vsub.s32 5, %v5874
        %v5876 = vrot.slane %v5831, %v5875
        %v5879 = vlaneseq
        %v5880 = vshrl.u32 %v5879, 7
        %v5881 = vsub.s32 1, %v5880
        %v5882 = vrot.slane %v5872, %v5881
        %v5883 = vlaneseq
        %v5884 = vshrl.u32 %v5883, 7
        %v5885 = vsub.s32 1, %v5884
        %v5886 = vrot.slane %v5876, %v5885
        %v5887 = vsub.f32 %v224, %v5882
        %v5888 = vsub.f32 %v224, %v5886
        %v5889 = vsub.f32 %v225, %v5882
        %v5890 = vsub.f32 %v225, %v5886
        %v5891 = vand.u32 2147483647, %v5887
        %v5892 = vand.u32 2147483647, %v5888
        %v5893 = vand.u32 2147483647, %v5889
        %v5894 = vand.u32 2147483647, %v5890
        %v5895 = vsub.f32 1.0, %v5891
        %v5896 = vsub.f32 1.0, %v5892
        %v5897 = vsub.f32 1.0, %v5893
        %v5898 = vsub.f32 1.0, %v5894
        %v5899 = vmax.f32 %v5895, 0.0
        %v5900 = vmax.f32 %v5896, 0.0
        %v5901 = vmax.f32 %v5897, 0.0
        %v5902 = vmax.f32 %v5898, 0.0
        %v5903 = vlaneseq
        %v5904 = vshrl.u32 %v5903, 7
        %v5905 = vsub.s32 2, %v5904
        %v5906 = vrot.slane %v5831, %v5905
        %v5907 = vlaneseq
        %v5908 = vshrl.u32 %v5907, 7
        %v5909 = vsub.s32 6, %v5908
        %v5910 = vrot.slane %v5831, %v5909
        %v5913 = vlaneseq
        %v5914 = vshrl.u32 %v5913, 7
        %v5915 = vsub.s32 2, %v5914
        %v5916 = vrot.slane %v5906, %v5915
        %v5917 = vlaneseq
        %v5918 = vshrl.u32 %v5917, 7
        %v5919 = vsub.s32 2, %v5918
        %v5920 = vrot.slane %v5910, %v5919
        %v5921 = vmul.f32 %v5899, %v5916
        %v5922 = vmul.f32 %v5900, %v5920
        %v5923 = vmul.f32 %v5901, %v5916
        %v5924 = vmul.f32 %v5902, %v5920
        %v5925 = vpack.c.bf16 %v5923, %v5921
        %v5926 = vpack.c.bf16 %v5924, %v5922
        %v5927 = vld [vmem:[%s208] sm:$0xf]
        %v5928 = vld [vmem:[%s208 + $0x4] sm:$0xf]
        %v5929 = vld [vmem:[%s208 + $0x8] sm:$0xf]
        %v5930 = vld [vmem:[%s208 + $0xc] sm:$0xf]
        %v5931 = vld [vmem:[%s208 + $0x10] sm:$0xf]
        %v5932 = vld [vmem:[%s208 + $0x14] sm:$0xf]
        %v5933 = vld [vmem:[%s208 + $0x18] sm:$0xf]
        %v5934 = vld [vmem:[%s208 + $0x1c] sm:$0xf]
        %v5935 = vld [vmem:[%s208 + $0x20] sm:$0xf]
        %v5936 = vld [vmem:[%s208 + $0x24] sm:$0xf]
        %v5937 = vld [vmem:[%s208 + $0x28] sm:$0xf]
        %v5938 = vld [vmem:[%s208 + $0x2c] sm:$0xf]
        %v5939 = vld [vmem:[%s208 + $0x30] sm:$0xf]
        %v5940 = vld [vmem:[%s208 + $0x34] sm:$0xf]
        %v5941 = vld [vmem:[%s208 + $0x38] sm:$0xf]
        %v5942 = vld [vmem:[%s208 + $0x3c] sm:$0xf]
        %v5943 = vld [vmem:[%s208 + $0x40] sm:$0xf]
        %v5944 = vld [vmem:[%s208 + $0x44] sm:$0xf]
        %v5945 = vld [vmem:[%s208 + $0x48] sm:$0xf]
        %v5946 = vld [vmem:[%s208 + $0x4c] sm:$0xf]
        %v5947 = vld [vmem:[%s208 + $0x50] sm:$0xf]
        %v5948 = vld [vmem:[%s208 + $0x54] sm:$0xf]
        %v5949 = vld [vmem:[%s208 + $0x58] sm:$0xf]
        %v5950 = vld [vmem:[%s208 + $0x5c] sm:$0xf]
        %v5951 = vld [vmem:[%s208 + $0x60] sm:$0xf]
        %v5952 = vld [vmem:[%s208 + $0x64] sm:$0xf]
        %v5953 = vld [vmem:[%s208 + $0x68] sm:$0xf]
        %v5954 = vld [vmem:[%s208 + $0x6c] sm:$0xf]
        %v5955 = vld [vmem:[%s208 + $0x70] sm:$0xf]
        %v5956 = vld [vmem:[%s208 + $0x74] sm:$0xf]
        %v5957 = vld [vmem:[%s208 + $0x78] sm:$0xf]
        %v5958 = vld [vmem:[%s208 + $0x7c] sm:$0xf]
        %v5991 = vunpack.c.l.b16 %v5927
        %v5992 = vunpack.c.l.b16 %v5928
        %v5993 = vunpack.c.l.b16 %v5929
        %v5994 = vunpack.c.l.b16 %v5930
        %v5995 = vunpack.c.l.b16 %v5931
        %v5996 = vunpack.c.l.b16 %v5932
        %v5997 = vunpack.c.l.b16 %v5933
        %v5998 = vunpack.c.l.b16 %v5934
        %v5999 = vunpack.c.l.b16 %v5935
        %v6000 = vunpack.c.l.b16 %v5936
        %v6001 = vunpack.c.l.b16 %v5937
        %v6002 = vunpack.c.l.b16 %v5938
        %v6003 = vunpack.c.l.b16 %v5939
        %v6004 = vunpack.c.l.b16 %v5940
        %v6005 = vunpack.c.l.b16 %v5941
        %v6006 = vunpack.c.l.b16 %v5942
        %v6007 = vunpack.c.l.b16 %v5943
        %v6008 = vunpack.c.l.b16 %v5944
        %v6009 = vunpack.c.l.b16 %v5945
        %v6010 = vunpack.c.l.b16 %v5946
        %v6011 = vunpack.c.l.b16 %v5947
        %v6012 = vunpack.c.l.b16 %v5948
        %v6013 = vunpack.c.l.b16 %v5949
        %v6014 = vunpack.c.l.b16 %v5950
        %v6015 = vunpack.c.l.b16 %v5951
        %v6016 = vunpack.c.l.b16 %v5952
        %v6017 = vunpack.c.l.b16 %v5953
        %v6018 = vunpack.c.l.b16 %v5954
        %v6019 = vunpack.c.l.b16 %v5955
        %v6020 = vunpack.c.l.b16 %v5956
        %v6021 = vunpack.c.l.b16 %v5957
        %v6022 = vunpack.c.l.b16 %v5958
        %v6023 = vpack.c.b16 %v5992, %v5991
        %v6024 = vpack.c.b16 %v5994, %v5993
        %v6025 = vpack.c.b16 %v5996, %v5995
        %v6026 = vpack.c.b16 %v5998, %v5997
        %v6027 = vpack.c.b16 %v6000, %v5999
        %v6028 = vpack.c.b16 %v6002, %v6001
        %v6029 = vpack.c.b16 %v6004, %v6003
        %v6030 = vpack.c.b16 %v6006, %v6005
        %v6031 = vpack.c.b16 %v6008, %v6007
        %v6032 = vpack.c.b16 %v6010, %v6009
        %v6033 = vpack.c.b16 %v6012, %v6011
        %v6034 = vpack.c.b16 %v6014, %v6013
        %v6035 = vpack.c.b16 %v6016, %v6015
        %v6036 = vpack.c.b16 %v6018, %v6017
        %v6037 = vpack.c.b16 %v6020, %v6019
        %v6038 = vpack.c.b16 %v6022, %v6021
        %v6040 = vsel %vm434, %v6023, 0
        %v6043 = vsel %vm434, %v6024, 0
        %v6046 = vsel %vm434, %v6025, 0
        %v6049 = vsel %vm434, %v6026, 0
        %v6052 = vsel %vm434, %v6027, 0
        %v6055 = vsel %vm434, %v6028, 0
        %v6058 = vsel %vm434, %v6029, 0
        %v6061 = vsel %vm434, %v6030, 0
        %v6064 = vsel %vm434, %v6031, 0
        %v6067 = vsel %vm434, %v6032, 0
        %v6070 = vsel %vm434, %v6033, 0
        %v6073 = vsel %vm434, %v6034, 0
        %v6076 = vsel %vm434, %v6035, 0
        %v6079 = vsel %vm434, %v6036, 0
        %v6082 = vsel %vm434, %v6037, 0
        %v6085 = vsel %vm434, %v6038, 0
        %6087 = vmatprep.subr.bf16.mxu0 %v5868
        %6088 = vmatpush1.bf16.msra.mxu0 %v5867
        %6089 = vmatprep.subr.bf16.mxu0 0
        %6090 = vmatpush1.bf16.msra.mxu0 0
        %6091 = vmatprep.subr.bf16.mxu0 0
        %6092 = vmatpush1.bf16.msra.mxu0 0
        %6093 = vmatprep.subr.bf16.mxu0 0
        %6094 = vmatpush1.bf16.msra.mxu0 0
        %6095 = vmatprep.subr.bf16.mxu0 0
        %6096 = vmatpush1.bf16.msra.mxu0 0
        %6097 = vmatprep.subr.bf16.mxu0 0
        %6098 = vmatpush1.bf16.msra.mxu0 0
        %6099 = vmatprep.subr.bf16.mxu0 0
        %6100 = vmatpush1.bf16.msra.mxu0 0
        %6101 = vmatprep.subr.bf16.mxu0 0
        %6102 = vmatpush1.bf16.msra.mxu0 0
        %6103 = vmatprep.subr.bf16.mxu0 0
        %6104 = vmatpush1.bf16.msra.mxu0 0
        %6105 = vmatprep.subr.bf16.mxu0 0
        %6106 = vmatpush1.bf16.msra.mxu0 0
        %6107 = vmatprep.subr.bf16.mxu0 0
        %6108 = vmatpush1.bf16.msra.mxu0 0
        %6109 = vmatprep.subr.bf16.mxu0 0
        %6110 = vmatpush1.bf16.msra.mxu0 0
        %6111 = vmatprep.subr.bf16.mxu0 0
        %6112 = vmatpush1.bf16.msra.mxu0 0
        %6113 = vmatprep.subr.bf16.mxu0 0
        %6114 = vmatpush1.bf16.msra.mxu0 0
        %6115 = vmatprep.subr.bf16.mxu0 0
        %6116 = vmatpush1.bf16.msra.mxu0 0
        %6117 = vmatprep.subr.bf16.mxu0 0
        %6118 = vmatpush1.bf16.msra.mxu0 0
        %6119 = vmatprep.mubr.bf16.mxu0 0
        %6120 = vmatmul.mubr.bf16.gmra.mrb[0].mxu0 %v6040
        %v6121 = vpop.f32.mrb[0].mxu0
        %v6122 = vadd.f32 0.0, %v6121
        %v6123 = vpop.f32.mrb[0].mxu0
        %v6124 = vadd.f32 0.0, %v6123
        %v6125 = vpop.f32.mrb[0].mxu0
        %v6126 = vadd.f32 0.0, %v6125
        %v6127 = vpop.f32.mrb[0].mxu0
        %v6128 = vadd.f32 0.0, %v6127
        %6129 = vmatprep.mubr.bf16.mxu0 0
        %6130 = vmatmul.mubr.bf16.gmra.mrb[0].mxu0 %v6043
        %v6131 = vpop.f32.mrb[0].mxu0
        %v6132 = vadd.f32 0.0, %v6131
        %v6133 = vpop.f32.mrb[0].mxu0
        %v6134 = vadd.f32 0.0, %v6133
        %v6135 = vpop.f32.mrb[0].mxu0
        %v6136 = vadd.f32 0.0, %v6135
        %v6137 = vpop.f32.mrb[0].mxu0
        %v6138 = vadd.f32 0.0, %v6137
        %6139 = vmatprep.mubr.bf16.mxu0 0
        %6140 = vmatmul.mubr.bf16.gmra.mrb[0].mxu0 %v6046
        %v6141 = vpop.f32.mrb[0].mxu0
        %v6142 = vadd.f32 0.0, %v6141
        %v6143 = vpop.f32.mrb[0].mxu0
        %v6144 = vadd.f32 0.0, %v6143
        %v6145 = vpop.f32.mrb[0].mxu0
        %v6146 = vadd.f32 0.0, %v6145
        %v6147 = vpop.f32.mrb[0].mxu0
        %v6148 = vadd.f32 0.0, %v6147
        %6149 = vmatprep.mubr.bf16.mxu0 0
        %6150 = vmatmul.mubr.bf16.gmra.mrb[0].mxu0 %v6049
        %v6151 = vpop.f32.mrb[0].mxu0
        %v6152 = vadd.f32 0.0, %v6151
        %v6153 = vpop.f32.mrb[0].mxu0
        %v6154 = vadd.f32 0.0, %v6153
        %v6155 = vpop.f32.mrb[0].mxu0
        %v6156 = vadd.f32 0.0, %v6155
        %v6157 = vpop.f32.mrb[0].mxu0
        %v6158 = vadd.f32 0.0, %v6157
        %6159 = vmatprep.mubr.bf16.mxu0 0
        %6160 = vmatmul.mubr.bf16.gmra.mrb[0].mxu0 %v6052
        %v6161 = vpop.f32.mrb[0].mxu0
        %v6162 = vadd.f32 0.0, %v6161
        %v6163 = vpop.f32.mrb[0].mxu0
        %v6164 = vadd.f32 0.0, %v6163
        %v6165 = vpop.f32.mrb[0].mxu0
        %v6166 = vadd.f32 0.0, %v6165
        %v6167 = vpop.f32.mrb[0].mxu0
        %v6168 = vadd.f32 0.0, %v6167
        %6169 = vmatprep.mubr.bf16.mxu0 0
        %6170 = vmatmul.mubr.bf16.gmra.mrb[0].mxu0 %v6055
        %v6171 = vpop.f32.mrb[0].mxu0
        %v6172 = vadd.f32 0.0, %v6171
        %v6173 = vpop.f32.mrb[0].mxu0
        %v6174 = vadd.f32 0.0, %v6173
        %v6175 = vpop.f32.mrb[0].mxu0
        %v6176 = vadd.f32 0.0, %v6175
        %v6177 = vpop.f32.mrb[0].mxu0
        %v6178 = vadd.f32 0.0, %v6177
        %6179 = vmatprep.mubr.bf16.mxu0 0
        %6180 = vmatmul.mubr.bf16.gmra.mrb[0].mxu0 %v6058
        %v6181 = vpop.f32.mrb[0].mxu0
        %v6182 = vadd.f32 0.0, %v6181
        %v6183 = vpop.f32.mrb[0].mxu0
        %v6184 = vadd.f32 0.0, %v6183
        %v6185 = vpop.f32.mrb[0].mxu0
        %v6186 = vadd.f32 0.0, %v6185
        %v6187 = vpop.f32.mrb[0].mxu0
        %v6188 = vadd.f32 0.0, %v6187
        %6189 = vmatprep.mubr.bf16.mxu0 0
        %6190 = vmatmul.mubr.bf16.gmra.mrb[0].mxu0 %v6061
        %v6191 = vpop.f32.mrb[0].mxu0
        %v6192 = vadd.f32 0.0, %v6191
        %v6193 = vpop.f32.mrb[0].mxu0
        %v6194 = vadd.f32 0.0, %v6193
        %v6195 = vpop.f32.mrb[0].mxu0
        %v6196 = vadd.f32 0.0, %v6195
        %v6197 = vpop.f32.mrb[0].mxu0
        %v6198 = vadd.f32 0.0, %v6197
        %6199 = vmatprep.mubr.bf16.mxu0 0
        %6200 = vmatmul.mubr.bf16.gmra.mrb[0].mxu0 %v6064
        %v6201 = vpop.f32.mrb[0].mxu0
        %v6202 = vadd.f32 0.0, %v6201
        %v6203 = vpop.f32.mrb[0].mxu0
        %v6204 = vadd.f32 0.0, %v6203
        %v6205 = vpop.f32.mrb[0].mxu0
        %v6206 = vadd.f32 0.0, %v6205
        %v6207 = vpop.f32.mrb[0].mxu0
        %v6208 = vadd.f32 0.0, %v6207
        %6209 = vmatprep.mubr.bf16.mxu0 0
        %6210 = vmatmul.mubr.bf16.gmra.mrb[0].mxu0 %v6067
        %v6211 = vpop.f32.mrb[0].mxu0
        %v6212 = vadd.f32 0.0, %v6211
        %v6213 = vpop.f32.mrb[0].mxu0
        %v6214 = vadd.f32 0.0, %v6213
        %v6215 = vpop.f32.mrb[0].mxu0
        %v6216 = vadd.f32 0.0, %v6215
        %v6217 = vpop.f32.mrb[0].mxu0
        %v6218 = vadd.f32 0.0, %v6217
        %6219 = vmatprep.mubr.bf16.mxu0 0
        %6220 = vmatmul.mubr.bf16.gmra.mrb[0].mxu0 %v6070
        %v6221 = vpop.f32.mrb[0].mxu0
        %v6222 = vadd.f32 0.0, %v6221
        %v6223 = vpop.f32.mrb[0].mxu0
        %v6224 = vadd.f32 0.0, %v6223
        %v6225 = vpop.f32.mrb[0].mxu0
        %v6226 = vadd.f32 0.0, %v6225
        %v6227 = vpop.f32.mrb[0].mxu0
        %v6228 = vadd.f32 0.0, %v6227
        %6229 = vmatprep.mubr.bf16.mxu0 0
        %6230 = vmatmul.mubr.bf16.gmra.mrb[0].mxu0 %v6073
        %v6231 = vpop.f32.mrb[0].mxu0
        %v6232 = vadd.f32 0.0, %v6231
        %v6233 = vpop.f32.mrb[0].mxu0
        %v6234 = vadd.f32 0.0, %v6233
        %v6235 = vpop.f32.mrb[0].mxu0
        %v6236 = vadd.f32 0.0, %v6235
        %v6237 = vpop.f32.mrb[0].mxu0
        %v6238 = vadd.f32 0.0, %v6237
        %6239 = vmatprep.mubr.bf16.mxu0 0
        %6240 = vmatmul.mubr.bf16.gmra.mrb[0].mxu0 %v6076
        %v6241 = vpop.f32.mrb[0].mxu0
        %v6242 = vadd.f32 0.0, %v6241
        %v6243 = vpop.f32.mrb[0].mxu0
        %v6244 = vadd.f32 0.0, %v6243
        %v6245 = vpop.f32.mrb[0].mxu0
        %v6246 = vadd.f32 0.0, %v6245
        %v6247 = vpop.f32.mrb[0].mxu0
        %v6248 = vadd.f32 0.0, %v6247
        %6249 = vmatprep.mubr.bf16.mxu0 0
        %6250 = vmatmul.mubr.bf16.gmra.mrb[0].mxu0 %v6079
        %v6251 = vpop.f32.mrb[0].mxu0
        %v6252 = vadd.f32 0.0, %v6251
        %v6253 = vpop.f32.mrb[0].mxu0
        %v6254 = vadd.f32 0.0, %v6253
        %v6255 = vpop.f32.mrb[0].mxu0
        %v6256 = vadd.f32 0.0, %v6255
        %v6257 = vpop.f32.mrb[0].mxu0
        %v6258 = vadd.f32 0.0, %v6257
        %6259 = vmatprep.mubr.bf16.mxu0 0
        %6260 = vmatmul.mubr.bf16.gmra.mrb[0].mxu0 %v6082
        %v6261 = vpop.f32.mrb[0].mxu0
        %v6262 = vadd.f32 0.0, %v6261
        %v6263 = vpop.f32.mrb[0].mxu0
        %v6264 = vadd.f32 0.0, %v6263
        %v6265 = vpop.f32.mrb[0].mxu0
        %v6266 = vadd.f32 0.0, %v6265
        %v6267 = vpop.f32.mrb[0].mxu0
        %v6268 = vadd.f32 0.0, %v6267
        %6269 = vmatprep.mubr.bf16.mxu0 0
        %6270 = vmatmul.mubr.bf16.gmra.mrb[0].mxu0 %v6085
        %v6271 = vpop.f32.mrb[0].mxu0
        %v6272 = vadd.f32 0.0, %v6271
        %v6273 = vpop.f32.mrb[0].mxu0
        %v6274 = vadd.f32 0.0, %v6273
        %v6275 = vpop.f32.mrb[0].mxu0
        %v6276 = vadd.f32 0.0, %v6275
        %v6277 = vpop.f32.mrb[0].mxu0
        %v6278 = vadd.f32 0.0, %v6277
        %6279 = vdwg.mxu0
        %v6280 = vpack.c.bf16 %v6126, %v6122
        %v6281 = vpack.c.bf16 %v6128, %v6124
        %v6282 = vpack.c.bf16 %v6136, %v6132
        %v6283 = vpack.c.bf16 %v6138, %v6134
        %v6284 = vpack.c.bf16 %v6146, %v6142
        %v6285 = vpack.c.bf16 %v6148, %v6144
        %v6286 = vpack.c.bf16 %v6156, %v6152
        %v6287 = vpack.c.bf16 %v6158, %v6154
        %v6288 = vpack.c.bf16 %v6166, %v6162
        %v6289 = vpack.c.bf16 %v6168, %v6164
        %v6290 = vpack.c.bf16 %v6176, %v6172
        %v6291 = vpack.c.bf16 %v6178, %v6174
        %v6292 = vpack.c.bf16 %v6186, %v6182
        %v6293 = vpack.c.bf16 %v6188, %v6184
        %v6294 = vpack.c.bf16 %v6196, %v6192
        %v6295 = vpack.c.bf16 %v6198, %v6194
        %v6296 = vpack.c.bf16 %v6206, %v6202
        %v6297 = vpack.c.bf16 %v6208, %v6204
        %v6298 = vpack.c.bf16 %v6216, %v6212
        %v6299 = vpack.c.bf16 %v6218, %v6214
        %v6300 = vpack.c.bf16 %v6226, %v6222
        %v6301 = vpack.c.bf16 %v6228, %v6224
        %v6302 = vpack.c.bf16 %v6236, %v6232
        %v6303 = vpack.c.bf16 %v6238, %v6234
        %v6304 = vpack.c.bf16 %v6246, %v6242
        %v6305 = vpack.c.bf16 %v6248, %v6244
        %v6306 = vpack.c.bf16 %v6256, %v6252
        %v6307 = vpack.c.bf16 %v6258, %v6254
        %v6308 = vpack.c.bf16 %v6266, %v6262
        %v6309 = vpack.c.bf16 %v6268, %v6264
        %v6310 = vpack.c.bf16 %v6276, %v6272
        %v6311 = vpack.c.bf16 %v6278, %v6274
        %v6312 = vmul.bf16 %v6280, %v5925
        %v6313 = vmul.bf16 %v6281, %v5926
        %v6314 = vmul.bf16 %v6282, %v5925
        %v6315 = vmul.bf16 %v6283, %v5926
        %v6316 = vmul.bf16 %v6284, %v5925
        %v6317 = vmul.bf16 %v6285, %v5926
        %v6318 = vmul.bf16 %v6286, %v5925
        %v6319 = vmul.bf16 %v6287, %v5926
        %v6320 = vmul.bf16 %v6288, %v5925
        %v6321 = vmul.bf16 %v6289, %v5926
        %v6322 = vmul.bf16 %v6290, %v5925
        %v6323 = vmul.bf16 %v6291, %v5926
        %v6324 = vmul.bf16 %v6292, %v5925
        %v6325 = vmul.bf16 %v6293, %v5926
        %v6326 = vmul.bf16 %v6294, %v5925
        %v6327 = vmul.bf16 %v6295, %v5926
        %v6328 = vmul.bf16 %v6296, %v5925
        %v6329 = vmul.bf16 %v6297, %v5926
        %v6330 = vmul.bf16 %v6298, %v5925
        %v6331 = vmul.bf16 %v6299, %v5926
        %v6332 = vmul.bf16 %v6300, %v5925
        %v6333 = vmul.bf16 %v6301, %v5926
        %v6334 = vmul.bf16 %v6302, %v5925
        %v6335 = vmul.bf16 %v6303, %v5926
        %v6336 = vmul.bf16 %v6304, %v5925
        %v6337 = vmul.bf16 %v6305, %v5926
        %v6338 = vmul.bf16 %v6306, %v5925
        %v6339 = vmul.bf16 %v6307, %v5926
        %v6340 = vmul.bf16 %v6308, %v5925
        %v6341 = vmul.bf16 %v6309, %v5926
        %v6342 = vmul.bf16 %v6310, %v5925
        %v6343 = vmul.bf16 %v6311, %v5926
        %v6344 = vunpack.c.l.bf16 %v6312
        %v6345 = vunpack.c.l.bf16 %v6313
        %v6346 = vunpack.c.h.bf16 %v6312
        %v6347 = vunpack.c.h.bf16 %v6313
        %v6348 = vunpack.c.l.bf16 %v6314
        %v6349 = vunpack.c.l.bf16 %v6315
        %v6350 = vunpack.c.h.bf16 %v6314
        %v6351 = vunpack.c.h.bf16 %v6315
        %v6352 = vunpack.c.l.bf16 %v6316
        %v6353 = vunpack.c.l.bf16 %v6317
        %v6354 = vunpack.c.h.bf16 %v6316
        %v6355 = vunpack.c.h.bf16 %v6317
        %v6356 = vunpack.c.l.bf16 %v6318
        %v6357 = vunpack.c.l.bf16 %v6319
        %v6358 = vunpack.c.h.bf16 %v6318
        %v6359 = vunpack.c.h.bf16 %v6319
        %v6360 = vunpack.c.l.bf16 %v6320
        %v6361 = vunpack.c.l.bf16 %v6321
        %v6362 = vunpack.c.h.bf16 %v6320
        %v6363 = vunpack.c.h.bf16 %v6321
        %v6364 = vunpack.c.l.bf16 %v6322
        %v6365 = vunpack.c.l.bf16 %v6323
        %v6366 = vunpack.c.h.bf16 %v6322
        %v6367 = vunpack.c.h.bf16 %v6323
        %v6368 = vunpack.c.l.bf16 %v6324
        %v6369 = vunpack.c.l.bf16 %v6325
        %v6370 = vunpack.c.h.bf16 %v6324
        %v6371 = vunpack.c.h.bf16 %v6325
        %v6372 = vunpack.c.l.bf16 %v6326
        %v6373 = vunpack.c.l.bf16 %v6327
        %v6374 = vunpack.c.h.bf16 %v6326
        %v6375 = vunpack.c.h.bf16 %v6327
        %v6376 = vunpack.c.l.bf16 %v6328
        %v6377 = vunpack.c.l.bf16 %v6329
        %v6378 = vunpack.c.h.bf16 %v6328
        %v6379 = vunpack.c.h.bf16 %v6329
        %v6380 = vunpack.c.l.bf16 %v6330
        %v6381 = vunpack.c.l.bf16 %v6331
        %v6382 = vunpack.c.h.bf16 %v6330
        %v6383 = vunpack.c.h.bf16 %v6331
        %v6384 = vunpack.c.l.bf16 %v6332
        %v6385 = vunpack.c.l.bf16 %v6333
        %v6386 = vunpack.c.h.bf16 %v6332
        %v6387 = vunpack.c.h.bf16 %v6333
        %v6388 = vunpack.c.l.bf16 %v6334
        %v6389 = vunpack.c.l.bf16 %v6335
        %v6390 = vunpack.c.h.bf16 %v6334
        %v6391 = vunpack.c.h.bf16 %v6335
        %v6392 = vunpack.c.l.bf16 %v6336
        %v6393 = vunpack.c.l.bf16 %v6337
        %v6394 = vunpack.c.h.bf16 %v6336
        %v6395 = vunpack.c.h.bf16 %v6337
        %v6396 = vunpack.c.l.bf16 %v6338
        %v6397 = vunpack.c.l.bf16 %v6339
        %v6398 = vunpack.c.h.bf16 %v6338
        %v6399 = vunpack.c.h.bf16 %v6339
        %v6400 = vunpack.c.l.bf16 %v6340
        %v6401 = vunpack.c.l.bf16 %v6341
        %v6402 = vunpack.c.h.bf16 %v6340
        %v6403 = vunpack.c.h.bf16 %v6341
        %v6404 = vunpack.c.l.bf16 %v6342
        %v6405 = vunpack.c.l.bf16 %v6343
        %v6406 = vunpack.c.h.bf16 %v6342
        %v6407 = vunpack.c.h.bf16 %v6343
        %v6408 = vadd.f32 %v6344, %v6346
        %v6409 = vrot.slane %v6408, 4
        %v6410 = vadd.f32 %v6408, %v6409
        %v6411 = vrot.slane %v6410, 2
        %v6412 = vadd.f32 %v6410, %v6411
        %v6413 = vrot.slane %v6412, 1
        %v6414 = vadd.f32 %v6412, %v6413
        %v6415 = vadd.f32 %v6345, %v6347
        %v6416 = vrot.slane %v6415, 4
        %v6417 = vadd.f32 %v6415, %v6416
        %v6418 = vrot.slane %v6417, 2
        %v6419 = vadd.f32 %v6417, %v6418
        %v6420 = vrot.slane %v6419, 1
        %v6421 = vadd.f32 %v6419, %v6420
        %v6422 = vadd.f32 %v6348, %v6350
        %v6423 = vrot.slane %v6422, 4
        %v6424 = vadd.f32 %v6422, %v6423
        %v6425 = vrot.slane %v6424, 2
        %v6426 = vadd.f32 %v6424, %v6425
        %v6427 = vrot.slane %v6426, 1
        %v6428 = vadd.f32 %v6426, %v6427
        %v6429 = vadd.f32 %v6349, %v6351
        %v6430 = vrot.slane %v6429, 4
        %v6431 = vadd.f32 %v6429, %v6430
        %v6432 = vrot.slane %v6431, 2
        %v6433 = vadd.f32 %v6431, %v6432
        %v6434 = vrot.slane %v6433, 1
        %v6435 = vadd.f32 %v6433, %v6434
        %v6436 = vadd.f32 %v6352, %v6354
        %v6437 = vrot.slane %v6436, 4
        %v6438 = vadd.f32 %v6436, %v6437
        %v6439 = vrot.slane %v6438, 2
        %v6440 = vadd.f32 %v6438, %v6439
        %v6441 = vrot.slane %v6440, 1
        %v6442 = vadd.f32 %v6440, %v6441
        %v6443 = vadd.f32 %v6353, %v6355
        %v6444 = vrot.slane %v6443, 4
        %v6445 = vadd.f32 %v6443, %v6444
        %v6446 = vrot.slane %v6445, 2
        %v6447 = vadd.f32 %v6445, %v6446
        %v6448 = vrot.slane %v6447, 1
        %v6449 = vadd.f32 %v6447, %v6448
        %v6450 = vadd.f32 %v6356, %v6358
        %v6451 = vrot.slane %v6450, 4
        %v6452 = vadd.f32 %v6450, %v6451
        %v6453 = vrot.slane %v6452, 2
        %v6454 = vadd.f32 %v6452, %v6453
        %v6455 = vrot.slane %v6454, 1
        %v6456 = vadd.f32 %v6454, %v6455
        %v6457 = vadd.f32 %v6357, %v6359
        %v6458 = vrot.slane %v6457, 4
        %v6459 = vadd.f32 %v6457, %v6458
        %v6460 = vrot.slane %v6459, 2
        %v6461 = vadd.f32 %v6459, %v6460
        %v6462 = vrot.slane %v6461, 1
        %v6463 = vadd.f32 %v6461, %v6462
        %v6464 = vadd.f32 %v6360, %v6362
        %v6465 = vrot.slane %v6464, 4
        %v6466 = vadd.f32 %v6464, %v6465
        %v6467 = vrot.slane %v6466, 2
        %v6468 = vadd.f32 %v6466, %v6467
        %v6469 = vrot.slane %v6468, 1
        %v6470 = vadd.f32 %v6468, %v6469
        %v6471 = vadd.f32 %v6361, %v6363
        %v6472 = vrot.slane %v6471, 4
        %v6473 = vadd.f32 %v6471, %v6472
        %v6474 = vrot.slane %v6473, 2
        %v6475 = vadd.f32 %v6473, %v6474
        %v6476 = vrot.slane %v6475, 1
        %v6477 = vadd.f32 %v6475, %v6476
        %v6478 = vadd.f32 %v6364, %v6366
        %v6479 = vrot.slane %v6478, 4
        %v6480 = vadd.f32 %v6478, %v6479
        %v6481 = vrot.slane %v6480, 2
        %v6482 = vadd.f32 %v6480, %v6481
        %v6483 = vrot.slane %v6482, 1
        %v6484 = vadd.f32 %v6482, %v6483
        %v6485 = vadd.f32 %v6365, %v6367
        %v6486 = vrot.slane %v6485, 4
        %v6487 = vadd.f32 %v6485, %v6486
        %v6488 = vrot.slane %v6487, 2
        %v6489 = vadd.f32 %v6487, %v6488
        %v6490 = vrot.slane %v6489, 1
        %v6491 = vadd.f32 %v6489, %v6490
        %v6492 = vadd.f32 %v6368, %v6370
        %v6493 = vrot.slane %v6492, 4
        %v6494 = vadd.f32 %v6492, %v6493
        %v6495 = vrot.slane %v6494, 2
        %v6496 = vadd.f32 %v6494, %v6495
        %v6497 = vrot.slane %v6496, 1
        %v6498 = vadd.f32 %v6496, %v6497
        %v6499 = vadd.f32 %v6369, %v6371
        %v6500 = vrot.slane %v6499, 4
        %v6501 = vadd.f32 %v6499, %v6500
        %v6502 = vrot.slane %v6501, 2
        %v6503 = vadd.f32 %v6501, %v6502
        %v6504 = vrot.slane %v6503, 1
        %v6505 = vadd.f32 %v6503, %v6504
        %v6506 = vadd.f32 %v6372, %v6374
        %v6507 = vrot.slane %v6506, 4
        %v6508 = vadd.f32 %v6506, %v6507
        %v6509 = vrot.slane %v6508, 2
        %v6510 = vadd.f32 %v6508, %v6509
        %v6511 = vrot.slane %v6510, 1
        %v6512 = vadd.f32 %v6510, %v6511
        %v6513 = vadd.f32 %v6373, %v6375
        %v6514 = vrot.slane %v6513, 4
        %v6515 = vadd.f32 %v6513, %v6514
        %v6516 = vrot.slane %v6515, 2
        %v6517 = vadd.f32 %v6515, %v6516
        %v6518 = vrot.slane %v6517, 1
        %v6519 = vadd.f32 %v6517, %v6518
        %v6520 = vadd.f32 %v6376, %v6378
        %v6521 = vrot.slane %v6520, 4
        %v6522 = vadd.f32 %v6520, %v6521
        %v6523 = vrot.slane %v6522, 2
        %v6524 = vadd.f32 %v6522, %v6523
        %v6525 = vrot.slane %v6524, 1
        %v6526 = vadd.f32 %v6524, %v6525
        %v6527 = vadd.f32 %v6377, %v6379
        %v6528 = vrot.slane %v6527, 4
        %v6529 = vadd.f32 %v6527, %v6528
        %v6530 = vrot.slane %v6529, 2
        %v6531 = vadd.f32 %v6529, %v6530
        %v6532 = vrot.slane %v6531, 1
        %v6533 = vadd.f32 %v6531, %v6532
        %v6534 = vadd.f32 %v6380, %v6382
        %v6535 = vrot.slane %v6534, 4
        %v6536 = vadd.f32 %v6534, %v6535
        %v6537 = vrot.slane %v6536, 2
        %v6538 = vadd.f32 %v6536, %v6537
        %v6539 = vrot.slane %v6538, 1
        %v6540 = vadd.f32 %v6538, %v6539
        %v6541 = vadd.f32 %v6381, %v6383
        %v6542 = vrot.slane %v6541, 4
        %v6543 = vadd.f32 %v6541, %v6542
        %v6544 = vrot.slane %v6543, 2
        %v6545 = vadd.f32 %v6543, %v6544
        %v6546 = vrot.slane %v6545, 1
        %v6547 = vadd.f32 %v6545, %v6546
        %v6548 = vadd.f32 %v6384, %v6386
        %v6549 = vrot.slane %v6548, 4
        %v6550 = vadd.f32 %v6548, %v6549
        %v6551 = vrot.slane %v6550, 2
        %v6552 = vadd.f32 %v6550, %v6551
        %v6553 = vrot.slane %v6552, 1
        %v6554 = vadd.f32 %v6552, %v6553
        %v6555 = vadd.f32 %v6385, %v6387
        %v6556 = vrot.slane %v6555, 4
        %v6557 = vadd.f32 %v6555, %v6556
        %v6558 = vrot.slane %v6557, 2
        %v6559 = vadd.f32 %v6557, %v6558
        %v6560 = vrot.slane %v6559, 1
        %v6561 = vadd.f32 %v6559, %v6560
        %v6562 = vadd.f32 %v6388, %v6390
        %v6563 = vrot.slane %v6562, 4
        %v6564 = vadd.f32 %v6562, %v6563
        %v6565 = vrot.slane %v6564, 2
        %v6566 = vadd.f32 %v6564, %v6565
        %v6567 = vrot.slane %v6566, 1
        %v6568 = vadd.f32 %v6566, %v6567
        %v6569 = vadd.f32 %v6389, %v6391
        %v6570 = vrot.slane %v6569, 4
        %v6571 = vadd.f32 %v6569, %v6570
        %v6572 = vrot.slane %v6571, 2
        %v6573 = vadd.f32 %v6571, %v6572
        %v6574 = vrot.slane %v6573, 1
        %v6575 = vadd.f32 %v6573, %v6574
        %v6576 = vadd.f32 %v6392, %v6394
        %v6577 = vrot.slane %v6576, 4
        %v6578 = vadd.f32 %v6576, %v6577
        %v6579 = vrot.slane %v6578, 2
        %v6580 = vadd.f32 %v6578, %v6579
        %v6581 = vrot.slane %v6580, 1
        %v6582 = vadd.f32 %v6580, %v6581
        %v6583 = vadd.f32 %v6393, %v6395
        %v6584 = vrot.slane %v6583, 4
        %v6585 = vadd.f32 %v6583, %v6584
        %v6586 = vrot.slane %v6585, 2
        %v6587 = vadd.f32 %v6585, %v6586
        %v6588 = vrot.slane %v6587, 1
        %v6589 = vadd.f32 %v6587, %v6588
        %v6590 = vadd.f32 %v6396, %v6398
        %v6591 = vrot.slane %v6590, 4
        %v6592 = vadd.f32 %v6590, %v6591
        %v6593 = vrot.slane %v6592, 2
        %v6594 = vadd.f32 %v6592, %v6593
        %v6595 = vrot.slane %v6594, 1
        %v6596 = vadd.f32 %v6594, %v6595
        %v6597 = vadd.f32 %v6397, %v6399
        %v6598 = vrot.slane %v6597, 4
        %v6599 = vadd.f32 %v6597, %v6598
        %v6600 = vrot.slane %v6599, 2
        %v6601 = vadd.f32 %v6599, %v6600
        %v6602 = vrot.slane %v6601, 1
        %v6603 = vadd.f32 %v6601, %v6602
        %v6604 = vadd.f32 %v6400, %v6402
        %v6605 = vrot.slane %v6604, 4
        %v6606 = vadd.f32 %v6604, %v6605
        %v6607 = vrot.slane %v6606, 2
        %v6608 = vadd.f32 %v6606, %v6607
        %v6609 = vrot.slane %v6608, 1
        %v6610 = vadd.f32 %v6608, %v6609
        %v6611 = vadd.f32 %v6401, %v6403
        %v6612 = vrot.slane %v6611, 4
        %v6613 = vadd.f32 %v6611, %v6612
        %v6614 = vrot.slane %v6613, 2
        %v6615 = vadd.f32 %v6613, %v6614
        %v6616 = vrot.slane %v6615, 1
        %v6617 = vadd.f32 %v6615, %v6616
        %v6618 = vadd.f32 %v6404, %v6406
        %v6619 = vrot.slane %v6618, 4
        %v6620 = vadd.f32 %v6618, %v6619
        %v6621 = vrot.slane %v6620, 2
        %v6622 = vadd.f32 %v6620, %v6621
        %v6623 = vrot.slane %v6622, 1
        %v6624 = vadd.f32 %v6622, %v6623
        %v6625 = vadd.f32 %v6405, %v6407
        %v6626 = vrot.slane %v6625, 4
        %v6627 = vadd.f32 %v6625, %v6626
        %v6628 = vrot.slane %v6627, 2
        %v6629 = vadd.f32 %v6627, %v6628
        %v6630 = vrot.slane %v6629, 1
        %v6631 = vadd.f32 %v6629, %v6630
        %v6632 = vpack.c.bf16 %v6414, %v6414
        %v6633 = vpack.c.bf16 %v6421, %v6421
        %v6634 = vpack.c.bf16 %v6428, %v6428
        %v6635 = vpack.c.bf16 %v6435, %v6435
        %v6636 = vpack.c.bf16 %v6442, %v6442
        %v6637 = vpack.c.bf16 %v6449, %v6449
        %v6638 = vpack.c.bf16 %v6456, %v6456
        %v6639 = vpack.c.bf16 %v6463, %v6463
        %v6640 = vpack.c.bf16 %v6470, %v6470
        %v6641 = vpack.c.bf16 %v6477, %v6477
        %v6642 = vpack.c.bf16 %v6484, %v6484
        %v6643 = vpack.c.bf16 %v6491, %v6491
        %v6644 = vpack.c.bf16 %v6498, %v6498
        %v6645 = vpack.c.bf16 %v6505, %v6505
        %v6646 = vpack.c.bf16 %v6512, %v6512
        %v6647 = vpack.c.bf16 %v6519, %v6519
        %v6648 = vpack.c.bf16 %v6526, %v6526
        %v6649 = vpack.c.bf16 %v6533, %v6533
        %v6650 = vpack.c.bf16 %v6540, %v6540
        %v6651 = vpack.c.bf16 %v6547, %v6547
        %v6652 = vpack.c.bf16 %v6554, %v6554
        %v6653 = vpack.c.bf16 %v6561, %v6561
        %v6654 = vpack.c.bf16 %v6568, %v6568
        %v6655 = vpack.c.bf16 %v6575, %v6575
        %v6656 = vpack.c.bf16 %v6582, %v6582
        %v6657 = vpack.c.bf16 %v6589, %v6589
        %v6658 = vpack.c.bf16 %v6596, %v6596
        %v6659 = vpack.c.bf16 %v6603, %v6603
        %v6660 = vpack.c.bf16 %v6610, %v6610
        %v6661 = vpack.c.bf16 %v6617, %v6617
        %v6662 = vpack.c.bf16 %v6624, %v6624
        %v6663 = vpack.c.bf16 %v6631, %v6631
        %v6696 = vunpack.c.l.b16 %v6632
        %v6697 = vunpack.c.l.b16 %v6633
        %v6698 = vunpack.c.l.b16 %v6634
        %v6699 = vunpack.c.l.b16 %v6635
        %v6700 = vunpack.c.l.b16 %v6636
        %v6701 = vunpack.c.l.b16 %v6637
        %v6702 = vunpack.c.l.b16 %v6638
        %v6703 = vunpack.c.l.b16 %v6639
        %v6704 = vunpack.c.l.b16 %v6640
        %v6705 = vunpack.c.l.b16 %v6641
        %v6706 = vunpack.c.l.b16 %v6642
        %v6707 = vunpack.c.l.b16 %v6643
        %v6708 = vunpack.c.l.b16 %v6644
        %v6709 = vunpack.c.l.b16 %v6645
        %v6710 = vunpack.c.l.b16 %v6646
        %v6711 = vunpack.c.l.b16 %v6647
        %v6712 = vunpack.c.l.b16 %v6648
        %v6713 = vunpack.c.l.b16 %v6649
        %v6714 = vunpack.c.l.b16 %v6650
        %v6715 = vunpack.c.l.b16 %v6651
        %v6716 = vunpack.c.l.b16 %v6652
        %v6717 = vunpack.c.l.b16 %v6653
        %v6718 = vunpack.c.l.b16 %v6654
        %v6719 = vunpack.c.l.b16 %v6655
        %v6720 = vunpack.c.l.b16 %v6656
        %v6721 = vunpack.c.l.b16 %v6657
        %v6722 = vunpack.c.l.b16 %v6658
        %v6723 = vunpack.c.l.b16 %v6659
        %v6724 = vunpack.c.l.b16 %v6660
        %v6725 = vunpack.c.l.b16 %v6661
        %v6726 = vunpack.c.l.b16 %v6662
        %v6727 = vunpack.c.l.b16 %v6663
        %v6728 = vsel %vm1124, %v6698, %v6696
        %v6729 = vsel %vm1126, %v6700, %v6728
        %v6730 = vsel %vm1128, %v6702, %v6729
        %v6731 = vsel %vm1130, %v6704, %v6730
        %v6732 = vsel %vm1132, %v6706, %v6731
        %v6733 = vsel %vm1134, %v6708, %v6732
        %v6734 = vsel %vm1136, %v6710, %v6733
        %v6735 = vsel %vm1124, %v6699, %v6697
        %v6736 = vsel %vm1126, %v6701, %v6735
        %v6737 = vsel %vm1128, %v6703, %v6736
        %v6738 = vsel %vm1130, %v6705, %v6737
        %v6739 = vsel %vm1132, %v6707, %v6738
        %v6740 = vsel %vm1134, %v6709, %v6739
        %v6741 = vsel %vm1136, %v6711, %v6740
        %v6742 = vsel %vm1124, %v6714, %v6712
        %v6743 = vsel %vm1126, %v6716, %v6742
        %v6744 = vsel %vm1128, %v6718, %v6743
        %v6745 = vsel %vm1130, %v6720, %v6744
        %v6746 = vsel %vm1132, %v6722, %v6745
        %v6747 = vsel %vm1134, %v6724, %v6746
        %v6748 = vsel %vm1136, %v6726, %v6747
        %v6749 = vsel %vm1124, %v6715, %v6713
        %v6750 = vsel %vm1126, %v6717, %v6749
        %v6751 = vsel %vm1128, %v6719, %v6750
        %v6752 = vsel %vm1130, %v6721, %v6751
        %v6753 = vsel %vm1132, %v6723, %v6752
        %v6754 = vsel %vm1134, %v6725, %v6753
        %v6755 = vsel %vm1136, %v6727, %v6754
        %v6756 = vpack.c.b16 %v6748, %v6734
        %v6757 = vpack.c.b16 %v6755, %v6741
        %s6760 = scalar_lea.vmem [#allocation2], 96
        %6761 = vst [vmem:[%s6760] sm:$0xff] %v6756
        %6762 = vst [vmem:[%s6760 + $0x8] sm:$0xff] %v6757
        %s6763 = scalar_lea.vmem %s217, 56
        %v6764 = vld [vmem:[%s6763] sm:$0x77]
        %v6766 = vlaneseq
        %v6767 = vshrl.u32 %v6766, 7
        %v6768 = vsub.s32 0, %v6767
        %v6769 = vrot.slane %v6764, %v6768
        %v6770 = vlaneseq
        %v6771 = vshrl.u32 %v6770, 7
        %v6772 = vsub.s32 4, %v6771
        %v6773 = vrot.slane %v6764, %v6772
        %v6776 = vlaneseq
        %v6777 = vshrl.u32 %v6776, 7
        %v6778 = vsub.s32 0, %v6777
        %v6779 = vrot.slane %v6769, %v6778
        %v6780 = vlaneseq
        %v6781 = vshrl.u32 %v6780, 7
        %v6782 = vsub.s32 0, %v6781
        %v6783 = vrot.slane %v6773, %v6782
        %v6784 = vsub.f32 %v224, %v6779
        %v6785 = vsub.f32 %v224, %v6783
        %v6786 = vsub.f32 %v225, %v6779
        %v6787 = vsub.f32 %v225, %v6783
        %v6788 = vand.u32 2147483647, %v6784
        %v6789 = vand.u32 2147483647, %v6785
        %v6790 = vand.u32 2147483647, %v6786
        %v6791 = vand.u32 2147483647, %v6787
        %v6792 = vsub.f32 1.0, %v6788
        %v6793 = vsub.f32 1.0, %v6789
        %v6794 = vsub.f32 1.0, %v6790
        %v6795 = vsub.f32 1.0, %v6791
        %v6796 = vmax.f32 %v6792, 0.0
        %v6797 = vmax.f32 %v6793, 0.0
        %v6798 = vmax.f32 %v6794, 0.0
        %v6799 = vmax.f32 %v6795, 0.0
        %v6800 = vpack.c.bf16 %v6798, %v6796
        %v6801 = vpack.c.bf16 %v6799, %v6797
        %v6802 = vlaneseq
        %v6803 = vshrl.u32 %v6802, 7
        %v6804 = vsub.s32 1, %v6803
        %v6805 = vrot.slane %v6764, %v6804
        %v6806 = vlaneseq
        %v6807 = vshrl.u32 %v6806, 7
        %v6808 = vsub.s32 5, %v6807
        %v6809 = vrot.slane %v6764, %v6808
        %v6812 = vlaneseq
        %v6813 = vshrl.u32 %v6812, 7
        %v6814 = vsub.s32 1, %v6813
        %v6815 = vrot.slane %v6805, %v6814
        %v6816 = vlaneseq
        %v6817 = vshrl.u32 %v6816, 7
        %v6818 = vsub.s32 1, %v6817
        %v6819 = vrot.slane %v6809, %v6818
        %v6820 = vsub.f32 %v224, %v6815
        %v6821 = vsub.f32 %v224, %v6819
        %v6822 = vsub.f32 %v225, %v6815
        %v6823 = vsub.f32 %v225, %v6819
        %v6824 = vand.u32 2147483647, %v6820
        %v6825 = vand.u32 2147483647, %v6821
        %v6826 = vand.u32 2147483647, %v6822
        %v6827 = vand.u32 2147483647, %v6823
        %v6828 = vsub.f32 1.0, %v6824
        %v6829 = vsub.f32 1.0, %v6825
        %v6830 = vsub.f32 1.0, %v6826
        %v6831 = vsub.f32 1.0, %v6827
        %v6832 = vmax.f32 %v6828, 0.0
        %v6833 = vmax.f32 %v6829, 0.0
        %v6834 = vmax.f32 %v6830, 0.0
        %v6835 = vmax.f32 %v6831, 0.0
        %v6836 = vlaneseq
        %v6837 = vshrl.u32 %v6836, 7
        %v6838 = vsub.s32 2, %v6837
        %v6839 = vrot.slane %v6764, %v6838
        %v6840 = vlaneseq
        %v6841 = vshrl.u32 %v6840, 7
        %v6842 = vsub.s32 6, %v6841
        %v6843 = vrot.slane %v6764, %v6842
        %v6846 = vlaneseq
        %v6847 = vshrl.u32 %v6846, 7
        %v6848 = vsub.s32 2, %v6847
        %v6849 = vrot.slane %v6839, %v6848
        %v6850 = vlaneseq
        %v6851 = vshrl.u32 %v6850, 7
        %v6852 = vsub.s32 2, %v6851
        %v6853 = vrot.slane %v6843, %v6852
        %v6854 = vmul.f32 %v6832, %v6849
        %v6855 = vmul.f32 %v6833, %v6853
        %v6856 = vmul.f32 %v6834, %v6849
        %v6857 = vmul.f32 %v6835, %v6853
        %v6858 = vpack.c.bf16 %v6856, %v6854
        %v6859 = vpack.c.bf16 %v6857, %v6855
        %v6860 = vld [vmem:[%s208] sm:$0xf]
        %v6861 = vld [vmem:[%s208 + $0x4] sm:$0xf]
        %v6862 = vld [vmem:[%s208 + $0x8] sm:$0xf]
        %v6863 = vld [vmem:[%s208 + $0xc] sm:$0xf]
        %v6864 = vld [vmem:[%s208 + $0x10] sm:$0xf]
        %v6865 = vld [vmem:[%s208 + $0x14] sm:$0xf]
        %v6866 = vld [vmem:[%s208 + $0x18] sm:$0xf]
        %v6867 = vld [vmem:[%s208 + $0x1c] sm:$0xf]
        %v6868 = vld [vmem:[%s208 + $0x20] sm:$0xf]
        %v6869 = vld [vmem:[%s208 + $0x24] sm:$0xf]
        %v6870 = vld [vmem:[%s208 + $0x28] sm:$0xf]
        %v6871 = vld [vmem:[%s208 + $0x2c] sm:$0xf]
        %v6872 = vld [vmem:[%s208 + $0x30] sm:$0xf]
        %v6873 = vld [vmem:[%s208 + $0x34] sm:$0xf]
        %v6874 = vld [vmem:[%s208 + $0x38] sm:$0xf]
        %v6875 = vld [vmem:[%s208 + $0x3c] sm:$0xf]
        %v6876 = vld [vmem:[%s208 + $0x40] sm:$0xf]
        %v6877 = vld [vmem:[%s208 + $0x44] sm:$0xf]
        %v6878 = vld [vmem:[%s208 + $0x48] sm:$0xf]
        %v6879 = vld [vmem:[%s208 + $0x4c] sm:$0xf]
        %v6880 = vld [vmem:[%s208 + $0x50] sm:$0xf]
        %v6881 = vld [vmem:[%s208 + $0x54] sm:$0xf]
        %v6882 = vld [vmem:[%s208 + $0x58] sm:$0xf]
        %v6883 = vld [vmem:[%s208 + $0x5c] sm:$0xf]
        %v6884 = vld [vmem:[%s208 + $0x60] sm:$0xf]
        %v6885 = vld [vmem:[%s208 + $0x64] sm:$0xf]
        %v6886 = vld [vmem:[%s208 + $0x68] sm:$0xf]
        %v6887 = vld [vmem:[%s208 + $0x6c] sm:$0xf]
        %v6888 = vld [vmem:[%s208 + $0x70] sm:$0xf]
        %v6889 = vld [vmem:[%s208 + $0x74] sm:$0xf]
        %v6890 = vld [vmem:[%s208 + $0x78] sm:$0xf]
        %v6891 = vld [vmem:[%s208 + $0x7c] sm:$0xf]
        %v6924 = vunpack.c.l.b16 %v6860
        %v6925 = vunpack.c.l.b16 %v6861
        %v6926 = vunpack.c.l.b16 %v6862
        %v6927 = vunpack.c.l.b16 %v6863
        %v6928 = vunpack.c.l.b16 %v6864
        %v6929 = vunpack.c.l.b16 %v6865
        %v6930 = vunpack.c.l.b16 %v6866
        %v6931 = vunpack.c.l.b16 %v6867
        %v6932 = vunpack.c.l.b16 %v6868
        %v6933 = vunpack.c.l.b16 %v6869
        %v6934 = vunpack.c.l.b16 %v6870
        %v6935 = vunpack.c.l.b16 %v6871
        %v6936 = vunpack.c.l.b16 %v6872
        %v6937 = vunpack.c.l.b16 %v6873
        %v6938 = vunpack.c.l.b16 %v6874
        %v6939 = vunpack.c.l.b16 %v6875
        %v6940 = vunpack.c.l.b16 %v6876
        %v6941 = vunpack.c.l.b16 %v6877
        %v6942 = vunpack.c.l.b16 %v6878
        %v6943 = vunpack.c.l.b16 %v6879
        %v6944 = vunpack.c.l.b16 %v6880
        %v6945 = vunpack.c.l.b16 %v6881
        %v6946 = vunpack.c.l.b16 %v6882
        %v6947 = vunpack.c.l.b16 %v6883
        %v6948 = vunpack.c.l.b16 %v6884
        %v6949 = vunpack.c.l.b16 %v6885
        %v6950 = vunpack.c.l.b16 %v6886
        %v6951 = vunpack.c.l.b16 %v6887
        %v6952 = vunpack.c.l.b16 %v6888
        %v6953 = vunpack.c.l.b16 %v6889
        %v6954 = vunpack.c.l.b16 %v6890
        %v6955 = vunpack.c.l.b16 %v6891
        %v6956 = vpack.c.b16 %v6925, %v6924
        %v6957 = vpack.c.b16 %v6927, %v6926
        %v6958 = vpack.c.b16 %v6929, %v6928
        %v6959 = vpack.c.b16 %v6931, %v6930
        %v6960 = vpack.c.b16 %v6933, %v6932
        %v6961 = vpack.c.b16 %v6935, %v6934
        %v6962 = vpack.c.b16 %v6937, %v6936
        %v6963 = vpack.c.b16 %v6939, %v6938
        %v6964 = vpack.c.b16 %v6941, %v6940
        %v6965 = vpack.c.b16 %v6943, %v6942
        %v6966 = vpack.c.b16 %v6945, %v6944
        %v6967 = vpack.c.b16 %v6947, %v6946
        %v6968 = vpack.c.b16 %v6949, %v6948
        %v6969 = vpack.c.b16 %v6951, %v6950
        %v6970 = vpack.c.b16 %v6953, %v6952
        %v6971 = vpack.c.b16 %v6955, %v6954
        %v6973 = vsel %vm434, %v6956, 0
        %v6976 = vsel %vm434, %v6957, 0
        %v6979 = vsel %vm434, %v6958, 0
        %v6982 = vsel %vm434, %v6959, 0
        %v6985 = vsel %vm434, %v6960, 0
        %v6988 = vsel %vm434, %v6961, 0
        %v6991 = vsel %vm434, %v6962, 0
        %v6994 = vsel %vm434, %v6963, 0
        %v6997 = vsel %vm434, %v6964, 0
        %v7000 = vsel %vm434, %v6965, 0
        %v7003 = vsel %vm434, %v6966, 0
        %v7006 = vsel %vm434, %v6967, 0
        %v7009 = vsel %vm434, %v6968, 0
        %v7012 = vsel %vm434, %v6969, 0
        %v7015 = vsel %vm434, %v6970, 0
        %v7018 = vsel %vm434, %v6971, 0
        %7020 = vmatprep.subr.bf16.mxu0 %v6801
        %7021 = vmatpush1.bf16.msra.mxu0 %v6800
        %7022 = vmatprep.subr.bf16.mxu0 0
        %7023 = vmatpush1.bf16.msra.mxu0 0
        %7024 = vmatprep.subr.bf16.mxu0 0
        %7025 = vmatpush1.bf16.msra.mxu0 0
        %7026 = vmatprep.subr.bf16.mxu0 0
        %7027 = vmatpush1.bf16.msra.mxu0 0
        %7028 = vmatprep.subr.bf16.mxu0 0
        %7029 = vmatpush1.bf16.msra.mxu0 0
        %7030 = vmatprep.subr.bf16.mxu0 0
        %7031 = vmatpush1.bf16.msra.mxu0 0
        %7032 = vmatprep.subr.bf16.mxu0 0
        %7033 = vmatpush1.bf16.msra.mxu0 0
        %7034 = vmatprep.subr.bf16.mxu0 0
        %7035 = vmatpush1.bf16.msra.mxu0 0
        %7036 = vmatprep.subr.bf16.mxu0 0
        %7037 = vmatpush1.bf16.msra.mxu0 0
        %7038 = vmatprep.subr.bf16.mxu0 0
        %7039 = vmatpush1.bf16.msra.mxu0 0
        %7040 = vmatprep.subr.bf16.mxu0 0
        %7041 = vmatpush1.bf16.msra.mxu0 0
        %7042 = vmatprep.subr.bf16.mxu0 0
        %7043 = vmatpush1.bf16.msra.mxu0 0
        %7044 = vmatprep.subr.bf16.mxu0 0
        %7045 = vmatpush1.bf16.msra.mxu0 0
        %7046 = vmatprep.subr.bf16.mxu0 0
        %7047 = vmatpush1.bf16.msra.mxu0 0
        %7048 = vmatprep.subr.bf16.mxu0 0
        %7049 = vmatpush1.bf16.msra.mxu0 0
        %7050 = vmatprep.subr.bf16.mxu0 0
        %7051 = vmatpush1.bf16.msra.mxu0 0
        %7052 = vmatprep.mubr.bf16.mxu0 0
        %7053 = vmatmul.mubr.bf16.gmra.mrb[0].mxu0 %v6973
        %v7054 = vpop.f32.mrb[0].mxu0
        %v7055 = vadd.f32 0.0, %v7054
        %v7056 = vpop.f32.mrb[0].mxu0
        %v7057 = vadd.f32 0.0, %v7056
        %v7058 = vpop.f32.mrb[0].mxu0
        %v7059 = vadd.f32 0.0, %v7058
        %v7060 = vpop.f32.mrb[0].mxu0
        %v7061 = vadd.f32 0.0, %v7060
        %7062 = vmatprep.mubr.bf16.mxu0 0
        %7063 = vmatmul.mubr.bf16.gmra.mrb[0].mxu0 %v6976
        %v7064 = vpop.f32.mrb[0].mxu0
        %v7065 = vadd.f32 0.0, %v7064
        %v7066 = vpop.f32.mrb[0].mxu0
        %v7067 = vadd.f32 0.0, %v7066
        %v7068 = vpop.f32.mrb[0].mxu0
        %v7069 = vadd.f32 0.0, %v7068
        %v7070 = vpop.f32.mrb[0].mxu0
        %v7071 = vadd.f32 0.0, %v7070
        %7072 = vmatprep.mubr.bf16.mxu0 0
        %7073 = vmatmul.mubr.bf16.gmra.mrb[0].mxu0 %v6979
        %v7074 = vpop.f32.mrb[0].mxu0
        %v7075 = vadd.f32 0.0, %v7074
        %v7076 = vpop.f32.mrb[0].mxu0
        %v7077 = vadd.f32 0.0, %v7076
        %v7078 = vpop.f32.mrb[0].mxu0
        %v7079 = vadd.f32 0.0, %v7078
        %v7080 = vpop.f32.mrb[0].mxu0
        %v7081 = vadd.f32 0.0, %v7080
        %7082 = vmatprep.mubr.bf16.mxu0 0
        %7083 = vmatmul.mubr.bf16.gmra.mrb[0].mxu0 %v6982
        %v7084 = vpop.f32.mrb[0].mxu0
        %v7085 = vadd.f32 0.0, %v7084
        %v7086 = vpop.f32.mrb[0].mxu0
        %v7087 = vadd.f32 0.0, %v7086
        %v7088 = vpop.f32.mrb[0].mxu0
        %v7089 = vadd.f32 0.0, %v7088
        %v7090 = vpop.f32.mrb[0].mxu0
        %v7091 = vadd.f32 0.0, %v7090
        %7092 = vmatprep.mubr.bf16.mxu0 0
        %7093 = vmatmul.mubr.bf16.gmra.mrb[0].mxu0 %v6985
        %v7094 = vpop.f32.mrb[0].mxu0
        %v7095 = vadd.f32 0.0, %v7094
        %v7096 = vpop.f32.mrb[0].mxu0
        %v7097 = vadd.f32 0.0, %v7096
        %v7098 = vpop.f32.mrb[0].mxu0
        %v7099 = vadd.f32 0.0, %v7098
        %v7100 = vpop.f32.mrb[0].mxu0
        %v7101 = vadd.f32 0.0, %v7100
        %7102 = vmatprep.mubr.bf16.mxu0 0
        %7103 = vmatmul.mubr.bf16.gmra.mrb[0].mxu0 %v6988
        %v7104 = vpop.f32.mrb[0].mxu0
        %v7105 = vadd.f32 0.0, %v7104
        %v7106 = vpop.f32.mrb[0].mxu0
        %v7107 = vadd.f32 0.0, %v7106
        %v7108 = vpop.f32.mrb[0].mxu0
        %v7109 = vadd.f32 0.0, %v7108
        %v7110 = vpop.f32.mrb[0].mxu0
        %v7111 = vadd.f32 0.0, %v7110
        %7112 = vmatprep.mubr.bf16.mxu0 0
        %7113 = vmatmul.mubr.bf16.gmra.mrb[0].mxu0 %v6991
        %v7114 = vpop.f32.mrb[0].mxu0
        %v7115 = vadd.f32 0.0, %v7114
        %v7116 = vpop.f32.mrb[0].mxu0
        %v7117 = vadd.f32 0.0, %v7116
        %v7118 = vpop.f32.mrb[0].mxu0
        %v7119 = vadd.f32 0.0, %v7118
        %v7120 = vpop.f32.mrb[0].mxu0
        %v7121 = vadd.f32 0.0, %v7120
        %7122 = vmatprep.mubr.bf16.mxu0 0
        %7123 = vmatmul.mubr.bf16.gmra.mrb[0].mxu0 %v6994
        %v7124 = vpop.f32.mrb[0].mxu0
        %v7125 = vadd.f32 0.0, %v7124
        %v7126 = vpop.f32.mrb[0].mxu0
        %v7127 = vadd.f32 0.0, %v7126
        %v7128 = vpop.f32.mrb[0].mxu0
        %v7129 = vadd.f32 0.0, %v7128
        %v7130 = vpop.f32.mrb[0].mxu0
        %v7131 = vadd.f32 0.0, %v7130
        %7132 = vmatprep.mubr.bf16.mxu0 0
        %7133 = vmatmul.mubr.bf16.gmra.mrb[0].mxu0 %v6997
        %v7134 = vpop.f32.mrb[0].mxu0
        %v7135 = vadd.f32 0.0, %v7134
        %v7136 = vpop.f32.mrb[0].mxu0
        %v7137 = vadd.f32 0.0, %v7136
        %v7138 = vpop.f32.mrb[0].mxu0
        %v7139 = vadd.f32 0.0, %v7138
        %v7140 = vpop.f32.mrb[0].mxu0
        %v7141 = vadd.f32 0.0, %v7140
        %7142 = vmatprep.mubr.bf16.mxu0 0
        %7143 = vmatmul.mubr.bf16.gmra.mrb[0].mxu0 %v7000
        %v7144 = vpop.f32.mrb[0].mxu0
        %v7145 = vadd.f32 0.0, %v7144
        %v7146 = vpop.f32.mrb[0].mxu0
        %v7147 = vadd.f32 0.0, %v7146
        %v7148 = vpop.f32.mrb[0].mxu0
        %v7149 = vadd.f32 0.0, %v7148
        %v7150 = vpop.f32.mrb[0].mxu0
        %v7151 = vadd.f32 0.0, %v7150
        %7152 = vmatprep.mubr.bf16.mxu0 0
        %7153 = vmatmul.mubr.bf16.gmra.mrb[0].mxu0 %v7003
        %v7154 = vpop.f32.mrb[0].mxu0
        %v7155 = vadd.f32 0.0, %v7154
        %v7156 = vpop.f32.mrb[0].mxu0
        %v7157 = vadd.f32 0.0, %v7156
        %v7158 = vpop.f32.mrb[0].mxu0
        %v7159 = vadd.f32 0.0, %v7158
        %v7160 = vpop.f32.mrb[0].mxu0
        %v7161 = vadd.f32 0.0, %v7160
        %7162 = vmatprep.mubr.bf16.mxu0 0
        %7163 = vmatmul.mubr.bf16.gmra.mrb[0].mxu0 %v7006
        %v7164 = vpop.f32.mrb[0].mxu0
        %v7165 = vadd.f32 0.0, %v7164
        %v7166 = vpop.f32.mrb[0].mxu0
        %v7167 = vadd.f32 0.0, %v7166
        %v7168 = vpop.f32.mrb[0].mxu0
        %v7169 = vadd.f32 0.0, %v7168
        %v7170 = vpop.f32.mrb[0].mxu0
        %v7171 = vadd.f32 0.0, %v7170
        %7172 = vmatprep.mubr.bf16.mxu0 0
        %7173 = vmatmul.mubr.bf16.gmra.mrb[0].mxu0 %v7009
        %v7174 = vpop.f32.mrb[0].mxu0
        %v7175 = vadd.f32 0.0, %v7174
        %v7176 = vpop.f32.mrb[0].mxu0
        %v7177 = vadd.f32 0.0, %v7176
        %v7178 = vpop.f32.mrb[0].mxu0
        %v7179 = vadd.f32 0.0, %v7178
        %v7180 = vpop.f32.mrb[0].mxu0
        %v7181 = vadd.f32 0.0, %v7180
        %7182 = vmatprep.mubr.bf16.mxu0 0
        %7183 = vmatmul.mubr.bf16.gmra.mrb[0].mxu0 %v7012
        %v7184 = vpop.f32.mrb[0].mxu0
        %v7185 = vadd.f32 0.0, %v7184
        %v7186 = vpop.f32.mrb[0].mxu0
        %v7187 = vadd.f32 0.0, %v7186
        %v7188 = vpop.f32.mrb[0].mxu0
        %v7189 = vadd.f32 0.0, %v7188
        %v7190 = vpop.f32.mrb[0].mxu0
        %v7191 = vadd.f32 0.0, %v7190
        %7192 = vmatprep.mubr.bf16.mxu0 0
        %7193 = vmatmul.mubr.bf16.gmra.mrb[0].mxu0 %v7015
        %v7194 = vpop.f32.mrb[0].mxu0
        %v7195 = vadd.f32 0.0, %v7194
        %v7196 = vpop.f32.mrb[0].mxu0
        %v7197 = vadd.f32 0.0, %v7196
        %v7198 = vpop.f32.mrb[0].mxu0
        %v7199 = vadd.f32 0.0, %v7198
        %v7200 = vpop.f32.mrb[0].mxu0
        %v7201 = vadd.f32 0.0, %v7200
        %7202 = vmatprep.mubr.bf16.mxu0 0
        %7203 = vmatmul.mubr.bf16.gmra.mrb[0].mxu0 %v7018
        %v7204 = vpop.f32.mrb[0].mxu0
        %v7205 = vadd.f32 0.0, %v7204
        %v7206 = vpop.f32.mrb[0].mxu0
        %v7207 = vadd.f32 0.0, %v7206
        %v7208 = vpop.f32.mrb[0].mxu0
        %v7209 = vadd.f32 0.0, %v7208
        %v7210 = vpop.f32.mrb[0].mxu0
        %v7211 = vadd.f32 0.0, %v7210
        %7212 = vdwg.mxu0
        %v7213 = vpack.c.bf16 %v7059, %v7055
        %v7214 = vpack.c.bf16 %v7061, %v7057
        %v7215 = vpack.c.bf16 %v7069, %v7065
        %v7216 = vpack.c.bf16 %v7071, %v7067
        %v7217 = vpack.c.bf16 %v7079, %v7075
        %v7218 = vpack.c.bf16 %v7081, %v7077
        %v7219 = vpack.c.bf16 %v7089, %v7085
        %v7220 = vpack.c.bf16 %v7091, %v7087
        %v7221 = vpack.c.bf16 %v7099, %v7095
        %v7222 = vpack.c.bf16 %v7101, %v7097
        %v7223 = vpack.c.bf16 %v7109, %v7105
        %v7224 = vpack.c.bf16 %v7111, %v7107
        %v7225 = vpack.c.bf16 %v7119, %v7115
        %v7226 = vpack.c.bf16 %v7121, %v7117
        %v7227 = vpack.c.bf16 %v7129, %v7125
        %v7228 = vpack.c.bf16 %v7131, %v7127
        %v7229 = vpack.c.bf16 %v7139, %v7135
        %v7230 = vpack.c.bf16 %v7141, %v7137
        %v7231 = vpack.c.bf16 %v7149, %v7145
        %v7232 = vpack.c.bf16 %v7151, %v7147
        %v7233 = vpack.c.bf16 %v7159, %v7155
        %v7234 = vpack.c.bf16 %v7161, %v7157
        %v7235 = vpack.c.bf16 %v7169, %v7165
        %v7236 = vpack.c.bf16 %v7171, %v7167
        %v7237 = vpack.c.bf16 %v7179, %v7175
        %v7238 = vpack.c.bf16 %v7181, %v7177
        %v7239 = vpack.c.bf16 %v7189, %v7185
        %v7240 = vpack.c.bf16 %v7191, %v7187
        %v7241 = vpack.c.bf16 %v7199, %v7195
        %v7242 = vpack.c.bf16 %v7201, %v7197
        %v7243 = vpack.c.bf16 %v7209, %v7205
        %v7244 = vpack.c.bf16 %v7211, %v7207
        %v7245 = vmul.bf16 %v7213, %v6858
        %v7246 = vmul.bf16 %v7214, %v6859
        %v7247 = vmul.bf16 %v7215, %v6858
        %v7248 = vmul.bf16 %v7216, %v6859
        %v7249 = vmul.bf16 %v7217, %v6858
        %v7250 = vmul.bf16 %v7218, %v6859
        %v7251 = vmul.bf16 %v7219, %v6858
        %v7252 = vmul.bf16 %v7220, %v6859
        %v7253 = vmul.bf16 %v7221, %v6858
        %v7254 = vmul.bf16 %v7222, %v6859
        %v7255 = vmul.bf16 %v7223, %v6858
        %v7256 = vmul.bf16 %v7224, %v6859
        %v7257 = vmul.bf16 %v7225, %v6858
        %v7258 = vmul.bf16 %v7226, %v6859
        %v7259 = vmul.bf16 %v7227, %v6858
        %v7260 = vmul.bf16 %v7228, %v6859
        %v7261 = vmul.bf16 %v7229, %v6858
        %v7262 = vmul.bf16 %v7230, %v6859
        %v7263 = vmul.bf16 %v7231, %v6858
        %v7264 = vmul.bf16 %v7232, %v6859
        %v7265 = vmul.bf16 %v7233, %v6858
        %v7266 = vmul.bf16 %v7234, %v6859
        %v7267 = vmul.bf16 %v7235, %v6858
        %v7268 = vmul.bf16 %v7236, %v6859
        %v7269 = vmul.bf16 %v7237, %v6858
        %v7270 = vmul.bf16 %v7238, %v6859
        %v7271 = vmul.bf16 %v7239, %v6858
        %v7272 = vmul.bf16 %v7240, %v6859
        %v7273 = vmul.bf16 %v7241, %v6858
        %v7274 = vmul.bf16 %v7242, %v6859
        %v7275 = vmul.bf16 %v7243, %v6858
        %v7276 = vmul.bf16 %v7244, %v6859
        %v7277 = vunpack.c.l.bf16 %v7245
        %v7278 = vunpack.c.l.bf16 %v7246
        %v7279 = vunpack.c.h.bf16 %v7245
        %v7280 = vunpack.c.h.bf16 %v7246
        %v7281 = vunpack.c.l.bf16 %v7247
        %v7282 = vunpack.c.l.bf16 %v7248
        %v7283 = vunpack.c.h.bf16 %v7247
        %v7284 = vunpack.c.h.bf16 %v7248
        %v7285 = vunpack.c.l.bf16 %v7249
        %v7286 = vunpack.c.l.bf16 %v7250
        %v7287 = vunpack.c.h.bf16 %v7249
        %v7288 = vunpack.c.h.bf16 %v7250
        %v7289 = vunpack.c.l.bf16 %v7251
        %v7290 = vunpack.c.l.bf16 %v7252
        %v7291 = vunpack.c.h.bf16 %v7251
        %v7292 = vunpack.c.h.bf16 %v7252
        %v7293 = vunpack.c.l.bf16 %v7253
        %v7294 = vunpack.c.l.bf16 %v7254
        %v7295 = vunpack.c.h.bf16 %v7253
        %v7296 = vunpack.c.h.bf16 %v7254
        %v7297 = vunpack.c.l.bf16 %v7255
        %v7298 = vunpack.c.l.bf16 %v7256
        %v7299 = vunpack.c.h.bf16 %v7255
        %v7300 = vunpack.c.h.bf16 %v7256
        %v7301 = vunpack.c.l.bf16 %v7257
        %v7302 = vunpack.c.l.bf16 %v7258
        %v7303 = vunpack.c.h.bf16 %v7257
        %v7304 = vunpack.c.h.bf16 %v7258
        %v7305 = vunpack.c.l.bf16 %v7259
        %v7306 = vunpack.c.l.bf16 %v7260
        %v7307 = vunpack.c.h.bf16 %v7259
        %v7308 = vunpack.c.h.bf16 %v7260
        %v7309 = vunpack.c.l.bf16 %v7261
        %v7310 = vunpack.c.l.bf16 %v7262
        %v7311 = vunpack.c.h.bf16 %v7261
        %v7312 = vunpack.c.h.bf16 %v7262
        %v7313 = vunpack.c.l.bf16 %v7263
        %v7314 = vunpack.c.l.bf16 %v7264
        %v7315 = vunpack.c.h.bf16 %v7263
        %v7316 = vunpack.c.h.bf16 %v7264
        %v7317 = vunpack.c.l.bf16 %v7265
        %v7318 = vunpack.c.l.bf16 %v7266
        %v7319 = vunpack.c.h.bf16 %v7265
        %v7320 = vunpack.c.h.bf16 %v7266
        %v7321 = vunpack.c.l.bf16 %v7267
        %v7322 = vunpack.c.l.bf16 %v7268
        %v7323 = vunpack.c.h.bf16 %v7267
        %v7324 = vunpack.c.h.bf16 %v7268
        %v7325 = vunpack.c.l.bf16 %v7269
        %v7326 = vunpack.c.l.bf16 %v7270
        %v7327 = vunpack.c.h.bf16 %v7269
        %v7328 = vunpack.c.h.bf16 %v7270
        %v7329 = vunpack.c.l.bf16 %v7271
        %v7330 = vunpack.c.l.bf16 %v7272
        %v7331 = vunpack.c.h.bf16 %v7271
        %v7332 = vunpack.c.h.bf16 %v7272
        %v7333 = vunpack.c.l.bf16 %v7273
        %v7334 = vunpack.c.l.bf16 %v7274
        %v7335 = vunpack.c.h.bf16 %v7273
        %v7336 = vunpack.c.h.bf16 %v7274
        %v7337 = vunpack.c.l.bf16 %v7275
        %v7338 = vunpack.c.l.bf16 %v7276
        %v7339 = vunpack.c.h.bf16 %v7275
        %v7340 = vunpack.c.h.bf16 %v7276
        %v7341 = vadd.f32 %v7277, %v7279
        %v7342 = vrot.slane %v7341, 4
        %v7343 = vadd.f32 %v7341, %v7342
        %v7344 = vrot.slane %v7343, 2
        %v7345 = vadd.f32 %v7343, %v7344
        %v7346 = vrot.slane %v7345, 1
        %v7347 = vadd.f32 %v7345, %v7346
        %v7348 = vadd.f32 %v7278, %v7280
        %v7349 = vrot.slane %v7348, 4
        %v7350 = vadd.f32 %v7348, %v7349
        %v7351 = vrot.slane %v7350, 2
        %v7352 = vadd.f32 %v7350, %v7351
        %v7353 = vrot.slane %v7352, 1
        %v7354 = vadd.f32 %v7352, %v7353
        %v7355 = vadd.f32 %v7281, %v7283
        %v7356 = vrot.slane %v7355, 4
        %v7357 = vadd.f32 %v7355, %v7356
        %v7358 = vrot.slane %v7357, 2
        %v7359 = vadd.f32 %v7357, %v7358
        %v7360 = vrot.slane %v7359, 1
        %v7361 = vadd.f32 %v7359, %v7360
        %v7362 = vadd.f32 %v7282, %v7284
        %v7363 = vrot.slane %v7362, 4
        %v7364 = vadd.f32 %v7362, %v7363
        %v7365 = vrot.slane %v7364, 2
        %v7366 = vadd.f32 %v7364, %v7365
        %v7367 = vrot.slane %v7366, 1
        %v7368 = vadd.f32 %v7366, %v7367
        %v7369 = vadd.f32 %v7285, %v7287
        %v7370 = vrot.slane %v7369, 4
        %v7371 = vadd.f32 %v7369, %v7370
        %v7372 = vrot.slane %v7371, 2
        %v7373 = vadd.f32 %v7371, %v7372
        %v7374 = vrot.slane %v7373, 1
        %v7375 = vadd.f32 %v7373, %v7374
        %v7376 = vadd.f32 %v7286, %v7288
        %v7377 = vrot.slane %v7376, 4
        %v7378 = vadd.f32 %v7376, %v7377
        %v7379 = vrot.slane %v7378, 2
        %v7380 = vadd.f32 %v7378, %v7379
        %v7381 = vrot.slane %v7380, 1
        %v7382 = vadd.f32 %v7380, %v7381
        %v7383 = vadd.f32 %v7289, %v7291
        %v7384 = vrot.slane %v7383, 4
        %v7385 = vadd.f32 %v7383, %v7384
        %v7386 = vrot.slane %v7385, 2
        %v7387 = vadd.f32 %v7385, %v7386
        %v7388 = vrot.slane %v7387, 1
        %v7389 = vadd.f32 %v7387, %v7388
        %v7390 = vadd.f32 %v7290, %v7292
        %v7391 = vrot.slane %v7390, 4
        %v7392 = vadd.f32 %v7390, %v7391
        %v7393 = vrot.slane %v7392, 2
        %v7394 = vadd.f32 %v7392, %v7393
        %v7395 = vrot.slane %v7394, 1
        %v7396 = vadd.f32 %v7394, %v7395
        %v7397 = vadd.f32 %v7293, %v7295
        %v7398 = vrot.slane %v7397, 4
        %v7399 = vadd.f32 %v7397, %v7398
        %v7400 = vrot.slane %v7399, 2
        %v7401 = vadd.f32 %v7399, %v7400
        %v7402 = vrot.slane %v7401, 1
        %v7403 = vadd.f32 %v7401, %v7402
        %v7404 = vadd.f32 %v7294, %v7296
        %v7405 = vrot.slane %v7404, 4
        %v7406 = vadd.f32 %v7404, %v7405
        %v7407 = vrot.slane %v7406, 2
        %v7408 = vadd.f32 %v7406, %v7407
        %v7409 = vrot.slane %v7408, 1
        %v7410 = vadd.f32 %v7408, %v7409
        %v7411 = vadd.f32 %v7297, %v7299
        %v7412 = vrot.slane %v7411, 4
        %v7413 = vadd.f32 %v7411, %v7412
        %v7414 = vrot.slane %v7413, 2
        %v7415 = vadd.f32 %v7413, %v7414
        %v7416 = vrot.slane %v7415, 1
        %v7417 = vadd.f32 %v7415, %v7416
        %v7418 = vadd.f32 %v7298, %v7300
        %v7419 = vrot.slane %v7418, 4
        %v7420 = vadd.f32 %v7418, %v7419
        %v7421 = vrot.slane %v7420, 2
        %v7422 = vadd.f32 %v7420, %v7421
        %v7423 = vrot.slane %v7422, 1
        %v7424 = vadd.f32 %v7422, %v7423
        %v7425 = vadd.f32 %v7301, %v7303
        %v7426 = vrot.slane %v7425, 4
        %v7427 = vadd.f32 %v7425, %v7426
        %v7428 = vrot.slane %v7427, 2
        %v7429 = vadd.f32 %v7427, %v7428
        %v7430 = vrot.slane %v7429, 1
        %v7431 = vadd.f32 %v7429, %v7430
        %v7432 = vadd.f32 %v7302, %v7304
        %v7433 = vrot.slane %v7432, 4
        %v7434 = vadd.f32 %v7432, %v7433
        %v7435 = vrot.slane %v7434, 2
        %v7436 = vadd.f32 %v7434, %v7435
        %v7437 = vrot.slane %v7436, 1
        %v7438 = vadd.f32 %v7436, %v7437
        %v7439 = vadd.f32 %v7305, %v7307
        %v7440 = vrot.slane %v7439, 4
        %v7441 = vadd.f32 %v7439, %v7440
        %v7442 = vrot.slane %v7441, 2
        %v7443 = vadd.f32 %v7441, %v7442
        %v7444 = vrot.slane %v7443, 1
        %v7445 = vadd.f32 %v7443, %v7444
        %v7446 = vadd.f32 %v7306, %v7308
        %v7447 = vrot.slane %v7446, 4
        %v7448 = vadd.f32 %v7446, %v7447
        %v7449 = vrot.slane %v7448, 2
        %v7450 = vadd.f32 %v7448, %v7449
        %v7451 = vrot.slane %v7450, 1
        %v7452 = vadd.f32 %v7450, %v7451
        %v7453 = vadd.f32 %v7309, %v7311
        %v7454 = vrot.slane %v7453, 4
        %v7455 = vadd.f32 %v7453, %v7454
        %v7456 = vrot.slane %v7455, 2
        %v7457 = vadd.f32 %v7455, %v7456
        %v7458 = vrot.slane %v7457, 1
        %v7459 = vadd.f32 %v7457, %v7458
        %v7460 = vadd.f32 %v7310, %v7312
        %v7461 = vrot.slane %v7460, 4
        %v7462 = vadd.f32 %v7460, %v7461
        %v7463 = vrot.slane %v7462, 2
        %v7464 = vadd.f32 %v7462, %v7463
        %v7465 = vrot.slane %v7464, 1
        %v7466 = vadd.f32 %v7464, %v7465
        %v7467 = vadd.f32 %v7313, %v7315
        %v7468 = vrot.slane %v7467, 4
        %v7469 = vadd.f32 %v7467, %v7468
        %v7470 = vrot.slane %v7469, 2
        %v7471 = vadd.f32 %v7469, %v7470
        %v7472 = vrot.slane %v7471, 1
        %v7473 = vadd.f32 %v7471, %v7472
        %v7474 = vadd.f32 %v7314, %v7316
        %v7475 = vrot.slane %v7474, 4
        %v7476 = vadd.f32 %v7474, %v7475
        %v7477 = vrot.slane %v7476, 2
        %v7478 = vadd.f32 %v7476, %v7477
        %v7479 = vrot.slane %v7478, 1
        %v7480 = vadd.f32 %v7478, %v7479
        %v7481 = vadd.f32 %v7317, %v7319
        %v7482 = vrot.slane %v7481, 4
        %v7483 = vadd.f32 %v7481, %v7482
        %v7484 = vrot.slane %v7483, 2
        %v7485 = vadd.f32 %v7483, %v7484
        %v7486 = vrot.slane %v7485, 1
        %v7487 = vadd.f32 %v7485, %v7486
        %v7488 = vadd.f32 %v7318, %v7320
        %v7489 = vrot.slane %v7488, 4
        %v7490 = vadd.f32 %v7488, %v7489
        %v7491 = vrot.slane %v7490, 2
        %v7492 = vadd.f32 %v7490, %v7491
        %v7493 = vrot.slane %v7492, 1
        %v7494 = vadd.f32 %v7492, %v7493
        %v7495 = vadd.f32 %v7321, %v7323
        %v7496 = vrot.slane %v7495, 4
        %v7497 = vadd.f32 %v7495, %v7496
        %v7498 = vrot.slane %v7497, 2
        %v7499 = vadd.f32 %v7497, %v7498
        %v7500 = vrot.slane %v7499, 1
        %v7501 = vadd.f32 %v7499, %v7500
        %v7502 = vadd.f32 %v7322, %v7324
        %v7503 = vrot.slane %v7502, 4
        %v7504 = vadd.f32 %v7502, %v7503
        %v7505 = vrot.slane %v7504, 2
        %v7506 = vadd.f32 %v7504, %v7505
        %v7507 = vrot.slane %v7506, 1
        %v7508 = vadd.f32 %v7506, %v7507
        %v7509 = vadd.f32 %v7325, %v7327
        %v7510 = vrot.slane %v7509, 4
        %v7511 = vadd.f32 %v7509, %v7510
        %v7512 = vrot.slane %v7511, 2
        %v7513 = vadd.f32 %v7511, %v7512
        %v7514 = vrot.slane %v7513, 1
        %v7515 = vadd.f32 %v7513, %v7514
        %v7516 = vadd.f32 %v7326, %v7328
        %v7517 = vrot.slane %v7516, 4
        %v7518 = vadd.f32 %v7516, %v7517
        %v7519 = vrot.slane %v7518, 2
        %v7520 = vadd.f32 %v7518, %v7519
        %v7521 = vrot.slane %v7520, 1
        %v7522 = vadd.f32 %v7520, %v7521
        %v7523 = vadd.f32 %v7329, %v7331
        %v7524 = vrot.slane %v7523, 4
        %v7525 = vadd.f32 %v7523, %v7524
        %v7526 = vrot.slane %v7525, 2
        %v7527 = vadd.f32 %v7525, %v7526
        %v7528 = vrot.slane %v7527, 1
        %v7529 = vadd.f32 %v7527, %v7528
        %v7530 = vadd.f32 %v7330, %v7332
        %v7531 = vrot.slane %v7530, 4
        %v7532 = vadd.f32 %v7530, %v7531
        %v7533 = vrot.slane %v7532, 2
        %v7534 = vadd.f32 %v7532, %v7533
        %v7535 = vrot.slane %v7534, 1
        %v7536 = vadd.f32 %v7534, %v7535
        %v7537 = vadd.f32 %v7333, %v7335
        %v7538 = vrot.slane %v7537, 4
        %v7539 = vadd.f32 %v7537, %v7538
        %v7540 = vrot.slane %v7539, 2
        %v7541 = vadd.f32 %v7539, %v7540
        %v7542 = vrot.slane %v7541, 1
        %v7543 = vadd.f32 %v7541, %v7542
        %v7544 = vadd.f32 %v7334, %v7336
        %v7545 = vrot.slane %v7544, 4
        %v7546 = vadd.f32 %v7544, %v7545
        %v7547 = vrot.slane %v7546, 2
        %v7548 = vadd.f32 %v7546, %v7547
        %v7549 = vrot.slane %v7548, 1
        %v7550 = vadd.f32 %v7548, %v7549
        %v7551 = vadd.f32 %v7337, %v7339
        %v7552 = vrot.slane %v7551, 4
        %v7553 = vadd.f32 %v7551, %v7552
        %v7554 = vrot.slane %v7553, 2
        %v7555 = vadd.f32 %v7553, %v7554
        %v7556 = vrot.slane %v7555, 1
        %v7557 = vadd.f32 %v7555, %v7556
        %v7558 = vadd.f32 %v7338, %v7340
        %v7559 = vrot.slane %v7558, 4
        %v7560 = vadd.f32 %v7558, %v7559
        %v7561 = vrot.slane %v7560, 2
        %v7562 = vadd.f32 %v7560, %v7561
        %v7563 = vrot.slane %v7562, 1
        %v7564 = vadd.f32 %v7562, %v7563
        %v7565 = vpack.c.bf16 %v7347, %v7347
        %v7566 = vpack.c.bf16 %v7354, %v7354
        %v7567 = vpack.c.bf16 %v7361, %v7361
        %v7568 = vpack.c.bf16 %v7368, %v7368
        %v7569 = vpack.c.bf16 %v7375, %v7375
        %v7570 = vpack.c.bf16 %v7382, %v7382
        %v7571 = vpack.c.bf16 %v7389, %v7389
        %v7572 = vpack.c.bf16 %v7396, %v7396
        %v7573 = vpack.c.bf16 %v7403, %v7403
        %v7574 = vpack.c.bf16 %v7410, %v7410
        %v7575 = vpack.c.bf16 %v7417, %v7417
        %v7576 = vpack.c.bf16 %v7424, %v7424
        %v7577 = vpack.c.bf16 %v7431, %v7431
        %v7578 = vpack.c.bf16 %v7438, %v7438
        %v7579 = vpack.c.bf16 %v7445, %v7445
        %v7580 = vpack.c.bf16 %v7452, %v7452
        %v7581 = vpack.c.bf16 %v7459, %v7459
        %v7582 = vpack.c.bf16 %v7466, %v7466
        %v7583 = vpack.c.bf16 %v7473, %v7473
        %v7584 = vpack.c.bf16 %v7480, %v7480
        %v7585 = vpack.c.bf16 %v7487, %v7487
        %v7586 = vpack.c.bf16 %v7494, %v7494
        %v7587 = vpack.c.bf16 %v7501, %v7501
        %v7588 = vpack.c.bf16 %v7508, %v7508
        %v7589 = vpack.c.bf16 %v7515, %v7515
        %v7590 = vpack.c.bf16 %v7522, %v7522
        %v7591 = vpack.c.bf16 %v7529, %v7529
        %v7592 = vpack.c.bf16 %v7536, %v7536
        %v7593 = vpack.c.bf16 %v7543, %v7543
        %v7594 = vpack.c.bf16 %v7550, %v7550
        %v7595 = vpack.c.bf16 %v7557, %v7557
        %v7596 = vpack.c.bf16 %v7564, %v7564
        %v7629 = vunpack.c.l.b16 %v7565
        %v7630 = vunpack.c.l.b16 %v7566
        %v7631 = vunpack.c.l.b16 %v7567
        %v7632 = vunpack.c.l.b16 %v7568
        %v7633 = vunpack.c.l.b16 %v7569
        %v7634 = vunpack.c.l.b16 %v7570
        %v7635 = vunpack.c.l.b16 %v7571
        %v7636 = vunpack.c.l.b16 %v7572
        %v7637 = vunpack.c.l.b16 %v7573
        %v7638 = vunpack.c.l.b16 %v7574
        %v7639 = vunpack.c.l.b16 %v7575
        %v7640 = vunpack.c.l.b16 %v7576
        %v7641 = vunpack.c.l.b16 %v7577
        %v7642 = vunpack.c.l.b16 %v7578
        %v7643 = vunpack.c.l.b16 %v7579
        %v7644 = vunpack.c.l.b16 %v7580
        %v7645 = vunpack.c.l.b16 %v7581
        %v7646 = vunpack.c.l.b16 %v7582
        %v7647 = vunpack.c.l.b16 %v7583
        %v7648 = vunpack.c.l.b16 %v7584
        %v7649 = vunpack.c.l.b16 %v7585
        %v7650 = vunpack.c.l.b16 %v7586
        %v7651 = vunpack.c.l.b16 %v7587
        %v7652 = vunpack.c.l.b16 %v7588
        %v7653 = vunpack.c.l.b16 %v7589
        %v7654 = vunpack.c.l.b16 %v7590
        %v7655 = vunpack.c.l.b16 %v7591
        %v7656 = vunpack.c.l.b16 %v7592
        %v7657 = vunpack.c.l.b16 %v7593
        %v7658 = vunpack.c.l.b16 %v7594
        %v7659 = vunpack.c.l.b16 %v7595
        %v7660 = vunpack.c.l.b16 %v7596
        %v7661 = vsel %vm1124, %v7631, %v7629
        %v7662 = vsel %vm1126, %v7633, %v7661
        %v7663 = vsel %vm1128, %v7635, %v7662
        %v7664 = vsel %vm1130, %v7637, %v7663
        %v7665 = vsel %vm1132, %v7639, %v7664
        %v7666 = vsel %vm1134, %v7641, %v7665
        %v7667 = vsel %vm1136, %v7643, %v7666
        %v7668 = vsel %vm1124, %v7632, %v7630
        %v7669 = vsel %vm1126, %v7634, %v7668
        %v7670 = vsel %vm1128, %v7636, %v7669
        %v7671 = vsel %vm1130, %v7638, %v7670
        %v7672 = vsel %vm1132, %v7640, %v7671
        %v7673 = vsel %vm1134, %v7642, %v7672
        %v7674 = vsel %vm1136, %v7644, %v7673
        %v7675 = vsel %vm1124, %v7647, %v7645
        %v7676 = vsel %vm1126, %v7649, %v7675
        %v7677 = vsel %vm1128, %v7651, %v7676
        %v7678 = vsel %vm1130, %v7653, %v7677
        %v7679 = vsel %vm1132, %v7655, %v7678
        %v7680 = vsel %vm1134, %v7657, %v7679
        %v7681 = vsel %vm1136, %v7659, %v7680
        %v7682 = vsel %vm1124, %v7648, %v7646
        %v7683 = vsel %vm1126, %v7650, %v7682
        %v7684 = vsel %vm1128, %v7652, %v7683
        %v7685 = vsel %vm1130, %v7654, %v7684
        %v7686 = vsel %vm1132, %v7656, %v7685
        %v7687 = vsel %vm1134, %v7658, %v7686
        %v7688 = vsel %vm1136, %v7660, %v7687
        %v7689 = vpack.c.b16 %v7681, %v7667
        %v7690 = vpack.c.b16 %v7688, %v7674
        %s7693 = scalar_lea.vmem [#allocation2], 112
        %7694 = vst [vmem:[%s7693] sm:$0xff] %v7689
        %7695 = vst [vmem:[%s7693 + $0x8] sm:$0xff] %v7690
        %s7696 = scalar_lea.vmem %s217, 64
        %v7697 = vld [vmem:[%s7696] sm:$0x77]
        %v7699 = vlaneseq
        %v7700 = vshrl.u32 %v7699, 7
        %v7701 = vsub.s32 0, %v7700
        %v7702 = vrot.slane %v7697, %v7701
        %v7703 = vlaneseq
        %v7704 = vshrl.u32 %v7703, 7
        %v7705 = vsub.s32 4, %v7704
        %v7706 = vrot.slane %v7697, %v7705
        %v7709 = vlaneseq
        %v7710 = vshrl.u32 %v7709, 7
        %v7711 = vsub.s32 0, %v7710
        %v7712 = vrot.slane %v7702, %v7711
        %v7713 = vlaneseq
        %v7714 = vshrl.u32 %v7713, 7
        %v7715 = vsub.s32 0, %v7714
        %v7716 = vrot.slane %v7706, %v7715
        %v7717 = vsub.f32 %v224, %v7712
        %v7718 = vsub.f32 %v224, %v7716
        %v7719 = vsub.f32 %v225, %v7712
        %v7720 = vsub.f32 %v225, %v7716
        %v7721 = vand.u32 2147483647, %v7717
        %v7722 = vand.u32 2147483647, %v7718
        %v7723 = vand.u32 2147483647, %v7719
        %v7724 = vand.u32 2147483647, %v7720
        %v7725 = vsub.f32 1.0, %v7721
        %v7726 = vsub.f32 1.0, %v7722
        %v7727 = vsub.f32 1.0, %v7723
        %v7728 = vsub.f32 1.0, %v7724
        %v7729 = vmax.f32 %v7725, 0.0
        %v7730 = vmax.f32 %v7726, 0.0
        %v7731 = vmax.f32 %v7727, 0.0
        %v7732 = vmax.f32 %v7728, 0.0
        %v7733 = vpack.c.bf16 %v7731, %v7729
        %v7734 = vpack.c.bf16 %v7732, %v7730
        %v7735 = vlaneseq
        %v7736 = vshrl.u32 %v7735, 7
        %v7737 = vsub.s32 1, %v7736
        %v7738 = vrot.slane %v7697, %v7737
        %v7739 = vlaneseq
        %v7740 = vshrl.u32 %v7739, 7
        %v7741 = vsub.s32 5, %v7740
        %v7742 = vrot.slane %v7697, %v7741
        %v7745 = vlaneseq
        %v7746 = vshrl.u32 %v7745, 7
        %v7747 = vsub.s32 1, %v7746
        %v7748 = vrot.slane %v7738, %v7747
        %v7749 = vlaneseq
        %v7750 = vshrl.u32 %v7749, 7
        %v7751 = vsub.s32 1, %v7750
        %v7752 = vrot.slane %v7742, %v7751
        %v7753 = vsub.f32 %v224, %v7748
        %v7754 = vsub.f32 %v224, %v7752
        %v7755 = vsub.f32 %v225, %v7748
        %v7756 = vsub.f32 %v225, %v7752
        %v7757 = vand.u32 2147483647, %v7753
        %v7758 = vand.u32 2147483647, %v7754
        %v7759 = vand.u32 2147483647, %v7755
        %v7760 = vand.u32 2147483647, %v7756
        %v7761 = vsub.f32 1.0, %v7757
        %v7762 = vsub.f32 1.0, %v7758
        %v7763 = vsub.f32 1.0, %v7759
        %v7764 = vsub.f32 1.0, %v7760
        %v7765 = vmax.f32 %v7761, 0.0
        %v7766 = vmax.f32 %v7762, 0.0
        %v7767 = vmax.f32 %v7763, 0.0
        %v7768 = vmax.f32 %v7764, 0.0
        %v7769 = vlaneseq
        %v7770 = vshrl.u32 %v7769, 7
        %v7771 = vsub.s32 2, %v7770
        %v7772 = vrot.slane %v7697, %v7771
        %v7773 = vlaneseq
        %v7774 = vshrl.u32 %v7773, 7
        %v7775 = vsub.s32 6, %v7774
        %v7776 = vrot.slane %v7697, %v7775
        %v7779 = vlaneseq
        %v7780 = vshrl.u32 %v7779, 7
        %v7781 = vsub.s32 2, %v7780
        %v7782 = vrot.slane %v7772, %v7781
        %v7783 = vlaneseq
        %v7784 = vshrl.u32 %v7783, 7
        %v7785 = vsub.s32 2, %v7784
        %v7786 = vrot.slane %v7776, %v7785
        %v7787 = vmul.f32 %v7765, %v7782
        %v7788 = vmul.f32 %v7766, %v7786
        %v7789 = vmul.f32 %v7767, %v7782
        %v7790 = vmul.f32 %v7768, %v7786
        %v7791 = vpack.c.bf16 %v7789, %v7787
        %v7792 = vpack.c.bf16 %v7790, %v7788
        %v7793 = vld [vmem:[%s208] sm:$0xf]
        %v7794 = vld [vmem:[%s208 + $0x4] sm:$0xf]
        %v7795 = vld [vmem:[%s208 + $0x8] sm:$0xf]
        %v7796 = vld [vmem:[%s208 + $0xc] sm:$0xf]
        %v7797 = vld [vmem:[%s208 + $0x10] sm:$0xf]
        %v7798 = vld [vmem:[%s208 + $0x14] sm:$0xf]
        %v7799 = vld [vmem:[%s208 + $0x18] sm:$0xf]
        %v7800 = vld [vmem:[%s208 + $0x1c] sm:$0xf]
        %v7801 = vld [vmem:[%s208 + $0x20] sm:$0xf]
        %v7802 = vld [vmem:[%s208 + $0x24] sm:$0xf]
        %v7803 = vld [vmem:[%s208 + $0x28] sm:$0xf]
        %v7804 = vld [vmem:[%s208 + $0x2c] sm:$0xf]
        %v7805 = vld [vmem:[%s208 + $0x30] sm:$0xf]
        %v7806 = vld [vmem:[%s208 + $0x34] sm:$0xf]
        %v7807 = vld [vmem:[%s208 + $0x38] sm:$0xf]
        %v7808 = vld [vmem:[%s208 + $0x3c] sm:$0xf]
        %v7809 = vld [vmem:[%s208 + $0x40] sm:$0xf]
        %v7810 = vld [vmem:[%s208 + $0x44] sm:$0xf]
        %v7811 = vld [vmem:[%s208 + $0x48] sm:$0xf]
        %v7812 = vld [vmem:[%s208 + $0x4c] sm:$0xf]
        %v7813 = vld [vmem:[%s208 + $0x50] sm:$0xf]
        %v7814 = vld [vmem:[%s208 + $0x54] sm:$0xf]
        %v7815 = vld [vmem:[%s208 + $0x58] sm:$0xf]
        %v7816 = vld [vmem:[%s208 + $0x5c] sm:$0xf]
        %v7817 = vld [vmem:[%s208 + $0x60] sm:$0xf]
        %v7818 = vld [vmem:[%s208 + $0x64] sm:$0xf]
        %v7819 = vld [vmem:[%s208 + $0x68] sm:$0xf]
        %v7820 = vld [vmem:[%s208 + $0x6c] sm:$0xf]
        %v7821 = vld [vmem:[%s208 + $0x70] sm:$0xf]
        %v7822 = vld [vmem:[%s208 + $0x74] sm:$0xf]
        %v7823 = vld [vmem:[%s208 + $0x78] sm:$0xf]
        %v7824 = vld [vmem:[%s208 + $0x7c] sm:$0xf]
        %v7857 = vunpack.c.l.b16 %v7793
        %v7858 = vunpack.c.l.b16 %v7794
        %v7859 = vunpack.c.l.b16 %v7795
        %v7860 = vunpack.c.l.b16 %v7796
        %v7861 = vunpack.c.l.b16 %v7797
        %v7862 = vunpack.c.l.b16 %v7798
        %v7863 = vunpack.c.l.b16 %v7799
        %v7864 = vunpack.c.l.b16 %v7800
        %v7865 = vunpack.c.l.b16 %v7801
        %v7866 = vunpack.c.l.b16 %v7802
        %v7867 = vunpack.c.l.b16 %v7803
        %v7868 = vunpack.c.l.b16 %v7804
        %v7869 = vunpack.c.l.b16 %v7805
        %v7870 = vunpack.c.l.b16 %v7806
        %v7871 = vunpack.c.l.b16 %v7807
        %v7872 = vunpack.c.l.b16 %v7808
        %v7873 = vunpack.c.l.b16 %v7809
        %v7874 = vunpack.c.l.b16 %v7810
        %v7875 = vunpack.c.l.b16 %v7811
        %v7876 = vunpack.c.l.b16 %v7812
        %v7877 = vunpack.c.l.b16 %v7813
        %v7878 = vunpack.c.l.b16 %v7814
        %v7879 = vunpack.c.l.b16 %v7815
        %v7880 = vunpack.c.l.b16 %v7816
        %v7881 = vunpack.c.l.b16 %v7817
        %v7882 = vunpack.c.l.b16 %v7818
        %v7883 = vunpack.c.l.b16 %v7819
        %v7884 = vunpack.c.l.b16 %v7820
        %v7885 = vunpack.c.l.b16 %v7821
        %v7886 = vunpack.c.l.b16 %v7822
        %v7887 = vunpack.c.l.b16 %v7823
        %v7888 = vunpack.c.l.b16 %v7824
        %v7889 = vpack.c.b16 %v7858, %v7857
        %v7890 = vpack.c.b16 %v7860, %v7859
        %v7891 = vpack.c.b16 %v7862, %v7861
        %v7892 = vpack.c.b16 %v7864, %v7863
        %v7893 = vpack.c.b16 %v7866, %v7865
        %v7894 = vpack.c.b16 %v7868, %v7867
        %v7895 = vpack.c.b16 %v7870, %v7869
        %v7896 = vpack.c.b16 %v7872, %v7871
        %v7897 = vpack.c.b16 %v7874, %v7873
        %v7898 = vpack.c.b16 %v7876, %v7875
        %v7899 = vpack.c.b16 %v7878, %v7877
        %v7900 = vpack.c.b16 %v7880, %v7879
        %v7901 = vpack.c.b16 %v7882, %v7881
        %v7902 = vpack.c.b16 %v7884, %v7883
        %v7903 = vpack.c.b16 %v7886, %v7885
        %v7904 = vpack.c.b16 %v7888, %v7887
        %v7906 = vsel %vm434, %v7889, 0
        %v7909 = vsel %vm434, %v7890, 0
        %v7912 = vsel %vm434, %v7891, 0
        %v7915 = vsel %vm434, %v7892, 0
        %v7918 = vsel %vm434, %v7893, 0
        %v7921 = vsel %vm434, %v7894, 0
        %v7924 = vsel %vm434, %v7895, 0
        %v7927 = vsel %vm434, %v7896, 0
        %v7930 = vsel %vm434, %v7897, 0
        %v7933 = vsel %vm434, %v7898, 0
        %v7936 = vsel %vm434, %v7899, 0
        %v7939 = vsel %vm434, %v7900, 0
        %v7942 = vsel %vm434, %v7901, 0
        %v7945 = vsel %vm434, %v7902, 0
        %v7948 = vsel %vm434, %v7903, 0
        %v7951 = vsel %vm434, %v7904, 0
        %7953 = vmatprep.subr.bf16.mxu0 %v7734
        %7954 = vmatpush1.bf16.msra.mxu0 %v7733
        %7955 = vmatprep.subr.bf16.mxu0 0
        %7956 = vmatpush1.bf16.msra.mxu0 0
        %7957 = vmatprep.subr.bf16.mxu0 0
        %7958 = vmatpush1.bf16.msra.mxu0 0
        %7959 = vmatprep.subr.bf16.mxu0 0
        %7960 = vmatpush1.bf16.msra.mxu0 0
        %7961 = vmatprep.subr.bf16.mxu0 0
        %7962 = vmatpush1.bf16.msra.mxu0 0
        %7963 = vmatprep.subr.bf16.mxu0 0
        %7964 = vmatpush1.bf16.msra.mxu0 0
        %7965 = vmatprep.subr.bf16.mxu0 0
        %7966 = vmatpush1.bf16.msra.mxu0 0
        %7967 = vmatprep.subr.bf16.mxu0 0
        %7968 = vmatpush1.bf16.msra.mxu0 0
        %7969 = vmatprep.subr.bf16.mxu0 0
        %7970 = vmatpush1.bf16.msra.mxu0 0
        %7971 = vmatprep.subr.bf16.mxu0 0
        %7972 = vmatpush1.bf16.msra.mxu0 0
        %7973 = vmatprep.subr.bf16.mxu0 0
        %7974 = vmatpush1.bf16.msra.mxu0 0
        %7975 = vmatprep.subr.bf16.mxu0 0
        %7976 = vmatpush1.bf16.msra.mxu0 0
        %7977 = vmatprep.subr.bf16.mxu0 0
        %7978 = vmatpush1.bf16.msra.mxu0 0
        %7979 = vmatprep.subr.bf16.mxu0 0
        %7980 = vmatpush1.bf16.msra.mxu0 0
        %7981 = vmatprep.subr.bf16.mxu0 0
        %7982 = vmatpush1.bf16.msra.mxu0 0
        %7983 = vmatprep.subr.bf16.mxu0 0
        %7984 = vmatpush1.bf16.msra.mxu0 0
        %7985 = vmatprep.mubr.bf16.mxu0 0
        %7986 = vmatmul.mubr.bf16.gmra.mrb[0].mxu0 %v7906
        %v7987 = vpop.f32.mrb[0].mxu0
        %v7988 = vadd.f32 0.0, %v7987
        %v7989 = vpop.f32.mrb[0].mxu0
        %v7990 = vadd.f32 0.0, %v7989
        %v7991 = vpop.f32.mrb[0].mxu0
        %v7992 = vadd.f32 0.0, %v7991
        %v7993 = vpop.f32.mrb[0].mxu0
        %v7994 = vadd.f32 0.0, %v7993
        %7995 = vmatprep.mubr.bf16.mxu0 0
        %7996 = vmatmul.mubr.bf16.gmra.mrb[0].mxu0 %v7909
        %v7997 = vpop.f32.mrb[0].mxu0
        %v7998 = vadd.f32 0.0, %v7997
        %v7999 = vpop.f32.mrb[0].mxu0
        %v8000 = vadd.f32 0.0, %v7999
        %v8001 = vpop.f32.mrb[0].mxu0
        %v8002 = vadd.f32 0.0, %v8001
        %v8003 = vpop.f32.mrb[0].mxu0
        %v8004 = vadd.f32 0.0, %v8003
        %8005 = vmatprep.mubr.bf16.mxu0 0
        %8006 = vmatmul.mubr.bf16.gmra.mrb[0].mxu0 %v7912
        %v8007 = vpop.f32.mrb[0].mxu0
        %v8008 = vadd.f32 0.0, %v8007
        %v8009 = vpop.f32.mrb[0].mxu0
        %v8010 = vadd.f32 0.0, %v8009
        %v8011 = vpop.f32.mrb[0].mxu0
        %v8012 = vadd.f32 0.0, %v8011
        %v8013 = vpop.f32.mrb[0].mxu0
        %v8014 = vadd.f32 0.0, %v8013
        %8015 = vmatprep.mubr.bf16.mxu0 0
        %8016 = vmatmul.mubr.bf16.gmra.mrb[0].mxu0 %v7915
        %v8017 = vpop.f32.mrb[0].mxu0
        %v8018 = vadd.f32 0.0, %v8017
        %v8019 = vpop.f32.mrb[0].mxu0
        %v8020 = vadd.f32 0.0, %v8019
        %v8021 = vpop.f32.mrb[0].mxu0
        %v8022 = vadd.f32 0.0, %v8021
        %v8023 = vpop.f32.mrb[0].mxu0
        %v8024 = vadd.f32 0.0, %v8023
        %8025 = vmatprep.mubr.bf16.mxu0 0
        %8026 = vmatmul.mubr.bf16.gmra.mrb[0].mxu0 %v7918
        %v8027 = vpop.f32.mrb[0].mxu0
        %v8028 = vadd.f32 0.0, %v8027
        %v8029 = vpop.f32.mrb[0].mxu0
        %v8030 = vadd.f32 0.0, %v8029
        %v8031 = vpop.f32.mrb[0].mxu0
        %v8032 = vadd.f32 0.0, %v8031
        %v8033 = vpop.f32.mrb[0].mxu0
        %v8034 = vadd.f32 0.0, %v8033
        %8035 = vmatprep.mubr.bf16.mxu0 0
        %8036 = vmatmul.mubr.bf16.gmra.mrb[0].mxu0 %v7921
        %v8037 = vpop.f32.mrb[0].mxu0
        %v8038 = vadd.f32 0.0, %v8037
        %v8039 = vpop.f32.mrb[0].mxu0
        %v8040 = vadd.f32 0.0, %v8039
        %v8041 = vpop.f32.mrb[0].mxu0
        %v8042 = vadd.f32 0.0, %v8041
        %v8043 = vpop.f32.mrb[0].mxu0
        %v8044 = vadd.f32 0.0, %v8043
        %8045 = vmatprep.mubr.bf16.mxu0 0
        %8046 = vmatmul.mubr.bf16.gmra.mrb[0].mxu0 %v7924
        %v8047 = vpop.f32.mrb[0].mxu0
        %v8048 = vadd.f32 0.0, %v8047
        %v8049 = vpop.f32.mrb[0].mxu0
        %v8050 = vadd.f32 0.0, %v8049
        %v8051 = vpop.f32.mrb[0].mxu0
        %v8052 = vadd.f32 0.0, %v8051
        %v8053 = vpop.f32.mrb[0].mxu0
        %v8054 = vadd.f32 0.0, %v8053
        %8055 = vmatprep.mubr.bf16.mxu0 0
        %8056 = vmatmul.mubr.bf16.gmra.mrb[0].mxu0 %v7927
        %v8057 = vpop.f32.mrb[0].mxu0
        %v8058 = vadd.f32 0.0, %v8057
        %v8059 = vpop.f32.mrb[0].mxu0
        %v8060 = vadd.f32 0.0, %v8059
        %v8061 = vpop.f32.mrb[0].mxu0
        %v8062 = vadd.f32 0.0, %v8061
        %v8063 = vpop.f32.mrb[0].mxu0
        %v8064 = vadd.f32 0.0, %v8063
        %8065 = vmatprep.mubr.bf16.mxu0 0
        %8066 = vmatmul.mubr.bf16.gmra.mrb[0].mxu0 %v7930
        %v8067 = vpop.f32.mrb[0].mxu0
        %v8068 = vadd.f32 0.0, %v8067
        %v8069 = vpop.f32.mrb[0].mxu0
        %v8070 = vadd.f32 0.0, %v8069
        %v8071 = vpop.f32.mrb[0].mxu0
        %v8072 = vadd.f32 0.0, %v8071
        %v8073 = vpop.f32.mrb[0].mxu0
        %v8074 = vadd.f32 0.0, %v8073
        %8075 = vmatprep.mubr.bf16.mxu0 0
        %8076 = vmatmul.mubr.bf16.gmra.mrb[0].mxu0 %v7933
        %v8077 = vpop.f32.mrb[0].mxu0
        %v8078 = vadd.f32 0.0, %v8077
        %v8079 = vpop.f32.mrb[0].mxu0
        %v8080 = vadd.f32 0.0, %v8079
        %v8081 = vpop.f32.mrb[0].mxu0
        %v8082 = vadd.f32 0.0, %v8081
        %v8083 = vpop.f32.mrb[0].mxu0
        %v8084 = vadd.f32 0.0, %v8083
        %8085 = vmatprep.mubr.bf16.mxu0 0
        %8086 = vmatmul.mubr.bf16.gmra.mrb[0].mxu0 %v7936
        %v8087 = vpop.f32.mrb[0].mxu0
        %v8088 = vadd.f32 0.0, %v8087
        %v8089 = vpop.f32.mrb[0].mxu0
        %v8090 = vadd.f32 0.0, %v8089
        %v8091 = vpop.f32.mrb[0].mxu0
        %v8092 = vadd.f32 0.0, %v8091
        %v8093 = vpop.f32.mrb[0].mxu0
        %v8094 = vadd.f32 0.0, %v8093
        %8095 = vmatprep.mubr.bf16.mxu0 0
        %8096 = vmatmul.mubr.bf16.gmra.mrb[0].mxu0 %v7939
        %v8097 = vpop.f32.mrb[0].mxu0
        %v8098 = vadd.f32 0.0, %v8097
        %v8099 = vpop.f32.mrb[0].mxu0
        %v8100 = vadd.f32 0.0, %v8099
        %v8101 = vpop.f32.mrb[0].mxu0
        %v8102 = vadd.f32 0.0, %v8101
        %v8103 = vpop.f32.mrb[0].mxu0
        %v8104 = vadd.f32 0.0, %v8103
        %8105 = vmatprep.mubr.bf16.mxu0 0
        %8106 = vmatmul.mubr.bf16.gmra.mrb[0].mxu0 %v7942
        %v8107 = vpop.f32.mrb[0].mxu0
        %v8108 = vadd.f32 0.0, %v8107
        %v8109 = vpop.f32.mrb[0].mxu0
        %v8110 = vadd.f32 0.0, %v8109
        %v8111 = vpop.f32.mrb[0].mxu0
        %v8112 = vadd.f32 0.0, %v8111
        %v8113 = vpop.f32.mrb[0].mxu0
        %v8114 = vadd.f32 0.0, %v8113
        %8115 = vmatprep.mubr.bf16.mxu0 0
        %8116 = vmatmul.mubr.bf16.gmra.mrb[0].mxu0 %v7945
        %v8117 = vpop.f32.mrb[0].mxu0
        %v8118 = vadd.f32 0.0, %v8117
        %v8119 = vpop.f32.mrb[0].mxu0
        %v8120 = vadd.f32 0.0, %v8119
        %v8121 = vpop.f32.mrb[0].mxu0
        %v8122 = vadd.f32 0.0, %v8121
        %v8123 = vpop.f32.mrb[0].mxu0
        %v8124 = vadd.f32 0.0, %v8123
        %8125 = vmatprep.mubr.bf16.mxu0 0
        %8126 = vmatmul.mubr.bf16.gmra.mrb[0].mxu0 %v7948
        %v8127 = vpop.f32.mrb[0].mxu0
        %v8128 = vadd.f32 0.0, %v8127
        %v8129 = vpop.f32.mrb[0].mxu0
        %v8130 = vadd.f32 0.0, %v8129
        %v8131 = vpop.f32.mrb[0].mxu0
        %v8132 = vadd.f32 0.0, %v8131
        %v8133 = vpop.f32.mrb[0].mxu0
        %v8134 = vadd.f32 0.0, %v8133
        %8135 = vmatprep.mubr.bf16.mxu0 0
        %8136 = vmatmul.mubr.bf16.gmra.mrb[0].mxu0 %v7951
        %v8137 = vpop.f32.mrb[0].mxu0
        %v8138 = vadd.f32 0.0, %v8137
        %v8139 = vpop.f32.mrb[0].mxu0
        %v8140 = vadd.f32 0.0, %v8139
        %v8141 = vpop.f32.mrb[0].mxu0
        %v8142 = vadd.f32 0.0, %v8141
        %v8143 = vpop.f32.mrb[0].mxu0
        %v8144 = vadd.f32 0.0, %v8143
        %8145 = vdwg.mxu0
        %v8146 = vpack.c.bf16 %v7992, %v7988
        %v8147 = vpack.c.bf16 %v7994, %v7990
        %v8148 = vpack.c.bf16 %v8002, %v7998
        %v8149 = vpack.c.bf16 %v8004, %v8000
        %v8150 = vpack.c.bf16 %v8012, %v8008
        %v8151 = vpack.c.bf16 %v8014, %v8010
        %v8152 = vpack.c.bf16 %v8022, %v8018
        %v8153 = vpack.c.bf16 %v8024, %v8020
        %v8154 = vpack.c.bf16 %v8032, %v8028
        %v8155 = vpack.c.bf16 %v8034, %v8030
        %v8156 = vpack.c.bf16 %v8042, %v8038
        %v8157 = vpack.c.bf16 %v8044, %v8040
        %v8158 = vpack.c.bf16 %v8052, %v8048
        %v8159 = vpack.c.bf16 %v8054, %v8050
        %v8160 = vpack.c.bf16 %v8062, %v8058
        %v8161 = vpack.c.bf16 %v8064, %v8060
        %v8162 = vpack.c.bf16 %v8072, %v8068
        %v8163 = vpack.c.bf16 %v8074, %v8070
        %v8164 = vpack.c.bf16 %v8082, %v8078
        %v8165 = vpack.c.bf16 %v8084, %v8080
        %v8166 = vpack.c.bf16 %v8092, %v8088
        %v8167 = vpack.c.bf16 %v8094, %v8090
        %v8168 = vpack.c.bf16 %v8102, %v8098
        %v8169 = vpack.c.bf16 %v8104, %v8100
        %v8170 = vpack.c.bf16 %v8112, %v8108
        %v8171 = vpack.c.bf16 %v8114, %v8110
        %v8172 = vpack.c.bf16 %v8122, %v8118
        %v8173 = vpack.c.bf16 %v8124, %v8120
        %v8174 = vpack.c.bf16 %v8132, %v8128
        %v8175 = vpack.c.bf16 %v8134, %v8130
        %v8176 = vpack.c.bf16 %v8142, %v8138
        %v8177 = vpack.c.bf16 %v8144, %v8140
        %v8178 = vmul.bf16 %v8146, %v7791
        %v8179 = vmul.bf16 %v8147, %v7792
        %v8180 = vmul.bf16 %v8148, %v7791
        %v8181 = vmul.bf16 %v8149, %v7792
        %v8182 = vmul.bf16 %v8150, %v7791
        %v8183 = vmul.bf16 %v8151, %v7792
        %v8184 = vmul.bf16 %v8152, %v7791
        %v8185 = vmul.bf16 %v8153, %v7792
        %v8186 = vmul.bf16 %v8154, %v7791
        %v8187 = vmul.bf16 %v8155, %v7792
        %v8188 = vmul.bf16 %v8156, %v7791
        %v8189 = vmul.bf16 %v8157, %v7792
        %v8190 = vmul.bf16 %v8158, %v7791
        %v8191 = vmul.bf16 %v8159, %v7792
        %v8192 = vmul.bf16 %v8160, %v7791
        %v8193 = vmul.bf16 %v8161, %v7792
        %v8194 = vmul.bf16 %v8162, %v7791
        %v8195 = vmul.bf16 %v8163, %v7792
        %v8196 = vmul.bf16 %v8164, %v7791
        %v8197 = vmul.bf16 %v8165, %v7792
        %v8198 = vmul.bf16 %v8166, %v7791
        %v8199 = vmul.bf16 %v8167, %v7792
        %v8200 = vmul.bf16 %v8168, %v7791
        %v8201 = vmul.bf16 %v8169, %v7792
        %v8202 = vmul.bf16 %v8170, %v7791
        %v8203 = vmul.bf16 %v8171, %v7792
        %v8204 = vmul.bf16 %v8172, %v7791
        %v8205 = vmul.bf16 %v8173, %v7792
        %v8206 = vmul.bf16 %v8174, %v7791
        %v8207 = vmul.bf16 %v8175, %v7792
        %v8208 = vmul.bf16 %v8176, %v7791
        %v8209 = vmul.bf16 %v8177, %v7792
        %v8210 = vunpack.c.l.bf16 %v8178
        %v8211 = vunpack.c.l.bf16 %v8179
        %v8212 = vunpack.c.h.bf16 %v8178
        %v8213 = vunpack.c.h.bf16 %v8179
        %v8214 = vunpack.c.l.bf16 %v8180
        %v8215 = vunpack.c.l.bf16 %v8181
        %v8216 = vunpack.c.h.bf16 %v8180
        %v8217 = vunpack.c.h.bf16 %v8181
        %v8218 = vunpack.c.l.bf16 %v8182
        %v8219 = vunpack.c.l.bf16 %v8183
        %v8220 = vunpack.c.h.bf16 %v8182
        %v8221 = vunpack.c.h.bf16 %v8183
        %v8222 = vunpack.c.l.bf16 %v8184
        %v8223 = vunpack.c.l.bf16 %v8185
        %v8224 = vunpack.c.h.bf16 %v8184
        %v8225 = vunpack.c.h.bf16 %v8185
        %v8226 = vunpack.c.l.bf16 %v8186
        %v8227 = vunpack.c.l.bf16 %v8187
        %v8228 = vunpack.c.h.bf16 %v8186
        %v8229 = vunpack.c.h.bf16 %v8187
        %v8230 = vunpack.c.l.bf16 %v8188
        %v8231 = vunpack.c.l.bf16 %v8189
        %v8232 = vunpack.c.h.bf16 %v8188
        %v8233 = vunpack.c.h.bf16 %v8189
        %v8234 = vunpack.c.l.bf16 %v8190
        %v8235 = vunpack.c.l.bf16 %v8191
        %v8236 = vunpack.c.h.bf16 %v8190
        %v8237 = vunpack.c.h.bf16 %v8191
        %v8238 = vunpack.c.l.bf16 %v8192
        %v8239 = vunpack.c.l.bf16 %v8193
        %v8240 = vunpack.c.h.bf16 %v8192
        %v8241 = vunpack.c.h.bf16 %v8193
        %v8242 = vunpack.c.l.bf16 %v8194
        %v8243 = vunpack.c.l.bf16 %v8195
        %v8244 = vunpack.c.h.bf16 %v8194
        %v8245 = vunpack.c.h.bf16 %v8195
        %v8246 = vunpack.c.l.bf16 %v8196
        %v8247 = vunpack.c.l.bf16 %v8197
        %v8248 = vunpack.c.h.bf16 %v8196
        %v8249 = vunpack.c.h.bf16 %v8197
        %v8250 = vunpack.c.l.bf16 %v8198
        %v8251 = vunpack.c.l.bf16 %v8199
        %v8252 = vunpack.c.h.bf16 %v8198
        %v8253 = vunpack.c.h.bf16 %v8199
        %v8254 = vunpack.c.l.bf16 %v8200
        %v8255 = vunpack.c.l.bf16 %v8201
        %v8256 = vunpack.c.h.bf16 %v8200
        %v8257 = vunpack.c.h.bf16 %v8201
        %v8258 = vunpack.c.l.bf16 %v8202
        %v8259 = vunpack.c.l.bf16 %v8203
        %v8260 = vunpack.c.h.bf16 %v8202
        %v8261 = vunpack.c.h.bf16 %v8203
        %v8262 = vunpack.c.l.bf16 %v8204
        %v8263 = vunpack.c.l.bf16 %v8205
        %v8264 = vunpack.c.h.bf16 %v8204
        %v8265 = vunpack.c.h.bf16 %v8205
        %v8266 = vunpack.c.l.bf16 %v8206
        %v8267 = vunpack.c.l.bf16 %v8207
        %v8268 = vunpack.c.h.bf16 %v8206
        %v8269 = vunpack.c.h.bf16 %v8207
        %v8270 = vunpack.c.l.bf16 %v8208
        %v8271 = vunpack.c.l.bf16 %v8209
        %v8272 = vunpack.c.h.bf16 %v8208
        %v8273 = vunpack.c.h.bf16 %v8209
        %v8274 = vadd.f32 %v8210, %v8212
        %v8275 = vrot.slane %v8274, 4
        %v8276 = vadd.f32 %v8274, %v8275
        %v8277 = vrot.slane %v8276, 2
        %v8278 = vadd.f32 %v8276, %v8277
        %v8279 = vrot.slane %v8278, 1
        %v8280 = vadd.f32 %v8278, %v8279
        %v8281 = vadd.f32 %v8211, %v8213
        %v8282 = vrot.slane %v8281, 4
        %v8283 = vadd.f32 %v8281, %v8282
        %v8284 = vrot.slane %v8283, 2
        %v8285 = vadd.f32 %v8283, %v8284
        %v8286 = vrot.slane %v8285, 1
        %v8287 = vadd.f32 %v8285, %v8286
        %v8288 = vadd.f32 %v8214, %v8216
        %v8289 = vrot.slane %v8288, 4
        %v8290 = vadd.f32 %v8288, %v8289
        %v8291 = vrot.slane %v8290, 2
        %v8292 = vadd.f32 %v8290, %v8291
        %v8293 = vrot.slane %v8292, 1
        %v8294 = vadd.f32 %v8292, %v8293
        %v8295 = vadd.f32 %v8215, %v8217
        %v8296 = vrot.slane %v8295, 4
        %v8297 = vadd.f32 %v8295, %v8296
        %v8298 = vrot.slane %v8297, 2
        %v8299 = vadd.f32 %v8297, %v8298
        %v8300 = vrot.slane %v8299, 1
        %v8301 = vadd.f32 %v8299, %v8300
        %v8302 = vadd.f32 %v8218, %v8220
        %v8303 = vrot.slane %v8302, 4
        %v8304 = vadd.f32 %v8302, %v8303
        %v8305 = vrot.slane %v8304, 2
        %v8306 = vadd.f32 %v8304, %v8305
        %v8307 = vrot.slane %v8306, 1
        %v8308 = vadd.f32 %v8306, %v8307
        %v8309 = vadd.f32 %v8219, %v8221
        %v8310 = vrot.slane %v8309, 4
        %v8311 = vadd.f32 %v8309, %v8310
        %v8312 = vrot.slane %v8311, 2
        %v8313 = vadd.f32 %v8311, %v8312
        %v8314 = vrot.slane %v8313, 1
        %v8315 = vadd.f32 %v8313, %v8314
        %v8316 = vadd.f32 %v8222, %v8224
        %v8317 = vrot.slane %v8316, 4
        %v8318 = vadd.f32 %v8316, %v8317
        %v8319 = vrot.slane %v8318, 2
        %v8320 = vadd.f32 %v8318, %v8319
        %v8321 = vrot.slane %v8320, 1
        %v8322 = vadd.f32 %v8320, %v8321
        %v8323 = vadd.f32 %v8223, %v8225
        %v8324 = vrot.slane %v8323, 4
        %v8325 = vadd.f32 %v8323, %v8324
        %v8326 = vrot.slane %v8325, 2
        %v8327 = vadd.f32 %v8325, %v8326
        %v8328 = vrot.slane %v8327, 1
        %v8329 = vadd.f32 %v8327, %v8328
        %v8330 = vadd.f32 %v8226, %v8228
        %v8331 = vrot.slane %v8330, 4
        %v8332 = vadd.f32 %v8330, %v8331
        %v8333 = vrot.slane %v8332, 2
        %v8334 = vadd.f32 %v8332, %v8333
        %v8335 = vrot.slane %v8334, 1
        %v8336 = vadd.f32 %v8334, %v8335
        %v8337 = vadd.f32 %v8227, %v8229
        %v8338 = vrot.slane %v8337, 4
        %v8339 = vadd.f32 %v8337, %v8338
        %v8340 = vrot.slane %v8339, 2
        %v8341 = vadd.f32 %v8339, %v8340
        %v8342 = vrot.slane %v8341, 1
        %v8343 = vadd.f32 %v8341, %v8342
        %v8344 = vadd.f32 %v8230, %v8232
        %v8345 = vrot.slane %v8344, 4
        %v8346 = vadd.f32 %v8344, %v8345
        %v8347 = vrot.slane %v8346, 2
        %v8348 = vadd.f32 %v8346, %v8347
        %v8349 = vrot.slane %v8348, 1
        %v8350 = vadd.f32 %v8348, %v8349
        %v8351 = vadd.f32 %v8231, %v8233
        %v8352 = vrot.slane %v8351, 4
        %v8353 = vadd.f32 %v8351, %v8352
        %v8354 = vrot.slane %v8353, 2
        %v8355 = vadd.f32 %v8353, %v8354
        %v8356 = vrot.slane %v8355, 1
        %v8357 = vadd.f32 %v8355, %v8356
        %v8358 = vadd.f32 %v8234, %v8236
        %v8359 = vrot.slane %v8358, 4
        %v8360 = vadd.f32 %v8358, %v8359
        %v8361 = vrot.slane %v8360, 2
        %v8362 = vadd.f32 %v8360, %v8361
        %v8363 = vrot.slane %v8362, 1
        %v8364 = vadd.f32 %v8362, %v8363
        %v8365 = vadd.f32 %v8235, %v8237
        %v8366 = vrot.slane %v8365, 4
        %v8367 = vadd.f32 %v8365, %v8366
        %v8368 = vrot.slane %v8367, 2
        %v8369 = vadd.f32 %v8367, %v8368
        %v8370 = vrot.slane %v8369, 1
        %v8371 = vadd.f32 %v8369, %v8370
        %v8372 = vadd.f32 %v8238, %v8240
        %v8373 = vrot.slane %v8372, 4
        %v8374 = vadd.f32 %v8372, %v8373
        %v8375 = vrot.slane %v8374, 2
        %v8376 = vadd.f32 %v8374, %v8375
        %v8377 = vrot.slane %v8376, 1
        %v8378 = vadd.f32 %v8376, %v8377
        %v8379 = vadd.f32 %v8239, %v8241
        %v8380 = vrot.slane %v8379, 4
        %v8381 = vadd.f32 %v8379, %v8380
        %v8382 = vrot.slane %v8381, 2
        %v8383 = vadd.f32 %v8381, %v8382
        %v8384 = vrot.slane %v8383, 1
        %v8385 = vadd.f32 %v8383, %v8384
        %v8386 = vadd.f32 %v8242, %v8244
        %v8387 = vrot.slane %v8386, 4
        %v8388 = vadd.f32 %v8386, %v8387
        %v8389 = vrot.slane %v8388, 2
        %v8390 = vadd.f32 %v8388, %v8389
        %v8391 = vrot.slane %v8390, 1
        %v8392 = vadd.f32 %v8390, %v8391
        %v8393 = vadd.f32 %v8243, %v8245
        %v8394 = vrot.slane %v8393, 4
        %v8395 = vadd.f32 %v8393, %v8394
        %v8396 = vrot.slane %v8395, 2
        %v8397 = vadd.f32 %v8395, %v8396
        %v8398 = vrot.slane %v8397, 1
        %v8399 = vadd.f32 %v8397, %v8398
        %v8400 = vadd.f32 %v8246, %v8248
        %v8401 = vrot.slane %v8400, 4
        %v8402 = vadd.f32 %v8400, %v8401
        %v8403 = vrot.slane %v8402, 2
        %v8404 = vadd.f32 %v8402, %v8403
        %v8405 = vrot.slane %v8404, 1
        %v8406 = vadd.f32 %v8404, %v8405
        %v8407 = vadd.f32 %v8247, %v8249
        %v8408 = vrot.slane %v8407, 4
        %v8409 = vadd.f32 %v8407, %v8408
        %v8410 = vrot.slane %v8409, 2
        %v8411 = vadd.f32 %v8409, %v8410
        %v8412 = vrot.slane %v8411, 1
        %v8413 = vadd.f32 %v8411, %v8412
        %v8414 = vadd.f32 %v8250, %v8252
        %v8415 = vrot.slane %v8414, 4
        %v8416 = vadd.f32 %v8414, %v8415
        %v8417 = vrot.slane %v8416, 2
        %v8418 = vadd.f32 %v8416, %v8417
        %v8419 = vrot.slane %v8418, 1
        %v8420 = vadd.f32 %v8418, %v8419
        %v8421 = vadd.f32 %v8251, %v8253
        %v8422 = vrot.slane %v8421, 4
        %v8423 = vadd.f32 %v8421, %v8422
        %v8424 = vrot.slane %v8423, 2
        %v8425 = vadd.f32 %v8423, %v8424
        %v8426 = vrot.slane %v8425, 1
        %v8427 = vadd.f32 %v8425, %v8426
        %v8428 = vadd.f32 %v8254, %v8256
        %v8429 = vrot.slane %v8428, 4
        %v8430 = vadd.f32 %v8428, %v8429
        %v8431 = vrot.slane %v8430, 2
        %v8432 = vadd.f32 %v8430, %v8431
        %v8433 = vrot.slane %v8432, 1
        %v8434 = vadd.f32 %v8432, %v8433
        %v8435 = vadd.f32 %v8255, %v8257
        %v8436 = vrot.slane %v8435, 4
        %v8437 = vadd.f32 %v8435, %v8436
        %v8438 = vrot.slane %v8437, 2
        %v8439 = vadd.f32 %v8437, %v8438
        %v8440 = vrot.slane %v8439, 1
        %v8441 = vadd.f32 %v8439, %v8440
        %v8442 = vadd.f32 %v8258, %v8260
        %v8443 = vrot.slane %v8442, 4
        %v8444 = vadd.f32 %v8442, %v8443
        %v8445 = vrot.slane %v8444, 2
        %v8446 = vadd.f32 %v8444, %v8445
        %v8447 = vrot.slane %v8446, 1
        %v8448 = vadd.f32 %v8446, %v8447
        %v8449 = vadd.f32 %v8259, %v8261
        %v8450 = vrot.slane %v8449, 4
        %v8451 = vadd.f32 %v8449, %v8450
        %v8452 = vrot.slane %v8451, 2
        %v8453 = vadd.f32 %v8451, %v8452
        %v8454 = vrot.slane %v8453, 1
        %v8455 = vadd.f32 %v8453, %v8454
        %v8456 = vadd.f32 %v8262, %v8264
        %v8457 = vrot.slane %v8456, 4
        %v8458 = vadd.f32 %v8456, %v8457
        %v8459 = vrot.slane %v8458, 2
        %v8460 = vadd.f32 %v8458, %v8459
        %v8461 = vrot.slane %v8460, 1
        %v8462 = vadd.f32 %v8460, %v8461
        %v8463 = vadd.f32 %v8263, %v8265
        %v8464 = vrot.slane %v8463, 4
        %v8465 = vadd.f32 %v8463, %v8464
        %v8466 = vrot.slane %v8465, 2
        %v8467 = vadd.f32 %v8465, %v8466
        %v8468 = vrot.slane %v8467, 1
        %v8469 = vadd.f32 %v8467, %v8468
        %v8470 = vadd.f32 %v8266, %v8268
        %v8471 = vrot.slane %v8470, 4
        %v8472 = vadd.f32 %v8470, %v8471
        %v8473 = vrot.slane %v8472, 2
        %v8474 = vadd.f32 %v8472, %v8473
        %v8475 = vrot.slane %v8474, 1
        %v8476 = vadd.f32 %v8474, %v8475
        %v8477 = vadd.f32 %v8267, %v8269
        %v8478 = vrot.slane %v8477, 4
        %v8479 = vadd.f32 %v8477, %v8478
        %v8480 = vrot.slane %v8479, 2
        %v8481 = vadd.f32 %v8479, %v8480
        %v8482 = vrot.slane %v8481, 1
        %v8483 = vadd.f32 %v8481, %v8482
        %v8484 = vadd.f32 %v8270, %v8272
        %v8485 = vrot.slane %v8484, 4
        %v8486 = vadd.f32 %v8484, %v8485
        %v8487 = vrot.slane %v8486, 2
        %v8488 = vadd.f32 %v8486, %v8487
        %v8489 = vrot.slane %v8488, 1
        %v8490 = vadd.f32 %v8488, %v8489
        %v8491 = vadd.f32 %v8271, %v8273
        %v8492 = vrot.slane %v8491, 4
        %v8493 = vadd.f32 %v8491, %v8492
        %v8494 = vrot.slane %v8493, 2
        %v8495 = vadd.f32 %v8493, %v8494
        %v8496 = vrot.slane %v8495, 1
        %v8497 = vadd.f32 %v8495, %v8496
        %v8498 = vpack.c.bf16 %v8280, %v8280
        %v8499 = vpack.c.bf16 %v8287, %v8287
        %v8500 = vpack.c.bf16 %v8294, %v8294
        %v8501 = vpack.c.bf16 %v8301, %v8301
        %v8502 = vpack.c.bf16 %v8308, %v8308
        %v8503 = vpack.c.bf16 %v8315, %v8315
        %v8504 = vpack.c.bf16 %v8322, %v8322
        %v8505 = vpack.c.bf16 %v8329, %v8329
        %v8506 = vpack.c.bf16 %v8336, %v8336
        %v8507 = vpack.c.bf16 %v8343, %v8343
        %v8508 = vpack.c.bf16 %v8350, %v8350
        %v8509 = vpack.c.bf16 %v8357, %v8357
        %v8510 = vpack.c.bf16 %v8364, %v8364
        %v8511 = vpack.c.bf16 %v8371, %v8371
        %v8512 = vpack.c.bf16 %v8378, %v8378
        %v8513 = vpack.c.bf16 %v8385, %v8385
        %v8514 = vpack.c.bf16 %v8392, %v8392
        %v8515 = vpack.c.bf16 %v8399, %v8399
        %v8516 = vpack.c.bf16 %v8406, %v8406
        %v8517 = vpack.c.bf16 %v8413, %v8413
        %v8518 = vpack.c.bf16 %v8420, %v8420
        %v8519 = vpack.c.bf16 %v8427, %v8427
        %v8520 = vpack.c.bf16 %v8434, %v8434
        %v8521 = vpack.c.bf16 %v8441, %v8441
        %v8522 = vpack.c.bf16 %v8448, %v8448
        %v8523 = vpack.c.bf16 %v8455, %v8455
        %v8524 = vpack.c.bf16 %v8462, %v8462
        %v8525 = vpack.c.bf16 %v8469, %v8469
        %v8526 = vpack.c.bf16 %v8476, %v8476
        %v8527 = vpack.c.bf16 %v8483, %v8483
        %v8528 = vpack.c.bf16 %v8490, %v8490
        %v8529 = vpack.c.bf16 %v8497, %v8497
        %v8562 = vunpack.c.l.b16 %v8498
        %v8563 = vunpack.c.l.b16 %v8499
        %v8564 = vunpack.c.l.b16 %v8500
        %v8565 = vunpack.c.l.b16 %v8501
        %v8566 = vunpack.c.l.b16 %v8502
        %v8567 = vunpack.c.l.b16 %v8503
        %v8568 = vunpack.c.l.b16 %v8504
        %v8569 = vunpack.c.l.b16 %v8505
        %v8570 = vunpack.c.l.b16 %v8506
        %v8571 = vunpack.c.l.b16 %v8507
        %v8572 = vunpack.c.l.b16 %v8508
        %v8573 = vunpack.c.l.b16 %v8509
        %v8574 = vunpack.c.l.b16 %v8510
        %v8575 = vunpack.c.l.b16 %v8511
        %v8576 = vunpack.c.l.b16 %v8512
        %v8577 = vunpack.c.l.b16 %v8513
        %v8578 = vunpack.c.l.b16 %v8514
        %v8579 = vunpack.c.l.b16 %v8515
        %v8580 = vunpack.c.l.b16 %v8516
        %v8581 = vunpack.c.l.b16 %v8517
        %v8582 = vunpack.c.l.b16 %v8518
        %v8583 = vunpack.c.l.b16 %v8519
        %v8584 = vunpack.c.l.b16 %v8520
        %v8585 = vunpack.c.l.b16 %v8521
        %v8586 = vunpack.c.l.b16 %v8522
        %v8587 = vunpack.c.l.b16 %v8523
        %v8588 = vunpack.c.l.b16 %v8524
        %v8589 = vunpack.c.l.b16 %v8525
        %v8590 = vunpack.c.l.b16 %v8526
        %v8591 = vunpack.c.l.b16 %v8527
        %v8592 = vunpack.c.l.b16 %v8528
        %v8593 = vunpack.c.l.b16 %v8529
        %v8594 = vsel %vm1124, %v8564, %v8562
        %v8595 = vsel %vm1126, %v8566, %v8594
        %v8596 = vsel %vm1128, %v8568, %v8595
        %v8597 = vsel %vm1130, %v8570, %v8596
        %v8598 = vsel %vm1132, %v8572, %v8597
        %v8599 = vsel %vm1134, %v8574, %v8598
        %v8600 = vsel %vm1136, %v8576, %v8599
        %v8601 = vsel %vm1124, %v8565, %v8563
        %v8602 = vsel %vm1126, %v8567, %v8601
        %v8603 = vsel %vm1128, %v8569, %v8602
        %v8604 = vsel %vm1130, %v8571, %v8603
        %v8605 = vsel %vm1132, %v8573, %v8604
        %v8606 = vsel %vm1134, %v8575, %v8605
        %v8607 = vsel %vm1136, %v8577, %v8606
        %v8608 = vsel %vm1124, %v8580, %v8578
        %v8609 = vsel %vm1126, %v8582, %v8608
        %v8610 = vsel %vm1128, %v8584, %v8609
        %v8611 = vsel %vm1130, %v8586, %v8610
        %v8612 = vsel %vm1132, %v8588, %v8611
        %v8613 = vsel %vm1134, %v8590, %v8612
        %v8614 = vsel %vm1136, %v8592, %v8613
        %v8615 = vsel %vm1124, %v8581, %v8579
        %v8616 = vsel %vm1126, %v8583, %v8615
        %v8617 = vsel %vm1128, %v8585, %v8616
        %v8618 = vsel %vm1130, %v8587, %v8617
        %v8619 = vsel %vm1132, %v8589, %v8618
        %v8620 = vsel %vm1134, %v8591, %v8619
        %v8621 = vsel %vm1136, %v8593, %v8620
        %v8622 = vpack.c.b16 %v8614, %v8600
        %v8623 = vpack.c.b16 %v8621, %v8607
        %s8626 = scalar_lea.vmem [#allocation2], 128
        %8627 = vst [vmem:[%s8626] sm:$0xff] %v8622
        %8628 = vst [vmem:[%s8626 + $0x8] sm:$0xff] %v8623
        %v8629 = vld [vmem:[#allocation2] sm:$0xff]
        %v8630 = vld [vmem:[#allocation2 + $0x8] sm:$0xff]
        %v8631 = vld [vmem:[#allocation2 + $0x10] sm:$0xff]
        %v8632 = vld [vmem:[#allocation2 + $0x18] sm:$0xff]
        %v8633 = vld [vmem:[#allocation2 + $0x20] sm:$0xff]
        %v8634 = vld [vmem:[#allocation2 + $0x28] sm:$0xff]
        %v8635 = vld [vmem:[#allocation2 + $0x30] sm:$0xff]
        %v8636 = vld [vmem:[#allocation2 + $0x38] sm:$0xff]
        %v8637 = vld [vmem:[#allocation2 + $0x40] sm:$0xff]
        %v8638 = vld [vmem:[#allocation2 + $0x48] sm:$0xff]
        %v8639 = vld [vmem:[#allocation2 + $0x50] sm:$0xff]
        %v8640 = vld [vmem:[#allocation2 + $0x58] sm:$0xff]
        %v8641 = vld [vmem:[#allocation2 + $0x60] sm:$0xff]
        %v8642 = vld [vmem:[#allocation2 + $0x68] sm:$0xff]
        %v8643 = vld [vmem:[#allocation2 + $0x70] sm:$0xff]
        %v8644 = vld [vmem:[#allocation2 + $0x78] sm:$0xff]
        %v8645 = vld [vmem:[#allocation2 + $0x80] sm:$0xff]
        %v8646 = vld [vmem:[#allocation2 + $0x88] sm:$0xff]
        %v8647 = vld [vmem:[%s2] sm:$0xff]
        %v8649 = vunpack.c.l.b16 %v8647
        %v8650 = vunpack.c.h.b16 %v8647
        %v8651 = vpack.c.b16 %v8649, %v8649
        %v8652 = vpack.c.b16 %v8650, %v8650
        %v8655 = vsel %vm434, %v8652, 0
        %8657 = vmatprep.subr.bf16.mxu0 %v8630
        %8658 = vmatpush1.bf16.msra.mxu0 %v8629
        %8659 = vmatprep.subr.bf16.mxu0 %v8632
        %8660 = vmatpush1.bf16.msra.mxu0 %v8631
        %8661 = vmatprep.subr.bf16.mxu0 %v8634
        %8662 = vmatpush1.bf16.msra.mxu0 %v8633
        %8663 = vmatprep.subr.bf16.mxu0 %v8636
        %8664 = vmatpush1.bf16.msra.mxu0 %v8635
        %8665 = vmatprep.subr.bf16.mxu0 %v8638
        %8666 = vmatpush1.bf16.msra.mxu0 %v8637
        %8667 = vmatprep.subr.bf16.mxu0 %v8640
        %8668 = vmatpush1.bf16.msra.mxu0 %v8639
        %8669 = vmatprep.subr.bf16.mxu0 %v8642
        %8670 = vmatpush1.bf16.msra.mxu0 %v8641
        %8671 = vmatprep.subr.bf16.mxu0 %v8644
        %8672 = vmatpush1.bf16.msra.mxu0 %v8643
        %8673 = vmatprep.subr.bf16.mxu0 %v8646
        %8674 = vmatpush1.bf16.msra.mxu0 %v8645
        %8675 = vmatprep.subr.bf16.mxu0 0
        %8676 = vmatpush1.bf16.msra.mxu0 0
        %8677 = vmatprep.subr.bf16.mxu0 0
        %8678 = vmatpush1.bf16.msra.mxu0 0
        %8679 = vmatprep.subr.bf16.mxu0 0
        %8680 = vmatpush1.bf16.msra.mxu0 0
        %8681 = vmatprep.subr.bf16.mxu0 0
        %8682 = vmatpush1.bf16.msra.mxu0 0
        %8683 = vmatprep.subr.bf16.mxu0 0
        %8684 = vmatpush1.bf16.msra.mxu0 0
        %8685 = vmatprep.subr.bf16.mxu0 0
        %8686 = vmatpush1.bf16.msra.mxu0 0
        %8687 = vmatprep.subr.bf16.mxu0 0
        %8688 = vmatpush1.bf16.msra.mxu0 0
        %8689 = vmatprep.mubr.bf16.mxu0 %v8655
        %8690 = vmatmul.mubr.bf16.gmra.mrb[0].mxu0 %v8651
        %v8691 = vpop.f32.mrb[0].mxu0
        %v8692 = vadd.f32 0.0, %v8691
        %v8693 = vpop.f32.mrb[0].mxu0
        %v8694 = vadd.f32 0.0, %v8693
        %v8695 = vpop.f32.mrb[0].mxu0
        %v8696 = vpop.f32.mrb[0].mxu0
        %8697 = vdwg.mxu0
        %8698 = vst [vmem:[%s203] sm:$0xff] %v8692
        %8699 = vst [vmem:[%s203 + $0x8] sm:$0xff] %v8694
        %s8700 = sand.u32 %s114, 1
        %s8701 = scalar_lea.sflag [#allocation4], %s8700
        %s8702 = sand.u32 %s114, 1
        %s8703 = smul.addr %s8702, 16
        %s8704 = scalar_lea.vmem [#allocation3], %s8703
        // Predicated region
        $region33: #{tpu_custom_call.1} parent=31 // pred_check
          %p8705 = pneg %p124
        $region34: #{tpu_custom_call.1} parent=31 // pred_check_branch
          %8707 = sbr.rel (%p8705) target = $region36
        $region35: #{tpu_custom_call.1} parent=31 // pred_region
          %s8708 = smul.u32 2, %s22
          %s8710 = ssub.s32 256, 256
          %8711 = vsyncadd %s8701, %s8710
          %s8712 = smul.addr %s21, 2
          %s8713 = sadd.s32 %s8708, %s8712
          %s8714 = smul.addr %s8713, 128
          %s8715 = scalar_lea.hbm %s3, %s8714
          %s8717 = sshll.u32 %s8704, 4
          %s8718 = int_to_ptr.vmem [resolvable:$true] %s8717
          %8720 = dma.vmem_to_hbm [thread:$0]  %s8718, 256, %s8715, %s8701
        $region36: #{tpu_custom_call.1} parent=31 // pred_fallthru
          _
      $region32: #{tpu_custom_call.1} parent=5 // pred_fallthru
        _
      %p8721 = scmp.le.s32.totalorder 2, %s12
      // Predicated region
      $region37: #{tpu_custom_call.1} parent=5 // pred_check
        %p8722 = pneg %p8721
      $region38: #{tpu_custom_call.1} parent=5 // pred_check_branch
        %8724 = sbr.rel (%p8722) target = $region40
      $region39: #{tpu_custom_call.1} parent=5 // pred_region
        %s8725 = ssub.s32 %s12, 2
        // Predicated region
        $region41: #{tpu_custom_call.1} parent=39 // pred_check
          %p8726 = pneg %p130
        $region42: #{tpu_custom_call.1} parent=39 // pred_check_branch
          %8728 = sbr.rel (%p8726) target = $region44
        $region43: #{tpu_custom_call.1} parent=39 // pred_region
          %s8729 = sand.u32 %s115, 1
          %s8730 = scalar_lea.sflag [#allocation4], %s8729
          %s8731 = sand.u32 %s115, 1
          %s8732 = smul.addr %s8731, 16
          %s8733 = scalar_lea.vmem [#allocation3], %s8732
          %8734 = dma.done %s8730, 256
        $region44: #{tpu_custom_call.1} parent=39 // pred_fallthru
          _
      $region40: #{tpu_custom_call.1} parent=5 // pred_fallthru
        _
    $region6: #{tpu_custom_call.1} parent=1 // loop_footer
      %s16 = sadd.s32 1, %s12
    $region7: #{tpu_custom_call.1} parent=1 // loop_footer_branch
      %11 = sbr.rel target = $region3
    $region8: #{tpu_custom_call.1} parent=1 // loop_exit
      _
    %8735 = vsyncpa [#allocation4], 1
    %s8736 = scalar_lea.sflag [#allocation4], 1
    %8737 = vsyncpa %s8736, 1

</llo_original>
